<compile_context>
chip_gen: v7x
topology: tpu7x:2x2x1
jax: 0.10.0
libtpu: 0.0.40
codegen_flags: <defaults>
</compile_context>

<pallas_src>
import jax
import jax.numpy as jnp
from jax.experimental import pallas as pl
from jax.experimental.pallas import tpu as pltpu


def _round_up(x, m):
    return ((x + m - 1) // m) * m


# ---------------- Pallas kernels ----------------

def _conv_relu_pool_kernel(p_ref, w_ref, b_ref, o_ref, cbuf, hbuf):
    # One image per grid step.
    #   p_ref: (Ho*Wo, Kp) bf16 im2col patches   w_ref: (Kp, C) bf16
    #   b_ref: (1, C) f32                        o_ref: (Hp, Wp, C) bf16
    #   cbuf : VMEM (Ho*Wo, C) f32  (conv+ReLU)  hbuf: VMEM (Hp, Wo, C) f32
    Hp, Wp, C = o_ref.shape
    Wo = hbuf.shape[1]

    # Conv as a single MXU matmul, f32 accumulation, bias + ReLU fused.
    acc = jnp.dot(p_ref[...], w_ref[...], preferred_element_type=jnp.float32)
    cbuf[...] = jnp.maximum(acc + b_ref[...], 0.0)

    # MaxPool 3x3 / stride 2 (floor mode), H direction first:
    # rows of cbuf are (h, w) flattened, so each output row hp is the max of
    # three consecutive Wo-row blocks starting at 2*hp*Wo.
    for hp in range(Hp):
        r = 2 * hp * Wo
        m = jnp.maximum(cbuf[r:r + Wo, :],
                        jnp.maximum(cbuf[r + Wo:r + 2 * Wo, :],
                                    cbuf[r + 2 * Wo:r + 3 * Wo, :]))
        hbuf[hp, :, :] = m

    # W direction: 3-tap max with stride-2 sublane reads.
    w = jnp.maximum(hbuf[:, pl.ds(0, Wp, 2), :],
                    jnp.maximum(hbuf[:, pl.ds(1, Wp, 2), :],
                                hbuf[:, pl.ds(2, Wp, 2), :]))
    o_ref[...] = w.astype(o_ref.dtype)


def _fc_tail_kernel(x_ref, w1_ref, b1_ref, w2_ref, b2_ref, w3_ref, b3_ref, o_ref):
    # fc1+ReLU -> fc2+ReLU -> fc3 -> log_softmax, fully fused in VMEM.
    h = jnp.dot(x_ref[...], w1_ref[...], preferred_element_type=jnp.float32)
    h = jnp.maximum(h + b1_ref[...], 0.0)
    h = jnp.dot(h.astype(jnp.bfloat16), w2_ref[...],
                preferred_element_type=jnp.float32)
    h = jnp.maximum(h + b2_ref[...], 0.0)
    logits = jnp.dot(h.astype(jnp.bfloat16), w3_ref[...],
                     preferred_element_type=jnp.float32)
    logits = logits + b3_ref[...]
    m = jnp.max(logits, axis=-1, keepdims=True)
    s = logits - m
    lse = jnp.log(jnp.sum(jnp.exp(s), axis=-1, keepdims=True))
    o_ref[...] = (s - lse).astype(o_ref.dtype)


# ---------------- wrappers ----------------

def conv_relu_pool_nhwc(x, w_kc, b, k):
    # x: (N, H, W, Cin) NHWC (any float dtype); w_kc: (Kp, Cout) bf16 with rows
    # ordered (kh, kw, cin) then zero-padded to a multiple of 128; b: (1, Cout)
    # f32. Valid conv stride 1, then ReLU, then MaxPool2d(3, 2) (floor mode).
    N, H, W, Cin = x.shape
    Ho, Wo = H - k + 1, W - k + 1
    Hp, Wp = (Ho - 3) // 2 + 1, (Wo - 3) // 2 + 1
    K = k * k * Cin
    Kp, Cout = w_kc.shape

    xb = x.astype(jnp.bfloat16)
    pats = [xb[:, i:i + Ho, j:j + Wo, :] for i in range(k) for j in range(k)]
    if Kp != K:  # fold K-padding into the same fused concat (lane-dense loads)
        pats.append(jnp.zeros((N, Ho, Wo, Kp - K), jnp.bfloat16))
    p = jnp.concatenate(pats, axis=-1).reshape(N, Ho * Wo, Kp)

    return pl.pallas_call(
        _conv_relu_pool_kernel,
        grid=(N,),
        in_specs=[
            pl.BlockSpec((None, Ho * Wo, Kp), lambda n: (n, 0, 0)),
            pl.BlockSpec((Kp, Cout), lambda n: (0, 0)),
            pl.BlockSpec((1, Cout), lambda n: (0, 0)),
        ],
        out_specs=pl.BlockSpec((None, Hp, Wp, Cout), lambda n: (n, 0, 0, 0)),
        out_shape=jax.ShapeDtypeStruct((N, Hp, Wp, Cout), jnp.bfloat16),
        scratch_shapes=[
            pltpu.VMEM((Ho * Wo, Cout), jnp.float32),
            pltpu.VMEM((Hp, Wo, Cout), jnp.float32),
        ],
        compiler_params=pltpu.CompilerParams(
            dimension_semantics=("parallel",)),
    )(p, w_kc, b)


def fc_tail(x, pp, tile_b=256):
    # x: (N, 1024) flattened (h, w, c)-ordered activations; fused FC tail.
    N, K = x.shape
    D1 = pp["fc1_w"].shape[1]
    D2 = pp["fc2_w"].shape[1]
    C = pp["fc3_w"].shape[1]
    xb = x.astype(jnp.bfloat16)
    N8 = _round_up(N, 8)
    if N8 != N:
        xb = jnp.pad(xb, ((0, N8 - N), (0, 0)))
    tb = min(tile_b, N8)
    out = pl.pallas_call(
        _fc_tail_kernel,
        grid=(pl.cdiv(N8, tb),),
        in_specs=[
            pl.BlockSpec((tb, K), lambda i: (i, 0)),
            pl.BlockSpec((K, D1), lambda i: (0, 0)),
            pl.BlockSpec((1, D1), lambda i: (0, 0)),
            pl.BlockSpec((D1, D2), lambda i: (0, 0)),
            pl.BlockSpec((1, D2), lambda i: (0, 0)),
            pl.BlockSpec((D2, C), lambda i: (0, 0)),
            pl.BlockSpec((1, C), lambda i: (0, 0)),
        ],
        out_specs=pl.BlockSpec((tb, C), lambda i: (i, 0)),
        out_shape=jax.ShapeDtypeStruct((N8, C), jnp.float32),
        compiler_params=pltpu.CompilerParams(
            dimension_semantics=("parallel",)),
    )(xb, pp["fc1_w"], pp["fc1_b"], pp["fc2_w"], pp["fc2_b"],
      pp["fc3_w"], pp["fc3_b"])
    return out[:N] if N8 != N else out


# ---------------- parameters ----------------

def init_params(key, num_classes=10):
    # PyTorch-layout params with U(-1/sqrt(fan_in), 1/sqrt(fan_in)) init.
    def uniform(k, shape, fan_in):
        bound = 1.0 / float(fan_in) ** 0.5
        return jax.random.uniform(k, shape, jnp.float32, -bound, bound)

    ks = jax.random.split(key, 10)
    p = {}
    p["conv1_w"] = uniform(ks[0], (64, 3, 5, 5), 3 * 25)
    p["conv1_b"] = uniform(ks[1], (64,), 3 * 25)
    p["conv2_w"] = uniform(ks[2], (64, 64, 5, 5), 64 * 25)
    p["conv2_b"] = uniform(ks[3], (64,), 64 * 25)
    p["fc1_w"] = uniform(ks[4], (384, 64 * 4 * 4), 64 * 4 * 4)
    p["fc1_b"] = uniform(ks[5], (384,), 64 * 4 * 4)
    p["fc2_w"] = uniform(ks[6], (192, 384), 384)
    p["fc2_b"] = uniform(ks[7], (192,), 384)
    p["fc3_w"] = uniform(ks[8], (num_classes, 192), 192)
    p["fc3_b"] = uniform(ks[9], (num_classes,), 192)
    return p


def prepare_params(p):
    # One-time transform of PyTorch-layout weights into kernel-friendly layout:
    # flatten/transpose/pad conv weights, pre-transpose FC weights, permute
    # fc1's K axis from (c,h,w) to (h,w,c) so the NHWC flatten feeds it
    # directly, and cast all matmul operands to bf16. Biases stay f32 (1,Cout).
    def conv_prep(w, b):
        Cout, Cin, k, _ = w.shape
        K = k * k * Cin
        Kp = _round_up(K, 128)
        w2 = w.transpose(2, 3, 1, 0).reshape(K, Cout)     # rows = (kh, kw, cin)
        w2 = jnp.pad(w2, ((0, Kp - K), (0, 0)))
        return w2.astype(jnp.bfloat16), b.reshape(1, Cout).astype(jnp.float32)

    pp = {}
    pp["conv1_w"], pp["conv1_b"] = conv_prep(p["conv1_w"], p["conv1_b"])
    pp["conv2_w"], pp["conv2_b"] = conv_prep(p["conv2_w"], p["conv2_b"])

    nc = p["fc3_w"].shape[0]
    w1 = p["fc1_w"].reshape(384, 64, 4, 4).transpose(0, 2, 3, 1).reshape(384, 1024)
    pp["fc1_w"] = w1.T.astype(jnp.bfloat16)                       # (1024, 384)
    pp["fc1_b"] = p["fc1_b"].reshape(1, 384).astype(jnp.float32)
    pp["fc2_w"] = p["fc2_w"].T.astype(jnp.bfloat16)               # (384, 192)
    pp["fc2_b"] = p["fc2_b"].reshape(1, 192).astype(jnp.float32)
    pp["fc3_w"] = p["fc3_w"].T.astype(jnp.bfloat16)               # (192, nc)
    pp["fc3_b"] = p["fc3_b"].reshape(1, nc).astype(jnp.float32)
    return pp


# ---------------- forward ----------------

def cnn_cifar_forward(pp, x):
    # x: (N, 3, 32, 32) float32 NCHW (PyTorch convention).
    x = x.transpose(0, 2, 3, 1)                                      # NHWC once
    x = conv_relu_pool_nhwc(x, pp["conv1_w"], pp["conv1_b"], k=5)    # (N,13,13,64) bf16
    x = conv_relu_pool_nhwc(x, pp["conv2_w"], pp["conv2_b"], k=5)    # (N, 4, 4,64) bf16
    x = x.reshape(x.shape[0], 4 * 4 * 64)                            # (h,w,c) flatten
    return fc_tail(x, pp)                                            # (N, num_classes) f32


if __name__ == "__main__":
    key = jax.random.PRNGKey(0)
    kp, kx = jax.random.split(key)
    params = init_params(kp, num_classes=10)
    pp = prepare_params(params)
    x = jax.random.normal(kx, (2, 3, 32, 32), jnp.float32)        # CIFAR-shaped batch
    out = jax.jit(cnn_cifar_forward)(pp, x)
    out = jax.block_until_ready(out)
    assert out.shape == (2, 10) and out.dtype == jnp.float32
    # log_softmax rows must exponentiate-sum to 1.
    assert bool(jnp.allclose(jnp.sum(jnp.exp(out), axis=-1), 1.0, atol=1e-2))
    print("KERNEL_OK")
</pallas_src>

<mosaic_0001>
module attributes {stable_mosaic.version = 11 : i64} {
  func.func @_conv_relu_pool_kernel(%arg0: i32, %arg1: memref<1x784x128xbf16, #tpu.memory_space<vmem>>, %arg2: memref<128x64xbf16, #tpu.memory_space<vmem>>, %arg3: memref<1x64xf32, #tpu.memory_space<vmem>>, %arg4: memref<1x13x13x64xbf16, #tpu.memory_space<vmem>>, %arg5: memref<784x64xf32, #tpu.memory_space<vmem>>, %arg6: memref<13x28x64xf32, #tpu.memory_space<vmem>>) attributes {dimension_semantics = [#tpu.dimension_semantics<parallel>], iteration_bounds = array<i64: 2>, scalar_prefetch = 0 : i64, scratch_operands = 2 : i64, tpu.core_type = #tpu.core_type<tc>, window_params = [{transform_indices = @transform_0, window_bounds = array<i64: 1, 784, 128>}, {pipeline_mode = #tpu.pipeline_mode<synchronous>, transform_indices = @transform_1, window_bounds = array<i64: 128, 64>}, {pipeline_mode = #tpu.pipeline_mode<synchronous>, transform_indices = @transform_2, window_bounds = array<i64: 1, 64>}, {transform_indices = @transform_3, window_bounds = array<i64: 1, 13, 13, 64>}]} {
    %c0 = arith.constant 0 : index
    %c0_0 = arith.constant 0 : index
    %c0_1 = arith.constant 0 : index
    %0 = vector.load %arg1[%c0, %c0_0, %c0_1] : memref<1x784x128xbf16, #tpu.memory_space<vmem>>, vector<1x784x128xbf16>
    %1 = vector.shape_cast %0 : vector<1x784x128xbf16> to vector<784x128xbf16>
    %c0_2 = arith.constant 0 : index
    %c0_3 = arith.constant 0 : index
    %2 = vector.load %arg2[%c0_2, %c0_3] : memref<128x64xbf16, #tpu.memory_space<vmem>>, vector<128x64xbf16>
    %cst = arith.constant dense<0.000000e+00> : vector<784x64xf32>
    %3 = tpu.matmul %1, %2, %cst {dimension_numbers = #tpu.dot_dimension_numbers<[1], [0], [0], [1], [0, 0, 1, 1], [], []>} : vector<784x128xbf16>, vector<128x64xbf16>, vector<784x64xf32> -> vector<784x64xf32>
    %c0_4 = arith.constant 0 : index
    %c0_5 = arith.constant 0 : index
    %4 = vector.load %arg3[%c0_4, %c0_5] : memref<1x64xf32, #tpu.memory_space<vmem>>, vector<1x64xf32>
    %5 = vector.broadcast %4 : vector<1x64xf32> to vector<784x64xf32>
    %6 = arith.addf %3, %5 : vector<784x64xf32>
    %cst_6 = arith.constant 0.000000e+00 : f32
    %7 = vector.broadcast %cst_6 : f32 to vector<784x64xf32>
    %8 = arith.maximumf %6, %7 : vector<784x64xf32>
    %c0_7 = arith.constant 0 : index
    %c0_8 = arith.constant 0 : index
    %9 = vector.load %arg5[%c0_7, %c0_8] : memref<784x64xf32, #tpu.memory_space<vmem>>, vector<784x64xf32>
    tpu.vector_store %arg5[%c0_7, %c0_8], %8 {strides = array<i32>} : memref<784x64xf32, #tpu.memory_space<vmem>>, vector<784x64xf32>,
    %c0_9 = arith.constant 0 : index
    %c0_10 = arith.constant 0 : index
    %10 = vector.load %arg5[%c0_9, %c0_10] : memref<784x64xf32, #tpu.memory_space<vmem>>, vector<28x64xf32>
    %c28 = arith.constant 28 : index
    %c0_11 = arith.constant 0 : index
    %11 = vector.load %arg5[%c28, %c0_11] : memref<784x64xf32, #tpu.memory_space<vmem>>, vector<28x64xf32>
    %c56 = arith.constant 56 : index
    %c0_12 = arith.constant 0 : index
    %12 = vector.load %arg5[%c56, %c0_12] : memref<784x64xf32, #tpu.memory_space<vmem>>, vector<28x64xf32>
    %13 = arith.maximumf %11, %12 : vector<28x64xf32>
    %14 = arith.maximumf %10, %13 : vector<28x64xf32>
    %c0_13 = arith.constant 0 : index
    %c0_14 = arith.constant 0 : index
    %c0_15 = arith.constant 0 : index
    %15 = vector.load %arg6[%c0_13, %c0_14, %c0_15] : memref<13x28x64xf32, #tpu.memory_space<vmem>>, vector<1x28x64xf32>
    %16 = vector.shape_cast %15 : vector<1x28x64xf32> to vector<28x64xf32>
    %17 = vector.shape_cast %14 : vector<28x64xf32> to vector<1x28x64xf32>
    tpu.vector_store %arg6[%c0_13, %c0_14, %c0_15], %17 {strides = array<i32>} : memref<13x28x64xf32, #tpu.memory_space<vmem>>, vector<1x28x64xf32>,
    %c56_16 = arith.constant 56 : index
    %c0_17 = arith.constant 0 : index
    %18 = vector.load %arg5[%c56_16, %c0_17] : memref<784x64xf32, #tpu.memory_space<vmem>>, vector<28x64xf32>
    %c84 = arith.constant 84 : index
    %c0_18 = arith.constant 0 : index
    %19 = vector.load %arg5[%c84, %c0_18] : memref<784x64xf32, #tpu.memory_space<vmem>>, vector<28x64xf32>
    %c112 = arith.constant 112 : index
    %c0_19 = arith.constant 0 : index
    %20 = vector.load %arg5[%c112, %c0_19] : memref<784x64xf32, #tpu.memory_space<vmem>>, vector<28x64xf32>
    %21 = arith.maximumf %19, %20 : vector<28x64xf32>
    %22 = arith.maximumf %18, %21 : vector<28x64xf32>
    %c1 = arith.constant 1 : index
    %c0_20 = arith.constant 0 : index
    %c0_21 = arith.constant 0 : index
    %23 = vector.load %arg6[%c1, %c0_20, %c0_21] : memref<13x28x64xf32, #tpu.memory_space<vmem>>, vector<1x28x64xf32>
    %24 = vector.shape_cast %23 : vector<1x28x64xf32> to vector<28x64xf32>
    %25 = vector.shape_cast %22 : vector<28x64xf32> to vector<1x28x64xf32>
    tpu.vector_store %arg6[%c1, %c0_20, %c0_21], %25 {strides = array<i32>} : memref<13x28x64xf32, #tpu.memory_space<vmem>>, vector<1x28x64xf32>,
    %c112_22 = arith.constant 112 : index
    %c0_23 = arith.constant 0 : index
    %26 = vector.load %arg5[%c112_22, %c0_23] : memref<784x64xf32, #tpu.memory_space<vmem>>, vector<28x64xf32>
    %c140 = arith.constant 140 : index
    %c0_24 = arith.constant 0 : index
    %27 = vector.load %arg5[%c140, %c0_24] : memref<784x64xf32, #tpu.memory_space<vmem>>, vector<28x64xf32>
    %c168 = arith.constant 168 : index
    %c0_25 = arith.constant 0 : index
    %28 = vector.load %arg5[%c168, %c0_25] : memref<784x64xf32, #tpu.memory_space<vmem>>, vector<28x64xf32>
    %29 = arith.maximumf %27, %28 : vector<28x64xf32>
    %30 = arith.maximumf %26, %29 : vector<28x64xf32>
    %c2 = arith.constant 2 : index
    %c0_26 = arith.constant 0 : index
    %c0_27 = arith.constant 0 : index
    %31 = vector.load %arg6[%c2, %c0_26, %c0_27] : memref<13x28x64xf32, #tpu.memory_space<vmem>>, vector<1x28x64xf32>
    %32 = vector.shape_cast %31 : vector<1x28x64xf32> to vector<28x64xf32>
    %33 = vector.shape_cast %30 : vector<28x64xf32> to vector<1x28x64xf32>
    tpu.vector_store %arg6[%c2, %c0_26, %c0_27], %33 {strides = array<i32>} : memref<13x28x64xf32, #tpu.memory_space<vmem>>, vector<1x28x64xf32>,
    %c168_28 = arith.constant 168 : index
    %c0_29 = arith.constant 0 : index
    %34 = vector.load %arg5[%c168_28, %c0_29] : memref<784x64xf32, #tpu.memory_space<vmem>>, vector<28x64xf32>
    %c196 = arith.constant 196 : index
    %c0_30 = arith.constant 0 : index
    %35 = vector.load %arg5[%c196, %c0_30] : memref<784x64xf32, #tpu.memory_space<vmem>>, vector<28x64xf32>
    %c224 = arith.constant 224 : index
    %c0_31 = arith.constant 0 : index
    %36 = vector.load %arg5[%c224, %c0_31] : memref<784x64xf32, #tpu.memory_space<vmem>>, vector<28x64xf32>
    %37 = arith.maximumf %35, %36 : vector<28x64xf32>
    %38 = arith.maximumf %34, %37 : vector<28x64xf32>
    %c3 = arith.constant 3 : index
    %c0_32 = arith.constant 0 : index
    %c0_33 = arith.constant 0 : index
    %39 = vector.load %arg6[%c3, %c0_32, %c0_33] : memref<13x28x64xf32, #tpu.memory_space<vmem>>, vector<1x28x64xf32>
    %40 = vector.shape_cast %39 : vector<1x28x64xf32> to vector<28x64xf32>
    %41 = vector.shape_cast %38 : vector<28x64xf32> to vector<1x28x64xf32>
    tpu.vector_store %arg6[%c3, %c0_32, %c0_33], %41 {strides = array<i32>} : memref<13x28x64xf32, #tpu.memory_space<vmem>>, vector<1x28x64xf32>,
    %c224_34 = arith.constant 224 : index
    %c0_35 = arith.constant 0 : index
    %42 = vector.load %arg5[%c224_34, %c0_35] : memref<784x64xf32, #tpu.memory_space<vmem>>, vector<28x64xf32>
    %c252 = arith.constant 252 : index
    %c0_36 = arith.constant 0 : index
    %43 = vector.load %arg5[%c252, %c0_36] : memref<784x64xf32, #tpu.memory_space<vmem>>, vector<28x64xf32>
    %c280 = arith.constant 280 : index
    %c0_37 = arith.constant 0 : index
    %44 = vector.load %arg5[%c280, %c0_37] : memref<784x64xf32, #tpu.memory_space<vmem>>, vector<28x64xf32>
    %45 = arith.maximumf %43, %44 : vector<28x64xf32>
    %46 = arith.maximumf %42, %45 : vector<28x64xf32>
    %c4 = arith.constant 4 : index
    %c0_38 = arith.constant 0 : index
    %c0_39 = arith.constant 0 : index
    %47 = vector.load %arg6[%c4, %c0_38, %c0_39] : memref<13x28x64xf32, #tpu.memory_space<vmem>>, vector<1x28x64xf32>
    %48 = vector.shape_cast %47 : vector<1x28x64xf32> to vector<28x64xf32>
    %49 = vector.shape_cast %46 : vector<28x64xf32> to vector<1x28x64xf32>
    tpu.vector_store %arg6[%c4, %c0_38, %c0_39], %49 {strides = array<i32>} : memref<13x28x64xf32, #tpu.memory_space<vmem>>, vector<1x28x64xf32>,
    %c280_40 = arith.constant 280 : index
    %c0_41 = arith.constant 0 : index
    %50 = vector.load %arg5[%c280_40, %c0_41] : memref<784x64xf32, #tpu.memory_space<vmem>>, vector<28x64xf32>
    %c308 = arith.constant 308 : index
    %c0_42 = arith.constant 0 : index
    %51 = vector.load %arg5[%c308, %c0_42] : memref<784x64xf32, #tpu.memory_space<vmem>>, vector<28x64xf32>
    %c336 = arith.constant 336 : index
    %c0_43 = arith.constant 0 : index
    %52 = vector.load %arg5[%c336, %c0_43] : memref<784x64xf32, #tpu.memory_space<vmem>>, vector<28x64xf32>
    %53 = arith.maximumf %51, %52 : vector<28x64xf32>
    %54 = arith.maximumf %50, %53 : vector<28x64xf32>
    %c5 = arith.constant 5 : index
    %c0_44 = arith.constant 0 : index
    %c0_45 = arith.constant 0 : index
    %55 = vector.load %arg6[%c5, %c0_44, %c0_45] : memref<13x28x64xf32, #tpu.memory_space<vmem>>, vector<1x28x64xf32>
    %56 = vector.shape_cast %55 : vector<1x28x64xf32> to vector<28x64xf32>
    %57 = vector.shape_cast %54 : vector<28x64xf32> to vector<1x28x64xf32>
    tpu.vector_store %arg6[%c5, %c0_44, %c0_45], %57 {strides = array<i32>} : memref<13x28x64xf32, #tpu.memory_space<vmem>>, vector<1x28x64xf32>,
    %c336_46 = arith.constant 336 : index
    %c0_47 = arith.constant 0 : index
    %58 = vector.load %arg5[%c336_46, %c0_47] : memref<784x64xf32, #tpu.memory_space<vmem>>, vector<28x64xf32>
    %c364 = arith.constant 364 : index
    %c0_48 = arith.constant 0 : index
    %59 = vector.load %arg5[%c364, %c0_48] : memref<784x64xf32, #tpu.memory_space<vmem>>, vector<28x64xf32>
    %c392 = arith.constant 392 : index
    %c0_49 = arith.constant 0 : index
    %60 = vector.load %arg5[%c392, %c0_49] : memref<784x64xf32, #tpu.memory_space<vmem>>, vector<28x64xf32>
    %61 = arith.maximumf %59, %60 : vector<28x64xf32>
    %62 = arith.maximumf %58, %61 : vector<28x64xf32>
    %c6 = arith.constant 6 : index
    %c0_50 = arith.constant 0 : index
    %c0_51 = arith.constant 0 : index
    %63 = vector.load %arg6[%c6, %c0_50, %c0_51] : memref<13x28x64xf32, #tpu.memory_space<vmem>>, vector<1x28x64xf32>
    %64 = vector.shape_cast %63 : vector<1x28x64xf32> to vector<28x64xf32>
    %65 = vector.shape_cast %62 : vector<28x64xf32> to vector<1x28x64xf32>
    tpu.vector_store %arg6[%c6, %c0_50, %c0_51], %65 {strides = array<i32>} : memref<13x28x64xf32, #tpu.memory_space<vmem>>, vector<1x28x64xf32>,
    %c392_52 = arith.constant 392 : index
    %c0_53 = arith.constant 0 : index
    %66 = vector.load %arg5[%c392_52, %c0_53] : memref<784x64xf32, #tpu.memory_space<vmem>>, vector<28x64xf32>
    %c420 = arith.constant 420 : index
    %c0_54 = arith.constant 0 : index
    %67 = vector.load %arg5[%c420, %c0_54] : memref<784x64xf32, #tpu.memory_space<vmem>>, vector<28x64xf32>
    %c448 = arith.constant 448 : index
    %c0_55 = arith.constant 0 : index
    %68 = vector.load %arg5[%c448, %c0_55] : memref<784x64xf32, #tpu.memory_space<vmem>>, vector<28x64xf32>
    %69 = arith.maximumf %67, %68 : vector<28x64xf32>
    %70 = arith.maximumf %66, %69 : vector<28x64xf32>
    %c7 = arith.constant 7 : index
    %c0_56 = arith.constant 0 : index
    %c0_57 = arith.constant 0 : index
    %71 = vector.load %arg6[%c7, %c0_56, %c0_57] : memref<13x28x64xf32, #tpu.memory_space<vmem>>, vector<1x28x64xf32>
    %72 = vector.shape_cast %71 : vector<1x28x64xf32> to vector<28x64xf32>
    %73 = vector.shape_cast %70 : vector<28x64xf32> to vector<1x28x64xf32>
    tpu.vector_store %arg6[%c7, %c0_56, %c0_57], %73 {strides = array<i32>} : memref<13x28x64xf32, #tpu.memory_space<vmem>>, vector<1x28x64xf32>,
    %c448_58 = arith.constant 448 : index
    %c0_59 = arith.constant 0 : index
    %74 = vector.load %arg5[%c448_58, %c0_59] : memref<784x64xf32, #tpu.memory_space<vmem>>, vector<28x64xf32>
    %c476 = arith.constant 476 : index
    %c0_60 = arith.constant 0 : index
    %75 = vector.load %arg5[%c476, %c0_60] : memref<784x64xf32, #tpu.memory_space<vmem>>, vector<28x64xf32>
    %c504 = arith.constant 504 : index
    %c0_61 = arith.constant 0 : index
    %76 = vector.load %arg5[%c504, %c0_61] : memref<784x64xf32, #tpu.memory_space<vmem>>, vector<28x64xf32>
    %77 = arith.maximumf %75, %76 : vector<28x64xf32>
    %78 = arith.maximumf %74, %77 : vector<28x64xf32>
    %c8 = arith.constant 8 : index
    %c0_62 = arith.constant 0 : index
    %c0_63 = arith.constant 0 : index
    %79 = vector.load %arg6[%c8, %c0_62, %c0_63] : memref<13x28x64xf32, #tpu.memory_space<vmem>>, vector<1x28x64xf32>
    %80 = vector.shape_cast %79 : vector<1x28x64xf32> to vector<28x64xf32>
    %81 = vector.shape_cast %78 : vector<28x64xf32> to vector<1x28x64xf32>
    tpu.vector_store %arg6[%c8, %c0_62, %c0_63], %81 {strides = array<i32>} : memref<13x28x64xf32, #tpu.memory_space<vmem>>, vector<1x28x64xf32>,
    %c504_64 = arith.constant 504 : index
    %c0_65 = arith.constant 0 : index
    %82 = vector.load %arg5[%c504_64, %c0_65] : memref<784x64xf32, #tpu.memory_space<vmem>>, vector<28x64xf32>
    %c532 = arith.constant 532 : index
    %c0_66 = arith.constant 0 : index
    %83 = vector.load %arg5[%c532, %c0_66] : memref<784x64xf32, #tpu.memory_space<vmem>>, vector<28x64xf32>
    %c560 = arith.constant 560 : index
    %c0_67 = arith.constant 0 : index
    %84 = vector.load %arg5[%c560, %c0_67] : memref<784x64xf32, #tpu.memory_space<vmem>>, vector<28x64xf32>
    %85 = arith.maximumf %83, %84 : vector<28x64xf32>
    %86 = arith.maximumf %82, %85 : vector<28x64xf32>
    %c9 = arith.constant 9 : index
    %c0_68 = arith.constant 0 : index
    %c0_69 = arith.constant 0 : index
    %87 = vector.load %arg6[%c9, %c0_68, %c0_69] : memref<13x28x64xf32, #tpu.memory_space<vmem>>, vector<1x28x64xf32>
    %88 = vector.shape_cast %87 : vector<1x28x64xf32> to vector<28x64xf32>
    %89 = vector.shape_cast %86 : vector<28x64xf32> to vector<1x28x64xf32>
    tpu.vector_store %arg6[%c9, %c0_68, %c0_69], %89 {strides = array<i32>} : memref<13x28x64xf32, #tpu.memory_space<vmem>>, vector<1x28x64xf32>,
    %c560_70 = arith.constant 560 : index
    %c0_71 = arith.constant 0 : index
    %90 = vector.load %arg5[%c560_70, %c0_71] : memref<784x64xf32, #tpu.memory_space<vmem>>, vector<28x64xf32>
    %c588 = arith.constant 588 : index
    %c0_72 = arith.constant 0 : index
    %91 = vector.load %arg5[%c588, %c0_72] : memref<784x64xf32, #tpu.memory_space<vmem>>, vector<28x64xf32>
    %c616 = arith.constant 616 : index
    %c0_73 = arith.constant 0 : index
    %92 = vector.load %arg5[%c616, %c0_73] : memref<784x64xf32, #tpu.memory_space<vmem>>, vector<28x64xf32>
    %93 = arith.maximumf %91, %92 : vector<28x64xf32>
    %94 = arith.maximumf %90, %93 : vector<28x64xf32>
    %c10 = arith.constant 10 : index
    %c0_74 = arith.constant 0 : index
    %c0_75 = arith.constant 0 : index
    %95 = vector.load %arg6[%c10, %c0_74, %c0_75] : memref<13x28x64xf32, #tpu.memory_space<vmem>>, vector<1x28x64xf32>
    %96 = vector.shape_cast %95 : vector<1x28x64xf32> to vector<28x64xf32>
    %97 = vector.shape_cast %94 : vector<28x64xf32> to vector<1x28x64xf32>
    tpu.vector_store %arg6[%c10, %c0_74, %c0_75], %97 {strides = array<i32>} : memref<13x28x64xf32, #tpu.memory_space<vmem>>, vector<1x28x64xf32>,
    %c616_76 = arith.constant 616 : index
    %c0_77 = arith.constant 0 : index
    %98 = vector.load %arg5[%c616_76, %c0_77] : memref<784x64xf32, #tpu.memory_space<vmem>>, vector<28x64xf32>
    %c644 = arith.constant 644 : index
    %c0_78 = arith.constant 0 : index
    %99 = vector.load %arg5[%c644, %c0_78] : memref<784x64xf32, #tpu.memory_space<vmem>>, vector<28x64xf32>
    %c672 = arith.constant 672 : index
    %c0_79 = arith.constant 0 : index
    %100 = vector.load %arg5[%c672, %c0_79] : memref<784x64xf32, #tpu.memory_space<vmem>>, vector<28x64xf32>
    %101 = arith.maximumf %99, %100 : vector<28x64xf32>
    %102 = arith.maximumf %98, %101 : vector<28x64xf32>
    %c11 = arith.constant 11 : index
    %c0_80 = arith.constant 0 : index
    %c0_81 = arith.constant 0 : index
    %103 = vector.load %arg6[%c11, %c0_80, %c0_81] : memref<13x28x64xf32, #tpu.memory_space<vmem>>, vector<1x28x64xf32>
    %104 = vector.shape_cast %103 : vector<1x28x64xf32> to vector<28x64xf32>
    %105 = vector.shape_cast %102 : vector<28x64xf32> to vector<1x28x64xf32>
    tpu.vector_store %arg6[%c11, %c0_80, %c0_81], %105 {strides = array<i32>} : memref<13x28x64xf32, #tpu.memory_space<vmem>>, vector<1x28x64xf32>,
    %c672_82 = arith.constant 672 : index
    %c0_83 = arith.constant 0 : index
    %106 = vector.load %arg5[%c672_82, %c0_83] : memref<784x64xf32, #tpu.memory_space<vmem>>, vector<28x64xf32>
    %c700 = arith.constant 700 : index
    %c0_84 = arith.constant 0 : index
    %107 = vector.load %arg5[%c700, %c0_84] : memref<784x64xf32, #tpu.memory_space<vmem>>, vector<28x64xf32>
    %c728 = arith.constant 728 : index
    %c0_85 = arith.constant 0 : index
    %108 = vector.load %arg5[%c728, %c0_85] : memref<784x64xf32, #tpu.memory_space<vmem>>, vector<28x64xf32>
    %109 = arith.maximumf %107, %108 : vector<28x64xf32>
    %110 = arith.maximumf %106, %109 : vector<28x64xf32>
    %c12 = arith.constant 12 : index
    %c0_86 = arith.constant 0 : index
    %c0_87 = arith.constant 0 : index
    %111 = vector.load %arg6[%c12, %c0_86, %c0_87] : memref<13x28x64xf32, #tpu.memory_space<vmem>>, vector<1x28x64xf32>
    %112 = vector.shape_cast %111 : vector<1x28x64xf32> to vector<28x64xf32>
    %113 = vector.shape_cast %110 : vector<28x64xf32> to vector<1x28x64xf32>
    tpu.vector_store %arg6[%c12, %c0_86, %c0_87], %113 {strides = array<i32>} : memref<13x28x64xf32, #tpu.memory_space<vmem>>, vector<1x28x64xf32>,
    %c0_88 = arith.constant 0 : index
    %c0_89 = arith.constant 0 : index
    %c0_90 = arith.constant 0 : index
    %114 = tpu.strided_load %arg6[%c0_88, %c0_89, %c0_90] {strides = array<i32: 1, 2, 1>} : memref<13x28x64xf32, #tpu.memory_space<vmem>>, vector<13x13x64xf32>
    %c0_91 = arith.constant 0 : index
    %c1_92 = arith.constant 1 : index
    %c0_93 = arith.constant 0 : index
    %115 = tpu.strided_load %arg6[%c0_91, %c1_92, %c0_93] {strides = array<i32: 1, 2, 1>} : memref<13x28x64xf32, #tpu.memory_space<vmem>>, vector<13x13x64xf32>
    %c0_94 = arith.constant 0 : index
    %c2_95 = arith.constant 2 : index
    %c0_96 = arith.constant 0 : index
    %116 = tpu.strided_load %arg6[%c0_94, %c2_95, %c0_96] {strides = array<i32: 1, 2, 1>} : memref<13x28x64xf32, #tpu.memory_space<vmem>>, vector<13x13x64xf32>
    %117 = arith.maximumf %115, %116 : vector<13x13x64xf32>
    %118 = arith.maximumf %114, %117 : vector<13x13x64xf32>
    %119 = arith.truncf %118 : vector<13x13x64xf32> to vector<13x13x64xbf16>
    %c0_97 = arith.constant 0 : index
    %c0_98 = arith.constant 0 : index
    %c0_99 = arith.constant 0 : index
    %c0_100 = arith.constant 0 : index
    %120 = vector.load %arg4[%c0_97, %c0_98, %c0_99, %c0_100] : memref<1x13x13x64xbf16, #tpu.memory_space<vmem>>, vector<1x13x13x64xbf16>
    %121 = vector.shape_cast %120 : vector<1x13x13x64xbf16> to vector<13x13x64xbf16>
    %122 = vector.shape_cast %119 : vector<13x13x64xbf16> to vector<1x13x13x64xbf16>
    tpu.vector_store %arg4[%c0_97, %c0_98, %c0_99, %c0_100], %122 {strides = array<i32>} : memref<1x13x13x64xbf16, #tpu.memory_space<vmem>>, vector<1x13x13x64xbf16>,
    return
  }
  func.func @transform_0(%arg0: i32) -> (i32, i32, i32) {
    %c0_i32 = arith.constant 0 : i32
    %c0_i32_0 = arith.constant 0 : i32
    %c0_i32_1 = arith.constant 0 : i32
    return %arg0, %c0_i32, %c0_i32_0 : i32, i32, i32
  }
  func.func @transform_1(%arg0: i32) -> (i32, i32) {
    %c0_i32 = arith.constant 0 : i32
    %c0_i32_0 = arith.constant 0 : i32
    %c0_i32_1 = arith.constant 0 : i32
    return %c0_i32, %c0_i32_0 : i32, i32
  }
  func.func @transform_2(%arg0: i32) -> (i32, i32) {
    %c0_i32 = arith.constant 0 : i32
    %c0_i32_0 = arith.constant 0 : i32
    %c0_i32_1 = arith.constant 0 : i32
    return %c0_i32, %c0_i32_0 : i32, i32
  }
  func.func @transform_3(%arg0: i32) -> (i32, i32, i32, i32) {
    %c0_i32 = arith.constant 0 : i32
    %c0_i32_0 = arith.constant 0 : i32
    %c0_i32_1 = arith.constant 0 : i32
    %c0_i32_2 = arith.constant 0 : i32
    return %arg0, %c0_i32, %c0_i32_0, %c0_i32_1 : i32, i32, i32, i32
  }
}

module attributes {stable_mosaic.version = 11 : i64} {
  func.func @_conv_relu_pool_kernel(%arg0: i32, %arg1: memref<1x81x1664xbf16, #tpu.memory_space<vmem>>, %arg2: memref<1664x64xbf16, #tpu.memory_space<vmem>>, %arg3: memref<1x64xf32, #tpu.memory_space<vmem>>, %arg4: memref<1x4x4x64xbf16, #tpu.memory_space<vmem>>, %arg5: memref<81x64xf32, #tpu.memory_space<vmem>>, %arg6: memref<4x9x64xf32, #tpu.memory_space<vmem>>) attributes {dimension_semantics = [#tpu.dimension_semantics<parallel>], iteration_bounds = array<i64: 2>, scalar_prefetch = 0 : i64, scratch_operands = 2 : i64, tpu.core_type = #tpu.core_type<tc>, window_params = [{transform_indices = @transform_0, window_bounds = array<i64: 1, 81, 1664>}, {pipeline_mode = #tpu.pipeline_mode<synchronous>, transform_indices = @transform_1, window_bounds = array<i64: 1664, 64>}, {pipeline_mode = #tpu.pipeline_mode<synchronous>, transform_indices = @transform_2, window_bounds = array<i64: 1, 64>}, {transform_indices = @transform_3, window_bounds = array<i64: 1, 4, 4, 64>}]} {
    %c0 = arith.constant 0 : index
    %c0_0 = arith.constant 0 : index
    %c0_1 = arith.constant 0 : index
    %0 = vector.load %arg1[%c0, %c0_0, %c0_1] : memref<1x81x1664xbf16, #tpu.memory_space<vmem>>, vector<1x81x1664xbf16>
    %1 = vector.shape_cast %0 : vector<1x81x1664xbf16> to vector<81x1664xbf16>
    %c0_2 = arith.constant 0 : index
    %c0_3 = arith.constant 0 : index
    %2 = vector.load %arg2[%c0_2, %c0_3] : memref<1664x64xbf16, #tpu.memory_space<vmem>>, vector<1664x64xbf16>
    %cst = arith.constant dense<0.000000e+00> : vector<81x64xf32>
    %3 = tpu.matmul %1, %2, %cst {dimension_numbers = #tpu.dot_dimension_numbers<[1], [0], [0], [1], [0, 0, 1, 1], [], []>} : vector<81x1664xbf16>, vector<1664x64xbf16>, vector<81x64xf32> -> vector<81x64xf32>
    %c0_4 = arith.constant 0 : index
    %c0_5 = arith.constant 0 : index
    %4 = vector.load %arg3[%c0_4, %c0_5] : memref<1x64xf32, #tpu.memory_space<vmem>>, vector<1x64xf32>
    %5 = vector.broadcast %4 : vector<1x64xf32> to vector<81x64xf32>
    %6 = arith.addf %3, %5 : vector<81x64xf32>
    %cst_6 = arith.constant 0.000000e+00 : f32
    %7 = vector.broadcast %cst_6 : f32 to vector<81x64xf32>
    %8 = arith.maximumf %6, %7 : vector<81x64xf32>
    %c0_7 = arith.constant 0 : index
    %c0_8 = arith.constant 0 : index
    %9 = vector.load %arg5[%c0_7, %c0_8] : memref<81x64xf32, #tpu.memory_space<vmem>>, vector<81x64xf32>
    tpu.vector_store %arg5[%c0_7, %c0_8], %8 {strides = array<i32>} : memref<81x64xf32, #tpu.memory_space<vmem>>, vector<81x64xf32>,
    %c0_9 = arith.constant 0 : index
    %c0_10 = arith.constant 0 : index
    %10 = vector.load %arg5[%c0_9, %c0_10] : memref<81x64xf32, #tpu.memory_space<vmem>>, vector<9x64xf32>
    %c9 = arith.constant 9 : index
    %c0_11 = arith.constant 0 : index
    %11 = vector.load %arg5[%c9, %c0_11] : memref<81x64xf32, #tpu.memory_space<vmem>>, vector<9x64xf32>
    %c18 = arith.constant 18 : index
    %c0_12 = arith.constant 0 : index
    %12 = vector.load %arg5[%c18, %c0_12] : memref<81x64xf32, #tpu.memory_space<vmem>>, vector<9x64xf32>
    %13 = arith.maximumf %11, %12 : vector<9x64xf32>
    %14 = arith.maximumf %10, %13 : vector<9x64xf32>
    %c0_13 = arith.constant 0 : index
    %c0_14 = arith.constant 0 : index
    %c0_15 = arith.constant 0 : index
    %15 = vector.load %arg6[%c0_13, %c0_14, %c0_15] : memref<4x9x64xf32, #tpu.memory_space<vmem>>, vector<1x9x64xf32>
    %16 = vector.shape_cast %15 : vector<1x9x64xf32> to vector<9x64xf32>
    %17 = vector.shape_cast %14 : vector<9x64xf32> to vector<1x9x64xf32>
    tpu.vector_store %arg6[%c0_13, %c0_14, %c0_15], %17 {strides = array<i32>} : memref<4x9x64xf32, #tpu.memory_space<vmem>>, vector<1x9x64xf32>,
    %c18_16 = arith.constant 18 : index
    %c0_17 = arith.constant 0 : index
    %18 = vector.load %arg5[%c18_16, %c0_17] : memref<81x64xf32, #tpu.memory_space<vmem>>, vector<9x64xf32>
    %c27 = arith.constant 27 : index
    %c0_18 = arith.constant 0 : index
    %19 = vector.load %arg5[%c27, %c0_18] : memref<81x64xf32, #tpu.memory_space<vmem>>, vector<9x64xf32>
    %c36 = arith.constant 36 : index
    %c0_19 = arith.constant 0 : index
    %20 = vector.load %arg5[%c36, %c0_19] : memref<81x64xf32, #tpu.memory_space<vmem>>, vector<9x64xf32>
    %21 = arith.maximumf %19, %20 : vector<9x64xf32>
    %22 = arith.maximumf %18, %21 : vector<9x64xf32>
    %c1 = arith.constant 1 : index
    %c0_20 = arith.constant 0 : index
    %c0_21 = arith.constant 0 : index
    %23 = vector.load %arg6[%c1, %c0_20, %c0_21] : memref<4x9x64xf32, #tpu.memory_space<vmem>>, vector<1x9x64xf32>
    %24 = vector.shape_cast %23 : vector<1x9x64xf32> to vector<9x64xf32>
    %25 = vector.shape_cast %22 : vector<9x64xf32> to vector<1x9x64xf32>
    tpu.vector_store %arg6[%c1, %c0_20, %c0_21], %25 {strides = array<i32>} : memref<4x9x64xf32, #tpu.memory_space<vmem>>, vector<1x9x64xf32>,
    %c36_22 = arith.constant 36 : index
    %c0_23 = arith.constant 0 : index
    %26 = vector.load %arg5[%c36_22, %c0_23] : memref<81x64xf32, #tpu.memory_space<vmem>>, vector<9x64xf32>
    %c45 = arith.constant 45 : index
    %c0_24 = arith.constant 0 : index
    %27 = vector.load %arg5[%c45, %c0_24] : memref<81x64xf32, #tpu.memory_space<vmem>>, vector<9x64xf32>
    %c54 = arith.constant 54 : index
    %c0_25 = arith.constant 0 : index
    %28 = vector.load %arg5[%c54, %c0_25] : memref<81x64xf32, #tpu.memory_space<vmem>>, vector<9x64xf32>
    %29 = arith.maximumf %27, %28 : vector<9x64xf32>
    %30 = arith.maximumf %26, %29 : vector<9x64xf32>
    %c2 = arith.constant 2 : index
    %c0_26 = arith.constant 0 : index
    %c0_27 = arith.constant 0 : index
    %31 = vector.load %arg6[%c2, %c0_26, %c0_27] : memref<4x9x64xf32, #tpu.memory_space<vmem>>, vector<1x9x64xf32>
    %32 = vector.shape_cast %31 : vector<1x9x64xf32> to vector<9x64xf32>
    %33 = vector.shape_cast %30 : vector<9x64xf32> to vector<1x9x64xf32>
    tpu.vector_store %arg6[%c2, %c0_26, %c0_27], %33 {strides = array<i32>} : memref<4x9x64xf32, #tpu.memory_space<vmem>>, vector<1x9x64xf32>,
    %c54_28 = arith.constant 54 : index
    %c0_29 = arith.constant 0 : index
    %34 = vector.load %arg5[%c54_28, %c0_29] : memref<81x64xf32, #tpu.memory_space<vmem>>, vector<9x64xf32>
    %c63 = arith.constant 63 : index
    %c0_30 = arith.constant 0 : index
    %35 = vector.load %arg5[%c63, %c0_30] : memref<81x64xf32, #tpu.memory_space<vmem>>, vector<9x64xf32>
    %c72 = arith.constant 72 : index
    %c0_31 = arith.constant 0 : index
    %36 = vector.load %arg5[%c72, %c0_31] : memref<81x64xf32, #tpu.memory_space<vmem>>, vector<9x64xf32>
    %37 = arith.maximumf %35, %36 : vector<9x64xf32>
    %38 = arith.maximumf %34, %37 : vector<9x64xf32>
    %c3 = arith.constant 3 : index
    %c0_32 = arith.constant 0 : index
    %c0_33 = arith.constant 0 : index
    %39 = vector.load %arg6[%c3, %c0_32, %c0_33] : memref<4x9x64xf32, #tpu.memory_space<vmem>>, vector<1x9x64xf32>
    %40 = vector.shape_cast %39 : vector<1x9x64xf32> to vector<9x64xf32>
    %41 = vector.shape_cast %38 : vector<9x64xf32> to vector<1x9x64xf32>
    tpu.vector_store %arg6[%c3, %c0_32, %c0_33], %41 {strides = array<i32>} : memref<4x9x64xf32, #tpu.memory_space<vmem>>, vector<1x9x64xf32>,
    %c0_34 = arith.constant 0 : index
    %c0_35 = arith.constant 0 : index
    %c0_36 = arith.constant 0 : index
    %42 = tpu.strided_load %arg6[%c0_34, %c0_35, %c0_36] {strides = array<i32: 1, 2, 1>} : memref<4x9x64xf32, #tpu.memory_space<vmem>>, vector<4x4x64xf32>
    %c0_37 = arith.constant 0 : index
    %c1_38 = arith.constant 1 : index
    %c0_39 = arith.constant 0 : index
    %43 = tpu.strided_load %arg6[%c0_37, %c1_38, %c0_39] {strides = array<i32: 1, 2, 1>} : memref<4x9x64xf32, #tpu.memory_space<vmem>>, vector<4x4x64xf32>
    %c0_40 = arith.constant 0 : index
    %c2_41 = arith.constant 2 : index
    %c0_42 = arith.constant 0 : index
    %44 = tpu.strided_load %arg6[%c0_40, %c2_41, %c0_42] {strides = array<i32: 1, 2, 1>} : memref<4x9x64xf32, #tpu.memory_space<vmem>>, vector<4x4x64xf32>
    %45 = arith.maximumf %43, %44 : vector<4x4x64xf32>
    %46 = arith.maximumf %42, %45 : vector<4x4x64xf32>
    %47 = arith.truncf %46 : vector<4x4x64xf32> to vector<4x4x64xbf16>
    %c0_43 = arith.constant 0 : index
    %c0_44 = arith.constant 0 : index
    %c0_45 = arith.constant 0 : index
    %c0_46 = arith.constant 0 : index
    %48 = vector.load %arg4[%c0_43, %c0_44, %c0_45, %c0_46] : memref<1x4x4x64xbf16, #tpu.memory_space<vmem>>, vector<1x4x4x64xbf16>
    %49 = vector.shape_cast %48 : vector<1x4x4x64xbf16> to vector<4x4x64xbf16>
    %50 = vector.shape_cast %47 : vector<4x4x64xbf16> to vector<1x4x4x64xbf16>
    tpu.vector_store %arg4[%c0_43, %c0_44, %c0_45, %c0_46], %50 {strides = array<i32>} : memref<1x4x4x64xbf16, #tpu.memory_space<vmem>>, vector<1x4x4x64xbf16>,
    return
  }
  func.func @transform_0(%arg0: i32) -> (i32, i32, i32) {
    %c0_i32 = arith.constant 0 : i32
    %c0_i32_0 = arith.constant 0 : i32
    %c0_i32_1 = arith.constant 0 : i32
    return %arg0, %c0_i32, %c0_i32_0 : i32, i32, i32
  }
  func.func @transform_1(%arg0: i32) -> (i32, i32) {
    %c0_i32 = arith.constant 0 : i32
    %c0_i32_0 = arith.constant 0 : i32
    %c0_i32_1 = arith.constant 0 : i32
    return %c0_i32, %c0_i32_0 : i32, i32
  }
  func.func @transform_2(%arg0: i32) -> (i32, i32) {
    %c0_i32 = arith.constant 0 : i32
    %c0_i32_0 = arith.constant 0 : i32
    %c0_i32_1 = arith.constant 0 : i32
    return %c0_i32, %c0_i32_0 : i32, i32
  }
  func.func @transform_3(%arg0: i32) -> (i32, i32, i32, i32) {
    %c0_i32 = arith.constant 0 : i32
    %c0_i32_0 = arith.constant 0 : i32
    %c0_i32_1 = arith.constant 0 : i32
    %c0_i32_2 = arith.constant 0 : i32
    return %arg0, %c0_i32, %c0_i32_0, %c0_i32_1 : i32, i32, i32, i32
  }
}

module attributes {stable_mosaic.version = 11 : i64} {
  func.func @_fc_tail_kernel(%arg0: i32, %arg1: memref<8x1024xbf16, #tpu.memory_space<vmem>>, %arg2: memref<1024x384xbf16, #tpu.memory_space<vmem>>, %arg3: memref<1x384xf32, #tpu.memory_space<vmem>>, %arg4: memref<384x192xbf16, #tpu.memory_space<vmem>>, %arg5: memref<1x192xf32, #tpu.memory_space<vmem>>, %arg6: memref<192x10xbf16, #tpu.memory_space<vmem>>, %arg7: memref<1x10xf32, #tpu.memory_space<vmem>>, %arg8: memref<8x10xf32, #tpu.memory_space<vmem>>) attributes {dimension_semantics = [#tpu.dimension_semantics<parallel>], iteration_bounds = array<i64: 1>, scalar_prefetch = 0 : i64, scratch_operands = 0 : i64, tpu.core_type = #tpu.core_type<tc>, window_params = [{transform_indices = @transform_0, window_bounds = array<i64: 8, 1024>}, {pipeline_mode = #tpu.pipeline_mode<synchronous>, transform_indices = @transform_1, window_bounds = array<i64: 1024, 384>}, {pipeline_mode = #tpu.pipeline_mode<synchronous>, transform_indices = @transform_2, window_bounds = array<i64: 1, 384>}, {pipeline_mode = #tpu.pipeline_mode<synchronous>, transform_indices = @transform_3, window_bounds = array<i64: 384, 192>}, {pipeline_mode = #tpu.pipeline_mode<synchronous>, transform_indices = @transform_4, window_bounds = array<i64: 1, 192>}, {pipeline_mode = #tpu.pipeline_mode<synchronous>, transform_indices = @transform_5, window_bounds = array<i64: 192, 10>}, {pipeline_mode = #tpu.pipeline_mode<synchronous>, transform_indices = @transform_6, window_bounds = array<i64: 1, 10>}, {transform_indices = @transform_7, window_bounds = array<i64: 8, 10>}]} {
    %c0 = arith.constant 0 : index
    %c0_0 = arith.constant 0 : index
    %0 = vector.load %arg1[%c0, %c0_0] : memref<8x1024xbf16, #tpu.memory_space<vmem>>, vector<8x1024xbf16>
    %c0_1 = arith.constant 0 : index
    %c0_2 = arith.constant 0 : index
    %1 = vector.load %arg2[%c0_1, %c0_2] : memref<1024x384xbf16, #tpu.memory_space<vmem>>, vector<1024x384xbf16>
    %cst = arith.constant dense<0.000000e+00> : vector<8x384xf32>
    %2 = tpu.matmul %0, %1, %cst {dimension_numbers = #tpu.dot_dimension_numbers<[1], [0], [0], [1], [0, 0, 1, 1], [], []>} : vector<8x1024xbf16>, vector<1024x384xbf16>, vector<8x384xf32> -> vector<8x384xf32>
    %c0_3 = arith.constant 0 : index
    %c0_4 = arith.constant 0 : index
    %3 = vector.load %arg3[%c0_3, %c0_4] : memref<1x384xf32, #tpu.memory_space<vmem>>, vector<1x384xf32>
    %4 = vector.broadcast %3 : vector<1x384xf32> to vector<8x384xf32>
    %5 = arith.addf %2, %4 : vector<8x384xf32>
    %cst_5 = arith.constant 0.000000e+00 : f32
    %6 = vector.broadcast %cst_5 : f32 to vector<8x384xf32>
    %7 = arith.maximumf %5, %6 : vector<8x384xf32>
    %8 = arith.truncf %7 : vector<8x384xf32> to vector<8x384xbf16>
    %c0_6 = arith.constant 0 : index
    %c0_7 = arith.constant 0 : index
    %9 = vector.load %arg4[%c0_6, %c0_7] : memref<384x192xbf16, #tpu.memory_space<vmem>>, vector<384x192xbf16>
    %cst_8 = arith.constant dense<0.000000e+00> : vector<8x192xf32>
    %10 = tpu.matmul %8, %9, %cst_8 {dimension_numbers = #tpu.dot_dimension_numbers<[1], [0], [0], [1], [0, 0, 1, 1], [], []>} : vector<8x384xbf16>, vector<384x192xbf16>, vector<8x192xf32> -> vector<8x192xf32>
    %c0_9 = arith.constant 0 : index
    %c0_10 = arith.constant 0 : index
    %11 = vector.load %arg5[%c0_9, %c0_10] : memref<1x192xf32, #tpu.memory_space<vmem>>, vector<1x192xf32>
    %12 = vector.broadcast %11 : vector<1x192xf32> to vector<8x192xf32>
    %13 = arith.addf %10, %12 : vector<8x192xf32>
    %cst_11 = arith.constant 0.000000e+00 : f32
    %14 = vector.broadcast %cst_11 : f32 to vector<8x192xf32>
    %15 = arith.maximumf %13, %14 : vector<8x192xf32>
    %16 = arith.truncf %15 : vector<8x192xf32> to vector<8x192xbf16>
    %c0_12 = arith.constant 0 : index
    %c0_13 = arith.constant 0 : index
    %17 = vector.load %arg6[%c0_12, %c0_13] : memref<192x10xbf16, #tpu.memory_space<vmem>>, vector<192x10xbf16>
    %cst_14 = arith.constant dense<0.000000e+00> : vector<8x10xf32>
    %18 = tpu.matmul %16, %17, %cst_14 {dimension_numbers = #tpu.dot_dimension_numbers<[1], [0], [0], [1], [0, 0, 1, 1], [], []>} : vector<8x192xbf16>, vector<192x10xbf16>, vector<8x10xf32> -> vector<8x10xf32>
    %c0_15 = arith.constant 0 : index
    %c0_16 = arith.constant 0 : index
    %19 = vector.load %arg7[%c0_15, %c0_16] : memref<1x10xf32, #tpu.memory_space<vmem>>, vector<1x10xf32>
    %20 = vector.broadcast %19 : vector<1x10xf32> to vector<8x10xf32>
    %21 = arith.addf %18, %20 : vector<8x10xf32>
    %cst_17 = arith.constant dense<0xFF800000> : vector<8xf32>
    %22 = vector.multi_reduction <maximumf>, %21, %cst_17 [1] : vector<8x10xf32> to vector<8xf32>
    %23 = vector.shape_cast %22 : vector<8xf32> to vector<8x1xf32>
    %24 = vector.broadcast %23 : vector<8x1xf32> to vector<8x10xf32>
    %25 = arith.subf %21, %24 : vector<8x10xf32>
    %26 = math.exp %25 : vector<8x10xf32>
    %cst_18 = arith.constant dense<0.000000e+00> : vector<8xf32>
    %27 = vector.multi_reduction <add>, %26, %cst_18 [1] : vector<8x10xf32> to vector<8xf32>
    %28 = vector.shape_cast %27 : vector<8xf32> to vector<8x1xf32>
    %29 = math.log %28 : vector<8x1xf32>
    %30 = vector.broadcast %29 : vector<8x1xf32> to vector<8x10xf32>
    %31 = arith.subf %25, %30 : vector<8x10xf32>
    %c0_19 = arith.constant 0 : index
    %c0_20 = arith.constant 0 : index
    %32 = vector.load %arg8[%c0_19, %c0_20] : memref<8x10xf32, #tpu.memory_space<vmem>>, vector<8x10xf32>
    tpu.vector_store %arg8[%c0_19, %c0_20], %31 {strides = array<i32>} : memref<8x10xf32, #tpu.memory_space<vmem>>, vector<8x10xf32>,
    return
  }
  func.func @transform_0(%arg0: i32) -> (i32, i32) {
    %c0_i32 = arith.constant 0 : i32
    %c0_i32_0 = arith.constant 0 : i32
    return %arg0, %c0_i32 : i32, i32
  }
  func.func @transform_1(%arg0: i32) -> (i32, i32) {
    %c0_i32 = arith.constant 0 : i32
    %c0_i32_0 = arith.constant 0 : i32
    %c0_i32_1 = arith.constant 0 : i32
    return %c0_i32, %c0_i32_0 : i32, i32
  }
  func.func @transform_2(%arg0: i32) -> (i32, i32) {
    %c0_i32 = arith.constant 0 : i32
    %c0_i32_0 = arith.constant 0 : i32
    %c0_i32_1 = arith.constant 0 : i32
    return %c0_i32, %c0_i32_0 : i32, i32
  }
  func.func @transform_3(%arg0: i32) -> (i32, i32) {
    %c0_i32 = arith.constant 0 : i32
    %c0_i32_0 = arith.constant 0 : i32
    %c0_i32_1 = arith.constant 0 : i32
    return %c0_i32, %c0_i32_0 : i32, i32
  }
  func.func @transform_4(%arg0: i32) -> (i32, i32) {
    %c0_i32 = arith.constant 0 : i32
    %c0_i32_0 = arith.constant 0 : i32
    %c0_i32_1 = arith.constant 0 : i32
    return %c0_i32, %c0_i32_0 : i32, i32
  }
  func.func @transform_5(%arg0: i32) -> (i32, i32) {
    %c0_i32 = arith.constant 0 : i32
    %c0_i32_0 = arith.constant 0 : i32
    %c0_i32_1 = arith.constant 0 : i32
    return %c0_i32, %c0_i32_0 : i32, i32
  }
  func.func @transform_6(%arg0: i32) -> (i32, i32) {
    %c0_i32 = arith.constant 0 : i32
    %c0_i32_0 = arith.constant 0 : i32
    %c0_i32_1 = arith.constant 0 : i32
    return %c0_i32, %c0_i32_0 : i32, i32
  }
  func.func @transform_7(%arg0: i32) -> (i32, i32) {
    %c0_i32 = arith.constant 0 : i32
    %c0_i32_0 = arith.constant 0 : i32
    return %arg0, %c0_i32 : i32, i32
  }
}

</mosaic_0001>

<llo_original>
// kernel: cnn_cifar_forward.3
$region0: #{cnn_cifar_forward.3}
  #allocation0 [shape = 'u32[]', space=smem, size = 0x4, offset = 0x4, fixed_abs, tag = 'smem constant byte address 0x4 - core index']
  #allocation1 [shape = 'u32[144,128]{1,0:T(1,128)}', space=vmem, size = 0x12000, scoped, tag = 'internal scratch']
  #allocation2 [shape = 'f32[784,64]{1,0:T(8,128)}', space=vmem, size = 0x62000, scoped, tag = 'scratch operand']
  #allocation3 [shape = 'f32[13,28,64]{2,1,0:T(8,128)}', space=vmem, size = 0x34000, scoped, tag = 'scratch operand']
  %s0 = inlined_call_operand.vmem [shape: bf16[2,784,128], index: 0, kind: input, shape index: {}]
  %s1 = inlined_call_operand.vmem [shape: bf16[128,64], index: 1, kind: input, shape index: {}]
  %s2 = inlined_call_operand.vmem [shape: f32[1,64], index: 2, kind: input, shape index: {}]
  %s3 = inlined_call_operand.vmem [shape: bf16[2,13,13,64], index: 3, kind: output, shape index: {}]
  %s4 = sld [smem:[#allocation0]]
  $region45: #{cnn_cifar_forward.3} parent=0
    _
  %s6 = ssub.s32 1, %s4
  %s7 = scalar_select 0, %s6, %s4
  loop: start=0, step=1, limit=4
  $region2: #{cnn_cifar_forward.3} parent=0 // loop_pre_header
    _
  $region3: #{cnn_cifar_forward.3} parent=0 // loop_header
    %s9 = sphi 0, %s13
    %p10 = scmp.ge.s32.totalorder %s9, 4
    %s19 = sphi 0, %s21
    %s22 = sphi 0, %s19
    %s23 = sphi 0, %s22
    %s39 = sphi 0, %s23
    %s43 = sphi 0, %s43
    %s45 = sphi 0, %s43
    %s46 = sphi 0, %s45
    %s60 = sphi 0, %s46
    %s64 = sphi 0, %s64
    %s66 = sphi 0, %s64
    %s67 = sphi 0, %s66
    %s81 = sphi 0, %s67
    %s87 = sphi 0, %s89
    %s90 = sphi 0, %s87
    %s91 = sphi 0, %s90
    %s107 = sphi 0, %s91
  $region4: #{cnn_cifar_forward.3} parent=0 // loop_header_branch
    %12 = sbr.rel (%p10) target = $region8
  $region5: #{cnn_cifar_forward.3} parent=0 // loop_body
    %s14 = ssub.s32 %s9, 1
    %s15 = ssub.s32 %s9, 2
    %s16 = sadd.s32 %s9, 1
    %s17 = ssub.s32 %s9, %s16
    %p18 = scmp.eq.s32.totalorder %s17, 0
    %s20 = sadd.s32 %s19, 1
    %s21 = scalar_select %p18, %s19, %s20
    %p24 = pneg %p18
    %p25 = scmp.eq.s32.totalorder %s9, 1
    %p26 = por %p24, %p25
    %p27 = scmp.ne.s32.totalorder %s19, %s22
    %p28 = scmp.eq.s32.totalorder %s9, 0
    %p29 = por %p27, %p28
    %p30 = scmp.ne.s32.totalorder %s19, %s22
    %p31 = scmp.eq.s32.totalorder %s14, 1
    %p32 = por %p30, %p31
    %p33 = scmp.ne.s32.totalorder %s22, %s23
    %p34 = scmp.eq.s32.totalorder %s14, 0
    %p35 = por %p33, %p34
    %p36 = scmp.ne.s32.totalorder %s22, %s23
    %p37 = scmp.eq.s32.totalorder %s15, 1
    %p38 = por %p36, %p37
    %p40 = scmp.ne.s32.totalorder %s23, %s39
    %p41 = scmp.eq.s32.totalorder %s15, 0
    %p42 = por %p40, %p41
    %s44 = sadd.s32 %s43, 1
    %p47 = scmp.eq.s32.totalorder %s9, 1
    %p48 = scmp.ne.s32.totalorder %s43, %s45
    %p49 = scmp.eq.s32.totalorder %s9, 0
    %p50 = por %p48, %p49
    %p51 = scmp.ne.s32.totalorder %s43, %s45
    %p52 = scmp.eq.s32.totalorder %s14, 1
    %p53 = por %p51, %p52
    %p54 = scmp.ne.s32.totalorder %s45, %s46
    %p55 = scmp.eq.s32.totalorder %s14, 0
    %p56 = por %p54, %p55
    %p57 = scmp.ne.s32.totalorder %s45, %s46
    %p58 = scmp.eq.s32.totalorder %s15, 1
    %p59 = por %p57, %p58
    %p61 = scmp.ne.s32.totalorder %s46, %s60
    %p62 = scmp.eq.s32.totalorder %s15, 0
    %p63 = por %p61, %p62
    %s65 = sadd.s32 %s64, 1
    %p68 = scmp.eq.s32.totalorder %s9, 1
    %p69 = scmp.ne.s32.totalorder %s64, %s66
    %p70 = scmp.eq.s32.totalorder %s9, 0
    %p71 = por %p69, %p70
    %p72 = scmp.ne.s32.totalorder %s64, %s66
    %p73 = scmp.eq.s32.totalorder %s14, 1
    %p74 = por %p72, %p73
    %p75 = scmp.ne.s32.totalorder %s66, %s67
    %p76 = scmp.eq.s32.totalorder %s14, 0
    %p77 = por %p75, %p76
    %p78 = scmp.ne.s32.totalorder %s66, %s67
    %p79 = scmp.eq.s32.totalorder %s15, 1
    %p80 = por %p78, %p79
    %p82 = scmp.ne.s32.totalorder %s67, %s81
    %p83 = scmp.eq.s32.totalorder %s15, 0
    %p84 = por %p82, %p83
    %s85 = ssub.s32 %s9, %s16
    %p86 = scmp.eq.s32.totalorder %s85, 0
    %s88 = sadd.s32 %s87, 1
    %s89 = scalar_select %p86, %s87, %s88
    %p92 = pneg %p86
    %p93 = scmp.eq.s32.totalorder %s9, 1
    %p94 = por %p92, %p93
    %p95 = scmp.ne.s32.totalorder %s87, %s90
    %p96 = scmp.eq.s32.totalorder %s9, 0
    %p97 = por %p95, %p96
    %p98 = scmp.ne.s32.totalorder %s87, %s90
    %p99 = scmp.eq.s32.totalorder %s14, 1
    %p100 = por %p98, %p99
    %p101 = scmp.ne.s32.totalorder %s90, %s91
    %p102 = scmp.eq.s32.totalorder %s14, 0
    %p103 = por %p101, %p102
    %p104 = scmp.ne.s32.totalorder %s90, %s91
    %p105 = scmp.eq.s32.totalorder %s15, 1
    %p106 = por %p104, %p105
    %p108 = scmp.ne.s32.totalorder %s91, %s107
    %p109 = scmp.eq.s32.totalorder %s15, 0
    %p110 = por %p108, %p109
    %p111 = scmp.le.s32.totalorder 1, %s9
    %p112 = scmp.lt.s32.totalorder %s9, 3
    %p113 = pnand %p111, %p112
    %p114 = pneg %p113
    // Predicated region
    $region9: #{cnn_cifar_forward.3} parent=5 // pred_check
      _
    $region10: #{cnn_cifar_forward.3} parent=5 // pred_check_branch
      %116 = sbr.rel (%p113) target = $region12
    $region11: #{cnn_cifar_forward.3} parent=5 // pred_region
      %s117 = ssub.s32 %s9, 1
      // Predicated region
      $region13: #{cnn_cifar_forward.3} parent=11 // pred_check
        %p118 = pneg %p56
      $region14: #{cnn_cifar_forward.3} parent=11 // pred_check_branch
        %120 = sbr.rel (%p118) target = $region16
      $region15: #{cnn_cifar_forward.3} parent=11 // pred_region
        _
      $region16: #{cnn_cifar_forward.3} parent=11 // pred_fallthru
        _
      // Predicated region
      $region17: #{cnn_cifar_forward.3} parent=11 // pred_check
        %p121 = pneg %p77
      $region18: #{cnn_cifar_forward.3} parent=11 // pred_check_branch
        %123 = sbr.rel (%p121) target = $region20
      $region19: #{cnn_cifar_forward.3} parent=11 // pred_region
        _
      $region20: #{cnn_cifar_forward.3} parent=11 // pred_fallthru
        _
    $region12: #{cnn_cifar_forward.3} parent=5 // pred_fallthru
      _
    %p124 = scmp.lt.s32.totalorder %s9, 2
    // Predicated region
    $region21: #{cnn_cifar_forward.3} parent=5 // pred_check
      %p125 = pneg %p124
    $region22: #{cnn_cifar_forward.3} parent=5 // pred_check_branch
      %127 = sbr.rel (%p125) target = $region24
    $region23: #{cnn_cifar_forward.3} parent=5 // pred_region
      // Predicated region
      $region25: #{cnn_cifar_forward.3} parent=23 // pred_check
        %p128 = pneg %p29
      $region26: #{cnn_cifar_forward.3} parent=23 // pred_check_branch
        %130 = sbr.rel (%p128) target = $region28
      $region27: #{cnn_cifar_forward.3} parent=23 // pred_region
        %p131 = scmp.lt.s32.totalorder %s9, 1
        %s132 = scalar_select %p131, %s9, 1
        %s133 = smul.addr %s132, 98
        %s134 = smul.addr %s133, 4
        %s135 = scalar_lea.vmem %s0, %s134
      $region28: #{cnn_cifar_forward.3} parent=23 // pred_fallthru
        _
    $region24: #{cnn_cifar_forward.3} parent=5 // pred_fallthru
      _
    %p136 = scmp.le.s32.totalorder 1, %s9
    %p137 = scmp.lt.s32.totalorder %s9, 3
    %p138 = pnand %p136, %p137
    %p139 = pneg %p138
    // Predicated region
    $region29: #{cnn_cifar_forward.3} parent=5 // pred_check
      _
    $region30: #{cnn_cifar_forward.3} parent=5 // pred_check_branch
      %141 = sbr.rel (%p138) target = $region32
    $region31: #{cnn_cifar_forward.3} parent=5 // pred_region
      %s142 = ssub.s32 %s9, 1
      %p143 = scmp.lt.s32.totalorder %s14, 1
      %s144 = scalar_select %p143, %s14, 1
      %s145 = smul.addr %s144, 98
      %s146 = smul.addr %s145, 4
      %s147 = scalar_lea.vmem %s0, %s146
      %p148 = pneg %p35
      %p149 = pneg %p32
      %p150 = pneg %p56
      %p151 = pneg %p53
      %p152 = pneg %p77
      %p153 = pneg %p74
      %p154 = pneg %p103
      %p155 = pneg %p100
      %p156 = scmp.lt.s32.totalorder %s14, 1
      %s157 = scalar_select %p156, %s14, 1
      %s158 = smul.addr %s157, 26
      %s159 = smul.addr %s158, 4
      %s160 = scalar_lea.vmem %s3, %s159
      %p161 = scmp.lt.s32.totalorder %s14, 1
      %s162 = scalar_select %p161, %s14, 1
      %s163 = smul.addr %s162, 98
      %s164 = smul.addr %s163, 4
      %s165 = scalar_lea.vmem %s0, %s164
      %p166 = scmp.lt.s32.totalorder %s14, 1
      %s167 = scalar_select %p166, %s14, 1
      %s168 = smul.addr %s167, 26
      %s169 = smul.addr %s168, 4
      %s170 = scalar_lea.vmem %s3, %s169
      %v172 = vld [vmem:[%s165] sm:$0xf]
      %v173 = vld [vmem:[%s165 + $0x4] sm:$0xf]
      %v174 = vld [vmem:[%s165 + $0x8] sm:$0xf]
      %v175 = vld [vmem:[%s165 + $0xc] sm:$0xf]
      %v176 = vld [vmem:[%s165 + $0x10] sm:$0xf]
      %v177 = vld [vmem:[%s165 + $0x14] sm:$0xf]
      %v178 = vld [vmem:[%s165 + $0x18] sm:$0xf]
      %v179 = vld [vmem:[%s165 + $0x1c] sm:$0xf]
      %v180 = vld [vmem:[%s165 + $0x20] sm:$0xf]
      %v181 = vld [vmem:[%s165 + $0x24] sm:$0xf]
      %v182 = vld [vmem:[%s165 + $0x28] sm:$0xf]
      %v183 = vld [vmem:[%s165 + $0x2c] sm:$0xf]
      %v184 = vld [vmem:[%s165 + $0x30] sm:$0xf]
      %v185 = vld [vmem:[%s165 + $0x34] sm:$0xf]
      %v186 = vld [vmem:[%s165 + $0x38] sm:$0xf]
      %v187 = vld [vmem:[%s165 + $0x3c] sm:$0xf]
      %v188 = vld [vmem:[%s165 + $0x40] sm:$0xf]
      %v189 = vld [vmem:[%s165 + $0x44] sm:$0xf]
      %v190 = vld [vmem:[%s165 + $0x48] sm:$0xf]
      %v191 = vld [vmem:[%s165 + $0x4c] sm:$0xf]
      %v192 = vld [vmem:[%s165 + $0x50] sm:$0xf]
      %v193 = vld [vmem:[%s165 + $0x54] sm:$0xf]
      %v194 = vld [vmem:[%s165 + $0x58] sm:$0xf]
      %v195 = vld [vmem:[%s165 + $0x5c] sm:$0xf]
      %v196 = vld [vmem:[%s165 + $0x60] sm:$0xf]
      %v197 = vld [vmem:[%s165 + $0x64] sm:$0xf]
      %v198 = vld [vmem:[%s165 + $0x68] sm:$0xf]
      %v199 = vld [vmem:[%s165 + $0x6c] sm:$0xf]
      %v200 = vld [vmem:[%s165 + $0x70] sm:$0xf]
      %v201 = vld [vmem:[%s165 + $0x74] sm:$0xf]
      %v202 = vld [vmem:[%s165 + $0x78] sm:$0xf]
      %v203 = vld [vmem:[%s165 + $0x7c] sm:$0xf]
      %v204 = vld [vmem:[%s165 + $0x80] sm:$0xf]
      %v205 = vld [vmem:[%s165 + $0x84] sm:$0xf]
      %v206 = vld [vmem:[%s165 + $0x88] sm:$0xf]
      %v207 = vld [vmem:[%s165 + $0x8c] sm:$0xf]
      %v208 = vld [vmem:[%s165 + $0x90] sm:$0xf]
      %v209 = vld [vmem:[%s165 + $0x94] sm:$0xf]
      %v210 = vld [vmem:[%s165 + $0x98] sm:$0xf]
      %v211 = vld [vmem:[%s165 + $0x9c] sm:$0xf]
      %v212 = vld [vmem:[%s165 + $0xa0] sm:$0xf]
      %v213 = vld [vmem:[%s165 + $0xa4] sm:$0xf]
      %v214 = vld [vmem:[%s165 + $0xa8] sm:$0xf]
      %v215 = vld [vmem:[%s165 + $0xac] sm:$0xf]
      %v216 = vld [vmem:[%s165 + $0xb0] sm:$0xf]
      %v217 = vld [vmem:[%s165 + $0xb4] sm:$0xf]
      %v218 = vld [vmem:[%s165 + $0xb8] sm:$0xf]
      %v219 = vld [vmem:[%s165 + $0xbc] sm:$0xf]
      %v220 = vld [vmem:[%s165 + $0xc0] sm:$0xf]
      %v221 = vld [vmem:[%s165 + $0xc4] sm:$0xf]
      %v222 = vld [vmem:[%s165 + $0xc8] sm:$0xf]
      %v223 = vld [vmem:[%s165 + $0xcc] sm:$0xf]
      %v224 = vld [vmem:[%s165 + $0xd0] sm:$0xf]
      %v225 = vld [vmem:[%s165 + $0xd4] sm:$0xf]
      %v226 = vld [vmem:[%s165 + $0xd8] sm:$0xf]
      %v227 = vld [vmem:[%s165 + $0xdc] sm:$0xf]
      %v228 = vld [vmem:[%s165 + $0xe0] sm:$0xf]
      %v229 = vld [vmem:[%s165 + $0xe4] sm:$0xf]
      %v230 = vld [vmem:[%s165 + $0xe8] sm:$0xf]
      %v231 = vld [vmem:[%s165 + $0xec] sm:$0xf]
      %v232 = vld [vmem:[%s165 + $0xf0] sm:$0xf]
      %v233 = vld [vmem:[%s165 + $0xf4] sm:$0xf]
      %v234 = vld [vmem:[%s165 + $0xf8] sm:$0xf]
      %v235 = vld [vmem:[%s165 + $0xfc] sm:$0xf]
      %v236 = vld [vmem:[%s165 + $0x100] sm:$0xf]
      %v237 = vld [vmem:[%s165 + $0x104] sm:$0xf]
      %v238 = vld [vmem:[%s165 + $0x108] sm:$0xf]
      %v239 = vld [vmem:[%s165 + $0x10c] sm:$0xf]
      %v240 = vld [vmem:[%s165 + $0x110] sm:$0xf]
      %v241 = vld [vmem:[%s165 + $0x114] sm:$0xf]
      %v242 = vld [vmem:[%s165 + $0x118] sm:$0xf]
      %v243 = vld [vmem:[%s165 + $0x11c] sm:$0xf]
      %v244 = vld [vmem:[%s165 + $0x120] sm:$0xf]
      %v245 = vld [vmem:[%s165 + $0x124] sm:$0xf]
      %v246 = vld [vmem:[%s165 + $0x128] sm:$0xf]
      %v247 = vld [vmem:[%s165 + $0x12c] sm:$0xf]
      %v248 = vld [vmem:[%s165 + $0x130] sm:$0xf]
      %v249 = vld [vmem:[%s165 + $0x134] sm:$0xf]
      %v250 = vld [vmem:[%s165 + $0x138] sm:$0xf]
      %v251 = vld [vmem:[%s165 + $0x13c] sm:$0xf]
      %v252 = vld [vmem:[%s165 + $0x140] sm:$0xf]
      %v253 = vld [vmem:[%s165 + $0x144] sm:$0xf]
      %v254 = vld [vmem:[%s165 + $0x148] sm:$0xf]
      %v255 = vld [vmem:[%s165 + $0x14c] sm:$0xf]
      %v256 = vld [vmem:[%s165 + $0x150] sm:$0xf]
      %v257 = vld [vmem:[%s165 + $0x154] sm:$0xf]
      %v258 = vld [vmem:[%s165 + $0x158] sm:$0xf]
      %v259 = vld [vmem:[%s165 + $0x15c] sm:$0xf]
      %v260 = vld [vmem:[%s165 + $0x160] sm:$0xf]
      %v261 = vld [vmem:[%s165 + $0x164] sm:$0xf]
      %v262 = vld [vmem:[%s165 + $0x168] sm:$0xf]
      %v263 = vld [vmem:[%s165 + $0x16c] sm:$0xf]
      %v264 = vld [vmem:[%s165 + $0x170] sm:$0xf]
      %v265 = vld [vmem:[%s165 + $0x174] sm:$0xf]
      %v266 = vld [vmem:[%s165 + $0x178] sm:$0xf]
      %v267 = vld [vmem:[%s165 + $0x17c] sm:$0xf]
      %v268 = vld [vmem:[%s165 + $0x180] sm:$0xf]
      %v269 = vld [vmem:[%s165 + $0x184] sm:$0xf]
      %v270 = vld [vmem:[%s1] sm:$0xf]
      %v271 = vld [vmem:[%s1 + $0x4] sm:$0xf]
      %v272 = vld [vmem:[%s1 + $0x8] sm:$0xf]
      %v273 = vld [vmem:[%s1 + $0xc] sm:$0xf]
      %v274 = vld [vmem:[%s1 + $0x10] sm:$0xf]
      %v275 = vld [vmem:[%s1 + $0x14] sm:$0xf]
      %v276 = vld [vmem:[%s1 + $0x18] sm:$0xf]
      %v277 = vld [vmem:[%s1 + $0x1c] sm:$0xf]
      %v278 = vld [vmem:[%s1 + $0x20] sm:$0xf]
      %v279 = vld [vmem:[%s1 + $0x24] sm:$0xf]
      %v280 = vld [vmem:[%s1 + $0x28] sm:$0xf]
      %v281 = vld [vmem:[%s1 + $0x2c] sm:$0xf]
      %v282 = vld [vmem:[%s1 + $0x30] sm:$0xf]
      %v283 = vld [vmem:[%s1 + $0x34] sm:$0xf]
      %v284 = vld [vmem:[%s1 + $0x38] sm:$0xf]
      %v285 = vld [vmem:[%s1 + $0x3c] sm:$0xf]
      %v286 = vld [vmem:[%s2] sm:$0x1]
      %v288 = vlaneseq
      %v289 = vshrl.u32 %v288, 7
      %v290 = vsub.s32 0, %v289
      %v291 = vrot.slane %v286, %v290
      %v391 = vunpack.c.l.b16 %v172
      %v392 = vunpack.c.l.b16 %v173
      %v393 = vunpack.c.l.b16 %v174
      %v394 = vunpack.c.l.b16 %v175
      %v395 = vunpack.c.l.b16 %v176
      %v396 = vunpack.c.l.b16 %v177
      %v397 = vunpack.c.l.b16 %v178
      %v398 = vunpack.c.l.b16 %v179
      %v399 = vunpack.c.l.b16 %v180
      %v400 = vunpack.c.l.b16 %v181
      %v401 = vunpack.c.l.b16 %v182
      %v402 = vunpack.c.l.b16 %v183
      %v403 = vunpack.c.l.b16 %v184
      %v404 = vunpack.c.l.b16 %v185
      %v405 = vunpack.c.l.b16 %v186
      %v406 = vunpack.c.l.b16 %v187
      %v407 = vunpack.c.l.b16 %v188
      %v408 = vunpack.c.l.b16 %v189
      %v409 = vunpack.c.l.b16 %v190
      %v410 = vunpack.c.l.b16 %v191
      %v411 = vunpack.c.l.b16 %v192
      %v412 = vunpack.c.l.b16 %v193
      %v413 = vunpack.c.l.b16 %v194
      %v414 = vunpack.c.l.b16 %v195
      %v415 = vunpack.c.l.b16 %v196
      %v416 = vunpack.c.l.b16 %v197
      %v417 = vunpack.c.l.b16 %v198
      %v418 = vunpack.c.l.b16 %v199
      %v419 = vunpack.c.l.b16 %v200
      %v420 = vunpack.c.l.b16 %v201
      %v421 = vunpack.c.l.b16 %v202
      %v422 = vunpack.c.l.b16 %v203
      %v423 = vunpack.c.l.b16 %v204
      %v424 = vunpack.c.l.b16 %v205
      %v425 = vunpack.c.l.b16 %v206
      %v426 = vunpack.c.l.b16 %v207
      %v427 = vunpack.c.l.b16 %v208
      %v428 = vunpack.c.l.b16 %v209
      %v429 = vunpack.c.l.b16 %v210
      %v430 = vunpack.c.l.b16 %v211
      %v431 = vunpack.c.l.b16 %v212
      %v432 = vunpack.c.l.b16 %v213
      %v433 = vunpack.c.l.b16 %v214
      %v434 = vunpack.c.l.b16 %v215
      %v435 = vunpack.c.l.b16 %v216
      %v436 = vunpack.c.l.b16 %v217
      %v437 = vunpack.c.l.b16 %v218
      %v438 = vunpack.c.l.b16 %v219
      %v439 = vunpack.c.l.b16 %v220
      %v440 = vunpack.c.l.b16 %v221
      %v441 = vunpack.c.l.b16 %v222
      %v442 = vunpack.c.l.b16 %v223
      %v443 = vunpack.c.l.b16 %v224
      %v444 = vunpack.c.l.b16 %v225
      %v445 = vunpack.c.l.b16 %v226
      %v446 = vunpack.c.l.b16 %v227
      %v447 = vunpack.c.l.b16 %v228
      %v448 = vunpack.c.l.b16 %v229
      %v449 = vunpack.c.l.b16 %v230
      %v450 = vunpack.c.l.b16 %v231
      %v451 = vunpack.c.l.b16 %v232
      %v452 = vunpack.c.l.b16 %v233
      %v453 = vunpack.c.l.b16 %v234
      %v454 = vunpack.c.l.b16 %v235
      %v455 = vunpack.c.l.b16 %v236
      %v456 = vunpack.c.l.b16 %v237
      %v457 = vunpack.c.l.b16 %v238
      %v458 = vunpack.c.l.b16 %v239
      %v459 = vunpack.c.l.b16 %v240
      %v460 = vunpack.c.l.b16 %v241
      %v461 = vunpack.c.l.b16 %v242
      %v462 = vunpack.c.l.b16 %v243
      %v463 = vunpack.c.l.b16 %v244
      %v464 = vunpack.c.l.b16 %v245
      %v465 = vunpack.c.l.b16 %v246
      %v466 = vunpack.c.l.b16 %v247
      %v467 = vunpack.c.l.b16 %v248
      %v468 = vunpack.c.l.b16 %v249
      %v469 = vunpack.c.l.b16 %v250
      %v470 = vunpack.c.l.b16 %v251
      %v471 = vunpack.c.l.b16 %v252
      %v472 = vunpack.c.l.b16 %v253
      %v473 = vunpack.c.l.b16 %v254
      %v474 = vunpack.c.l.b16 %v255
      %v475 = vunpack.c.l.b16 %v256
      %v476 = vunpack.c.l.b16 %v257
      %v477 = vunpack.c.l.b16 %v258
      %v478 = vunpack.c.l.b16 %v259
      %v479 = vunpack.c.l.b16 %v260
      %v480 = vunpack.c.l.b16 %v261
      %v481 = vunpack.c.l.b16 %v262
      %v482 = vunpack.c.l.b16 %v263
      %v483 = vunpack.c.l.b16 %v264
      %v484 = vunpack.c.l.b16 %v265
      %v485 = vunpack.c.l.b16 %v266
      %v486 = vunpack.c.l.b16 %v267
      %v487 = vunpack.c.l.b16 %v268
      %v488 = vunpack.c.l.b16 %v269
      %v489 = vpack.c.b16 %v392, %v391
      %v490 = vpack.c.b16 %v394, %v393
      %v491 = vpack.c.b16 %v396, %v395
      %v492 = vpack.c.b16 %v398, %v397
      %v493 = vpack.c.b16 %v400, %v399
      %v494 = vpack.c.b16 %v402, %v401
      %v495 = vpack.c.b16 %v404, %v403
      %v496 = vpack.c.b16 %v406, %v405
      %v497 = vpack.c.b16 %v408, %v407
      %v498 = vpack.c.b16 %v410, %v409
      %v499 = vpack.c.b16 %v412, %v411
      %v500 = vpack.c.b16 %v414, %v413
      %v501 = vpack.c.b16 %v416, %v415
      %v502 = vpack.c.b16 %v418, %v417
      %v503 = vpack.c.b16 %v420, %v419
      %v504 = vpack.c.b16 %v422, %v421
      %v505 = vpack.c.b16 %v424, %v423
      %v506 = vpack.c.b16 %v426, %v425
      %v507 = vpack.c.b16 %v428, %v427
      %v508 = vpack.c.b16 %v430, %v429
      %v509 = vpack.c.b16 %v432, %v431
      %v510 = vpack.c.b16 %v434, %v433
      %v511 = vpack.c.b16 %v436, %v435
      %v512 = vpack.c.b16 %v438, %v437
      %v513 = vpack.c.b16 %v440, %v439
      %v514 = vpack.c.b16 %v442, %v441
      %v515 = vpack.c.b16 %v444, %v443
      %v516 = vpack.c.b16 %v446, %v445
      %v517 = vpack.c.b16 %v448, %v447
      %v518 = vpack.c.b16 %v450, %v449
      %v519 = vpack.c.b16 %v452, %v451
      %v520 = vpack.c.b16 %v454, %v453
      %v521 = vpack.c.b16 %v456, %v455
      %v522 = vpack.c.b16 %v458, %v457
      %v523 = vpack.c.b16 %v460, %v459
      %v524 = vpack.c.b16 %v462, %v461
      %v525 = vpack.c.b16 %v464, %v463
      %v526 = vpack.c.b16 %v466, %v465
      %v527 = vpack.c.b16 %v468, %v467
      %v528 = vpack.c.b16 %v470, %v469
      %v529 = vpack.c.b16 %v472, %v471
      %v530 = vpack.c.b16 %v474, %v473
      %v531 = vpack.c.b16 %v476, %v475
      %v532 = vpack.c.b16 %v478, %v477
      %v533 = vpack.c.b16 %v480, %v479
      %v534 = vpack.c.b16 %v482, %v481
      %v535 = vpack.c.b16 %v484, %v483
      %v536 = vpack.c.b16 %v486, %v485
      %v537 = vpack.c.b16 %v488, %v487
      %v603 = vunpack.c.l.b16 %v270
      %v604 = vunpack.c.l.b16 %v271
      %v605 = vunpack.c.l.b16 %v272
      %v606 = vunpack.c.l.b16 %v273
      %v607 = vunpack.c.l.b16 %v274
      %v608 = vunpack.c.l.b16 %v275
      %v609 = vunpack.c.l.b16 %v276
      %v610 = vunpack.c.l.b16 %v277
      %v611 = vunpack.c.l.b16 %v278
      %v612 = vunpack.c.l.b16 %v279
      %v613 = vunpack.c.l.b16 %v280
      %v614 = vunpack.c.l.b16 %v281
      %v615 = vunpack.c.l.b16 %v282
      %v616 = vunpack.c.l.b16 %v283
      %v617 = vunpack.c.l.b16 %v284
      %v618 = vunpack.c.l.b16 %v285
      %v619 = vpack.c.b16 %v604, %v603
      %v620 = vpack.c.b16 %v606, %v605
      %v621 = vpack.c.b16 %v608, %v607
      %v622 = vpack.c.b16 %v610, %v609
      %v623 = vpack.c.b16 %v612, %v611
      %v624 = vpack.c.b16 %v614, %v613
      %v625 = vpack.c.b16 %v616, %v615
      %v626 = vpack.c.b16 %v618, %v617
      %635 = vmatprep.subr.bf16.mxu0 0
      %636 = vmatpush1.bf16.msra.mxu0 %v619
      %637 = vmatprep.subr.bf16.mxu0 0
      %638 = vmatpush1.bf16.msra.mxu0 %v620
      %639 = vmatprep.subr.bf16.mxu0 0
      %640 = vmatpush1.bf16.msra.mxu0 %v621
      %641 = vmatprep.subr.bf16.mxu0 0
      %642 = vmatpush1.bf16.msra.mxu0 %v622
      %643 = vmatprep.subr.bf16.mxu0 0
      %644 = vmatpush1.bf16.msra.mxu0 %v623
      %645 = vmatprep.subr.bf16.mxu0 0
      %646 = vmatpush1.bf16.msra.mxu0 %v624
      %647 = vmatprep.subr.bf16.mxu0 0
      %648 = vmatpush1.bf16.msra.mxu0 %v625
      %649 = vmatprep.subr.bf16.mxu0 0
      %650 = vmatpush1.bf16.msra.mxu0 %v626
      %651 = vmatprep.subr.bf16.mxu0 0
      %652 = vmatpush1.bf16.msra.mxu0 0
      %653 = vmatprep.subr.bf16.mxu0 0
      %654 = vmatpush1.bf16.msra.mxu0 0
      %655 = vmatprep.subr.bf16.mxu0 0
      %656 = vmatpush1.bf16.msra.mxu0 0
      %657 = vmatprep.subr.bf16.mxu0 0
      %658 = vmatpush1.bf16.msra.mxu0 0
      %659 = vmatprep.subr.bf16.mxu0 0
      %660 = vmatpush1.bf16.msra.mxu0 0
      %661 = vmatprep.subr.bf16.mxu0 0
      %662 = vmatpush1.bf16.msra.mxu0 0
      %663 = vmatprep.subr.bf16.mxu0 0
      %664 = vmatpush1.bf16.msra.mxu0 0
      %665 = vmatprep.subr.bf16.mxu0 0
      %666 = vmatpush1.bf16.msra.mxu0 0
      %667 = vmatprep.mubr.bf16.mxu0 0
      %668 = vmatmul.mubr.bf16.gmra.mrb[0].mxu0 %v489
      %v669 = vpop.f32.mrb[0].mxu0
      %v670 = vadd.f32 %v291, %v669
      %v671 = vpop.f32.mrb[0].mxu0
      %v672 = vpop.f32.mrb[0].mxu0
      %v673 = vadd.f32 %v291, %v672
      %v674 = vpop.f32.mrb[0].mxu0
      %675 = vmatprep.mubr.bf16.mxu0 0
      %676 = vmatmul.mubr.bf16.gmra.mrb[0].mxu0 %v490
      %v677 = vpop.f32.mrb[0].mxu0
      %v678 = vadd.f32 %v291, %v677
      %v679 = vpop.f32.mrb[0].mxu0
      %v680 = vpop.f32.mrb[0].mxu0
      %v681 = vadd.f32 %v291, %v680
      %v682 = vpop.f32.mrb[0].mxu0
      %683 = vmatprep.mubr.bf16.mxu0 0
      %684 = vmatmul.mubr.bf16.gmra.mrb[0].mxu0 %v491
      %v685 = vpop.f32.mrb[0].mxu0
      %v686 = vadd.f32 %v291, %v685
      %v687 = vpop.f32.mrb[0].mxu0
      %v688 = vpop.f32.mrb[0].mxu0
      %v689 = vadd.f32 %v291, %v688
      %v690 = vpop.f32.mrb[0].mxu0
      %691 = vmatprep.mubr.bf16.mxu0 0
      %692 = vmatmul.mubr.bf16.gmra.mrb[0].mxu0 %v492
      %v693 = vpop.f32.mrb[0].mxu0
      %v694 = vadd.f32 %v291, %v693
      %v695 = vpop.f32.mrb[0].mxu0
      %v696 = vpop.f32.mrb[0].mxu0
      %v697 = vadd.f32 %v291, %v696
      %v698 = vpop.f32.mrb[0].mxu0
      %699 = vmatprep.mubr.bf16.mxu0 0
      %700 = vmatmul.mubr.bf16.gmra.mrb[0].mxu0 %v493
      %v701 = vpop.f32.mrb[0].mxu0
      %v702 = vadd.f32 %v291, %v701
      %v703 = vpop.f32.mrb[0].mxu0
      %v704 = vpop.f32.mrb[0].mxu0
      %v705 = vadd.f32 %v291, %v704
      %v706 = vpop.f32.mrb[0].mxu0
      %707 = vmatprep.mubr.bf16.mxu0 0
      %708 = vmatmul.mubr.bf16.gmra.mrb[0].mxu0 %v494
      %v709 = vpop.f32.mrb[0].mxu0
      %v710 = vadd.f32 %v291, %v709
      %v711 = vpop.f32.mrb[0].mxu0
      %v712 = vpop.f32.mrb[0].mxu0
      %v713 = vadd.f32 %v291, %v712
      %v714 = vpop.f32.mrb[0].mxu0
      %715 = vmatprep.mubr.bf16.mxu0 0
      %716 = vmatmul.mubr.bf16.gmra.mrb[0].mxu0 %v495
      %v717 = vpop.f32.mrb[0].mxu0
      %v718 = vadd.f32 %v291, %v717
      %v719 = vpop.f32.mrb[0].mxu0
      %v720 = vpop.f32.mrb[0].mxu0
      %v721 = vadd.f32 %v291, %v720
      %v722 = vpop.f32.mrb[0].mxu0
      %723 = vmatprep.mubr.bf16.mxu0 0
      %724 = vmatmul.mubr.bf16.gmra.mrb[0].mxu0 %v496
      %v725 = vpop.f32.mrb[0].mxu0
      %v726 = vadd.f32 %v291, %v725
      %v727 = vpop.f32.mrb[0].mxu0
      %v728 = vpop.f32.mrb[0].mxu0
      %v729 = vadd.f32 %v291, %v728
      %v730 = vpop.f32.mrb[0].mxu0
      %731 = vmatprep.mubr.bf16.mxu0 0
      %732 = vmatmul.mubr.bf16.gmra.mrb[0].mxu0 %v497
      %v733 = vpop.f32.mrb[0].mxu0
      %v734 = vadd.f32 %v291, %v733
      %v735 = vpop.f32.mrb[0].mxu0
      %v736 = vpop.f32.mrb[0].mxu0
      %v737 = vadd.f32 %v291, %v736
      %v738 = vpop.f32.mrb[0].mxu0
      %739 = vmatprep.mubr.bf16.mxu0 0
      %740 = vmatmul.mubr.bf16.gmra.mrb[0].mxu0 %v498
      %v741 = vpop.f32.mrb[0].mxu0
      %v742 = vadd.f32 %v291, %v741
      %v743 = vpop.f32.mrb[0].mxu0
      %v744 = vpop.f32.mrb[0].mxu0
      %v745 = vadd.f32 %v291, %v744
      %v746 = vpop.f32.mrb[0].mxu0
      %747 = vmatprep.mubr.bf16.mxu0 0
      %748 = vmatmul.mubr.bf16.gmra.mrb[0].mxu0 %v499
      %v749 = vpop.f32.mrb[0].mxu0
      %v750 = vadd.f32 %v291, %v749
      %v751 = vpop.f32.mrb[0].mxu0
      %v752 = vpop.f32.mrb[0].mxu0
      %v753 = vadd.f32 %v291, %v752
      %v754 = vpop.f32.mrb[0].mxu0
      %755 = vmatprep.mubr.bf16.mxu0 0
      %756 = vmatmul.mubr.bf16.gmra.mrb[0].mxu0 %v500
      %v757 = vpop.f32.mrb[0].mxu0
      %v758 = vadd.f32 %v291, %v757
      %v759 = vpop.f32.mrb[0].mxu0
      %v760 = vpop.f32.mrb[0].mxu0
      %v761 = vadd.f32 %v291, %v760
      %v762 = vpop.f32.mrb[0].mxu0
      %763 = vmatprep.mubr.bf16.mxu0 0
      %764 = vmatmul.mubr.bf16.gmra.mrb[0].mxu0 %v501
      %v765 = vpop.f32.mrb[0].mxu0
      %v766 = vadd.f32 %v291, %v765
      %v767 = vpop.f32.mrb[0].mxu0
      %v768 = vpop.f32.mrb[0].mxu0
      %v769 = vadd.f32 %v291, %v768
      %v770 = vpop.f32.mrb[0].mxu0
      %771 = vmatprep.mubr.bf16.mxu0 0
      %772 = vmatmul.mubr.bf16.gmra.mrb[0].mxu0 %v502
      %v773 = vpop.f32.mrb[0].mxu0
      %v774 = vadd.f32 %v291, %v773
      %v775 = vpop.f32.mrb[0].mxu0
      %v776 = vpop.f32.mrb[0].mxu0
      %v777 = vadd.f32 %v291, %v776
      %v778 = vpop.f32.mrb[0].mxu0
      %779 = vmatprep.mubr.bf16.mxu0 0
      %780 = vmatmul.mubr.bf16.gmra.mrb[0].mxu0 %v503
      %v781 = vpop.f32.mrb[0].mxu0
      %v782 = vadd.f32 %v291, %v781
      %v783 = vpop.f32.mrb[0].mxu0
      %v784 = vpop.f32.mrb[0].mxu0
      %v785 = vadd.f32 %v291, %v784
      %v786 = vpop.f32.mrb[0].mxu0
      %787 = vmatprep.mubr.bf16.mxu0 0
      %788 = vmatmul.mubr.bf16.gmra.mrb[0].mxu0 %v504
      %v789 = vpop.f32.mrb[0].mxu0
      %v790 = vadd.f32 %v291, %v789
      %v791 = vpop.f32.mrb[0].mxu0
      %v792 = vpop.f32.mrb[0].mxu0
      %v793 = vadd.f32 %v291, %v792
      %v794 = vpop.f32.mrb[0].mxu0
      %795 = vmatprep.mubr.bf16.mxu0 0
      %796 = vmatmul.mubr.bf16.gmra.mrb[0].mxu0 %v505
      %v797 = vpop.f32.mrb[0].mxu0
      %v798 = vadd.f32 %v291, %v797
      %v799 = vpop.f32.mrb[0].mxu0
      %v800 = vpop.f32.mrb[0].mxu0
      %v801 = vadd.f32 %v291, %v800
      %v802 = vpop.f32.mrb[0].mxu0
      %803 = vmatprep.mubr.bf16.mxu0 0
      %804 = vmatmul.mubr.bf16.gmra.mrb[0].mxu0 %v506
      %v805 = vpop.f32.mrb[0].mxu0
      %v806 = vadd.f32 %v291, %v805
      %v807 = vpop.f32.mrb[0].mxu0
      %v808 = vpop.f32.mrb[0].mxu0
      %v809 = vadd.f32 %v291, %v808
      %v810 = vpop.f32.mrb[0].mxu0
      %811 = vmatprep.mubr.bf16.mxu0 0
      %812 = vmatmul.mubr.bf16.gmra.mrb[0].mxu0 %v507
      %v813 = vpop.f32.mrb[0].mxu0
      %v814 = vadd.f32 %v291, %v813
      %v815 = vpop.f32.mrb[0].mxu0
      %v816 = vpop.f32.mrb[0].mxu0
      %v817 = vadd.f32 %v291, %v816
      %v818 = vpop.f32.mrb[0].mxu0
      %819 = vmatprep.mubr.bf16.mxu0 0
      %820 = vmatmul.mubr.bf16.gmra.mrb[0].mxu0 %v508
      %v821 = vpop.f32.mrb[0].mxu0
      %v822 = vadd.f32 %v291, %v821
      %v823 = vpop.f32.mrb[0].mxu0
      %v824 = vpop.f32.mrb[0].mxu0
      %v825 = vadd.f32 %v291, %v824
      %v826 = vpop.f32.mrb[0].mxu0
      %827 = vmatprep.mubr.bf16.mxu0 0
      %828 = vmatmul.mubr.bf16.gmra.mrb[0].mxu0 %v509
      %v829 = vpop.f32.mrb[0].mxu0
      %v830 = vadd.f32 %v291, %v829
      %v831 = vpop.f32.mrb[0].mxu0
      %v832 = vpop.f32.mrb[0].mxu0
      %v833 = vadd.f32 %v291, %v832
      %v834 = vpop.f32.mrb[0].mxu0
      %835 = vmatprep.mubr.bf16.mxu0 0
      %836 = vmatmul.mubr.bf16.gmra.mrb[0].mxu0 %v510
      %v837 = vpop.f32.mrb[0].mxu0
      %v838 = vadd.f32 %v291, %v837
      %v839 = vpop.f32.mrb[0].mxu0
      %v840 = vpop.f32.mrb[0].mxu0
      %v841 = vadd.f32 %v291, %v840
      %v842 = vpop.f32.mrb[0].mxu0
      %843 = vmatprep.mubr.bf16.mxu0 0
      %844 = vmatmul.mubr.bf16.gmra.mrb[0].mxu0 %v511
      %v845 = vpop.f32.mrb[0].mxu0
      %v846 = vadd.f32 %v291, %v845
      %v847 = vpop.f32.mrb[0].mxu0
      %v848 = vpop.f32.mrb[0].mxu0
      %v849 = vadd.f32 %v291, %v848
      %v850 = vpop.f32.mrb[0].mxu0
      %851 = vmatprep.mubr.bf16.mxu0 0
      %852 = vmatmul.mubr.bf16.gmra.mrb[0].mxu0 %v512
      %v853 = vpop.f32.mrb[0].mxu0
      %v854 = vadd.f32 %v291, %v853
      %v855 = vpop.f32.mrb[0].mxu0
      %v856 = vpop.f32.mrb[0].mxu0
      %v857 = vadd.f32 %v291, %v856
      %v858 = vpop.f32.mrb[0].mxu0
      %859 = vmatprep.mubr.bf16.mxu0 0
      %860 = vmatmul.mubr.bf16.gmra.mrb[0].mxu0 %v513
      %v861 = vpop.f32.mrb[0].mxu0
      %v862 = vadd.f32 %v291, %v861
      %v863 = vpop.f32.mrb[0].mxu0
      %v864 = vpop.f32.mrb[0].mxu0
      %v865 = vadd.f32 %v291, %v864
      %v866 = vpop.f32.mrb[0].mxu0
      %867 = vmatprep.mubr.bf16.mxu0 0
      %868 = vmatmul.mubr.bf16.gmra.mrb[0].mxu0 %v514
      %v869 = vpop.f32.mrb[0].mxu0
      %v870 = vadd.f32 %v291, %v869
      %v871 = vpop.f32.mrb[0].mxu0
      %v872 = vpop.f32.mrb[0].mxu0
      %v873 = vadd.f32 %v291, %v872
      %v874 = vpop.f32.mrb[0].mxu0
      %875 = vmatprep.mubr.bf16.mxu0 0
      %876 = vmatmul.mubr.bf16.gmra.mrb[0].mxu0 %v515
      %v877 = vpop.f32.mrb[0].mxu0
      %v878 = vadd.f32 %v291, %v877
      %v879 = vpop.f32.mrb[0].mxu0
      %v880 = vpop.f32.mrb[0].mxu0
      %v881 = vadd.f32 %v291, %v880
      %v882 = vpop.f32.mrb[0].mxu0
      %883 = vmatprep.mubr.bf16.mxu0 0
      %884 = vmatmul.mubr.bf16.gmra.mrb[0].mxu0 %v516
      %v885 = vpop.f32.mrb[0].mxu0
      %v886 = vadd.f32 %v291, %v885
      %v887 = vpop.f32.mrb[0].mxu0
      %v888 = vpop.f32.mrb[0].mxu0
      %v889 = vadd.f32 %v291, %v888
      %v890 = vpop.f32.mrb[0].mxu0
      %891 = vmatprep.mubr.bf16.mxu0 0
      %892 = vmatmul.mubr.bf16.gmra.mrb[0].mxu0 %v517
      %v893 = vpop.f32.mrb[0].mxu0
      %v894 = vadd.f32 %v291, %v893
      %v895 = vpop.f32.mrb[0].mxu0
      %v896 = vpop.f32.mrb[0].mxu0
      %v897 = vadd.f32 %v291, %v896
      %v898 = vpop.f32.mrb[0].mxu0
      %899 = vmatprep.mubr.bf16.mxu0 0
      %900 = vmatmul.mubr.bf16.gmra.mrb[0].mxu0 %v518
      %v901 = vpop.f32.mrb[0].mxu0
      %v902 = vadd.f32 %v291, %v901
      %v903 = vpop.f32.mrb[0].mxu0
      %v904 = vpop.f32.mrb[0].mxu0
      %v905 = vadd.f32 %v291, %v904
      %v906 = vpop.f32.mrb[0].mxu0
      %907 = vmatprep.mubr.bf16.mxu0 0
      %908 = vmatmul.mubr.bf16.gmra.mrb[0].mxu0 %v519
      %v909 = vpop.f32.mrb[0].mxu0
      %v910 = vadd.f32 %v291, %v909
      %v911 = vpop.f32.mrb[0].mxu0
      %v912 = vpop.f32.mrb[0].mxu0
      %v913 = vadd.f32 %v291, %v912
      %v914 = vpop.f32.mrb[0].mxu0
      %915 = vmatprep.mubr.bf16.mxu0 0
      %916 = vmatmul.mubr.bf16.gmra.mrb[0].mxu0 %v520
      %v917 = vpop.f32.mrb[0].mxu0
      %v918 = vadd.f32 %v291, %v917
      %v919 = vpop.f32.mrb[0].mxu0
      %v920 = vpop.f32.mrb[0].mxu0
      %v921 = vadd.f32 %v291, %v920
      %v922 = vpop.f32.mrb[0].mxu0
      %923 = vmatprep.mubr.bf16.mxu0 0
      %924 = vmatmul.mubr.bf16.gmra.mrb[0].mxu0 %v521
      %v925 = vpop.f32.mrb[0].mxu0
      %v926 = vadd.f32 %v291, %v925
      %v927 = vpop.f32.mrb[0].mxu0
      %v928 = vpop.f32.mrb[0].mxu0
      %v929 = vadd.f32 %v291, %v928
      %v930 = vpop.f32.mrb[0].mxu0
      %931 = vmatprep.mubr.bf16.mxu0 0
      %932 = vmatmul.mubr.bf16.gmra.mrb[0].mxu0 %v522
      %v933 = vpop.f32.mrb[0].mxu0
      %v934 = vadd.f32 %v291, %v933
      %v935 = vpop.f32.mrb[0].mxu0
      %v936 = vpop.f32.mrb[0].mxu0
      %v937 = vadd.f32 %v291, %v936
      %v938 = vpop.f32.mrb[0].mxu0
      %939 = vmatprep.mubr.bf16.mxu0 0
      %940 = vmatmul.mubr.bf16.gmra.mrb[0].mxu0 %v523
      %v941 = vpop.f32.mrb[0].mxu0
      %v942 = vadd.f32 %v291, %v941
      %v943 = vpop.f32.mrb[0].mxu0
      %v944 = vpop.f32.mrb[0].mxu0
      %v945 = vadd.f32 %v291, %v944
      %v946 = vpop.f32.mrb[0].mxu0
      %947 = vmatprep.mubr.bf16.mxu0 0
      %948 = vmatmul.mubr.bf16.gmra.mrb[0].mxu0 %v524
      %v949 = vpop.f32.mrb[0].mxu0
      %v950 = vadd.f32 %v291, %v949
      %v951 = vpop.f32.mrb[0].mxu0
      %v952 = vpop.f32.mrb[0].mxu0
      %v953 = vadd.f32 %v291, %v952
      %v954 = vpop.f32.mrb[0].mxu0
      %955 = vmatprep.mubr.bf16.mxu0 0
      %956 = vmatmul.mubr.bf16.gmra.mrb[0].mxu0 %v525
      %v957 = vpop.f32.mrb[0].mxu0
      %v958 = vadd.f32 %v291, %v957
      %v959 = vpop.f32.mrb[0].mxu0
      %v960 = vpop.f32.mrb[0].mxu0
      %v961 = vadd.f32 %v291, %v960
      %v962 = vpop.f32.mrb[0].mxu0
      %963 = vmatprep.mubr.bf16.mxu0 0
      %964 = vmatmul.mubr.bf16.gmra.mrb[0].mxu0 %v526
      %v965 = vpop.f32.mrb[0].mxu0
      %v966 = vadd.f32 %v291, %v965
      %v967 = vpop.f32.mrb[0].mxu0
      %v968 = vpop.f32.mrb[0].mxu0
      %v969 = vadd.f32 %v291, %v968
      %v970 = vpop.f32.mrb[0].mxu0
      %971 = vmatprep.mubr.bf16.mxu0 0
      %972 = vmatmul.mubr.bf16.gmra.mrb[0].mxu0 %v527
      %v973 = vpop.f32.mrb[0].mxu0
      %v974 = vadd.f32 %v291, %v973
      %v975 = vpop.f32.mrb[0].mxu0
      %v976 = vpop.f32.mrb[0].mxu0
      %v977 = vadd.f32 %v291, %v976
      %v978 = vpop.f32.mrb[0].mxu0
      %979 = vmatprep.mubr.bf16.mxu0 0
      %980 = vmatmul.mubr.bf16.gmra.mrb[0].mxu0 %v528
      %v981 = vpop.f32.mrb[0].mxu0
      %v982 = vadd.f32 %v291, %v981
      %v983 = vpop.f32.mrb[0].mxu0
      %v984 = vpop.f32.mrb[0].mxu0
      %v985 = vadd.f32 %v291, %v984
      %v986 = vpop.f32.mrb[0].mxu0
      %987 = vmatprep.mubr.bf16.mxu0 0
      %988 = vmatmul.mubr.bf16.gmra.mrb[0].mxu0 %v529
      %v989 = vpop.f32.mrb[0].mxu0
      %v990 = vadd.f32 %v291, %v989
      %v991 = vpop.f32.mrb[0].mxu0
      %v992 = vpop.f32.mrb[0].mxu0
      %v993 = vadd.f32 %v291, %v992
      %v994 = vpop.f32.mrb[0].mxu0
      %995 = vmatprep.mubr.bf16.mxu0 0
      %996 = vmatmul.mubr.bf16.gmra.mrb[0].mxu0 %v530
      %v997 = vpop.f32.mrb[0].mxu0
      %v998 = vadd.f32 %v291, %v997
      %v999 = vpop.f32.mrb[0].mxu0
      %v1000 = vpop.f32.mrb[0].mxu0
      %v1001 = vadd.f32 %v291, %v1000
      %v1002 = vpop.f32.mrb[0].mxu0
      %1003 = vmatprep.mubr.bf16.mxu0 0
      %1004 = vmatmul.mubr.bf16.gmra.mrb[0].mxu0 %v531
      %v1005 = vpop.f32.mrb[0].mxu0
      %v1006 = vadd.f32 %v291, %v1005
      %v1007 = vpop.f32.mrb[0].mxu0
      %v1008 = vpop.f32.mrb[0].mxu0
      %v1009 = vadd.f32 %v291, %v1008
      %v1010 = vpop.f32.mrb[0].mxu0
      %1011 = vmatprep.mubr.bf16.mxu0 0
      %1012 = vmatmul.mubr.bf16.gmra.mrb[0].mxu0 %v532
      %v1013 = vpop.f32.mrb[0].mxu0
      %v1014 = vadd.f32 %v291, %v1013
      %v1015 = vpop.f32.mrb[0].mxu0
      %v1016 = vpop.f32.mrb[0].mxu0
      %v1017 = vadd.f32 %v291, %v1016
      %v1018 = vpop.f32.mrb[0].mxu0
      %1019 = vmatprep.mubr.bf16.mxu0 0
      %1020 = vmatmul.mubr.bf16.gmra.mrb[0].mxu0 %v533
      %v1021 = vpop.f32.mrb[0].mxu0
      %v1022 = vadd.f32 %v291, %v1021
      %v1023 = vpop.f32.mrb[0].mxu0
      %v1024 = vpop.f32.mrb[0].mxu0
      %v1025 = vadd.f32 %v291, %v1024
      %v1026 = vpop.f32.mrb[0].mxu0
      %1027 = vmatprep.mubr.bf16.mxu0 0
      %1028 = vmatmul.mubr.bf16.gmra.mrb[0].mxu0 %v534
      %v1029 = vpop.f32.mrb[0].mxu0
      %v1030 = vadd.f32 %v291, %v1029
      %v1031 = vpop.f32.mrb[0].mxu0
      %v1032 = vpop.f32.mrb[0].mxu0
      %v1033 = vadd.f32 %v291, %v1032
      %v1034 = vpop.f32.mrb[0].mxu0
      %1035 = vmatprep.mubr.bf16.mxu0 0
      %1036 = vmatmul.mubr.bf16.gmra.mrb[0].mxu0 %v535
      %v1037 = vpop.f32.mrb[0].mxu0
      %v1038 = vadd.f32 %v291, %v1037
      %v1039 = vpop.f32.mrb[0].mxu0
      %v1040 = vpop.f32.mrb[0].mxu0
      %v1041 = vadd.f32 %v291, %v1040
      %v1042 = vpop.f32.mrb[0].mxu0
      %1043 = vmatprep.mubr.bf16.mxu0 0
      %1044 = vmatmul.mubr.bf16.gmra.mrb[0].mxu0 %v536
      %v1045 = vpop.f32.mrb[0].mxu0
      %v1046 = vadd.f32 %v291, %v1045
      %v1047 = vpop.f32.mrb[0].mxu0
      %v1048 = vpop.f32.mrb[0].mxu0
      %v1049 = vadd.f32 %v291, %v1048
      %v1050 = vpop.f32.mrb[0].mxu0
      %1051 = vmatprep.mubr.bf16.mxu0 0
      %1052 = vmatmul.mubr.bf16.gmra.mrb[0].mxu0 %v537
      %v1053 = vpop.f32.mrb[0].mxu0
      %v1054 = vadd.f32 %v291, %v1053
      %v1055 = vpop.f32.mrb[0].mxu0
      %v1056 = vpop.f32.mrb[0].mxu0
      %v1057 = vadd.f32 %v291, %v1056
      %v1058 = vpop.f32.mrb[0].mxu0
      %1059 = vdwg.mxu0
      %v1060 = vmax.f32 %v670, 0.0
      %v1061 = vmax.f32 %v673, 0.0
      %v1062 = vmax.f32 %v678, 0.0
      %v1063 = vmax.f32 %v681, 0.0
      %v1064 = vmax.f32 %v686, 0.0
      %v1065 = vmax.f32 %v689, 0.0
      %v1066 = vmax.f32 %v694, 0.0
      %v1067 = vmax.f32 %v697, 0.0
      %v1068 = vmax.f32 %v702, 0.0
      %v1069 = vmax.f32 %v705, 0.0
      %v1070 = vmax.f32 %v710, 0.0
      %v1071 = vmax.f32 %v713, 0.0
      %v1072 = vmax.f32 %v718, 0.0
      %v1073 = vmax.f32 %v721, 0.0
      %v1074 = vmax.f32 %v726, 0.0
      %v1075 = vmax.f32 %v729, 0.0
      %v1076 = vmax.f32 %v734, 0.0
      %v1077 = vmax.f32 %v737, 0.0
      %v1078 = vmax.f32 %v742, 0.0
      %v1079 = vmax.f32 %v745, 0.0
      %v1080 = vmax.f32 %v750, 0.0
      %v1081 = vmax.f32 %v753, 0.0
      %v1082 = vmax.f32 %v758, 0.0
      %v1083 = vmax.f32 %v761, 0.0
      %v1084 = vmax.f32 %v766, 0.0
      %v1085 = vmax.f32 %v769, 0.0
      %v1086 = vmax.f32 %v774, 0.0
      %v1087 = vmax.f32 %v777, 0.0
      %v1088 = vmax.f32 %v782, 0.0
      %v1089 = vmax.f32 %v785, 0.0
      %v1090 = vmax.f32 %v790, 0.0
      %v1091 = vmax.f32 %v793, 0.0
      %v1092 = vmax.f32 %v798, 0.0
      %v1093 = vmax.f32 %v801, 0.0
      %v1094 = vmax.f32 %v806, 0.0
      %v1095 = vmax.f32 %v809, 0.0
      %v1096 = vmax.f32 %v814, 0.0
      %v1097 = vmax.f32 %v817, 0.0
      %v1098 = vmax.f32 %v822, 0.0
      %v1099 = vmax.f32 %v825, 0.0
      %v1100 = vmax.f32 %v830, 0.0
      %v1101 = vmax.f32 %v833, 0.0
      %v1102 = vmax.f32 %v838, 0.0
      %v1103 = vmax.f32 %v841, 0.0
      %v1104 = vmax.f32 %v846, 0.0
      %v1105 = vmax.f32 %v849, 0.0
      %v1106 = vmax.f32 %v854, 0.0
      %v1107 = vmax.f32 %v857, 0.0
      %v1108 = vmax.f32 %v862, 0.0
      %v1109 = vmax.f32 %v865, 0.0
      %v1110 = vmax.f32 %v870, 0.0
      %v1111 = vmax.f32 %v873, 0.0
      %v1112 = vmax.f32 %v878, 0.0
      %v1113 = vmax.f32 %v881, 0.0
      %v1114 = vmax.f32 %v886, 0.0
      %v1115 = vmax.f32 %v889, 0.0
      %v1116 = vmax.f32 %v894, 0.0
      %v1117 = vmax.f32 %v897, 0.0
      %v1118 = vmax.f32 %v902, 0.0
      %v1119 = vmax.f32 %v905, 0.0
      %v1120 = vmax.f32 %v910, 0.0
      %v1121 = vmax.f32 %v913, 0.0
      %v1122 = vmax.f32 %v918, 0.0
      %v1123 = vmax.f32 %v921, 0.0
      %v1124 = vmax.f32 %v926, 0.0
      %v1125 = vmax.f32 %v929, 0.0
      %v1126 = vmax.f32 %v934, 0.0
      %v1127 = vmax.f32 %v937, 0.0
      %v1128 = vmax.f32 %v942, 0.0
      %v1129 = vmax.f32 %v945, 0.0
      %v1130 = vmax.f32 %v950, 0.0
      %v1131 = vmax.f32 %v953, 0.0
      %v1132 = vmax.f32 %v958, 0.0
      %v1133 = vmax.f32 %v961, 0.0
      %v1134 = vmax.f32 %v966, 0.0
      %v1135 = vmax.f32 %v969, 0.0
      %v1136 = vmax.f32 %v974, 0.0
      %v1137 = vmax.f32 %v977, 0.0
      %v1138 = vmax.f32 %v982, 0.0
      %v1139 = vmax.f32 %v985, 0.0
      %v1140 = vmax.f32 %v990, 0.0
      %v1141 = vmax.f32 %v993, 0.0
      %v1142 = vmax.f32 %v998, 0.0
      %v1143 = vmax.f32 %v1001, 0.0
      %v1144 = vmax.f32 %v1006, 0.0
      %v1145 = vmax.f32 %v1009, 0.0
      %v1146 = vmax.f32 %v1014, 0.0
      %v1147 = vmax.f32 %v1017, 0.0
      %v1148 = vmax.f32 %v1022, 0.0
      %v1149 = vmax.f32 %v1025, 0.0
      %v1150 = vmax.f32 %v1030, 0.0
      %v1151 = vmax.f32 %v1033, 0.0
      %v1152 = vmax.f32 %v1038, 0.0
      %v1153 = vmax.f32 %v1041, 0.0
      %v1154 = vmax.f32 %v1046, 0.0
      %v1155 = vmax.f32 %v1049, 0.0
      %v1156 = vmax.f32 %v1054, 0.0
      %v1157 = vmax.f32 %v1057, 0.0
      %vm1158 = vcmask 523264
      %1159 = vst.msk [vmem:[#allocation2] sm:$0xff] %vm1158, %v1060
      %1160 = vst.msk [vmem:[#allocation2 + $0x8] sm:$0xff] %vm1158, %v1061
      %1161 = vst.msk [vmem:[#allocation2 + $0x10] sm:$0xff] %vm1158, %v1062
      %1162 = vst.msk [vmem:[#allocation2 + $0x18] sm:$0xff] %vm1158, %v1063
      %1163 = vst.msk [vmem:[#allocation2 + $0x20] sm:$0xff] %vm1158, %v1064
      %1164 = vst.msk [vmem:[#allocation2 + $0x28] sm:$0xff] %vm1158, %v1065
      %1165 = vst.msk [vmem:[#allocation2 + $0x30] sm:$0xff] %vm1158, %v1066
      %1166 = vst.msk [vmem:[#allocation2 + $0x38] sm:$0xff] %vm1158, %v1067
      %1167 = vst.msk [vmem:[#allocation2 + $0x40] sm:$0xff] %vm1158, %v1068
      %1168 = vst.msk [vmem:[#allocation2 + $0x48] sm:$0xff] %vm1158, %v1069
      %1169 = vst.msk [vmem:[#allocation2 + $0x50] sm:$0xff] %vm1158, %v1070
      %1170 = vst.msk [vmem:[#allocation2 + $0x58] sm:$0xff] %vm1158, %v1071
      %1171 = vst.msk [vmem:[#allocation2 + $0x60] sm:$0xff] %vm1158, %v1072
      %1172 = vst.msk [vmem:[#allocation2 + $0x68] sm:$0xff] %vm1158, %v1073
      %1173 = vst.msk [vmem:[#allocation2 + $0x70] sm:$0xff] %vm1158, %v1074
      %1174 = vst.msk [vmem:[#allocation2 + $0x78] sm:$0xff] %vm1158, %v1075
      %1175 = vst.msk [vmem:[#allocation2 + $0x80] sm:$0xff] %vm1158, %v1076
      %1176 = vst.msk [vmem:[#allocation2 + $0x88] sm:$0xff] %vm1158, %v1077
      %1177 = vst.msk [vmem:[#allocation2 + $0x90] sm:$0xff] %vm1158, %v1078
      %1178 = vst.msk [vmem:[#allocation2 + $0x98] sm:$0xff] %vm1158, %v1079
      %1179 = vst.msk [vmem:[#allocation2 + $0xa0] sm:$0xff] %vm1158, %v1080
      %1180 = vst.msk [vmem:[#allocation2 + $0xa8] sm:$0xff] %vm1158, %v1081
      %1181 = vst.msk [vmem:[#allocation2 + $0xb0] sm:$0xff] %vm1158, %v1082
      %1182 = vst.msk [vmem:[#allocation2 + $0xb8] sm:$0xff] %vm1158, %v1083
      %1183 = vst.msk [vmem:[#allocation2 + $0xc0] sm:$0xff] %vm1158, %v1084
      %1184 = vst.msk [vmem:[#allocation2 + $0xc8] sm:$0xff] %vm1158, %v1085
      %1185 = vst.msk [vmem:[#allocation2 + $0xd0] sm:$0xff] %vm1158, %v1086
      %1186 = vst.msk [vmem:[#allocation2 + $0xd8] sm:$0xff] %vm1158, %v1087
      %1187 = vst.msk [vmem:[#allocation2 + $0xe0] sm:$0xff] %vm1158, %v1088
      %1188 = vst.msk [vmem:[#allocation2 + $0xe8] sm:$0xff] %vm1158, %v1089
      %1189 = vst.msk [vmem:[#allocation2 + $0xf0] sm:$0xff] %vm1158, %v1090
      %1190 = vst.msk [vmem:[#allocation2 + $0xf8] sm:$0xff] %vm1158, %v1091
      %1191 = vst.msk [vmem:[#allocation2 + $0x100] sm:$0xff] %vm1158, %v1092
      %1192 = vst.msk [vmem:[#allocation2 + $0x108] sm:$0xff] %vm1158, %v1093
      %1193 = vst.msk [vmem:[#allocation2 + $0x110] sm:$0xff] %vm1158, %v1094
      %1194 = vst.msk [vmem:[#allocation2 + $0x118] sm:$0xff] %vm1158, %v1095
      %1195 = vst.msk [vmem:[#allocation2 + $0x120] sm:$0xff] %vm1158, %v1096
      %1196 = vst.msk [vmem:[#allocation2 + $0x128] sm:$0xff] %vm1158, %v1097
      %1197 = vst.msk [vmem:[#allocation2 + $0x130] sm:$0xff] %vm1158, %v1098
      %1198 = vst.msk [vmem:[#allocation2 + $0x138] sm:$0xff] %vm1158, %v1099
      %1199 = vst.msk [vmem:[#allocation2 + $0x140] sm:$0xff] %vm1158, %v1100
      %1200 = vst.msk [vmem:[#allocation2 + $0x148] sm:$0xff] %vm1158, %v1101
      %1201 = vst.msk [vmem:[#allocation2 + $0x150] sm:$0xff] %vm1158, %v1102
      %1202 = vst.msk [vmem:[#allocation2 + $0x158] sm:$0xff] %vm1158, %v1103
      %1203 = vst.msk [vmem:[#allocation2 + $0x160] sm:$0xff] %vm1158, %v1104
      %1204 = vst.msk [vmem:[#allocation2 + $0x168] sm:$0xff] %vm1158, %v1105
      %1205 = vst.msk [vmem:[#allocation2 + $0x170] sm:$0xff] %vm1158, %v1106
      %1206 = vst.msk [vmem:[#allocation2 + $0x178] sm:$0xff] %vm1158, %v1107
      %1207 = vst.msk [vmem:[#allocation2 + $0x180] sm:$0xff] %vm1158, %v1108
      %1208 = vst.msk [vmem:[#allocation2 + $0x188] sm:$0xff] %vm1158, %v1109
      %1209 = vst.msk [vmem:[#allocation2 + $0x190] sm:$0xff] %vm1158, %v1110
      %1210 = vst.msk [vmem:[#allocation2 + $0x198] sm:$0xff] %vm1158, %v1111
      %1211 = vst.msk [vmem:[#allocation2 + $0x1a0] sm:$0xff] %vm1158, %v1112
      %1212 = vst.msk [vmem:[#allocation2 + $0x1a8] sm:$0xff] %vm1158, %v1113
      %1213 = vst.msk [vmem:[#allocation2 + $0x1b0] sm:$0xff] %vm1158, %v1114
      %1214 = vst.msk [vmem:[#allocation2 + $0x1b8] sm:$0xff] %vm1158, %v1115
      %1215 = vst.msk [vmem:[#allocation2 + $0x1c0] sm:$0xff] %vm1158, %v1116
      %1216 = vst.msk [vmem:[#allocation2 + $0x1c8] sm:$0xff] %vm1158, %v1117
      %1217 = vst.msk [vmem:[#allocation2 + $0x1d0] sm:$0xff] %vm1158, %v1118
      %1218 = vst.msk [vmem:[#allocation2 + $0x1d8] sm:$0xff] %vm1158, %v1119
      %1219 = vst.msk [vmem:[#allocation2 + $0x1e0] sm:$0xff] %vm1158, %v1120
      %1220 = vst.msk [vmem:[#allocation2 + $0x1e8] sm:$0xff] %vm1158, %v1121
      %1221 = vst.msk [vmem:[#allocation2 + $0x1f0] sm:$0xff] %vm1158, %v1122
      %1222 = vst.msk [vmem:[#allocation2 + $0x1f8] sm:$0xff] %vm1158, %v1123
      %1223 = vst.msk [vmem:[#allocation2 + $0x200] sm:$0xff] %vm1158, %v1124
      %1224 = vst.msk [vmem:[#allocation2 + $0x208] sm:$0xff] %vm1158, %v1125
      %1225 = vst.msk [vmem:[#allocation2 + $0x210] sm:$0xff] %vm1158, %v1126
      %1226 = vst.msk [vmem:[#allocation2 + $0x218] sm:$0xff] %vm1158, %v1127
      %1227 = vst.msk [vmem:[#allocation2 + $0x220] sm:$0xff] %vm1158, %v1128
      %1228 = vst.msk [vmem:[#allocation2 + $0x228] sm:$0xff] %vm1158, %v1129
      %1229 = vst.msk [vmem:[#allocation2 + $0x230] sm:$0xff] %vm1158, %v1130
      %1230 = vst.msk [vmem:[#allocation2 + $0x238] sm:$0xff] %vm1158, %v1131
      %1231 = vst.msk [vmem:[#allocation2 + $0x240] sm:$0xff] %vm1158, %v1132
      %1232 = vst.msk [vmem:[#allocation2 + $0x248] sm:$0xff] %vm1158, %v1133
      %1233 = vst.msk [vmem:[#allocation2 + $0x250] sm:$0xff] %vm1158, %v1134
      %1234 = vst.msk [vmem:[#allocation2 + $0x258] sm:$0xff] %vm1158, %v1135
      %1235 = vst.msk [vmem:[#allocation2 + $0x260] sm:$0xff] %vm1158, %v1136
      %1236 = vst.msk [vmem:[#allocation2 + $0x268] sm:$0xff] %vm1158, %v1137
      %1237 = vst.msk [vmem:[#allocation2 + $0x270] sm:$0xff] %vm1158, %v1138
      %1238 = vst.msk [vmem:[#allocation2 + $0x278] sm:$0xff] %vm1158, %v1139
      %1239 = vst.msk [vmem:[#allocation2 + $0x280] sm:$0xff] %vm1158, %v1140
      %1240 = vst.msk [vmem:[#allocation2 + $0x288] sm:$0xff] %vm1158, %v1141
      %1241 = vst.msk [vmem:[#allocation2 + $0x290] sm:$0xff] %vm1158, %v1142
      %1242 = vst.msk [vmem:[#allocation2 + $0x298] sm:$0xff] %vm1158, %v1143
      %1243 = vst.msk [vmem:[#allocation2 + $0x2a0] sm:$0xff] %vm1158, %v1144
      %1244 = vst.msk [vmem:[#allocation2 + $0x2a8] sm:$0xff] %vm1158, %v1145
      %1245 = vst.msk [vmem:[#allocation2 + $0x2b0] sm:$0xff] %vm1158, %v1146
      %1246 = vst.msk [vmem:[#allocation2 + $0x2b8] sm:$0xff] %vm1158, %v1147
      %1247 = vst.msk [vmem:[#allocation2 + $0x2c0] sm:$0xff] %vm1158, %v1148
      %1248 = vst.msk [vmem:[#allocation2 + $0x2c8] sm:$0xff] %vm1158, %v1149
      %1249 = vst.msk [vmem:[#allocation2 + $0x2d0] sm:$0xff] %vm1158, %v1150
      %1250 = vst.msk [vmem:[#allocation2 + $0x2d8] sm:$0xff] %vm1158, %v1151
      %1251 = vst.msk [vmem:[#allocation2 + $0x2e0] sm:$0xff] %vm1158, %v1152
      %1252 = vst.msk [vmem:[#allocation2 + $0x2e8] sm:$0xff] %vm1158, %v1153
      %1253 = vst.msk [vmem:[#allocation2 + $0x2f0] sm:$0xff] %vm1158, %v1154
      %1254 = vst.msk [vmem:[#allocation2 + $0x2f8] sm:$0xff] %vm1158, %v1155
      %1255 = vst.msk [vmem:[#allocation2 + $0x300] sm:$0xff] %vm1158, %v1156
      %1256 = vst.msk [vmem:[#allocation2 + $0x308] sm:$0xff] %vm1158, %v1157
      %v1257 = vld [vmem:[#allocation2] sm:$0xff]
      %v1258 = vld [vmem:[#allocation2 + $0x8] sm:$0xff]
      %v1259 = vld [vmem:[#allocation2 + $0x10] sm:$0xff]
      %v1260 = vld [vmem:[#allocation2 + $0x18] sm:$0xf]
      %v1261 = vld [vmem:[#allocation2 + $0x1c] sm:$0xff]
      %v1262 = vld [vmem:[#allocation2 + $0x24] sm:$0xff]
      %v1263 = vld [vmem:[#allocation2 + $0x2c] sm:$0xff]
      %v1264 = vld [vmem:[#allocation2 + $0x34] sm:$0xf]
      %v1265 = vld [vmem:[#allocation2 + $0x38] sm:$0xff]
      %v1266 = vld [vmem:[#allocation2 + $0x40] sm:$0xff]
      %v1267 = vld [vmem:[#allocation2 + $0x48] sm:$0xff]
      %v1268 = vld [vmem:[#allocation2 + $0x50] sm:$0xf]
      %v1269 = vmax.f32 %v1261, %v1265
      %v1270 = vmax.f32 %v1262, %v1266
      %v1271 = vmax.f32 %v1263, %v1267
      %v1272 = vmax.f32 %v1264, %v1268
      %v1273 = vmax.f32 %v1257, %v1269
      %v1274 = vmax.f32 %v1258, %v1270
      %v1275 = vmax.f32 %v1259, %v1271
      %v1276 = vmax.f32 %v1260, %v1272
      %1277 = vst.msk [vmem:[#allocation3] sm:$0xff] %vm1158, %v1273
      %1278 = vst.msk [vmem:[#allocation3 + $0x8] sm:$0xff] %vm1158, %v1274
      %1279 = vst.msk [vmem:[#allocation3 + $0x10] sm:$0xff] %vm1158, %v1275
      %vm1280 = vcmask 519168
      %1281 = vst.msk [vmem:[#allocation3 + $0x18] sm:$0xf] %vm1280, %v1276
      %v1282 = vld [vmem:[#allocation2 + $0x38] sm:$0xff]
      %v1283 = vld [vmem:[#allocation2 + $0x40] sm:$0xff]
      %v1284 = vld [vmem:[#allocation2 + $0x48] sm:$0xff]
      %v1285 = vld [vmem:[#allocation2 + $0x50] sm:$0xf]
      %v1286 = vld [vmem:[#allocation2 + $0x54] sm:$0xff]
      %v1287 = vld [vmem:[#allocation2 + $0x5c] sm:$0xff]
      %v1288 = vld [vmem:[#allocation2 + $0x64] sm:$0xff]
      %v1289 = vld [vmem:[#allocation2 + $0x6c] sm:$0xf]
      %v1290 = vld [vmem:[#allocation2 + $0x70] sm:$0xff]
      %v1291 = vld [vmem:[#allocation2 + $0x78] sm:$0xff]
      %v1292 = vld [vmem:[#allocation2 + $0x80] sm:$0xff]
      %v1293 = vld [vmem:[#allocation2 + $0x88] sm:$0xf]
      %v1294 = vmax.f32 %v1286, %v1290
      %v1295 = vmax.f32 %v1287, %v1291
      %v1296 = vmax.f32 %v1288, %v1292
      %v1297 = vmax.f32 %v1289, %v1293
      %v1298 = vmax.f32 %v1282, %v1294
      %v1299 = vmax.f32 %v1283, %v1295
      %v1300 = vmax.f32 %v1284, %v1296
      %v1301 = vmax.f32 %v1285, %v1297
      %s1302 = scalar_lea.vmem [#allocation3], 32
      %1303 = vst.msk [vmem:[%s1302] sm:$0xff] %vm1158, %v1298
      %1304 = vst.msk [vmem:[%s1302 + $0x8] sm:$0xff] %vm1158, %v1299
      %1305 = vst.msk [vmem:[%s1302 + $0x10] sm:$0xff] %vm1158, %v1300
      %1306 = vst.msk [vmem:[%s1302 + $0x18] sm:$0xf] %vm1280, %v1301
      %v1307 = vld [vmem:[#allocation2 + $0x70] sm:$0xff]
      %v1308 = vld [vmem:[#allocation2 + $0x78] sm:$0xff]
      %v1309 = vld [vmem:[#allocation2 + $0x80] sm:$0xff]
      %v1310 = vld [vmem:[#allocation2 + $0x88] sm:$0xf]
      %v1311 = vld [vmem:[#allocation2 + $0x8c] sm:$0xff]
      %v1312 = vld [vmem:[#allocation2 + $0x94] sm:$0xff]
      %v1313 = vld [vmem:[#allocation2 + $0x9c] sm:$0xff]
      %v1314 = vld [vmem:[#allocation2 + $0xa4] sm:$0xf]
      %v1315 = vld [vmem:[#allocation2 + $0xa8] sm:$0xff]
      %v1316 = vld [vmem:[#allocation2 + $0xb0] sm:$0xff]
      %v1317 = vld [vmem:[#allocation2 + $0xb8] sm:$0xff]
      %v1318 = vld [vmem:[#allocation2 + $0xc0] sm:$0xf]
      %v1319 = vmax.f32 %v1311, %v1315
      %v1320 = vmax.f32 %v1312, %v1316
      %v1321 = vmax.f32 %v1313, %v1317
      %v1322 = vmax.f32 %v1314, %v1318
      %v1323 = vmax.f32 %v1307, %v1319
      %v1324 = vmax.f32 %v1308, %v1320
      %v1325 = vmax.f32 %v1309, %v1321
      %v1326 = vmax.f32 %v1310, %v1322
      %s1327 = scalar_lea.vmem [#allocation3], 64
      %1328 = vst.msk [vmem:[%s1327] sm:$0xff] %vm1158, %v1323
      %1329 = vst.msk [vmem:[%s1327 + $0x8] sm:$0xff] %vm1158, %v1324
      %1330 = vst.msk [vmem:[%s1327 + $0x10] sm:$0xff] %vm1158, %v1325
      %1331 = vst.msk [vmem:[%s1327 + $0x18] sm:$0xf] %vm1280, %v1326
      %v1332 = vld [vmem:[#allocation2 + $0xa8] sm:$0xff]
      %v1333 = vld [vmem:[#allocation2 + $0xb0] sm:$0xff]
      %v1334 = vld [vmem:[#allocation2 + $0xb8] sm:$0xff]
      %v1335 = vld [vmem:[#allocation2 + $0xc0] sm:$0xf]
      %v1336 = vld [vmem:[#allocation2 + $0xc4] sm:$0xff]
      %v1337 = vld [vmem:[#allocation2 + $0xcc] sm:$0xff]
      %v1338 = vld [vmem:[#allocation2 + $0xd4] sm:$0xff]
      %v1339 = vld [vmem:[#allocation2 + $0xdc] sm:$0xf]
      %v1340 = vld [vmem:[#allocation2 + $0xe0] sm:$0xff]
      %v1341 = vld [vmem:[#allocation2 + $0xe8] sm:$0xff]
      %v1342 = vld [vmem:[#allocation2 + $0xf0] sm:$0xff]
      %v1343 = vld [vmem:[#allocation2 + $0xf8] sm:$0xf]
      %v1344 = vmax.f32 %v1336, %v1340
      %v1345 = vmax.f32 %v1337, %v1341
      %v1346 = vmax.f32 %v1338, %v1342
      %v1347 = vmax.f32 %v1339, %v1343
      %v1348 = vmax.f32 %v1332, %v1344
      %v1349 = vmax.f32 %v1333, %v1345
      %v1350 = vmax.f32 %v1334, %v1346
      %v1351 = vmax.f32 %v1335, %v1347
      %s1352 = scalar_lea.vmem [#allocation3], 96
      %1353 = vst.msk [vmem:[%s1352] sm:$0xff] %vm1158, %v1348
      %1354 = vst.msk [vmem:[%s1352 + $0x8] sm:$0xff] %vm1158, %v1349
      %1355 = vst.msk [vmem:[%s1352 + $0x10] sm:$0xff] %vm1158, %v1350
      %1356 = vst.msk [vmem:[%s1352 + $0x18] sm:$0xf] %vm1280, %v1351
      %v1357 = vld [vmem:[#allocation2 + $0xe0] sm:$0xff]
      %v1358 = vld [vmem:[#allocation2 + $0xe8] sm:$0xff]
      %v1359 = vld [vmem:[#allocation2 + $0xf0] sm:$0xff]
      %v1360 = vld [vmem:[#allocation2 + $0xf8] sm:$0xf]
      %v1361 = vld [vmem:[#allocation2 + $0xfc] sm:$0xff]
      %v1362 = vld [vmem:[#allocation2 + $0x104] sm:$0xff]
      %v1363 = vld [vmem:[#allocation2 + $0x10c] sm:$0xff]
      %v1364 = vld [vmem:[#allocation2 + $0x114] sm:$0xf]
      %v1365 = vld [vmem:[#allocation2 + $0x118] sm:$0xff]
      %v1366 = vld [vmem:[#allocation2 + $0x120] sm:$0xff]
      %v1367 = vld [vmem:[#allocation2 + $0x128] sm:$0xff]
      %v1368 = vld [vmem:[#allocation2 + $0x130] sm:$0xf]
      %v1369 = vmax.f32 %v1361, %v1365
      %v1370 = vmax.f32 %v1362, %v1366
      %v1371 = vmax.f32 %v1363, %v1367
      %v1372 = vmax.f32 %v1364, %v1368
      %v1373 = vmax.f32 %v1357, %v1369
      %v1374 = vmax.f32 %v1358, %v1370
      %v1375 = vmax.f32 %v1359, %v1371
      %v1376 = vmax.f32 %v1360, %v1372
      %s1377 = scalar_lea.vmem [#allocation3], 128
      %1378 = vst.msk [vmem:[%s1377] sm:$0xff] %vm1158, %v1373
      %1379 = vst.msk [vmem:[%s1377 + $0x8] sm:$0xff] %vm1158, %v1374
      %1380 = vst.msk [vmem:[%s1377 + $0x10] sm:$0xff] %vm1158, %v1375
      %1381 = vst.msk [vmem:[%s1377 + $0x18] sm:$0xf] %vm1280, %v1376
      %v1382 = vld [vmem:[#allocation2 + $0x118] sm:$0xff]
      %v1383 = vld [vmem:[#allocation2 + $0x120] sm:$0xff]
      %v1384 = vld [vmem:[#allocation2 + $0x128] sm:$0xff]
      %v1385 = vld [vmem:[#allocation2 + $0x130] sm:$0xf]
      %v1386 = vld [vmem:[#allocation2 + $0x134] sm:$0xff]
      %v1387 = vld [vmem:[#allocation2 + $0x13c] sm:$0xff]
      %v1388 = vld [vmem:[#allocation2 + $0x144] sm:$0xff]
      %v1389 = vld [vmem:[#allocation2 + $0x14c] sm:$0xf]
      %v1390 = vld [vmem:[#allocation2 + $0x150] sm:$0xff]
      %v1391 = vld [vmem:[#allocation2 + $0x158] sm:$0xff]
      %v1392 = vld [vmem:[#allocation2 + $0x160] sm:$0xff]
      %v1393 = vld [vmem:[#allocation2 + $0x168] sm:$0xf]
      %v1394 = vmax.f32 %v1386, %v1390
      %v1395 = vmax.f32 %v1387, %v1391
      %v1396 = vmax.f32 %v1388, %v1392
      %v1397 = vmax.f32 %v1389, %v1393
      %v1398 = vmax.f32 %v1382, %v1394
      %v1399 = vmax.f32 %v1383, %v1395
      %v1400 = vmax.f32 %v1384, %v1396
      %v1401 = vmax.f32 %v1385, %v1397
      %s1402 = scalar_lea.vmem [#allocation3], 160
      %1403 = vst.msk [vmem:[%s1402] sm:$0xff] %vm1158, %v1398
      %1404 = vst.msk [vmem:[%s1402 + $0x8] sm:$0xff] %vm1158, %v1399
      %1405 = vst.msk [vmem:[%s1402 + $0x10] sm:$0xff] %vm1158, %v1400
      %1406 = vst.msk [vmem:[%s1402 + $0x18] sm:$0xf] %vm1280, %v1401
      %v1407 = vld [vmem:[#allocation2 + $0x150] sm:$0xff]
      %v1408 = vld [vmem:[#allocation2 + $0x158] sm:$0xff]
      %v1409 = vld [vmem:[#allocation2 + $0x160] sm:$0xff]
      %v1410 = vld [vmem:[#allocation2 + $0x168] sm:$0xf]
      %v1411 = vld [vmem:[#allocation2 + $0x16c] sm:$0xff]
      %v1412 = vld [vmem:[#allocation2 + $0x174] sm:$0xff]
      %v1413 = vld [vmem:[#allocation2 + $0x17c] sm:$0xff]
      %v1414 = vld [vmem:[#allocation2 + $0x184] sm:$0xf]
      %v1415 = vld [vmem:[#allocation2 + $0x188] sm:$0xff]
      %v1416 = vld [vmem:[#allocation2 + $0x190] sm:$0xff]
      %v1417 = vld [vmem:[#allocation2 + $0x198] sm:$0xff]
      %v1418 = vld [vmem:[#allocation2 + $0x1a0] sm:$0xf]
      %v1419 = vmax.f32 %v1411, %v1415
      %v1420 = vmax.f32 %v1412, %v1416
      %v1421 = vmax.f32 %v1413, %v1417
      %v1422 = vmax.f32 %v1414, %v1418
      %v1423 = vmax.f32 %v1407, %v1419
      %v1424 = vmax.f32 %v1408, %v1420
      %v1425 = vmax.f32 %v1409, %v1421
      %v1426 = vmax.f32 %v1410, %v1422
      %s1427 = scalar_lea.vmem [#allocation3], 192
      %1428 = vst.msk [vmem:[%s1427] sm:$0xff] %vm1158, %v1423
      %1429 = vst.msk [vmem:[%s1427 + $0x8] sm:$0xff] %vm1158, %v1424
      %1430 = vst.msk [vmem:[%s1427 + $0x10] sm:$0xff] %vm1158, %v1425
      %1431 = vst.msk [vmem:[%s1427 + $0x18] sm:$0xf] %vm1280, %v1426
      %v1432 = vld [vmem:[#allocation2 + $0x188] sm:$0xff]
      %v1433 = vld [vmem:[#allocation2 + $0x190] sm:$0xff]
      %v1434 = vld [vmem:[#allocation2 + $0x198] sm:$0xff]
      %v1435 = vld [vmem:[#allocation2 + $0x1a0] sm:$0xf]
      %v1436 = vld [vmem:[#allocation2 + $0x1a4] sm:$0xff]
      %v1437 = vld [vmem:[#allocation2 + $0x1ac] sm:$0xff]
      %v1438 = vld [vmem:[#allocation2 + $0x1b4] sm:$0xff]
      %v1439 = vld [vmem:[#allocation2 + $0x1bc] sm:$0xf]
      %v1440 = vld [vmem:[#allocation2 + $0x1c0] sm:$0xff]
      %v1441 = vld [vmem:[#allocation2 + $0x1c8] sm:$0xff]
      %v1442 = vld [vmem:[#allocation2 + $0x1d0] sm:$0xff]
      %v1443 = vld [vmem:[#allocation2 + $0x1d8] sm:$0xf]
      %v1444 = vmax.f32 %v1436, %v1440
      %v1445 = vmax.f32 %v1437, %v1441
      %v1446 = vmax.f32 %v1438, %v1442
      %v1447 = vmax.f32 %v1439, %v1443
      %v1448 = vmax.f32 %v1432, %v1444
      %v1449 = vmax.f32 %v1433, %v1445
      %v1450 = vmax.f32 %v1434, %v1446
      %v1451 = vmax.f32 %v1435, %v1447
      %s1452 = scalar_lea.vmem [#allocation3], 224
      %1453 = vst.msk [vmem:[%s1452] sm:$0xff] %vm1158, %v1448
      %1454 = vst.msk [vmem:[%s1452 + $0x8] sm:$0xff] %vm1158, %v1449
      %1455 = vst.msk [vmem:[%s1452 + $0x10] sm:$0xff] %vm1158, %v1450
      %1456 = vst.msk [vmem:[%s1452 + $0x18] sm:$0xf] %vm1280, %v1451
      %v1457 = vld [vmem:[#allocation2 + $0x1c0] sm:$0xff]
      %v1458 = vld [vmem:[#allocation2 + $0x1c8] sm:$0xff]
      %v1459 = vld [vmem:[#allocation2 + $0x1d0] sm:$0xff]
      %v1460 = vld [vmem:[#allocation2 + $0x1d8] sm:$0xf]
      %v1461 = vld [vmem:[#allocation2 + $0x1dc] sm:$0xff]
      %v1462 = vld [vmem:[#allocation2 + $0x1e4] sm:$0xff]
      %v1463 = vld [vmem:[#allocation2 + $0x1ec] sm:$0xff]
      %v1464 = vld [vmem:[#allocation2 + $0x1f4] sm:$0xf]
      %v1465 = vld [vmem:[#allocation2 + $0x1f8] sm:$0xff]
      %v1466 = vld [vmem:[#allocation2 + $0x200] sm:$0xff]
      %v1467 = vld [vmem:[#allocation2 + $0x208] sm:$0xff]
      %v1468 = vld [vmem:[#allocation2 + $0x210] sm:$0xf]
      %v1469 = vmax.f32 %v1461, %v1465
      %v1470 = vmax.f32 %v1462, %v1466
      %v1471 = vmax.f32 %v1463, %v1467
      %v1472 = vmax.f32 %v1464, %v1468
      %v1473 = vmax.f32 %v1457, %v1469
      %v1474 = vmax.f32 %v1458, %v1470
      %v1475 = vmax.f32 %v1459, %v1471
      %v1476 = vmax.f32 %v1460, %v1472
      %s1477 = scalar_lea.vmem [#allocation3], 256
      %1478 = vst.msk [vmem:[%s1477] sm:$0xff] %vm1158, %v1473
      %1479 = vst.msk [vmem:[%s1477 + $0x8] sm:$0xff] %vm1158, %v1474
      %1480 = vst.msk [vmem:[%s1477 + $0x10] sm:$0xff] %vm1158, %v1475
      %1481 = vst.msk [vmem:[%s1477 + $0x18] sm:$0xf] %vm1280, %v1476
      %v1482 = vld [vmem:[#allocation2 + $0x1f8] sm:$0xff]
      %v1483 = vld [vmem:[#allocation2 + $0x200] sm:$0xff]
      %v1484 = vld [vmem:[#allocation2 + $0x208] sm:$0xff]
      %v1485 = vld [vmem:[#allocation2 + $0x210] sm:$0xf]
      %v1486 = vld [vmem:[#allocation2 + $0x214] sm:$0xff]
      %v1487 = vld [vmem:[#allocation2 + $0x21c] sm:$0xff]
      %v1488 = vld [vmem:[#allocation2 + $0x224] sm:$0xff]
      %v1489 = vld [vmem:[#allocation2 + $0x22c] sm:$0xf]
      %v1490 = vld [vmem:[#allocation2 + $0x230] sm:$0xff]
      %v1491 = vld [vmem:[#allocation2 + $0x238] sm:$0xff]
      %v1492 = vld [vmem:[#allocation2 + $0x240] sm:$0xff]
      %v1493 = vld [vmem:[#allocation2 + $0x248] sm:$0xf]
      %v1494 = vmax.f32 %v1486, %v1490
      %v1495 = vmax.f32 %v1487, %v1491
      %v1496 = vmax.f32 %v1488, %v1492
      %v1497 = vmax.f32 %v1489, %v1493
      %v1498 = vmax.f32 %v1482, %v1494
      %v1499 = vmax.f32 %v1483, %v1495
      %v1500 = vmax.f32 %v1484, %v1496
      %v1501 = vmax.f32 %v1485, %v1497
      %s1502 = scalar_lea.vmem [#allocation3], 288
      %1503 = vst.msk [vmem:[%s1502] sm:$0xff] %vm1158, %v1498
      %1504 = vst.msk [vmem:[%s1502 + $0x8] sm:$0xff] %vm1158, %v1499
      %1505 = vst.msk [vmem:[%s1502 + $0x10] sm:$0xff] %vm1158, %v1500
      %1506 = vst.msk [vmem:[%s1502 + $0x18] sm:$0xf] %vm1280, %v1501
      %v1507 = vld [vmem:[#allocation2 + $0x230] sm:$0xff]
      %v1508 = vld [vmem:[#allocation2 + $0x238] sm:$0xff]
      %v1509 = vld [vmem:[#allocation2 + $0x240] sm:$0xff]
      %v1510 = vld [vmem:[#allocation2 + $0x248] sm:$0xf]
      %v1511 = vld [vmem:[#allocation2 + $0x24c] sm:$0xff]
      %v1512 = vld [vmem:[#allocation2 + $0x254] sm:$0xff]
      %v1513 = vld [vmem:[#allocation2 + $0x25c] sm:$0xff]
      %v1514 = vld [vmem:[#allocation2 + $0x264] sm:$0xf]
      %v1515 = vld [vmem:[#allocation2 + $0x268] sm:$0xff]
      %v1516 = vld [vmem:[#allocation2 + $0x270] sm:$0xff]
      %v1517 = vld [vmem:[#allocation2 + $0x278] sm:$0xff]
      %v1518 = vld [vmem:[#allocation2 + $0x280] sm:$0xf]
      %v1519 = vmax.f32 %v1511, %v1515
      %v1520 = vmax.f32 %v1512, %v1516
      %v1521 = vmax.f32 %v1513, %v1517
      %v1522 = vmax.f32 %v1514, %v1518
      %v1523 = vmax.f32 %v1507, %v1519
      %v1524 = vmax.f32 %v1508, %v1520
      %v1525 = vmax.f32 %v1509, %v1521
      %v1526 = vmax.f32 %v1510, %v1522
      %s1527 = scalar_lea.vmem [#allocation3], 320
      %1528 = vst.msk [vmem:[%s1527] sm:$0xff] %vm1158, %v1523
      %1529 = vst.msk [vmem:[%s1527 + $0x8] sm:$0xff] %vm1158, %v1524
      %1530 = vst.msk [vmem:[%s1527 + $0x10] sm:$0xff] %vm1158, %v1525
      %1531 = vst.msk [vmem:[%s1527 + $0x18] sm:$0xf] %vm1280, %v1526
      %v1532 = vld [vmem:[#allocation2 + $0x268] sm:$0xff]
      %v1533 = vld [vmem:[#allocation2 + $0x270] sm:$0xff]
      %v1534 = vld [vmem:[#allocation2 + $0x278] sm:$0xff]
      %v1535 = vld [vmem:[#allocation2 + $0x280] sm:$0xf]
      %v1536 = vld [vmem:[#allocation2 + $0x284] sm:$0xff]
      %v1537 = vld [vmem:[#allocation2 + $0x28c] sm:$0xff]
      %v1538 = vld [vmem:[#allocation2 + $0x294] sm:$0xff]
      %v1539 = vld [vmem:[#allocation2 + $0x29c] sm:$0xf]
      %v1540 = vld [vmem:[#allocation2 + $0x2a0] sm:$0xff]
      %v1541 = vld [vmem:[#allocation2 + $0x2a8] sm:$0xff]
      %v1542 = vld [vmem:[#allocation2 + $0x2b0] sm:$0xff]
      %v1543 = vld [vmem:[#allocation2 + $0x2b8] sm:$0xf]
      %v1544 = vmax.f32 %v1536, %v1540
      %v1545 = vmax.f32 %v1537, %v1541
      %v1546 = vmax.f32 %v1538, %v1542
      %v1547 = vmax.f32 %v1539, %v1543
      %v1548 = vmax.f32 %v1532, %v1544
      %v1549 = vmax.f32 %v1533, %v1545
      %v1550 = vmax.f32 %v1534, %v1546
      %v1551 = vmax.f32 %v1535, %v1547
      %s1552 = scalar_lea.vmem [#allocation3], 352
      %1553 = vst.msk [vmem:[%s1552] sm:$0xff] %vm1158, %v1548
      %1554 = vst.msk [vmem:[%s1552 + $0x8] sm:$0xff] %vm1158, %v1549
      %1555 = vst.msk [vmem:[%s1552 + $0x10] sm:$0xff] %vm1158, %v1550
      %1556 = vst.msk [vmem:[%s1552 + $0x18] sm:$0xf] %vm1280, %v1551
      %v1557 = vld [vmem:[#allocation2 + $0x2a0] sm:$0xff]
      %v1558 = vld [vmem:[#allocation2 + $0x2a8] sm:$0xff]
      %v1559 = vld [vmem:[#allocation2 + $0x2b0] sm:$0xff]
      %v1560 = vld [vmem:[#allocation2 + $0x2b8] sm:$0xf]
      %v1561 = vld [vmem:[#allocation2 + $0x2bc] sm:$0xff]
      %v1562 = vld [vmem:[#allocation2 + $0x2c4] sm:$0xff]
      %v1563 = vld [vmem:[#allocation2 + $0x2cc] sm:$0xff]
      %v1564 = vld [vmem:[#allocation2 + $0x2d4] sm:$0xf]
      %v1565 = vld [vmem:[#allocation2 + $0x2d8] sm:$0xff]
      %v1566 = vld [vmem:[#allocation2 + $0x2e0] sm:$0xff]
      %v1567 = vld [vmem:[#allocation2 + $0x2e8] sm:$0xff]
      %v1568 = vld [vmem:[#allocation2 + $0x2f0] sm:$0xf]
      %v1569 = vmax.f32 %v1561, %v1565
      %v1570 = vmax.f32 %v1562, %v1566
      %v1571 = vmax.f32 %v1563, %v1567
      %v1572 = vmax.f32 %v1564, %v1568
      %v1573 = vmax.f32 %v1557, %v1569
      %v1574 = vmax.f32 %v1558, %v1570
      %v1575 = vmax.f32 %v1559, %v1571
      %v1576 = vmax.f32 %v1560, %v1572
      %s1577 = scalar_lea.vmem [#allocation3], 384
      %1578 = vst.msk [vmem:[%s1577] sm:$0xff] %vm1158, %v1573
      %1579 = vst.msk [vmem:[%s1577 + $0x8] sm:$0xff] %vm1158, %v1574
      %1580 = vst.msk [vmem:[%s1577 + $0x10] sm:$0xff] %vm1158, %v1575
      %1581 = vst.msk [vmem:[%s1577 + $0x18] sm:$0xf] %vm1280, %v1576
      %v1582 = vld [vmem:[#allocation3] ss:$2 sm:$0xff]
      %s1583 = scalar_lea.vmem [#allocation3], 16
      %v1584 = vld [vmem:[%s1583] ss:$2 sm:$0x1f]
      %s1585 = scalar_lea.vmem [#allocation3], 32
      %v1586 = vld [vmem:[%s1585] ss:$2 sm:$0xff]
      %s1587 = scalar_lea.vmem [#allocation3], 48
      %v1588 = vld [vmem:[%s1587] ss:$2 sm:$0x1f]
      %s1589 = scalar_lea.vmem [#allocation3], 64
      %v1590 = vld [vmem:[%s1589] ss:$2 sm:$0xff]
      %s1591 = scalar_lea.vmem [#allocation3], 80
      %v1592 = vld [vmem:[%s1591] ss:$2 sm:$0x1f]
      %s1593 = scalar_lea.vmem [#allocation3], 96
      %v1594 = vld [vmem:[%s1593] ss:$2 sm:$0xff]
      %s1595 = scalar_lea.vmem [#allocation3], 112
      %v1596 = vld [vmem:[%s1595] ss:$2 sm:$0x1f]
      %s1597 = scalar_lea.vmem [#allocation3], 128
      %v1598 = vld [vmem:[%s1597] ss:$2 sm:$0xff]
      %s1599 = scalar_lea.vmem [#allocation3], 144
      %v1600 = vld [vmem:[%s1599] ss:$2 sm:$0x1f]
      %s1601 = scalar_lea.vmem [#allocation3], 160
      %v1602 = vld [vmem:[%s1601] ss:$2 sm:$0xff]
      %s1603 = scalar_lea.vmem [#allocation3], 176
      %v1604 = vld [vmem:[%s1603] ss:$2 sm:$0x1f]
      %s1605 = scalar_lea.vmem [#allocation3], 192
      %v1606 = vld [vmem:[%s1605] ss:$2 sm:$0xff]
      %s1607 = scalar_lea.vmem [#allocation3], 208
      %v1608 = vld [vmem:[%s1607] ss:$2 sm:$0x1f]
      %s1609 = scalar_lea.vmem [#allocation3], 224
      %v1610 = vld [vmem:[%s1609] ss:$2 sm:$0xff]
      %s1611 = scalar_lea.vmem [#allocation3], 240
      %v1612 = vld [vmem:[%s1611] ss:$2 sm:$0x1f]
      %s1613 = scalar_lea.vmem [#allocation3], 256
      %v1614 = vld [vmem:[%s1613] ss:$2 sm:$0xff]
      %s1615 = scalar_lea.vmem [#allocation3], 272
      %v1616 = vld [vmem:[%s1615] ss:$2 sm:$0x1f]
      %s1617 = scalar_lea.vmem [#allocation3], 288
      %v1618 = vld [vmem:[%s1617] ss:$2 sm:$0xff]
      %s1619 = scalar_lea.vmem [#allocation3], 304
      %v1620 = vld [vmem:[%s1619] ss:$2 sm:$0x1f]
      %s1621 = scalar_lea.vmem [#allocation3], 320
      %v1622 = vld [vmem:[%s1621] ss:$2 sm:$0xff]
      %s1623 = scalar_lea.vmem [#allocation3], 336
      %v1624 = vld [vmem:[%s1623] ss:$2 sm:$0x1f]
      %s1625 = scalar_lea.vmem [#allocation3], 352
      %v1626 = vld [vmem:[%s1625] ss:$2 sm:$0xff]
      %s1627 = scalar_lea.vmem [#allocation3], 368
      %v1628 = vld [vmem:[%s1627] ss:$2 sm:$0x1f]
      %s1629 = scalar_lea.vmem [#allocation3], 384
      %v1630 = vld [vmem:[%s1629] ss:$2 sm:$0xff]
      %s1631 = scalar_lea.vmem [#allocation3], 400
      %v1632 = vld [vmem:[%s1631] ss:$2 sm:$0x1f]
      %s1633 = scalar_lea.vmem [#allocation3], 1
      %v1634 = vld [vmem:[%s1633] ss:$2 sm:$0xff]
      %s1635 = scalar_lea.vmem [#allocation3], 17
      %v1636 = vld [vmem:[%s1635] ss:$2 sm:$0x1f]
      %s1637 = scalar_lea.vmem [#allocation3], 33
      %v1638 = vld [vmem:[%s1637] ss:$2 sm:$0xff]
      %s1639 = scalar_lea.vmem [#allocation3], 49
      %v1640 = vld [vmem:[%s1639] ss:$2 sm:$0x1f]
      %s1641 = scalar_lea.vmem [#allocation3], 65
      %v1642 = vld [vmem:[%s1641] ss:$2 sm:$0xff]
      %s1643 = scalar_lea.vmem [#allocation3], 81
      %v1644 = vld [vmem:[%s1643] ss:$2 sm:$0x1f]
      %s1645 = scalar_lea.vmem [#allocation3], 97
      %v1646 = vld [vmem:[%s1645] ss:$2 sm:$0xff]
      %s1647 = scalar_lea.vmem [#allocation3], 113
      %v1648 = vld [vmem:[%s1647] ss:$2 sm:$0x1f]
      %s1649 = scalar_lea.vmem [#allocation3], 129
      %v1650 = vld [vmem:[%s1649] ss:$2 sm:$0xff]
      %s1651 = scalar_lea.vmem [#allocation3], 145
      %v1652 = vld [vmem:[%s1651] ss:$2 sm:$0x1f]
      %s1653 = scalar_lea.vmem [#allocation3], 161
      %v1654 = vld [vmem:[%s1653] ss:$2 sm:$0xff]
      %s1655 = scalar_lea.vmem [#allocation3], 177
      %v1656 = vld [vmem:[%s1655] ss:$2 sm:$0x1f]
      %s1657 = scalar_lea.vmem [#allocation3], 193
      %v1658 = vld [vmem:[%s1657] ss:$2 sm:$0xff]
      %s1659 = scalar_lea.vmem [#allocation3], 209
      %v1660 = vld [vmem:[%s1659] ss:$2 sm:$0x1f]
      %s1661 = scalar_lea.vmem [#allocation3], 225
      %v1662 = vld [vmem:[%s1661] ss:$2 sm:$0xff]
      %s1663 = scalar_lea.vmem [#allocation3], 241
      %v1664 = vld [vmem:[%s1663] ss:$2 sm:$0x1f]
      %s1665 = scalar_lea.vmem [#allocation3], 257
      %v1666 = vld [vmem:[%s1665] ss:$2 sm:$0xff]
      %s1667 = scalar_lea.vmem [#allocation3], 273
      %v1668 = vld [vmem:[%s1667] ss:$2 sm:$0x1f]
      %s1669 = scalar_lea.vmem [#allocation3], 289
      %v1670 = vld [vmem:[%s1669] ss:$2 sm:$0xff]
      %s1671 = scalar_lea.vmem [#allocation3], 305
      %v1672 = vld [vmem:[%s1671] ss:$2 sm:$0x1f]
      %s1673 = scalar_lea.vmem [#allocation3], 321
      %v1674 = vld [vmem:[%s1673] ss:$2 sm:$0xff]
      %s1675 = scalar_lea.vmem [#allocation3], 337
      %v1676 = vld [vmem:[%s1675] ss:$2 sm:$0x1f]
      %s1677 = scalar_lea.vmem [#allocation3], 353
      %v1678 = vld [vmem:[%s1677] ss:$2 sm:$0xff]
      %s1679 = scalar_lea.vmem [#allocation3], 369
      %v1680 = vld [vmem:[%s1679] ss:$2 sm:$0x1f]
      %s1681 = scalar_lea.vmem [#allocation3], 385
      %v1682 = vld [vmem:[%s1681] ss:$2 sm:$0xff]
      %s1683 = scalar_lea.vmem [#allocation3], 401
      %v1684 = vld [vmem:[%s1683] ss:$2 sm:$0x1f]
      %s1685 = scalar_lea.vmem [#allocation3], 2
      %v1686 = vld [vmem:[%s1685] ss:$2 sm:$0xff]
      %s1687 = scalar_lea.vmem [#allocation3], 18
      %v1688 = vld [vmem:[%s1687] ss:$2 sm:$0x1f]
      %s1689 = scalar_lea.vmem [#allocation3], 34
      %v1690 = vld [vmem:[%s1689] ss:$2 sm:$0xff]
      %s1691 = scalar_lea.vmem [#allocation3], 50
      %v1692 = vld [vmem:[%s1691] ss:$2 sm:$0x1f]
      %s1693 = scalar_lea.vmem [#allocation3], 66
      %v1694 = vld [vmem:[%s1693] ss:$2 sm:$0xff]
      %s1695 = scalar_lea.vmem [#allocation3], 82
      %v1696 = vld [vmem:[%s1695] ss:$2 sm:$0x1f]
      %s1697 = scalar_lea.vmem [#allocation3], 98
      %v1698 = vld [vmem:[%s1697] ss:$2 sm:$0xff]
      %s1699 = scalar_lea.vmem [#allocation3], 114
      %v1700 = vld [vmem:[%s1699] ss:$2 sm:$0x1f]
      %s1701 = scalar_lea.vmem [#allocation3], 130
      %v1702 = vld [vmem:[%s1701] ss:$2 sm:$0xff]
      %s1703 = scalar_lea.vmem [#allocation3], 146
      %v1704 = vld [vmem:[%s1703] ss:$2 sm:$0x1f]
      %s1705 = scalar_lea.vmem [#allocation3], 162
      %v1706 = vld [vmem:[%s1705] ss:$2 sm:$0xff]
      %s1707 = scalar_lea.vmem [#allocation3], 178
      %v1708 = vld [vmem:[%s1707] ss:$2 sm:$0x1f]
      %s1709 = scalar_lea.vmem [#allocation3], 194
      %v1710 = vld [vmem:[%s1709] ss:$2 sm:$0xff]
      %s1711 = scalar_lea.vmem [#allocation3], 210
      %v1712 = vld [vmem:[%s1711] ss:$2 sm:$0x1f]
      %s1713 = scalar_lea.vmem [#allocation3], 226
      %v1714 = vld [vmem:[%s1713] ss:$2 sm:$0xff]
      %s1715 = scalar_lea.vmem [#allocation3], 242
      %v1716 = vld [vmem:[%s1715] ss:$2 sm:$0x1f]
      %s1717 = scalar_lea.vmem [#allocation3], 258
      %v1718 = vld [vmem:[%s1717] ss:$2 sm:$0xff]
      %s1719 = scalar_lea.vmem [#allocation3], 274
      %v1720 = vld [vmem:[%s1719] ss:$2 sm:$0x1f]
      %s1721 = scalar_lea.vmem [#allocation3], 290
      %v1722 = vld [vmem:[%s1721] ss:$2 sm:$0xff]
      %s1723 = scalar_lea.vmem [#allocation3], 306
      %v1724 = vld [vmem:[%s1723] ss:$2 sm:$0x1f]
      %s1725 = scalar_lea.vmem [#allocation3], 322
      %v1726 = vld [vmem:[%s1725] ss:$2 sm:$0xff]
      %s1727 = scalar_lea.vmem [#allocation3], 338
      %v1728 = vld [vmem:[%s1727] ss:$2 sm:$0x1f]
      %s1729 = scalar_lea.vmem [#allocation3], 354
      %v1730 = vld [vmem:[%s1729] ss:$2 sm:$0xff]
      %s1731 = scalar_lea.vmem [#allocation3], 370
      %v1732 = vld [vmem:[%s1731] ss:$2 sm:$0x1f]
      %s1733 = scalar_lea.vmem [#allocation3], 386
      %v1734 = vld [vmem:[%s1733] ss:$2 sm:$0xff]
      %s1735 = scalar_lea.vmem [#allocation3], 402
      %v1736 = vld [vmem:[%s1735] ss:$2 sm:$0x1f]
      %v1737 = vmax.f32 %v1634, %v1686
      %v1738 = vmax.f32 %v1636, %v1688
      %v1739 = vmax.f32 %v1638, %v1690
      %v1740 = vmax.f32 %v1640, %v1692
      %v1741 = vmax.f32 %v1642, %v1694
      %v1742 = vmax.f32 %v1644, %v1696
      %v1743 = vmax.f32 %v1646, %v1698
      %v1744 = vmax.f32 %v1648, %v1700
      %v1745 = vmax.f32 %v1650, %v1702
      %v1746 = vmax.f32 %v1652, %v1704
      %v1747 = vmax.f32 %v1654, %v1706
      %v1748 = vmax.f32 %v1656, %v1708
      %v1749 = vmax.f32 %v1658, %v1710
      %v1750 = vmax.f32 %v1660, %v1712
      %v1751 = vmax.f32 %v1662, %v1714
      %v1752 = vmax.f32 %v1664, %v1716
      %v1753 = vmax.f32 %v1666, %v1718
      %v1754 = vmax.f32 %v1668, %v1720
      %v1755 = vmax.f32 %v1670, %v1722
      %v1756 = vmax.f32 %v1672, %v1724
      %v1757 = vmax.f32 %v1674, %v1726
      %v1758 = vmax.f32 %v1676, %v1728
      %v1759 = vmax.f32 %v1678, %v1730
      %v1760 = vmax.f32 %v1680, %v1732
      %v1761 = vmax.f32 %v1682, %v1734
      %v1762 = vmax.f32 %v1684, %v1736
      %v1763 = vmax.f32 %v1582, %v1737
      %v1764 = vmax.f32 %v1584, %v1738
      %v1765 = vmax.f32 %v1586, %v1739
      %v1766 = vmax.f32 %v1588, %v1740
      %v1767 = vmax.f32 %v1590, %v1741
      %v1768 = vmax.f32 %v1592, %v1742
      %v1769 = vmax.f32 %v1594, %v1743
      %v1770 = vmax.f32 %v1596, %v1744
      %v1771 = vmax.f32 %v1598, %v1745
      %v1772 = vmax.f32 %v1600, %v1746
      %v1773 = vmax.f32 %v1602, %v1747
      %v1774 = vmax.f32 %v1604, %v1748
      %v1775 = vmax.f32 %v1606, %v1749
      %v1776 = vmax.f32 %v1608, %v1750
      %v1777 = vmax.f32 %v1610, %v1751
      %v1778 = vmax.f32 %v1612, %v1752
      %v1779 = vmax.f32 %v1614, %v1753
      %v1780 = vmax.f32 %v1616, %v1754
      %v1781 = vmax.f32 %v1618, %v1755
      %v1782 = vmax.f32 %v1620, %v1756
      %v1783 = vmax.f32 %v1622, %v1757
      %v1784 = vmax.f32 %v1624, %v1758
      %v1785 = vmax.f32 %v1626, %v1759
      %v1786 = vmax.f32 %v1628, %v1760
      %v1787 = vmax.f32 %v1630, %v1761
      %v1788 = vmax.f32 %v1632, %v1762
      %v1789 = vpack.c.bf16 %v1764, %v1763
      %v1790 = vpack.c.bf16 %v1766, %v1765
      %v1791 = vpack.c.bf16 %v1768, %v1767
      %v1792 = vpack.c.bf16 %v1770, %v1769
      %v1793 = vpack.c.bf16 %v1772, %v1771
      %v1794 = vpack.c.bf16 %v1774, %v1773
      %v1795 = vpack.c.bf16 %v1776, %v1775
      %v1796 = vpack.c.bf16 %v1778, %v1777
      %v1797 = vpack.c.bf16 %v1780, %v1779
      %v1798 = vpack.c.bf16 %v1782, %v1781
      %v1799 = vpack.c.bf16 %v1784, %v1783
      %v1800 = vpack.c.bf16 %v1786, %v1785
      %v1801 = vpack.c.bf16 %v1788, %v1787
      %v1815 = vunpack.c.l.b16 %v1789
      %v1816 = vunpack.c.h.b16 %v1789
      %v1817 = vunpack.c.l.b16 %v1790
      %v1818 = vunpack.c.h.b16 %v1790
      %v1819 = vunpack.c.l.b16 %v1791
      %v1820 = vunpack.c.h.b16 %v1791
      %v1821 = vunpack.c.l.b16 %v1792
      %v1822 = vunpack.c.h.b16 %v1792
      %v1823 = vunpack.c.l.b16 %v1793
      %v1824 = vunpack.c.h.b16 %v1793
      %v1825 = vunpack.c.l.b16 %v1794
      %v1826 = vunpack.c.h.b16 %v1794
      %v1827 = vunpack.c.l.b16 %v1795
      %v1828 = vunpack.c.h.b16 %v1795
      %v1829 = vunpack.c.l.b16 %v1796
      %v1830 = vunpack.c.h.b16 %v1796
      %v1831 = vunpack.c.l.b16 %v1797
      %v1832 = vunpack.c.h.b16 %v1797
      %v1833 = vunpack.c.l.b16 %v1798
      %v1834 = vunpack.c.h.b16 %v1798
      %v1835 = vunpack.c.l.b16 %v1799
      %v1836 = vunpack.c.h.b16 %v1799
      %v1837 = vunpack.c.l.b16 %v1800
      %v1838 = vunpack.c.h.b16 %v1800
      %v1839 = vunpack.c.l.b16 %v1801
      %v1840 = vunpack.c.h.b16 %v1801
      %v1841 = vpack.c.b16 %v1815, %v1815
      %v1842 = vpack.c.b16 %v1816, %v1816
      %v1843 = vpack.c.b16 %v1817, %v1817
      %v1844 = vpack.c.b16 %v1818, %v1818
      %v1845 = vpack.c.b16 %v1819, %v1819
      %v1846 = vpack.c.b16 %v1820, %v1820
      %v1847 = vpack.c.b16 %v1821, %v1821
      %v1848 = vpack.c.b16 %v1822, %v1822
      %v1849 = vpack.c.b16 %v1823, %v1823
      %v1850 = vpack.c.b16 %v1824, %v1824
      %v1851 = vpack.c.b16 %v1825, %v1825
      %v1852 = vpack.c.b16 %v1826, %v1826
      %v1853 = vpack.c.b16 %v1827, %v1827
      %v1854 = vpack.c.b16 %v1828, %v1828
      %v1855 = vpack.c.b16 %v1829, %v1829
      %v1856 = vpack.c.b16 %v1830, %v1830
      %v1857 = vpack.c.b16 %v1831, %v1831
      %v1858 = vpack.c.b16 %v1832, %v1832
      %v1859 = vpack.c.b16 %v1833, %v1833
      %v1860 = vpack.c.b16 %v1834, %v1834
      %v1861 = vpack.c.b16 %v1835, %v1835
      %v1862 = vpack.c.b16 %v1836, %v1836
      %v1863 = vpack.c.b16 %v1837, %v1837
      %v1864 = vpack.c.b16 %v1838, %v1838
      %v1865 = vpack.c.b16 %v1839, %v1839
      %v1866 = vpack.c.b16 %v1840, %v1840
      %1893 = vst.msk [vmem:[%s170] sm:$0xf] %vm1280, %v1841
      %vm1894 = vcmask 518144
      %vm1895 = vsmask.f32 2304
      %vm1896 = vmand %vm1894, %vm1895
      %v1897 = vld [vmem:[%s170 + $0x4] sm:$0x7]
      %v1898 = vsel %vm1896, %v1842, %v1897
      %1899 = vst [vmem:[%s170 + $0x4] sm:$0x7] %v1898
      %1900 = vst.msk [vmem:[%s170 + $0x8] sm:$0xf] %vm1280, %v1843
      %v1901 = vld [vmem:[%s170 + $0xc] sm:$0x7]
      %v1902 = vsel %vm1896, %v1844, %v1901
      %1903 = vst [vmem:[%s170 + $0xc] sm:$0x7] %v1902
      %1904 = vst.msk [vmem:[%s170 + $0x10] sm:$0xf] %vm1280, %v1845
      %v1905 = vld [vmem:[%s170 + $0x14] sm:$0x7]
      %v1906 = vsel %vm1896, %v1846, %v1905
      %1907 = vst [vmem:[%s170 + $0x14] sm:$0x7] %v1906
      %1908 = vst.msk [vmem:[%s170 + $0x18] sm:$0xf] %vm1280, %v1847
      %v1909 = vld [vmem:[%s170 + $0x1c] sm:$0x7]
      %v1910 = vsel %vm1896, %v1848, %v1909
      %1911 = vst [vmem:[%s170 + $0x1c] sm:$0x7] %v1910
      %1912 = vst.msk [vmem:[%s170 + $0x20] sm:$0xf] %vm1280, %v1849
      %v1913 = vld [vmem:[%s170 + $0x24] sm:$0x7]
      %v1914 = vsel %vm1896, %v1850, %v1913
      %1915 = vst [vmem:[%s170 + $0x24] sm:$0x7] %v1914
      %1916 = vst.msk [vmem:[%s170 + $0x28] sm:$0xf] %vm1280, %v1851
      %v1917 = vld [vmem:[%s170 + $0x2c] sm:$0x7]
      %v1918 = vsel %vm1896, %v1852, %v1917
      %1919 = vst [vmem:[%s170 + $0x2c] sm:$0x7] %v1918
      %1920 = vst.msk [vmem:[%s170 + $0x30] sm:$0xf] %vm1280, %v1853
      %v1921 = vld [vmem:[%s170 + $0x34] sm:$0x7]
      %v1922 = vsel %vm1896, %v1854, %v1921
      %1923 = vst [vmem:[%s170 + $0x34] sm:$0x7] %v1922
      %1924 = vst.msk [vmem:[%s170 + $0x38] sm:$0xf] %vm1280, %v1855
      %v1925 = vld [vmem:[%s170 + $0x3c] sm:$0x7]
      %v1926 = vsel %vm1896, %v1856, %v1925
      %1927 = vst [vmem:[%s170 + $0x3c] sm:$0x7] %v1926
      %1928 = vst.msk [vmem:[%s170 + $0x40] sm:$0xf] %vm1280, %v1857
      %v1929 = vld [vmem:[%s170 + $0x44] sm:$0x7]
      %v1930 = vsel %vm1896, %v1858, %v1929
      %1931 = vst [vmem:[%s170 + $0x44] sm:$0x7] %v1930
      %1932 = vst.msk [vmem:[%s170 + $0x48] sm:$0xf] %vm1280, %v1859
      %v1933 = vld [vmem:[%s170 + $0x4c] sm:$0x7]
      %v1934 = vsel %vm1896, %v1860, %v1933
      %1935 = vst [vmem:[%s170 + $0x4c] sm:$0x7] %v1934
      %1936 = vst.msk [vmem:[%s170 + $0x50] sm:$0xf] %vm1280, %v1861
      %v1937 = vld [vmem:[%s170 + $0x54] sm:$0x7]
      %v1938 = vsel %vm1896, %v1862, %v1937
      %1939 = vst [vmem:[%s170 + $0x54] sm:$0x7] %v1938
      %1940 = vst.msk [vmem:[%s170 + $0x58] sm:$0xf] %vm1280, %v1863
      %v1941 = vld [vmem:[%s170 + $0x5c] sm:$0x7]
      %v1942 = vsel %vm1896, %v1864, %v1941
      %1943 = vst [vmem:[%s170 + $0x5c] sm:$0x7] %v1942
      %1944 = vst.msk [vmem:[%s170 + $0x60] sm:$0xf] %vm1280, %v1865
      %v1945 = vld [vmem:[%s170 + $0x64] sm:$0x7]
      %v1946 = vsel %vm1896, %v1866, %v1945
      %1947 = vst [vmem:[%s170 + $0x64] sm:$0x7] %v1946
      %p1948 = scmp.lt.s32.totalorder %s14, 1
      %s1949 = scalar_select %p1948, %s14, 1
      %s1950 = smul.addr %s1949, 26
      %s1951 = smul.addr %s1950, 4
      %s1952 = scalar_lea.vmem %s3, %s1951
      // Predicated region
      $region33: #{cnn_cifar_forward.3} parent=31 // pred_check
        %p1953 = pneg %p100
      $region34: #{cnn_cifar_forward.3} parent=31 // pred_check_branch
        %1955 = sbr.rel (%p1953) target = $region36
      $region35: #{cnn_cifar_forward.3} parent=31 // pred_region
        _
      $region36: #{cnn_cifar_forward.3} parent=31 // pred_fallthru
        _
    $region32: #{cnn_cifar_forward.3} parent=5 // pred_fallthru
      _
    %p1956 = scmp.le.s32.totalorder 2, %s9
    // Predicated region
    $region37: #{cnn_cifar_forward.3} parent=5 // pred_check
      %p1957 = pneg %p1956
    $region38: #{cnn_cifar_forward.3} parent=5 // pred_check_branch
      %1959 = sbr.rel (%p1957) target = $region40
    $region39: #{cnn_cifar_forward.3} parent=5 // pred_region
      %s1960 = ssub.s32 %s9, 2
      // Predicated region
      $region41: #{cnn_cifar_forward.3} parent=39 // pred_check
        %p1961 = pneg %p106
      $region42: #{cnn_cifar_forward.3} parent=39 // pred_check_branch
        %1963 = sbr.rel (%p1961) target = $region44
      $region43: #{cnn_cifar_forward.3} parent=39 // pred_region
        %p1964 = scmp.lt.s32.totalorder %s15, 1
        %s1965 = scalar_select %p1964, %s15, 1
        %s1966 = smul.addr %s1965, 26
        %s1967 = smul.addr %s1966, 4
        %s1968 = scalar_lea.vmem %s3, %s1967
      $region44: #{cnn_cifar_forward.3} parent=39 // pred_fallthru
        _
    $region40: #{cnn_cifar_forward.3} parent=5 // pred_fallthru
      _
  $region6: #{cnn_cifar_forward.3} parent=0 // loop_footer
    %s13 = sadd.s32 1, %s9
  $region7: #{cnn_cifar_forward.3} parent=0 // loop_footer_branch
    %8 = sbr.rel target = $region3
  $region8: #{cnn_cifar_forward.3} parent=0 // loop_exit
    _

// kernel: cnn_cifar_forward.4
$region0: #{cnn_cifar_forward.4}
  #allocation0 [shape = 'u32[]', space=smem, size = 0x4, offset = 0x4, fixed_abs, tag = 'smem constant byte address 0x4 - core index']
  #allocation1 [shape = 'u32[144,128]{1,0:T(1,128)}', space=vmem, size = 0x12000, scoped, tag = 'internal scratch']
  #allocation2 [shape = 'f32[81,64]{1,0:T(8,128)}', space=vmem, size = 0xb000, scoped, tag = 'scratch operand']
  #allocation3 [shape = 'f32[4,9,64]{2,1,0:T(8,128)}', space=vmem, size = 0x8000, scoped, tag = 'scratch operand']
  %s0 = inlined_call_operand.vmem [shape: bf16[2,81,1664], index: 0, kind: input, shape index: {}]
  %s1 = inlined_call_operand.vmem [shape: bf16[1664,64], index: 1, kind: input, shape index: {}]
  %s2 = inlined_call_operand.vmem [shape: f32[1,64], index: 2, kind: input, shape index: {}]
  %s3 = inlined_call_operand.vmem [shape: bf16[2,4,4,64], index: 3, kind: output, shape index: {}]
  %s4 = sld [smem:[#allocation0]]
  $region45: #{cnn_cifar_forward.4} parent=0
    _
  %s6 = ssub.s32 1, %s4
  %s7 = scalar_select 0, %s6, %s4
  loop: start=0, step=1, limit=4
  $region2: #{cnn_cifar_forward.4} parent=0 // loop_pre_header
    _
  $region3: #{cnn_cifar_forward.4} parent=0 // loop_header
    %s9 = sphi 0, %s13
    %p10 = scmp.ge.s32.totalorder %s9, 4
    %s19 = sphi 0, %s21
    %s22 = sphi 0, %s19
    %s23 = sphi 0, %s22
    %s39 = sphi 0, %s23
    %s43 = sphi 0, %s43
    %s45 = sphi 0, %s43
    %s46 = sphi 0, %s45
    %s60 = sphi 0, %s46
    %s64 = sphi 0, %s64
    %s66 = sphi 0, %s64
    %s67 = sphi 0, %s66
    %s81 = sphi 0, %s67
    %s87 = sphi 0, %s89
    %s90 = sphi 0, %s87
    %s91 = sphi 0, %s90
    %s107 = sphi 0, %s91
  $region4: #{cnn_cifar_forward.4} parent=0 // loop_header_branch
    %12 = sbr.rel (%p10) target = $region8
  $region5: #{cnn_cifar_forward.4} parent=0 // loop_body
    %s14 = ssub.s32 %s9, 1
    %s15 = ssub.s32 %s9, 2
    %s16 = sadd.s32 %s9, 1
    %s17 = ssub.s32 %s9, %s16
    %p18 = scmp.eq.s32.totalorder %s17, 0
    %s20 = sadd.s32 %s19, 1
    %s21 = scalar_select %p18, %s19, %s20
    %p24 = pneg %p18
    %p25 = scmp.eq.s32.totalorder %s9, 1
    %p26 = por %p24, %p25
    %p27 = scmp.ne.s32.totalorder %s19, %s22
    %p28 = scmp.eq.s32.totalorder %s9, 0
    %p29 = por %p27, %p28
    %p30 = scmp.ne.s32.totalorder %s19, %s22
    %p31 = scmp.eq.s32.totalorder %s14, 1
    %p32 = por %p30, %p31
    %p33 = scmp.ne.s32.totalorder %s22, %s23
    %p34 = scmp.eq.s32.totalorder %s14, 0
    %p35 = por %p33, %p34
    %p36 = scmp.ne.s32.totalorder %s22, %s23
    %p37 = scmp.eq.s32.totalorder %s15, 1
    %p38 = por %p36, %p37
    %p40 = scmp.ne.s32.totalorder %s23, %s39
    %p41 = scmp.eq.s32.totalorder %s15, 0
    %p42 = por %p40, %p41
    %s44 = sadd.s32 %s43, 1
    %p47 = scmp.eq.s32.totalorder %s9, 1
    %p48 = scmp.ne.s32.totalorder %s43, %s45
    %p49 = scmp.eq.s32.totalorder %s9, 0
    %p50 = por %p48, %p49
    %p51 = scmp.ne.s32.totalorder %s43, %s45
    %p52 = scmp.eq.s32.totalorder %s14, 1
    %p53 = por %p51, %p52
    %p54 = scmp.ne.s32.totalorder %s45, %s46
    %p55 = scmp.eq.s32.totalorder %s14, 0
    %p56 = por %p54, %p55
    %p57 = scmp.ne.s32.totalorder %s45, %s46
    %p58 = scmp.eq.s32.totalorder %s15, 1
    %p59 = por %p57, %p58
    %p61 = scmp.ne.s32.totalorder %s46, %s60
    %p62 = scmp.eq.s32.totalorder %s15, 0
    %p63 = por %p61, %p62
    %s65 = sadd.s32 %s64, 1
    %p68 = scmp.eq.s32.totalorder %s9, 1
    %p69 = scmp.ne.s32.totalorder %s64, %s66
    %p70 = scmp.eq.s32.totalorder %s9, 0
    %p71 = por %p69, %p70
    %p72 = scmp.ne.s32.totalorder %s64, %s66
    %p73 = scmp.eq.s32.totalorder %s14, 1
    %p74 = por %p72, %p73
    %p75 = scmp.ne.s32.totalorder %s66, %s67
    %p76 = scmp.eq.s32.totalorder %s14, 0
    %p77 = por %p75, %p76
    %p78 = scmp.ne.s32.totalorder %s66, %s67
    %p79 = scmp.eq.s32.totalorder %s15, 1
    %p80 = por %p78, %p79
    %p82 = scmp.ne.s32.totalorder %s67, %s81
    %p83 = scmp.eq.s32.totalorder %s15, 0
    %p84 = por %p82, %p83
    %s85 = ssub.s32 %s9, %s16
    %p86 = scmp.eq.s32.totalorder %s85, 0
    %s88 = sadd.s32 %s87, 1
    %s89 = scalar_select %p86, %s87, %s88
    %p92 = pneg %p86
    %p93 = scmp.eq.s32.totalorder %s9, 1
    %p94 = por %p92, %p93
    %p95 = scmp.ne.s32.totalorder %s87, %s90
    %p96 = scmp.eq.s32.totalorder %s9, 0
    %p97 = por %p95, %p96
    %p98 = scmp.ne.s32.totalorder %s87, %s90
    %p99 = scmp.eq.s32.totalorder %s14, 1
    %p100 = por %p98, %p99
    %p101 = scmp.ne.s32.totalorder %s90, %s91
    %p102 = scmp.eq.s32.totalorder %s14, 0
    %p103 = por %p101, %p102
    %p104 = scmp.ne.s32.totalorder %s90, %s91
    %p105 = scmp.eq.s32.totalorder %s15, 1
    %p106 = por %p104, %p105
    %p108 = scmp.ne.s32.totalorder %s91, %s107
    %p109 = scmp.eq.s32.totalorder %s15, 0
    %p110 = por %p108, %p109
    %p111 = scmp.le.s32.totalorder 1, %s9
    %p112 = scmp.lt.s32.totalorder %s9, 3
    %p113 = pnand %p111, %p112
    %p114 = pneg %p113
    // Predicated region
    $region9: #{cnn_cifar_forward.4} parent=5 // pred_check
      _
    $region10: #{cnn_cifar_forward.4} parent=5 // pred_check_branch
      %116 = sbr.rel (%p113) target = $region12
    $region11: #{cnn_cifar_forward.4} parent=5 // pred_region
      %s117 = ssub.s32 %s9, 1
      // Predicated region
      $region13: #{cnn_cifar_forward.4} parent=11 // pred_check
        %p118 = pneg %p56
      $region14: #{cnn_cifar_forward.4} parent=11 // pred_check_branch
        %120 = sbr.rel (%p118) target = $region16
      $region15: #{cnn_cifar_forward.4} parent=11 // pred_region
        _
      $region16: #{cnn_cifar_forward.4} parent=11 // pred_fallthru
        _
      // Predicated region
      $region17: #{cnn_cifar_forward.4} parent=11 // pred_check
        %p121 = pneg %p77
      $region18: #{cnn_cifar_forward.4} parent=11 // pred_check_branch
        %123 = sbr.rel (%p121) target = $region20
      $region19: #{cnn_cifar_forward.4} parent=11 // pred_region
        _
      $region20: #{cnn_cifar_forward.4} parent=11 // pred_fallthru
        _
    $region12: #{cnn_cifar_forward.4} parent=5 // pred_fallthru
      _
    %p124 = scmp.lt.s32.totalorder %s9, 2
    // Predicated region
    $region21: #{cnn_cifar_forward.4} parent=5 // pred_check
      %p125 = pneg %p124
    $region22: #{cnn_cifar_forward.4} parent=5 // pred_check_branch
      %127 = sbr.rel (%p125) target = $region24
    $region23: #{cnn_cifar_forward.4} parent=5 // pred_region
      // Predicated region
      $region25: #{cnn_cifar_forward.4} parent=23 // pred_check
        %p128 = pneg %p29
      $region26: #{cnn_cifar_forward.4} parent=23 // pred_check_branch
        %130 = sbr.rel (%p128) target = $region28
      $region27: #{cnn_cifar_forward.4} parent=23 // pred_region
        %p131 = scmp.lt.s32.totalorder %s9, 1
        %s132 = scalar_select %p131, %s9, 1
        %s133 = smul.addr %s132, 143
        %s134 = smul.addr %s133, 4
        %s135 = scalar_lea.vmem %s0, %s134
      $region28: #{cnn_cifar_forward.4} parent=23 // pred_fallthru
        _
    $region24: #{cnn_cifar_forward.4} parent=5 // pred_fallthru
      _
    %p136 = scmp.le.s32.totalorder 1, %s9
    %p137 = scmp.lt.s32.totalorder %s9, 3
    %p138 = pnand %p136, %p137
    %p139 = pneg %p138
    // Predicated region
    $region29: #{cnn_cifar_forward.4} parent=5 // pred_check
      _
    $region30: #{cnn_cifar_forward.4} parent=5 // pred_check_branch
      %141 = sbr.rel (%p138) target = $region32
    $region31: #{cnn_cifar_forward.4} parent=5 // pred_region
      %s142 = ssub.s32 %s9, 1
      %p143 = scmp.lt.s32.totalorder %s14, 1
      %s144 = scalar_select %p143, %s14, 1
      %s145 = smul.addr %s144, 143
      %s146 = smul.addr %s145, 4
      %s147 = scalar_lea.vmem %s0, %s146
      %p148 = pneg %p35
      %p149 = pneg %p32
      %p150 = pneg %p56
      %p151 = pneg %p53
      %p152 = pneg %p77
      %p153 = pneg %p74
      %p154 = pneg %p103
      %p155 = pneg %p100
      %p156 = scmp.lt.s32.totalorder %s14, 1
      %s157 = scalar_select %p156, %s14, 1
      %s158 = smul.addr %s157, 4
      %s159 = smul.addr %s158, 2
      %s160 = scalar_lea.vmem %s3, %s159
      %p161 = scmp.lt.s32.totalorder %s14, 1
      %s162 = scalar_select %p161, %s14, 1
      %s163 = smul.addr %s162, 143
      %s164 = smul.addr %s163, 4
      %s165 = scalar_lea.vmem %s0, %s164
      %p166 = scmp.lt.s32.totalorder %s14, 1
      %s167 = scalar_select %p166, %s14, 1
      %s168 = smul.addr %s167, 4
      %s169 = smul.addr %s168, 2
      %s170 = scalar_lea.vmem %s3, %s169
      %v172 = vld [vmem:[%s165] sm:$0xff]
      %v173 = vld [vmem:[%s165 + $0x8] sm:$0xff]
      %v174 = vld [vmem:[%s165 + $0x10] sm:$0xff]
      %v175 = vld [vmem:[%s165 + $0x18] sm:$0xff]
      %v176 = vld [vmem:[%s165 + $0x20] sm:$0xff]
      %v177 = vld [vmem:[%s165 + $0x28] sm:$0xff]
      %v178 = vld [vmem:[%s165 + $0x30] sm:$0xf]
      %v179 = vld [vmem:[%s165 + $0x34] sm:$0xff]
      %v180 = vld [vmem:[%s165 + $0x3c] sm:$0xff]
      %v181 = vld [vmem:[%s165 + $0x44] sm:$0xff]
      %v182 = vld [vmem:[%s165 + $0x4c] sm:$0xff]
      %v183 = vld [vmem:[%s165 + $0x54] sm:$0xff]
      %v184 = vld [vmem:[%s165 + $0x5c] sm:$0xff]
      %v185 = vld [vmem:[%s165 + $0x64] sm:$0xf]
      %v186 = vld [vmem:[%s165 + $0x68] sm:$0xff]
      %v187 = vld [vmem:[%s165 + $0x70] sm:$0xff]
      %v188 = vld [vmem:[%s165 + $0x78] sm:$0xff]
      %v189 = vld [vmem:[%s165 + $0x80] sm:$0xff]
      %v190 = vld [vmem:[%s165 + $0x88] sm:$0xff]
      %v191 = vld [vmem:[%s165 + $0x90] sm:$0xff]
      %v192 = vld [vmem:[%s165 + $0x98] sm:$0xf]
      %v193 = vld [vmem:[%s165 + $0x9c] sm:$0xff]
      %v194 = vld [vmem:[%s165 + $0xa4] sm:$0xff]
      %v195 = vld [vmem:[%s165 + $0xac] sm:$0xff]
      %v196 = vld [vmem:[%s165 + $0xb4] sm:$0xff]
      %v197 = vld [vmem:[%s165 + $0xbc] sm:$0xff]
      %v198 = vld [vmem:[%s165 + $0xc4] sm:$0xff]
      %v199 = vld [vmem:[%s165 + $0xcc] sm:$0xf]
      %v200 = vld [vmem:[%s165 + $0xd0] sm:$0xff]
      %v201 = vld [vmem:[%s165 + $0xd8] sm:$0xff]
      %v202 = vld [vmem:[%s165 + $0xe0] sm:$0xff]
      %v203 = vld [vmem:[%s165 + $0xe8] sm:$0xff]
      %v204 = vld [vmem:[%s165 + $0xf0] sm:$0xff]
      %v205 = vld [vmem:[%s165 + $0xf8] sm:$0xff]
      %v206 = vld [vmem:[%s165 + $0x100] sm:$0xf]
      %v207 = vld [vmem:[%s165 + $0x104] sm:$0xff]
      %v208 = vld [vmem:[%s165 + $0x10c] sm:$0xff]
      %v209 = vld [vmem:[%s165 + $0x114] sm:$0xff]
      %v210 = vld [vmem:[%s165 + $0x11c] sm:$0xff]
      %v211 = vld [vmem:[%s165 + $0x124] sm:$0xff]
      %v212 = vld [vmem:[%s165 + $0x12c] sm:$0xff]
      %v213 = vld [vmem:[%s165 + $0x134] sm:$0xf]
      %v214 = vld [vmem:[%s165 + $0x138] sm:$0xff]
      %v215 = vld [vmem:[%s165 + $0x140] sm:$0xff]
      %v216 = vld [vmem:[%s165 + $0x148] sm:$0xff]
      %v217 = vld [vmem:[%s165 + $0x150] sm:$0xff]
      %v218 = vld [vmem:[%s165 + $0x158] sm:$0xff]
      %v219 = vld [vmem:[%s165 + $0x160] sm:$0xff]
      %v220 = vld [vmem:[%s165 + $0x168] sm:$0xf]
      %v221 = vld [vmem:[%s165 + $0x16c] sm:$0xff]
      %v222 = vld [vmem:[%s165 + $0x174] sm:$0xff]
      %v223 = vld [vmem:[%s165 + $0x17c] sm:$0xff]
      %v224 = vld [vmem:[%s165 + $0x184] sm:$0xff]
      %v225 = vld [vmem:[%s165 + $0x18c] sm:$0xff]
      %v226 = vld [vmem:[%s165 + $0x194] sm:$0xff]
      %v227 = vld [vmem:[%s165 + $0x19c] sm:$0xf]
      %v228 = vld [vmem:[%s165 + $0x1a0] sm:$0xff]
      %v229 = vld [vmem:[%s165 + $0x1a8] sm:$0xff]
      %v230 = vld [vmem:[%s165 + $0x1b0] sm:$0xff]
      %v231 = vld [vmem:[%s165 + $0x1b8] sm:$0xff]
      %v232 = vld [vmem:[%s165 + $0x1c0] sm:$0xff]
      %v233 = vld [vmem:[%s165 + $0x1c8] sm:$0xff]
      %v234 = vld [vmem:[%s165 + $0x1d0] sm:$0xf]
      %v235 = vld [vmem:[%s165 + $0x1d4] sm:$0xff]
      %v236 = vld [vmem:[%s165 + $0x1dc] sm:$0xff]
      %v237 = vld [vmem:[%s165 + $0x1e4] sm:$0xff]
      %v238 = vld [vmem:[%s165 + $0x1ec] sm:$0xff]
      %v239 = vld [vmem:[%s165 + $0x1f4] sm:$0xff]
      %v240 = vld [vmem:[%s165 + $0x1fc] sm:$0xff]
      %v241 = vld [vmem:[%s165 + $0x204] sm:$0xf]
      %v242 = vld [vmem:[%s165 + $0x208] sm:$0x11]
      %v243 = vld [vmem:[%s165 + $0x210] sm:$0x11]
      %v244 = vld [vmem:[%s165 + $0x218] sm:$0x11]
      %v245 = vld [vmem:[%s165 + $0x220] sm:$0x11]
      %v246 = vld [vmem:[%s165 + $0x228] sm:$0x11]
      %v247 = vld [vmem:[%s165 + $0x230] sm:$0x11]
      %v248 = vld [vmem:[%s165 + $0x238] sm:$0x1]
      %v249 = vld [vmem:[%s1] sm:$0xf]
      %v250 = vld [vmem:[%s1 + $0x4] sm:$0xf]
      %v251 = vld [vmem:[%s1 + $0x8] sm:$0xf]
      %v252 = vld [vmem:[%s1 + $0xc] sm:$0xf]
      %v253 = vld [vmem:[%s1 + $0x10] sm:$0xf]
      %v254 = vld [vmem:[%s1 + $0x14] sm:$0xf]
      %v255 = vld [vmem:[%s1 + $0x18] sm:$0xf]
      %v256 = vld [vmem:[%s1 + $0x1c] sm:$0xf]
      %v257 = vld [vmem:[%s1 + $0x20] sm:$0xf]
      %v258 = vld [vmem:[%s1 + $0x24] sm:$0xf]
      %v259 = vld [vmem:[%s1 + $0x28] sm:$0xf]
      %v260 = vld [vmem:[%s1 + $0x2c] sm:$0xf]
      %v261 = vld [vmem:[%s1 + $0x30] sm:$0xf]
      %v262 = vld [vmem:[%s1 + $0x34] sm:$0xf]
      %v263 = vld [vmem:[%s1 + $0x38] sm:$0xf]
      %v264 = vld [vmem:[%s1 + $0x3c] sm:$0xf]
      %v265 = vld [vmem:[%s1 + $0x40] sm:$0xf]
      %v266 = vld [vmem:[%s1 + $0x44] sm:$0xf]
      %v267 = vld [vmem:[%s1 + $0x48] sm:$0xf]
      %v268 = vld [vmem:[%s1 + $0x4c] sm:$0xf]
      %v269 = vld [vmem:[%s1 + $0x50] sm:$0xf]
      %v270 = vld [vmem:[%s1 + $0x54] sm:$0xf]
      %v271 = vld [vmem:[%s1 + $0x58] sm:$0xf]
      %v272 = vld [vmem:[%s1 + $0x5c] sm:$0xf]
      %v273 = vld [vmem:[%s1 + $0x60] sm:$0xf]
      %v274 = vld [vmem:[%s1 + $0x64] sm:$0xf]
      %v275 = vld [vmem:[%s1 + $0x68] sm:$0xf]
      %v276 = vld [vmem:[%s1 + $0x6c] sm:$0xf]
      %v277 = vld [vmem:[%s1 + $0x70] sm:$0xf]
      %v278 = vld [vmem:[%s1 + $0x74] sm:$0xf]
      %v279 = vld [vmem:[%s1 + $0x78] sm:$0xf]
      %v280 = vld [vmem:[%s1 + $0x7c] sm:$0xf]
      %v281 = vld [vmem:[%s1 + $0x80] sm:$0xf]
      %v282 = vld [vmem:[%s1 + $0x84] sm:$0xf]
      %v283 = vld [vmem:[%s1 + $0x88] sm:$0xf]
      %v284 = vld [vmem:[%s1 + $0x8c] sm:$0xf]
      %v285 = vld [vmem:[%s1 + $0x90] sm:$0xf]
      %v286 = vld [vmem:[%s1 + $0x94] sm:$0xf]
      %v287 = vld [vmem:[%s1 + $0x98] sm:$0xf]
      %v288 = vld [vmem:[%s1 + $0x9c] sm:$0xf]
      %v289 = vld [vmem:[%s1 + $0xa0] sm:$0xf]
      %v290 = vld [vmem:[%s1 + $0xa4] sm:$0xf]
      %v291 = vld [vmem:[%s1 + $0xa8] sm:$0xf]
      %v292 = vld [vmem:[%s1 + $0xac] sm:$0xf]
      %v293 = vld [vmem:[%s1 + $0xb0] sm:$0xf]
      %v294 = vld [vmem:[%s1 + $0xb4] sm:$0xf]
      %v295 = vld [vmem:[%s1 + $0xb8] sm:$0xf]
      %v296 = vld [vmem:[%s1 + $0xbc] sm:$0xf]
      %v297 = vld [vmem:[%s1 + $0xc0] sm:$0xf]
      %v298 = vld [vmem:[%s1 + $0xc4] sm:$0xf]
      %v299 = vld [vmem:[%s1 + $0xc8] sm:$0xf]
      %v300 = vld [vmem:[%s1 + $0xcc] sm:$0xf]
      %v301 = vld [vmem:[%s1 + $0xd0] sm:$0xf]
      %v302 = vld [vmem:[%s1 + $0xd4] sm:$0xf]
      %v303 = vld [vmem:[%s1 + $0xd8] sm:$0xf]
      %v304 = vld [vmem:[%s1 + $0xdc] sm:$0xf]
      %v305 = vld [vmem:[%s1 + $0xe0] sm:$0xf]
      %v306 = vld [vmem:[%s1 + $0xe4] sm:$0xf]
      %v307 = vld [vmem:[%s1 + $0xe8] sm:$0xf]
      %v308 = vld [vmem:[%s1 + $0xec] sm:$0xf]
      %v309 = vld [vmem:[%s1 + $0xf0] sm:$0xf]
      %v310 = vld [vmem:[%s1 + $0xf4] sm:$0xf]
      %v311 = vld [vmem:[%s1 + $0xf8] sm:$0xf]
      %v312 = vld [vmem:[%s1 + $0xfc] sm:$0xf]
      %v313 = vld [vmem:[%s1 + $0x100] sm:$0xf]
      %v314 = vld [vmem:[%s1 + $0x104] sm:$0xf]
      %v315 = vld [vmem:[%s1 + $0x108] sm:$0xf]
      %v316 = vld [vmem:[%s1 + $0x10c] sm:$0xf]
      %v317 = vld [vmem:[%s1 + $0x110] sm:$0xf]
      %v318 = vld [vmem:[%s1 + $0x114] sm:$0xf]
      %v319 = vld [vmem:[%s1 + $0x118] sm:$0xf]
      %v320 = vld [vmem:[%s1 + $0x11c] sm:$0xf]
      %v321 = vld [vmem:[%s1 + $0x120] sm:$0xf]
      %v322 = vld [vmem:[%s1 + $0x124] sm:$0xf]
      %v323 = vld [vmem:[%s1 + $0x128] sm:$0xf]
      %v324 = vld [vmem:[%s1 + $0x12c] sm:$0xf]
      %v325 = vld [vmem:[%s1 + $0x130] sm:$0xf]
      %v326 = vld [vmem:[%s1 + $0x134] sm:$0xf]
      %v327 = vld [vmem:[%s1 + $0x138] sm:$0xf]
      %v328 = vld [vmem:[%s1 + $0x13c] sm:$0xf]
      %v329 = vld [vmem:[%s1 + $0x140] sm:$0xf]
      %v330 = vld [vmem:[%s1 + $0x144] sm:$0xf]
      %v331 = vld [vmem:[%s1 + $0x148] sm:$0xf]
      %v332 = vld [vmem:[%s1 + $0x14c] sm:$0xf]
      %v333 = vld [vmem:[%s1 + $0x150] sm:$0xf]
      %v334 = vld [vmem:[%s1 + $0x154] sm:$0xf]
      %v335 = vld [vmem:[%s1 + $0x158] sm:$0xf]
      %v336 = vld [vmem:[%s1 + $0x15c] sm:$0xf]
      %v337 = vld [vmem:[%s1 + $0x160] sm:$0xf]
      %v338 = vld [vmem:[%s1 + $0x164] sm:$0xf]
      %v339 = vld [vmem:[%s1 + $0x168] sm:$0xf]
      %v340 = vld [vmem:[%s1 + $0x16c] sm:$0xf]
      %v341 = vld [vmem:[%s1 + $0x170] sm:$0xf]
      %v342 = vld [vmem:[%s1 + $0x174] sm:$0xf]
      %v343 = vld [vmem:[%s1 + $0x178] sm:$0xf]
      %v344 = vld [vmem:[%s1 + $0x17c] sm:$0xf]
      %v345 = vld [vmem:[%s1 + $0x180] sm:$0xf]
      %v346 = vld [vmem:[%s1 + $0x184] sm:$0xf]
      %v347 = vld [vmem:[%s1 + $0x188] sm:$0xf]
      %v348 = vld [vmem:[%s1 + $0x18c] sm:$0xf]
      %v349 = vld [vmem:[%s1 + $0x190] sm:$0xf]
      %v350 = vld [vmem:[%s1 + $0x194] sm:$0xf]
      %v351 = vld [vmem:[%s1 + $0x198] sm:$0xf]
      %v352 = vld [vmem:[%s1 + $0x19c] sm:$0xf]
      %v353 = vld [vmem:[%s1 + $0x1a0] sm:$0xf]
      %v354 = vld [vmem:[%s1 + $0x1a4] sm:$0xf]
      %v355 = vld [vmem:[%s1 + $0x1a8] sm:$0xf]
      %v356 = vld [vmem:[%s1 + $0x1ac] sm:$0xf]
      %v357 = vld [vmem:[%s1 + $0x1b0] sm:$0xf]
      %v358 = vld [vmem:[%s1 + $0x1b4] sm:$0xf]
      %v359 = vld [vmem:[%s1 + $0x1b8] sm:$0xf]
      %v360 = vld [vmem:[%s1 + $0x1bc] sm:$0xf]
      %v361 = vld [vmem:[%s1 + $0x1c0] sm:$0xf]
      %v362 = vld [vmem:[%s1 + $0x1c4] sm:$0xf]
      %v363 = vld [vmem:[%s1 + $0x1c8] sm:$0xf]
      %v364 = vld [vmem:[%s1 + $0x1cc] sm:$0xf]
      %v365 = vld [vmem:[%s1 + $0x1d0] sm:$0xf]
      %v366 = vld [vmem:[%s1 + $0x1d4] sm:$0xf]
      %v367 = vld [vmem:[%s1 + $0x1d8] sm:$0xf]
      %v368 = vld [vmem:[%s1 + $0x1dc] sm:$0xf]
      %v369 = vld [vmem:[%s1 + $0x1e0] sm:$0xf]
      %v370 = vld [vmem:[%s1 + $0x1e4] sm:$0xf]
      %v371 = vld [vmem:[%s1 + $0x1e8] sm:$0xf]
      %v372 = vld [vmem:[%s1 + $0x1ec] sm:$0xf]
      %v373 = vld [vmem:[%s1 + $0x1f0] sm:$0xf]
      %v374 = vld [vmem:[%s1 + $0x1f4] sm:$0xf]
      %v375 = vld [vmem:[%s1 + $0x1f8] sm:$0xf]
      %v376 = vld [vmem:[%s1 + $0x1fc] sm:$0xf]
      %v377 = vld [vmem:[%s1 + $0x200] sm:$0xf]
      %v378 = vld [vmem:[%s1 + $0x204] sm:$0xf]
      %v379 = vld [vmem:[%s1 + $0x208] sm:$0xf]
      %v380 = vld [vmem:[%s1 + $0x20c] sm:$0xf]
      %v381 = vld [vmem:[%s1 + $0x210] sm:$0xf]
      %v382 = vld [vmem:[%s1 + $0x214] sm:$0xf]
      %v383 = vld [vmem:[%s1 + $0x218] sm:$0xf]
      %v384 = vld [vmem:[%s1 + $0x21c] sm:$0xf]
      %v385 = vld [vmem:[%s1 + $0x220] sm:$0xf]
      %v386 = vld [vmem:[%s1 + $0x224] sm:$0xf]
      %v387 = vld [vmem:[%s1 + $0x228] sm:$0xf]
      %v388 = vld [vmem:[%s1 + $0x22c] sm:$0xf]
      %v389 = vld [vmem:[%s1 + $0x230] sm:$0xf]
      %v390 = vld [vmem:[%s1 + $0x234] sm:$0xf]
      %v391 = vld [vmem:[%s1 + $0x238] sm:$0xf]
      %v392 = vld [vmem:[%s1 + $0x23c] sm:$0xf]
      %v393 = vld [vmem:[%s1 + $0x240] sm:$0xf]
      %v394 = vld [vmem:[%s1 + $0x244] sm:$0xf]
      %v395 = vld [vmem:[%s1 + $0x248] sm:$0xf]
      %v396 = vld [vmem:[%s1 + $0x24c] sm:$0xf]
      %v397 = vld [vmem:[%s1 + $0x250] sm:$0xf]
      %v398 = vld [vmem:[%s1 + $0x254] sm:$0xf]
      %v399 = vld [vmem:[%s1 + $0x258] sm:$0xf]
      %v400 = vld [vmem:[%s1 + $0x25c] sm:$0xf]
      %v401 = vld [vmem:[%s1 + $0x260] sm:$0xf]
      %v402 = vld [vmem:[%s1 + $0x264] sm:$0xf]
      %v403 = vld [vmem:[%s1 + $0x268] sm:$0xf]
      %v404 = vld [vmem:[%s1 + $0x26c] sm:$0xf]
      %v405 = vld [vmem:[%s1 + $0x270] sm:$0xf]
      %v406 = vld [vmem:[%s1 + $0x274] sm:$0xf]
      %v407 = vld [vmem:[%s1 + $0x278] sm:$0xf]
      %v408 = vld [vmem:[%s1 + $0x27c] sm:$0xf]
      %v409 = vld [vmem:[%s1 + $0x280] sm:$0xf]
      %v410 = vld [vmem:[%s1 + $0x284] sm:$0xf]
      %v411 = vld [vmem:[%s1 + $0x288] sm:$0xf]
      %v412 = vld [vmem:[%s1 + $0x28c] sm:$0xf]
      %v413 = vld [vmem:[%s1 + $0x290] sm:$0xf]
      %v414 = vld [vmem:[%s1 + $0x294] sm:$0xf]
      %v415 = vld [vmem:[%s1 + $0x298] sm:$0xf]
      %v416 = vld [vmem:[%s1 + $0x29c] sm:$0xf]
      %v417 = vld [vmem:[%s1 + $0x2a0] sm:$0xf]
      %v418 = vld [vmem:[%s1 + $0x2a4] sm:$0xf]
      %v419 = vld [vmem:[%s1 + $0x2a8] sm:$0xf]
      %v420 = vld [vmem:[%s1 + $0x2ac] sm:$0xf]
      %v421 = vld [vmem:[%s1 + $0x2b0] sm:$0xf]
      %v422 = vld [vmem:[%s1 + $0x2b4] sm:$0xf]
      %v423 = vld [vmem:[%s1 + $0x2b8] sm:$0xf]
      %v424 = vld [vmem:[%s1 + $0x2bc] sm:$0xf]
      %v425 = vld [vmem:[%s1 + $0x2c0] sm:$0xf]
      %v426 = vld [vmem:[%s1 + $0x2c4] sm:$0xf]
      %v427 = vld [vmem:[%s1 + $0x2c8] sm:$0xf]
      %v428 = vld [vmem:[%s1 + $0x2cc] sm:$0xf]
      %v429 = vld [vmem:[%s1 + $0x2d0] sm:$0xf]
      %v430 = vld [vmem:[%s1 + $0x2d4] sm:$0xf]
      %v431 = vld [vmem:[%s1 + $0x2d8] sm:$0xf]
      %v432 = vld [vmem:[%s1 + $0x2dc] sm:$0xf]
      %v433 = vld [vmem:[%s1 + $0x2e0] sm:$0xf]
      %v434 = vld [vmem:[%s1 + $0x2e4] sm:$0xf]
      %v435 = vld [vmem:[%s1 + $0x2e8] sm:$0xf]
      %v436 = vld [vmem:[%s1 + $0x2ec] sm:$0xf]
      %v437 = vld [vmem:[%s1 + $0x2f0] sm:$0xf]
      %v438 = vld [vmem:[%s1 + $0x2f4] sm:$0xf]
      %v439 = vld [vmem:[%s1 + $0x2f8] sm:$0xf]
      %v440 = vld [vmem:[%s1 + $0x2fc] sm:$0xf]
      %v441 = vld [vmem:[%s1 + $0x300] sm:$0xf]
      %v442 = vld [vmem:[%s1 + $0x304] sm:$0xf]
      %v443 = vld [vmem:[%s1 + $0x308] sm:$0xf]
      %v444 = vld [vmem:[%s1 + $0x30c] sm:$0xf]
      %v445 = vld [vmem:[%s1 + $0x310] sm:$0xf]
      %v446 = vld [vmem:[%s1 + $0x314] sm:$0xf]
      %v447 = vld [vmem:[%s1 + $0x318] sm:$0xf]
      %v448 = vld [vmem:[%s1 + $0x31c] sm:$0xf]
      %v449 = vld [vmem:[%s1 + $0x320] sm:$0xf]
      %v450 = vld [vmem:[%s1 + $0x324] sm:$0xf]
      %v451 = vld [vmem:[%s1 + $0x328] sm:$0xf]
      %v452 = vld [vmem:[%s1 + $0x32c] sm:$0xf]
      %v453 = vld [vmem:[%s1 + $0x330] sm:$0xf]
      %v454 = vld [vmem:[%s1 + $0x334] sm:$0xf]
      %v455 = vld [vmem:[%s1 + $0x338] sm:$0xf]
      %v456 = vld [vmem:[%s1 + $0x33c] sm:$0xf]
      %v457 = vld [vmem:[%s2] sm:$0x1]
      %v459 = vlaneseq
      %v460 = vshrl.u32 %v459, 7
      %v461 = vsub.s32 0, %v460
      %v462 = vrot.slane %v457, %v461
      %v541 = vunpack.c.l.b16 %v172
      %v542 = vunpack.c.h.b16 %v172
      %v543 = vunpack.c.l.b16 %v173
      %v544 = vunpack.c.h.b16 %v173
      %v545 = vunpack.c.l.b16 %v174
      %v546 = vunpack.c.h.b16 %v174
      %v547 = vunpack.c.l.b16 %v175
      %v548 = vunpack.c.h.b16 %v175
      %v549 = vunpack.c.l.b16 %v176
      %v550 = vunpack.c.h.b16 %v176
      %v551 = vunpack.c.l.b16 %v177
      %v552 = vunpack.c.h.b16 %v177
      %v553 = vunpack.c.l.b16 %v178
      %v554 = vunpack.c.l.b16 %v179
      %v555 = vunpack.c.h.b16 %v179
      %v556 = vunpack.c.l.b16 %v180
      %v557 = vunpack.c.h.b16 %v180
      %v558 = vunpack.c.l.b16 %v181
      %v559 = vunpack.c.h.b16 %v181
      %v560 = vunpack.c.l.b16 %v182
      %v561 = vunpack.c.h.b16 %v182
      %v562 = vunpack.c.l.b16 %v183
      %v563 = vunpack.c.h.b16 %v183
      %v564 = vunpack.c.l.b16 %v184
      %v565 = vunpack.c.h.b16 %v184
      %v566 = vunpack.c.l.b16 %v185
      %v567 = vunpack.c.l.b16 %v186
      %v568 = vunpack.c.h.b16 %v186
      %v569 = vunpack.c.l.b16 %v187
      %v570 = vunpack.c.h.b16 %v187
      %v571 = vunpack.c.l.b16 %v188
      %v572 = vunpack.c.h.b16 %v188
      %v573 = vunpack.c.l.b16 %v189
      %v574 = vunpack.c.h.b16 %v189
      %v575 = vunpack.c.l.b16 %v190
      %v576 = vunpack.c.h.b16 %v190
      %v577 = vunpack.c.l.b16 %v191
      %v578 = vunpack.c.h.b16 %v191
      %v579 = vunpack.c.l.b16 %v192
      %v580 = vunpack.c.l.b16 %v193
      %v581 = vunpack.c.h.b16 %v193
      %v582 = vunpack.c.l.b16 %v194
      %v583 = vunpack.c.h.b16 %v194
      %v584 = vunpack.c.l.b16 %v195
      %v585 = vunpack.c.h.b16 %v195
      %v586 = vunpack.c.l.b16 %v196
      %v587 = vunpack.c.h.b16 %v196
      %v588 = vunpack.c.l.b16 %v197
      %v589 = vunpack.c.h.b16 %v197
      %v590 = vunpack.c.l.b16 %v198
      %v591 = vunpack.c.h.b16 %v198
      %v592 = vunpack.c.l.b16 %v199
      %v593 = vunpack.c.l.b16 %v200
      %v594 = vunpack.c.h.b16 %v200
      %v595 = vunpack.c.l.b16 %v201
      %v596 = vunpack.c.h.b16 %v201
      %v597 = vunpack.c.l.b16 %v202
      %v598 = vunpack.c.h.b16 %v202
      %v599 = vunpack.c.l.b16 %v203
      %v600 = vunpack.c.h.b16 %v203
      %v601 = vunpack.c.l.b16 %v204
      %v602 = vunpack.c.h.b16 %v204
      %v603 = vunpack.c.l.b16 %v205
      %v604 = vunpack.c.h.b16 %v205
      %v605 = vunpack.c.l.b16 %v206
      %v606 = vunpack.c.l.b16 %v207
      %v607 = vunpack.c.h.b16 %v207
      %v608 = vunpack.c.l.b16 %v208
      %v609 = vunpack.c.h.b16 %v208
      %v610 = vunpack.c.l.b16 %v209
      %v611 = vunpack.c.h.b16 %v209
      %v612 = vunpack.c.l.b16 %v210
      %v613 = vunpack.c.h.b16 %v210
      %v614 = vunpack.c.l.b16 %v211
      %v615 = vunpack.c.h.b16 %v211
      %v616 = vunpack.c.l.b16 %v212
      %v617 = vunpack.c.h.b16 %v212
      %v618 = vunpack.c.l.b16 %v213
      %v619 = vunpack.c.l.b16 %v214
      %v620 = vunpack.c.h.b16 %v214
      %v621 = vunpack.c.l.b16 %v215
      %v622 = vunpack.c.h.b16 %v215
      %v623 = vunpack.c.l.b16 %v216
      %v624 = vunpack.c.h.b16 %v216
      %v625 = vunpack.c.l.b16 %v217
      %v626 = vunpack.c.h.b16 %v217
      %v627 = vunpack.c.l.b16 %v218
      %v628 = vunpack.c.h.b16 %v218
      %v629 = vunpack.c.l.b16 %v219
      %v630 = vunpack.c.h.b16 %v219
      %v631 = vunpack.c.l.b16 %v220
      %v632 = vunpack.c.l.b16 %v221
      %v633 = vunpack.c.h.b16 %v221
      %v634 = vunpack.c.l.b16 %v222
      %v635 = vunpack.c.h.b16 %v222
      %v636 = vunpack.c.l.b16 %v223
      %v637 = vunpack.c.h.b16 %v223
      %v638 = vunpack.c.l.b16 %v224
      %v639 = vunpack.c.h.b16 %v224
      %v640 = vunpack.c.l.b16 %v225
      %v641 = vunpack.c.h.b16 %v225
      %v642 = vunpack.c.l.b16 %v226
      %v643 = vunpack.c.h.b16 %v226
      %v644 = vunpack.c.l.b16 %v227
      %v645 = vunpack.c.l.b16 %v228
      %v646 = vunpack.c.h.b16 %v228
      %v647 = vunpack.c.l.b16 %v229
      %v648 = vunpack.c.h.b16 %v229
      %v649 = vunpack.c.l.b16 %v230
      %v650 = vunpack.c.h.b16 %v230
      %v651 = vunpack.c.l.b16 %v231
      %v652 = vunpack.c.h.b16 %v231
      %v653 = vunpack.c.l.b16 %v232
      %v654 = vunpack.c.h.b16 %v232
      %v655 = vunpack.c.l.b16 %v233
      %v656 = vunpack.c.h.b16 %v233
      %v657 = vunpack.c.l.b16 %v234
      %v658 = vunpack.c.l.b16 %v235
      %v659 = vunpack.c.h.b16 %v235
      %v660 = vunpack.c.l.b16 %v236
      %v661 = vunpack.c.h.b16 %v236
      %v662 = vunpack.c.l.b16 %v237
      %v663 = vunpack.c.h.b16 %v237
      %v664 = vunpack.c.l.b16 %v238
      %v665 = vunpack.c.h.b16 %v238
      %v666 = vunpack.c.l.b16 %v239
      %v667 = vunpack.c.h.b16 %v239
      %v668 = vunpack.c.l.b16 %v240
      %v669 = vunpack.c.h.b16 %v240
      %v670 = vunpack.c.l.b16 %v241
      %v671 = vunpack.c.l.b16 %v242
      %v672 = vunpack.c.h.b16 %v242
      %v673 = vunpack.c.l.b16 %v243
      %v674 = vunpack.c.h.b16 %v243
      %v675 = vunpack.c.l.b16 %v244
      %v676 = vunpack.c.h.b16 %v244
      %v677 = vunpack.c.l.b16 %v245
      %v678 = vunpack.c.h.b16 %v245
      %v679 = vunpack.c.l.b16 %v246
      %v680 = vunpack.c.h.b16 %v246
      %v681 = vunpack.c.l.b16 %v247
      %v682 = vunpack.c.h.b16 %v247
      %v683 = vunpack.c.l.b16 %v248
      %v684 = vpack.c.b16 %v554, %v541
      %v685 = vpack.c.b16 %v555, %v542
      %v686 = vpack.c.b16 %v556, %v543
      %v687 = vpack.c.b16 %v557, %v544
      %v688 = vpack.c.b16 %v558, %v545
      %v689 = vpack.c.b16 %v559, %v546
      %v690 = vpack.c.b16 %v560, %v547
      %v691 = vpack.c.b16 %v561, %v548
      %v692 = vpack.c.b16 %v562, %v549
      %v693 = vpack.c.b16 %v563, %v550
      %v694 = vpack.c.b16 %v564, %v551
      %v695 = vpack.c.b16 %v565, %v552
      %v696 = vpack.c.b16 %v566, %v553
      %v697 = vpack.c.b16 %v580, %v567
      %v698 = vpack.c.b16 %v581, %v568
      %v699 = vpack.c.b16 %v582, %v569
      %v700 = vpack.c.b16 %v583, %v570
      %v701 = vpack.c.b16 %v584, %v571
      %v702 = vpack.c.b16 %v585, %v572
      %v703 = vpack.c.b16 %v586, %v573
      %v704 = vpack.c.b16 %v587, %v574
      %v705 = vpack.c.b16 %v588, %v575
      %v706 = vpack.c.b16 %v589, %v576
      %v707 = vpack.c.b16 %v590, %v577
      %v708 = vpack.c.b16 %v591, %v578
      %v709 = vpack.c.b16 %v592, %v579
      %v710 = vpack.c.b16 %v606, %v593
      %v711 = vpack.c.b16 %v607, %v594
      %v712 = vpack.c.b16 %v608, %v595
      %v713 = vpack.c.b16 %v609, %v596
      %v714 = vpack.c.b16 %v610, %v597
      %v715 = vpack.c.b16 %v611, %v598
      %v716 = vpack.c.b16 %v612, %v599
      %v717 = vpack.c.b16 %v613, %v600
      %v718 = vpack.c.b16 %v614, %v601
      %v719 = vpack.c.b16 %v615, %v602
      %v720 = vpack.c.b16 %v616, %v603
      %v721 = vpack.c.b16 %v617, %v604
      %v722 = vpack.c.b16 %v618, %v605
      %v723 = vpack.c.b16 %v632, %v619
      %v724 = vpack.c.b16 %v633, %v620
      %v725 = vpack.c.b16 %v634, %v621
      %v726 = vpack.c.b16 %v635, %v622
      %v727 = vpack.c.b16 %v636, %v623
      %v728 = vpack.c.b16 %v637, %v624
      %v729 = vpack.c.b16 %v638, %v625
      %v730 = vpack.c.b16 %v639, %v626
      %v731 = vpack.c.b16 %v640, %v627
      %v732 = vpack.c.b16 %v641, %v628
      %v733 = vpack.c.b16 %v642, %v629
      %v734 = vpack.c.b16 %v643, %v630
      %v735 = vpack.c.b16 %v644, %v631
      %v736 = vpack.c.b16 %v658, %v645
      %v737 = vpack.c.b16 %v659, %v646
      %v738 = vpack.c.b16 %v660, %v647
      %v739 = vpack.c.b16 %v661, %v648
      %v740 = vpack.c.b16 %v662, %v649
      %v741 = vpack.c.b16 %v663, %v650
      %v742 = vpack.c.b16 %v664, %v651
      %v743 = vpack.c.b16 %v665, %v652
      %v744 = vpack.c.b16 %v666, %v653
      %v745 = vpack.c.b16 %v667, %v654
      %v746 = vpack.c.b16 %v668, %v655
      %v747 = vpack.c.b16 %v669, %v656
      %v748 = vpack.c.b16 %v670, %v657
      %v749 = vpack.c.b16 %v671, %v671
      %v750 = vpack.c.b16 %v672, %v672
      %v751 = vpack.c.b16 %v673, %v673
      %v752 = vpack.c.b16 %v674, %v674
      %v753 = vpack.c.b16 %v675, %v675
      %v754 = vpack.c.b16 %v676, %v676
      %v755 = vpack.c.b16 %v677, %v677
      %v756 = vpack.c.b16 %v678, %v678
      %v757 = vpack.c.b16 %v679, %v679
      %v758 = vpack.c.b16 %v680, %v680
      %v759 = vpack.c.b16 %v681, %v681
      %v760 = vpack.c.b16 %v682, %v682
      %v761 = vpack.c.b16 %v683, %v683
      %v1048 = vunpack.c.l.b16 %v249
      %v1049 = vunpack.c.l.b16 %v250
      %v1050 = vunpack.c.l.b16 %v251
      %v1051 = vunpack.c.l.b16 %v252
      %v1052 = vunpack.c.l.b16 %v253
      %v1053 = vunpack.c.l.b16 %v254
      %v1054 = vunpack.c.l.b16 %v255
      %v1055 = vunpack.c.l.b16 %v256
      %v1056 = vunpack.c.l.b16 %v257
      %v1057 = vunpack.c.l.b16 %v258
      %v1058 = vunpack.c.l.b16 %v259
      %v1059 = vunpack.c.l.b16 %v260
      %v1060 = vunpack.c.l.b16 %v261
      %v1061 = vunpack.c.l.b16 %v262
      %v1062 = vunpack.c.l.b16 %v263
      %v1063 = vunpack.c.l.b16 %v264
      %v1064 = vunpack.c.l.b16 %v265
      %v1065 = vunpack.c.l.b16 %v266
      %v1066 = vunpack.c.l.b16 %v267
      %v1067 = vunpack.c.l.b16 %v268
      %v1068 = vunpack.c.l.b16 %v269
      %v1069 = vunpack.c.l.b16 %v270
      %v1070 = vunpack.c.l.b16 %v271
      %v1071 = vunpack.c.l.b16 %v272
      %v1072 = vunpack.c.l.b16 %v273
      %v1073 = vunpack.c.l.b16 %v274
      %v1074 = vunpack.c.l.b16 %v275
      %v1075 = vunpack.c.l.b16 %v276
      %v1076 = vunpack.c.l.b16 %v277
      %v1077 = vunpack.c.l.b16 %v278
      %v1078 = vunpack.c.l.b16 %v279
      %v1079 = vunpack.c.l.b16 %v280
      %v1080 = vunpack.c.l.b16 %v281
      %v1081 = vunpack.c.l.b16 %v282
      %v1082 = vunpack.c.l.b16 %v283
      %v1083 = vunpack.c.l.b16 %v284
      %v1084 = vunpack.c.l.b16 %v285
      %v1085 = vunpack.c.l.b16 %v286
      %v1086 = vunpack.c.l.b16 %v287
      %v1087 = vunpack.c.l.b16 %v288
      %v1088 = vunpack.c.l.b16 %v289
      %v1089 = vunpack.c.l.b16 %v290
      %v1090 = vunpack.c.l.b16 %v291
      %v1091 = vunpack.c.l.b16 %v292
      %v1092 = vunpack.c.l.b16 %v293
      %v1093 = vunpack.c.l.b16 %v294
      %v1094 = vunpack.c.l.b16 %v295
      %v1095 = vunpack.c.l.b16 %v296
      %v1096 = vunpack.c.l.b16 %v297
      %v1097 = vunpack.c.l.b16 %v298
      %v1098 = vunpack.c.l.b16 %v299
      %v1099 = vunpack.c.l.b16 %v300
      %v1100 = vunpack.c.l.b16 %v301
      %v1101 = vunpack.c.l.b16 %v302
      %v1102 = vunpack.c.l.b16 %v303
      %v1103 = vunpack.c.l.b16 %v304
      %v1104 = vunpack.c.l.b16 %v305
      %v1105 = vunpack.c.l.b16 %v306
      %v1106 = vunpack.c.l.b16 %v307
      %v1107 = vunpack.c.l.b16 %v308
      %v1108 = vunpack.c.l.b16 %v309
      %v1109 = vunpack.c.l.b16 %v310
      %v1110 = vunpack.c.l.b16 %v311
      %v1111 = vunpack.c.l.b16 %v312
      %v1112 = vunpack.c.l.b16 %v313
      %v1113 = vunpack.c.l.b16 %v314
      %v1114 = vunpack.c.l.b16 %v315
      %v1115 = vunpack.c.l.b16 %v316
      %v1116 = vunpack.c.l.b16 %v317
      %v1117 = vunpack.c.l.b16 %v318
      %v1118 = vunpack.c.l.b16 %v319
      %v1119 = vunpack.c.l.b16 %v320
      %v1120 = vunpack.c.l.b16 %v321
      %v1121 = vunpack.c.l.b16 %v322
      %v1122 = vunpack.c.l.b16 %v323
      %v1123 = vunpack.c.l.b16 %v324
      %v1124 = vunpack.c.l.b16 %v325
      %v1125 = vunpack.c.l.b16 %v326
      %v1126 = vunpack.c.l.b16 %v327
      %v1127 = vunpack.c.l.b16 %v328
      %v1128 = vunpack.c.l.b16 %v329
      %v1129 = vunpack.c.l.b16 %v330
      %v1130 = vunpack.c.l.b16 %v331
      %v1131 = vunpack.c.l.b16 %v332
      %v1132 = vunpack.c.l.b16 %v333
      %v1133 = vunpack.c.l.b16 %v334
      %v1134 = vunpack.c.l.b16 %v335
      %v1135 = vunpack.c.l.b16 %v336
      %v1136 = vunpack.c.l.b16 %v337
      %v1137 = vunpack.c.l.b16 %v338
      %v1138 = vunpack.c.l.b16 %v339
      %v1139 = vunpack.c.l.b16 %v340
      %v1140 = vunpack.c.l.b16 %v341
      %v1141 = vunpack.c.l.b16 %v342
      %v1142 = vunpack.c.l.b16 %v343
      %v1143 = vunpack.c.l.b16 %v344
      %v1144 = vunpack.c.l.b16 %v345
      %v1145 = vunpack.c.l.b16 %v346
      %v1146 = vunpack.c.l.b16 %v347
      %v1147 = vunpack.c.l.b16 %v348
      %v1148 = vunpack.c.l.b16 %v349
      %v1149 = vunpack.c.l.b16 %v350
      %v1150 = vunpack.c.l.b16 %v351
      %v1151 = vunpack.c.l.b16 %v352
      %v1152 = vunpack.c.l.b16 %v353
      %v1153 = vunpack.c.l.b16 %v354
      %v1154 = vunpack.c.l.b16 %v355
      %v1155 = vunpack.c.l.b16 %v356
      %v1156 = vunpack.c.l.b16 %v357
      %v1157 = vunpack.c.l.b16 %v358
      %v1158 = vunpack.c.l.b16 %v359
      %v1159 = vunpack.c.l.b16 %v360
      %v1160 = vunpack.c.l.b16 %v361
      %v1161 = vunpack.c.l.b16 %v362
      %v1162 = vunpack.c.l.b16 %v363
      %v1163 = vunpack.c.l.b16 %v364
      %v1164 = vunpack.c.l.b16 %v365
      %v1165 = vunpack.c.l.b16 %v366
      %v1166 = vunpack.c.l.b16 %v367
      %v1167 = vunpack.c.l.b16 %v368
      %v1168 = vunpack.c.l.b16 %v369
      %v1169 = vunpack.c.l.b16 %v370
      %v1170 = vunpack.c.l.b16 %v371
      %v1171 = vunpack.c.l.b16 %v372
      %v1172 = vunpack.c.l.b16 %v373
      %v1173 = vunpack.c.l.b16 %v374
      %v1174 = vunpack.c.l.b16 %v375
      %v1175 = vunpack.c.l.b16 %v376
      %v1176 = vunpack.c.l.b16 %v377
      %v1177 = vunpack.c.l.b16 %v378
      %v1178 = vunpack.c.l.b16 %v379
      %v1179 = vunpack.c.l.b16 %v380
      %v1180 = vunpack.c.l.b16 %v381
      %v1181 = vunpack.c.l.b16 %v382
      %v1182 = vunpack.c.l.b16 %v383
      %v1183 = vunpack.c.l.b16 %v384
      %v1184 = vunpack.c.l.b16 %v385
      %v1185 = vunpack.c.l.b16 %v386
      %v1186 = vunpack.c.l.b16 %v387
      %v1187 = vunpack.c.l.b16 %v388
      %v1188 = vunpack.c.l.b16 %v389
      %v1189 = vunpack.c.l.b16 %v390
      %v1190 = vunpack.c.l.b16 %v391
      %v1191 = vunpack.c.l.b16 %v392
      %v1192 = vunpack.c.l.b16 %v393
      %v1193 = vunpack.c.l.b16 %v394
      %v1194 = vunpack.c.l.b16 %v395
      %v1195 = vunpack.c.l.b16 %v396
      %v1196 = vunpack.c.l.b16 %v397
      %v1197 = vunpack.c.l.b16 %v398
      %v1198 = vunpack.c.l.b16 %v399
      %v1199 = vunpack.c.l.b16 %v400
      %v1200 = vunpack.c.l.b16 %v401
      %v1201 = vunpack.c.l.b16 %v402
      %v1202 = vunpack.c.l.b16 %v403
      %v1203 = vunpack.c.l.b16 %v404
      %v1204 = vunpack.c.l.b16 %v405
      %v1205 = vunpack.c.l.b16 %v406
      %v1206 = vunpack.c.l.b16 %v407
      %v1207 = vunpack.c.l.b16 %v408
      %v1208 = vunpack.c.l.b16 %v409
      %v1209 = vunpack.c.l.b16 %v410
      %v1210 = vunpack.c.l.b16 %v411
      %v1211 = vunpack.c.l.b16 %v412
      %v1212 = vunpack.c.l.b16 %v413
      %v1213 = vunpack.c.l.b16 %v414
      %v1214 = vunpack.c.l.b16 %v415
      %v1215 = vunpack.c.l.b16 %v416
      %v1216 = vunpack.c.l.b16 %v417
      %v1217 = vunpack.c.l.b16 %v418
      %v1218 = vunpack.c.l.b16 %v419
      %v1219 = vunpack.c.l.b16 %v420
      %v1220 = vunpack.c.l.b16 %v421
      %v1221 = vunpack.c.l.b16 %v422
      %v1222 = vunpack.c.l.b16 %v423
      %v1223 = vunpack.c.l.b16 %v424
      %v1224 = vunpack.c.l.b16 %v425
      %v1225 = vunpack.c.l.b16 %v426
      %v1226 = vunpack.c.l.b16 %v427
      %v1227 = vunpack.c.l.b16 %v428
      %v1228 = vunpack.c.l.b16 %v429
      %v1229 = vunpack.c.l.b16 %v430
      %v1230 = vunpack.c.l.b16 %v431
      %v1231 = vunpack.c.l.b16 %v432
      %v1232 = vunpack.c.l.b16 %v433
      %v1233 = vunpack.c.l.b16 %v434
      %v1234 = vunpack.c.l.b16 %v435
      %v1235 = vunpack.c.l.b16 %v436
      %v1236 = vunpack.c.l.b16 %v437
      %v1237 = vunpack.c.l.b16 %v438
      %v1238 = vunpack.c.l.b16 %v439
      %v1239 = vunpack.c.l.b16 %v440
      %v1240 = vunpack.c.l.b16 %v441
      %v1241 = vunpack.c.l.b16 %v442
      %v1242 = vunpack.c.l.b16 %v443
      %v1243 = vunpack.c.l.b16 %v444
      %v1244 = vunpack.c.l.b16 %v445
      %v1245 = vunpack.c.l.b16 %v446
      %v1246 = vunpack.c.l.b16 %v447
      %v1247 = vunpack.c.l.b16 %v448
      %v1248 = vunpack.c.l.b16 %v449
      %v1249 = vunpack.c.l.b16 %v450
      %v1250 = vunpack.c.l.b16 %v451
      %v1251 = vunpack.c.l.b16 %v452
      %v1252 = vunpack.c.l.b16 %v453
      %v1253 = vunpack.c.l.b16 %v454
      %v1254 = vunpack.c.l.b16 %v455
      %v1255 = vunpack.c.l.b16 %v456
      %v1256 = vpack.c.b16 %v1049, %v1048
      %v1257 = vpack.c.b16 %v1051, %v1050
      %v1258 = vpack.c.b16 %v1053, %v1052
      %v1259 = vpack.c.b16 %v1055, %v1054
      %v1260 = vpack.c.b16 %v1057, %v1056
      %v1261 = vpack.c.b16 %v1059, %v1058
      %v1262 = vpack.c.b16 %v1061, %v1060
      %v1263 = vpack.c.b16 %v1063, %v1062
      %v1264 = vpack.c.b16 %v1065, %v1064
      %v1265 = vpack.c.b16 %v1067, %v1066
      %v1266 = vpack.c.b16 %v1069, %v1068
      %v1267 = vpack.c.b16 %v1071, %v1070
      %v1268 = vpack.c.b16 %v1073, %v1072
      %v1269 = vpack.c.b16 %v1075, %v1074
      %v1270 = vpack.c.b16 %v1077, %v1076
      %v1271 = vpack.c.b16 %v1079, %v1078
      %v1272 = vpack.c.b16 %v1081, %v1080
      %v1273 = vpack.c.b16 %v1083, %v1082
      %v1274 = vpack.c.b16 %v1085, %v1084
      %v1275 = vpack.c.b16 %v1087, %v1086
      %v1276 = vpack.c.b16 %v1089, %v1088
      %v1277 = vpack.c.b16 %v1091, %v1090
      %v1278 = vpack.c.b16 %v1093, %v1092
      %v1279 = vpack.c.b16 %v1095, %v1094
      %v1280 = vpack.c.b16 %v1097, %v1096
      %v1281 = vpack.c.b16 %v1099, %v1098
      %v1282 = vpack.c.b16 %v1101, %v1100
      %v1283 = vpack.c.b16 %v1103, %v1102
      %v1284 = vpack.c.b16 %v1105, %v1104
      %v1285 = vpack.c.b16 %v1107, %v1106
      %v1286 = vpack.c.b16 %v1109, %v1108
      %v1287 = vpack.c.b16 %v1111, %v1110
      %v1288 = vpack.c.b16 %v1113, %v1112
      %v1289 = vpack.c.b16 %v1115, %v1114
      %v1290 = vpack.c.b16 %v1117, %v1116
      %v1291 = vpack.c.b16 %v1119, %v1118
      %v1292 = vpack.c.b16 %v1121, %v1120
      %v1293 = vpack.c.b16 %v1123, %v1122
      %v1294 = vpack.c.b16 %v1125, %v1124
      %v1295 = vpack.c.b16 %v1127, %v1126
      %v1296 = vpack.c.b16 %v1129, %v1128
      %v1297 = vpack.c.b16 %v1131, %v1130
      %v1298 = vpack.c.b16 %v1133, %v1132
      %v1299 = vpack.c.b16 %v1135, %v1134
      %v1300 = vpack.c.b16 %v1137, %v1136
      %v1301 = vpack.c.b16 %v1139, %v1138
      %v1302 = vpack.c.b16 %v1141, %v1140
      %v1303 = vpack.c.b16 %v1143, %v1142
      %v1304 = vpack.c.b16 %v1145, %v1144
      %v1305 = vpack.c.b16 %v1147, %v1146
      %v1306 = vpack.c.b16 %v1149, %v1148
      %v1307 = vpack.c.b16 %v1151, %v1150
      %v1308 = vpack.c.b16 %v1153, %v1152
      %v1309 = vpack.c.b16 %v1155, %v1154
      %v1310 = vpack.c.b16 %v1157, %v1156
      %v1311 = vpack.c.b16 %v1159, %v1158
      %v1312 = vpack.c.b16 %v1161, %v1160
      %v1313 = vpack.c.b16 %v1163, %v1162
      %v1314 = vpack.c.b16 %v1165, %v1164
      %v1315 = vpack.c.b16 %v1167, %v1166
      %v1316 = vpack.c.b16 %v1169, %v1168
      %v1317 = vpack.c.b16 %v1171, %v1170
      %v1318 = vpack.c.b16 %v1173, %v1172
      %v1319 = vpack.c.b16 %v1175, %v1174
      %v1320 = vpack.c.b16 %v1177, %v1176
      %v1321 = vpack.c.b16 %v1179, %v1178
      %v1322 = vpack.c.b16 %v1181, %v1180
      %v1323 = vpack.c.b16 %v1183, %v1182
      %v1324 = vpack.c.b16 %v1185, %v1184
      %v1325 = vpack.c.b16 %v1187, %v1186
      %v1326 = vpack.c.b16 %v1189, %v1188
      %v1327 = vpack.c.b16 %v1191, %v1190
      %v1328 = vpack.c.b16 %v1193, %v1192
      %v1329 = vpack.c.b16 %v1195, %v1194
      %v1330 = vpack.c.b16 %v1197, %v1196
      %v1331 = vpack.c.b16 %v1199, %v1198
      %v1332 = vpack.c.b16 %v1201, %v1200
      %v1333 = vpack.c.b16 %v1203, %v1202
      %v1334 = vpack.c.b16 %v1205, %v1204
      %v1335 = vpack.c.b16 %v1207, %v1206
      %v1336 = vpack.c.b16 %v1209, %v1208
      %v1337 = vpack.c.b16 %v1211, %v1210
      %v1338 = vpack.c.b16 %v1213, %v1212
      %v1339 = vpack.c.b16 %v1215, %v1214
      %v1340 = vpack.c.b16 %v1217, %v1216
      %v1341 = vpack.c.b16 %v1219, %v1218
      %v1342 = vpack.c.b16 %v1221, %v1220
      %v1343 = vpack.c.b16 %v1223, %v1222
      %v1344 = vpack.c.b16 %v1225, %v1224
      %v1345 = vpack.c.b16 %v1227, %v1226
      %v1346 = vpack.c.b16 %v1229, %v1228
      %v1347 = vpack.c.b16 %v1231, %v1230
      %v1348 = vpack.c.b16 %v1233, %v1232
      %v1349 = vpack.c.b16 %v1235, %v1234
      %v1350 = vpack.c.b16 %v1237, %v1236
      %v1351 = vpack.c.b16 %v1239, %v1238
      %v1352 = vpack.c.b16 %v1241, %v1240
      %v1353 = vpack.c.b16 %v1243, %v1242
      %v1354 = vpack.c.b16 %v1245, %v1244
      %v1355 = vpack.c.b16 %v1247, %v1246
      %v1356 = vpack.c.b16 %v1249, %v1248
      %v1357 = vpack.c.b16 %v1251, %v1250
      %v1358 = vpack.c.b16 %v1253, %v1252
      %v1359 = vpack.c.b16 %v1255, %v1254
      %1464 = vmatprep.subr.bf16.mxu0 0
      %1465 = vmatpush1.bf16.msra.mxu0 %v1256
      %1466 = vmatprep.subr.bf16.mxu0 0
      %1467 = vmatpush1.bf16.msra.mxu0 %v1257
      %1468 = vmatprep.subr.bf16.mxu0 0
      %1469 = vmatpush1.bf16.msra.mxu0 %v1258
      %1470 = vmatprep.subr.bf16.mxu0 0
      %1471 = vmatpush1.bf16.msra.mxu0 %v1259
      %1472 = vmatprep.subr.bf16.mxu0 0
      %1473 = vmatpush1.bf16.msra.mxu0 %v1260
      %1474 = vmatprep.subr.bf16.mxu0 0
      %1475 = vmatpush1.bf16.msra.mxu0 %v1261
      %1476 = vmatprep.subr.bf16.mxu0 0
      %1477 = vmatpush1.bf16.msra.mxu0 %v1262
      %1478 = vmatprep.subr.bf16.mxu0 0
      %1479 = vmatpush1.bf16.msra.mxu0 %v1263
      %1480 = vmatprep.subr.bf16.mxu0 0
      %1481 = vmatpush1.bf16.msra.mxu0 %v1264
      %1482 = vmatprep.subr.bf16.mxu0 0
      %1483 = vmatpush1.bf16.msra.mxu0 %v1265
      %1484 = vmatprep.subr.bf16.mxu0 0
      %1485 = vmatpush1.bf16.msra.mxu0 %v1266
      %1486 = vmatprep.subr.bf16.mxu0 0
      %1487 = vmatpush1.bf16.msra.mxu0 %v1267
      %1488 = vmatprep.subr.bf16.mxu0 0
      %1489 = vmatpush1.bf16.msra.mxu0 %v1268
      %1490 = vmatprep.subr.bf16.mxu0 0
      %1491 = vmatpush1.bf16.msra.mxu0 %v1269
      %1492 = vmatprep.subr.bf16.mxu0 0
      %1493 = vmatpush1.bf16.msra.mxu0 %v1270
      %1494 = vmatprep.subr.bf16.mxu0 0
      %1495 = vmatpush1.bf16.msra.mxu0 %v1271
      %1496 = vmatprep.mubr.bf16.mxu0 %v685
      %1497 = vmatmul.mubr.bf16.gmra.mrb[0].mxu0 %v684
      %v1498 = vpop.f32.mrb[0].mxu0
      %v1499 = vadd.f32 %v462, %v1498
      %v1500 = vpop.f32.mrb[0].mxu0
      %v1501 = vpop.f32.mrb[0].mxu0
      %v1502 = vadd.f32 %v462, %v1501
      %v1503 = vpop.f32.mrb[0].mxu0
      %1504 = vmatprep.mubr.bf16.mxu0 %v698
      %1505 = vmatmul.mubr.bf16.gmra.mrb[0].mxu0 %v697
      %v1506 = vpop.f32.mrb[0].mxu0
      %v1507 = vadd.f32 %v462, %v1506
      %v1508 = vpop.f32.mrb[0].mxu0
      %v1509 = vpop.f32.mrb[0].mxu0
      %v1510 = vadd.f32 %v462, %v1509
      %v1511 = vpop.f32.mrb[0].mxu0
      %1512 = vmatprep.mubr.bf16.mxu0 %v711
      %1513 = vmatmul.mubr.bf16.gmra.mrb[0].mxu0 %v710
      %v1514 = vpop.f32.mrb[0].mxu0
      %v1515 = vadd.f32 %v462, %v1514
      %v1516 = vpop.f32.mrb[0].mxu0
      %v1517 = vpop.f32.mrb[0].mxu0
      %v1518 = vadd.f32 %v462, %v1517
      %v1519 = vpop.f32.mrb[0].mxu0
      %1520 = vmatprep.mubr.bf16.mxu0 %v724
      %1521 = vmatmul.mubr.bf16.gmra.mrb[0].mxu0 %v723
      %v1522 = vpop.f32.mrb[0].mxu0
      %v1523 = vadd.f32 %v462, %v1522
      %v1524 = vpop.f32.mrb[0].mxu0
      %v1525 = vpop.f32.mrb[0].mxu0
      %v1526 = vadd.f32 %v462, %v1525
      %v1527 = vpop.f32.mrb[0].mxu0
      %1528 = vmatprep.mubr.bf16.mxu0 %v737
      %1529 = vmatmul.mubr.bf16.gmra.mrb[0].mxu0 %v736
      %v1530 = vpop.f32.mrb[0].mxu0
      %v1531 = vadd.f32 %v462, %v1530
      %v1532 = vpop.f32.mrb[0].mxu0
      %v1533 = vpop.f32.mrb[0].mxu0
      %v1534 = vadd.f32 %v462, %v1533
      %v1535 = vpop.f32.mrb[0].mxu0
      %1536 = vmatprep.mubr.bf16.mxu0 %v750
      %1537 = vmatmul.mubr.bf16.gmra.mrb[0].mxu0 %v749
      %v1538 = vpop.f32.mrb[0].mxu0
      %v1539 = vadd.f32 %v462, %v1538
      %v1540 = vpop.f32.mrb[0].mxu0
      %v1541 = vpop.f32.mrb[0].mxu0
      %v1542 = vpop.f32.mrb[0].mxu0
      %1543 = vdwg.mxu0
      %1544 = vmatprep.subr.bf16.mxu0 0
      %1545 = vmatpush1.bf16.msra.mxu0 %v1272
      %1546 = vmatprep.subr.bf16.mxu0 0
      %1547 = vmatpush1.bf16.msra.mxu0 %v1273
      %1548 = vmatprep.subr.bf16.mxu0 0
      %1549 = vmatpush1.bf16.msra.mxu0 %v1274
      %1550 = vmatprep.subr.bf16.mxu0 0
      %1551 = vmatpush1.bf16.msra.mxu0 %v1275
      %1552 = vmatprep.subr.bf16.mxu0 0
      %1553 = vmatpush1.bf16.msra.mxu0 %v1276
      %1554 = vmatprep.subr.bf16.mxu0 0
      %1555 = vmatpush1.bf16.msra.mxu0 %v1277
      %1556 = vmatprep.subr.bf16.mxu0 0
      %1557 = vmatpush1.bf16.msra.mxu0 %v1278
      %1558 = vmatprep.subr.bf16.mxu0 0
      %1559 = vmatpush1.bf16.msra.mxu0 %v1279
      %1560 = vmatprep.subr.bf16.mxu0 0
      %1561 = vmatpush1.bf16.msra.mxu0 %v1280
      %1562 = vmatprep.subr.bf16.mxu0 0
      %1563 = vmatpush1.bf16.msra.mxu0 %v1281
      %1564 = vmatprep.subr.bf16.mxu0 0
      %1565 = vmatpush1.bf16.msra.mxu0 %v1282
      %1566 = vmatprep.subr.bf16.mxu0 0
      %1567 = vmatpush1.bf16.msra.mxu0 %v1283
      %1568 = vmatprep.subr.bf16.mxu0 0
      %1569 = vmatpush1.bf16.msra.mxu0 %v1284
      %1570 = vmatprep.subr.bf16.mxu0 0
      %1571 = vmatpush1.bf16.msra.mxu0 %v1285
      %1572 = vmatprep.subr.bf16.mxu0 0
      %1573 = vmatpush1.bf16.msra.mxu0 %v1286
      %1574 = vmatprep.subr.bf16.mxu0 0
      %1575 = vmatpush1.bf16.msra.mxu0 %v1287
      %1576 = vmatprep.mubr.bf16.mxu0 %v687
      %1577 = vmatmul.mubr.bf16.gmra.mrb[0].mxu0 %v686
      %v1578 = vpop.f32.mrb[0].mxu0
      %v1579 = vadd.f32 %v1499, %v1578
      %v1580 = vpop.f32.mrb[0].mxu0
      %v1581 = vpop.f32.mrb[0].mxu0
      %v1582 = vadd.f32 %v1502, %v1581
      %v1583 = vpop.f32.mrb[0].mxu0
      %1584 = vmatprep.mubr.bf16.mxu0 %v700
      %1585 = vmatmul.mubr.bf16.gmra.mrb[0].mxu0 %v699
      %v1586 = vpop.f32.mrb[0].mxu0
      %v1587 = vadd.f32 %v1507, %v1586
      %v1588 = vpop.f32.mrb[0].mxu0
      %v1589 = vpop.f32.mrb[0].mxu0
      %v1590 = vadd.f32 %v1510, %v1589
      %v1591 = vpop.f32.mrb[0].mxu0
      %1592 = vmatprep.mubr.bf16.mxu0 %v713
      %1593 = vmatmul.mubr.bf16.gmra.mrb[0].mxu0 %v712
      %v1594 = vpop.f32.mrb[0].mxu0
      %v1595 = vadd.f32 %v1515, %v1594
      %v1596 = vpop.f32.mrb[0].mxu0
      %v1597 = vpop.f32.mrb[0].mxu0
      %v1598 = vadd.f32 %v1518, %v1597
      %v1599 = vpop.f32.mrb[0].mxu0
      %1600 = vmatprep.mubr.bf16.mxu0 %v726
      %1601 = vmatmul.mubr.bf16.gmra.mrb[0].mxu0 %v725
      %v1602 = vpop.f32.mrb[0].mxu0
      %v1603 = vadd.f32 %v1523, %v1602
      %v1604 = vpop.f32.mrb[0].mxu0
      %v1605 = vpop.f32.mrb[0].mxu0
      %v1606 = vadd.f32 %v1526, %v1605
      %v1607 = vpop.f32.mrb[0].mxu0
      %1608 = vmatprep.mubr.bf16.mxu0 %v739
      %1609 = vmatmul.mubr.bf16.gmra.mrb[0].mxu0 %v738
      %v1610 = vpop.f32.mrb[0].mxu0
      %v1611 = vadd.f32 %v1531, %v1610
      %v1612 = vpop.f32.mrb[0].mxu0
      %v1613 = vpop.f32.mrb[0].mxu0
      %v1614 = vadd.f32 %v1534, %v1613
      %v1615 = vpop.f32.mrb[0].mxu0
      %1616 = vmatprep.mubr.bf16.mxu0 %v752
      %1617 = vmatmul.mubr.bf16.gmra.mrb[0].mxu0 %v751
      %v1618 = vpop.f32.mrb[0].mxu0
      %v1619 = vadd.f32 %v1539, %v1618
      %v1620 = vpop.f32.mrb[0].mxu0
      %v1621 = vpop.f32.mrb[0].mxu0
      %v1622 = vpop.f32.mrb[0].mxu0
      %1623 = vdwg.mxu0
      %1624 = vmatprep.subr.bf16.mxu0 0
      %1625 = vmatpush1.bf16.msra.mxu0 %v1288
      %1626 = vmatprep.subr.bf16.mxu0 0
      %1627 = vmatpush1.bf16.msra.mxu0 %v1289
      %1628 = vmatprep.subr.bf16.mxu0 0
      %1629 = vmatpush1.bf16.msra.mxu0 %v1290
      %1630 = vmatprep.subr.bf16.mxu0 0
      %1631 = vmatpush1.bf16.msra.mxu0 %v1291
      %1632 = vmatprep.subr.bf16.mxu0 0
      %1633 = vmatpush1.bf16.msra.mxu0 %v1292
      %1634 = vmatprep.subr.bf16.mxu0 0
      %1635 = vmatpush1.bf16.msra.mxu0 %v1293
      %1636 = vmatprep.subr.bf16.mxu0 0
      %1637 = vmatpush1.bf16.msra.mxu0 %v1294
      %1638 = vmatprep.subr.bf16.mxu0 0
      %1639 = vmatpush1.bf16.msra.mxu0 %v1295
      %1640 = vmatprep.subr.bf16.mxu0 0
      %1641 = vmatpush1.bf16.msra.mxu0 %v1296
      %1642 = vmatprep.subr.bf16.mxu0 0
      %1643 = vmatpush1.bf16.msra.mxu0 %v1297
      %1644 = vmatprep.subr.bf16.mxu0 0
      %1645 = vmatpush1.bf16.msra.mxu0 %v1298
      %1646 = vmatprep.subr.bf16.mxu0 0
      %1647 = vmatpush1.bf16.msra.mxu0 %v1299
      %1648 = vmatprep.subr.bf16.mxu0 0
      %1649 = vmatpush1.bf16.msra.mxu0 %v1300
      %1650 = vmatprep.subr.bf16.mxu0 0
      %1651 = vmatpush1.bf16.msra.mxu0 %v1301
      %1652 = vmatprep.subr.bf16.mxu0 0
      %1653 = vmatpush1.bf16.msra.mxu0 %v1302
      %1654 = vmatprep.subr.bf16.mxu0 0
      %1655 = vmatpush1.bf16.msra.mxu0 %v1303
      %1656 = vmatprep.mubr.bf16.mxu0 %v689
      %1657 = vmatmul.mubr.bf16.gmra.mrb[0].mxu0 %v688
      %v1658 = vpop.f32.mrb[0].mxu0
      %v1659 = vadd.f32 %v1579, %v1658
      %v1660 = vpop.f32.mrb[0].mxu0
      %v1661 = vpop.f32.mrb[0].mxu0
      %v1662 = vadd.f32 %v1582, %v1661
      %v1663 = vpop.f32.mrb[0].mxu0
      %1664 = vmatprep.mubr.bf16.mxu0 %v702
      %1665 = vmatmul.mubr.bf16.gmra.mrb[0].mxu0 %v701
      %v1666 = vpop.f32.mrb[0].mxu0
      %v1667 = vadd.f32 %v1587, %v1666
      %v1668 = vpop.f32.mrb[0].mxu0
      %v1669 = vpop.f32.mrb[0].mxu0
      %v1670 = vadd.f32 %v1590, %v1669
      %v1671 = vpop.f32.mrb[0].mxu0
      %1672 = vmatprep.mubr.bf16.mxu0 %v715
      %1673 = vmatmul.mubr.bf16.gmra.mrb[0].mxu0 %v714
      %v1674 = vpop.f32.mrb[0].mxu0
      %v1675 = vadd.f32 %v1595, %v1674
      %v1676 = vpop.f32.mrb[0].mxu0
      %v1677 = vpop.f32.mrb[0].mxu0
      %v1678 = vadd.f32 %v1598, %v1677
      %v1679 = vpop.f32.mrb[0].mxu0
      %1680 = vmatprep.mubr.bf16.mxu0 %v728
      %1681 = vmatmul.mubr.bf16.gmra.mrb[0].mxu0 %v727
      %v1682 = vpop.f32.mrb[0].mxu0
      %v1683 = vadd.f32 %v1603, %v1682
      %v1684 = vpop.f32.mrb[0].mxu0
      %v1685 = vpop.f32.mrb[0].mxu0
      %v1686 = vadd.f32 %v1606, %v1685
      %v1687 = vpop.f32.mrb[0].mxu0
      %1688 = vmatprep.mubr.bf16.mxu0 %v741
      %1689 = vmatmul.mubr.bf16.gmra.mrb[0].mxu0 %v740
      %v1690 = vpop.f32.mrb[0].mxu0
      %v1691 = vadd.f32 %v1611, %v1690
      %v1692 = vpop.f32.mrb[0].mxu0
      %v1693 = vpop.f32.mrb[0].mxu0
      %v1694 = vadd.f32 %v1614, %v1693
      %v1695 = vpop.f32.mrb[0].mxu0
      %1696 = vmatprep.mubr.bf16.mxu0 %v754
      %1697 = vmatmul.mubr.bf16.gmra.mrb[0].mxu0 %v753
      %v1698 = vpop.f32.mrb[0].mxu0
      %v1699 = vadd.f32 %v1619, %v1698
      %v1700 = vpop.f32.mrb[0].mxu0
      %v1701 = vpop.f32.mrb[0].mxu0
      %v1702 = vpop.f32.mrb[0].mxu0
      %1703 = vdwg.mxu0
      %1704 = vmatprep.subr.bf16.mxu0 0
      %1705 = vmatpush1.bf16.msra.mxu0 %v1304
      %1706 = vmatprep.subr.bf16.mxu0 0
      %1707 = vmatpush1.bf16.msra.mxu0 %v1305
      %1708 = vmatprep.subr.bf16.mxu0 0
      %1709 = vmatpush1.bf16.msra.mxu0 %v1306
      %1710 = vmatprep.subr.bf16.mxu0 0
      %1711 = vmatpush1.bf16.msra.mxu0 %v1307
      %1712 = vmatprep.subr.bf16.mxu0 0
      %1713 = vmatpush1.bf16.msra.mxu0 %v1308
      %1714 = vmatprep.subr.bf16.mxu0 0
      %1715 = vmatpush1.bf16.msra.mxu0 %v1309
      %1716 = vmatprep.subr.bf16.mxu0 0
      %1717 = vmatpush1.bf16.msra.mxu0 %v1310
      %1718 = vmatprep.subr.bf16.mxu0 0
      %1719 = vmatpush1.bf16.msra.mxu0 %v1311
      %1720 = vmatprep.subr.bf16.mxu0 0
      %1721 = vmatpush1.bf16.msra.mxu0 %v1312
      %1722 = vmatprep.subr.bf16.mxu0 0
      %1723 = vmatpush1.bf16.msra.mxu0 %v1313
      %1724 = vmatprep.subr.bf16.mxu0 0
      %1725 = vmatpush1.bf16.msra.mxu0 %v1314
      %1726 = vmatprep.subr.bf16.mxu0 0
      %1727 = vmatpush1.bf16.msra.mxu0 %v1315
      %1728 = vmatprep.subr.bf16.mxu0 0
      %1729 = vmatpush1.bf16.msra.mxu0 %v1316
      %1730 = vmatprep.subr.bf16.mxu0 0
      %1731 = vmatpush1.bf16.msra.mxu0 %v1317
      %1732 = vmatprep.subr.bf16.mxu0 0
      %1733 = vmatpush1.bf16.msra.mxu0 %v1318
      %1734 = vmatprep.subr.bf16.mxu0 0
      %1735 = vmatpush1.bf16.msra.mxu0 %v1319
      %1736 = vmatprep.mubr.bf16.mxu0 %v691
      %1737 = vmatmul.mubr.bf16.gmra.mrb[0].mxu0 %v690
      %v1738 = vpop.f32.mrb[0].mxu0
      %v1739 = vadd.f32 %v1659, %v1738
      %v1740 = vpop.f32.mrb[0].mxu0
      %v1741 = vpop.f32.mrb[0].mxu0
      %v1742 = vadd.f32 %v1662, %v1741
      %v1743 = vpop.f32.mrb[0].mxu0
      %1744 = vmatprep.mubr.bf16.mxu0 %v704
      %1745 = vmatmul.mubr.bf16.gmra.mrb[0].mxu0 %v703
      %v1746 = vpop.f32.mrb[0].mxu0
      %v1747 = vadd.f32 %v1667, %v1746
      %v1748 = vpop.f32.mrb[0].mxu0
      %v1749 = vpop.f32.mrb[0].mxu0
      %v1750 = vadd.f32 %v1670, %v1749
      %v1751 = vpop.f32.mrb[0].mxu0
      %1752 = vmatprep.mubr.bf16.mxu0 %v717
      %1753 = vmatmul.mubr.bf16.gmra.mrb[0].mxu0 %v716
      %v1754 = vpop.f32.mrb[0].mxu0
      %v1755 = vadd.f32 %v1675, %v1754
      %v1756 = vpop.f32.mrb[0].mxu0
      %v1757 = vpop.f32.mrb[0].mxu0
      %v1758 = vadd.f32 %v1678, %v1757
      %v1759 = vpop.f32.mrb[0].mxu0
      %1760 = vmatprep.mubr.bf16.mxu0 %v730
      %1761 = vmatmul.mubr.bf16.gmra.mrb[0].mxu0 %v729
      %v1762 = vpop.f32.mrb[0].mxu0
      %v1763 = vadd.f32 %v1683, %v1762
      %v1764 = vpop.f32.mrb[0].mxu0
      %v1765 = vpop.f32.mrb[0].mxu0
      %v1766 = vadd.f32 %v1686, %v1765
      %v1767 = vpop.f32.mrb[0].mxu0
      %1768 = vmatprep.mubr.bf16.mxu0 %v743
      %1769 = vmatmul.mubr.bf16.gmra.mrb[0].mxu0 %v742
      %v1770 = vpop.f32.mrb[0].mxu0
      %v1771 = vadd.f32 %v1691, %v1770
      %v1772 = vpop.f32.mrb[0].mxu0
      %v1773 = vpop.f32.mrb[0].mxu0
      %v1774 = vadd.f32 %v1694, %v1773
      %v1775 = vpop.f32.mrb[0].mxu0
      %1776 = vmatprep.mubr.bf16.mxu0 %v756
      %1777 = vmatmul.mubr.bf16.gmra.mrb[0].mxu0 %v755
      %v1778 = vpop.f32.mrb[0].mxu0
      %v1779 = vadd.f32 %v1699, %v1778
      %v1780 = vpop.f32.mrb[0].mxu0
      %v1781 = vpop.f32.mrb[0].mxu0
      %v1782 = vpop.f32.mrb[0].mxu0
      %1783 = vdwg.mxu0
      %1784 = vmatprep.subr.bf16.mxu0 0
      %1785 = vmatpush1.bf16.msra.mxu0 %v1320
      %1786 = vmatprep.subr.bf16.mxu0 0
      %1787 = vmatpush1.bf16.msra.mxu0 %v1321
      %1788 = vmatprep.subr.bf16.mxu0 0
      %1789 = vmatpush1.bf16.msra.mxu0 %v1322
      %1790 = vmatprep.subr.bf16.mxu0 0
      %1791 = vmatpush1.bf16.msra.mxu0 %v1323
      %1792 = vmatprep.subr.bf16.mxu0 0
      %1793 = vmatpush1.bf16.msra.mxu0 %v1324
      %1794 = vmatprep.subr.bf16.mxu0 0
      %1795 = vmatpush1.bf16.msra.mxu0 %v1325
      %1796 = vmatprep.subr.bf16.mxu0 0
      %1797 = vmatpush1.bf16.msra.mxu0 %v1326
      %1798 = vmatprep.subr.bf16.mxu0 0
      %1799 = vmatpush1.bf16.msra.mxu0 %v1327
      %1800 = vmatprep.subr.bf16.mxu0 0
      %1801 = vmatpush1.bf16.msra.mxu0 %v1328
      %1802 = vmatprep.subr.bf16.mxu0 0
      %1803 = vmatpush1.bf16.msra.mxu0 %v1329
      %1804 = vmatprep.subr.bf16.mxu0 0
      %1805 = vmatpush1.bf16.msra.mxu0 %v1330
      %1806 = vmatprep.subr.bf16.mxu0 0
      %1807 = vmatpush1.bf16.msra.mxu0 %v1331
      %1808 = vmatprep.subr.bf16.mxu0 0
      %1809 = vmatpush1.bf16.msra.mxu0 %v1332
      %1810 = vmatprep.subr.bf16.mxu0 0
      %1811 = vmatpush1.bf16.msra.mxu0 %v1333
      %1812 = vmatprep.subr.bf16.mxu0 0
      %1813 = vmatpush1.bf16.msra.mxu0 %v1334
      %1814 = vmatprep.subr.bf16.mxu0 0
      %1815 = vmatpush1.bf16.msra.mxu0 %v1335
      %1816 = vmatprep.mubr.bf16.mxu0 %v693
      %1817 = vmatmul.mubr.bf16.gmra.mrb[0].mxu0 %v692
      %v1818 = vpop.f32.mrb[0].mxu0
      %v1819 = vadd.f32 %v1739, %v1818
      %v1820 = vpop.f32.mrb[0].mxu0
      %v1821 = vpop.f32.mrb[0].mxu0
      %v1822 = vadd.f32 %v1742, %v1821
      %v1823 = vpop.f32.mrb[0].mxu0
      %1824 = vmatprep.mubr.bf16.mxu0 %v706
      %1825 = vmatmul.mubr.bf16.gmra.mrb[0].mxu0 %v705
      %v1826 = vpop.f32.mrb[0].mxu0
      %v1827 = vadd.f32 %v1747, %v1826
      %v1828 = vpop.f32.mrb[0].mxu0
      %v1829 = vpop.f32.mrb[0].mxu0
      %v1830 = vadd.f32 %v1750, %v1829
      %v1831 = vpop.f32.mrb[0].mxu0
      %1832 = vmatprep.mubr.bf16.mxu0 %v719
      %1833 = vmatmul.mubr.bf16.gmra.mrb[0].mxu0 %v718
      %v1834 = vpop.f32.mrb[0].mxu0
      %v1835 = vadd.f32 %v1755, %v1834
      %v1836 = vpop.f32.mrb[0].mxu0
      %v1837 = vpop.f32.mrb[0].mxu0
      %v1838 = vadd.f32 %v1758, %v1837
      %v1839 = vpop.f32.mrb[0].mxu0
      %1840 = vmatprep.mubr.bf16.mxu0 %v732
      %1841 = vmatmul.mubr.bf16.gmra.mrb[0].mxu0 %v731
      %v1842 = vpop.f32.mrb[0].mxu0
      %v1843 = vadd.f32 %v1763, %v1842
      %v1844 = vpop.f32.mrb[0].mxu0
      %v1845 = vpop.f32.mrb[0].mxu0
      %v1846 = vadd.f32 %v1766, %v1845
      %v1847 = vpop.f32.mrb[0].mxu0
      %1848 = vmatprep.mubr.bf16.mxu0 %v745
      %1849 = vmatmul.mubr.bf16.gmra.mrb[0].mxu0 %v744
      %v1850 = vpop.f32.mrb[0].mxu0
      %v1851 = vadd.f32 %v1771, %v1850
      %v1852 = vpop.f32.mrb[0].mxu0
      %v1853 = vpop.f32.mrb[0].mxu0
      %v1854 = vadd.f32 %v1774, %v1853
      %v1855 = vpop.f32.mrb[0].mxu0
      %1856 = vmatprep.mubr.bf16.mxu0 %v758
      %1857 = vmatmul.mubr.bf16.gmra.mrb[0].mxu0 %v757
      %v1858 = vpop.f32.mrb[0].mxu0
      %v1859 = vadd.f32 %v1779, %v1858
      %v1860 = vpop.f32.mrb[0].mxu0
      %v1861 = vpop.f32.mrb[0].mxu0
      %v1862 = vpop.f32.mrb[0].mxu0
      %1863 = vdwg.mxu0
      %1864 = vmatprep.subr.bf16.mxu0 0
      %1865 = vmatpush1.bf16.msra.mxu0 %v1336
      %1866 = vmatprep.subr.bf16.mxu0 0
      %1867 = vmatpush1.bf16.msra.mxu0 %v1337
      %1868 = vmatprep.subr.bf16.mxu0 0
      %1869 = vmatpush1.bf16.msra.mxu0 %v1338
      %1870 = vmatprep.subr.bf16.mxu0 0
      %1871 = vmatpush1.bf16.msra.mxu0 %v1339
      %1872 = vmatprep.subr.bf16.mxu0 0
      %1873 = vmatpush1.bf16.msra.mxu0 %v1340
      %1874 = vmatprep.subr.bf16.mxu0 0
      %1875 = vmatpush1.bf16.msra.mxu0 %v1341
      %1876 = vmatprep.subr.bf16.mxu0 0
      %1877 = vmatpush1.bf16.msra.mxu0 %v1342
      %1878 = vmatprep.subr.bf16.mxu0 0
      %1879 = vmatpush1.bf16.msra.mxu0 %v1343
      %1880 = vmatprep.subr.bf16.mxu0 0
      %1881 = vmatpush1.bf16.msra.mxu0 %v1344
      %1882 = vmatprep.subr.bf16.mxu0 0
      %1883 = vmatpush1.bf16.msra.mxu0 %v1345
      %1884 = vmatprep.subr.bf16.mxu0 0
      %1885 = vmatpush1.bf16.msra.mxu0 %v1346
      %1886 = vmatprep.subr.bf16.mxu0 0
      %1887 = vmatpush1.bf16.msra.mxu0 %v1347
      %1888 = vmatprep.subr.bf16.mxu0 0
      %1889 = vmatpush1.bf16.msra.mxu0 %v1348
      %1890 = vmatprep.subr.bf16.mxu0 0
      %1891 = vmatpush1.bf16.msra.mxu0 %v1349
      %1892 = vmatprep.subr.bf16.mxu0 0
      %1893 = vmatpush1.bf16.msra.mxu0 %v1350
      %1894 = vmatprep.subr.bf16.mxu0 0
      %1895 = vmatpush1.bf16.msra.mxu0 %v1351
      %1896 = vmatprep.mubr.bf16.mxu0 %v695
      %1897 = vmatmul.mubr.bf16.gmra.mrb[0].mxu0 %v694
      %v1898 = vpop.f32.mrb[0].mxu0
      %v1899 = vadd.f32 %v1819, %v1898
      %v1900 = vpop.f32.mrb[0].mxu0
      %v1901 = vpop.f32.mrb[0].mxu0
      %v1902 = vadd.f32 %v1822, %v1901
      %v1903 = vpop.f32.mrb[0].mxu0
      %1904 = vmatprep.mubr.bf16.mxu0 %v708
      %1905 = vmatmul.mubr.bf16.gmra.mrb[0].mxu0 %v707
      %v1906 = vpop.f32.mrb[0].mxu0
      %v1907 = vadd.f32 %v1827, %v1906
      %v1908 = vpop.f32.mrb[0].mxu0
      %v1909 = vpop.f32.mrb[0].mxu0
      %v1910 = vadd.f32 %v1830, %v1909
      %v1911 = vpop.f32.mrb[0].mxu0
      %1912 = vmatprep.mubr.bf16.mxu0 %v721
      %1913 = vmatmul.mubr.bf16.gmra.mrb[0].mxu0 %v720
      %v1914 = vpop.f32.mrb[0].mxu0
      %v1915 = vadd.f32 %v1835, %v1914
      %v1916 = vpop.f32.mrb[0].mxu0
      %v1917 = vpop.f32.mrb[0].mxu0
      %v1918 = vadd.f32 %v1838, %v1917
      %v1919 = vpop.f32.mrb[0].mxu0
      %1920 = vmatprep.mubr.bf16.mxu0 %v734
      %1921 = vmatmul.mubr.bf16.gmra.mrb[0].mxu0 %v733
      %v1922 = vpop.f32.mrb[0].mxu0
      %v1923 = vadd.f32 %v1843, %v1922
      %v1924 = vpop.f32.mrb[0].mxu0
      %v1925 = vpop.f32.mrb[0].mxu0
      %v1926 = vadd.f32 %v1846, %v1925
      %v1927 = vpop.f32.mrb[0].mxu0
      %1928 = vmatprep.mubr.bf16.mxu0 %v747
      %1929 = vmatmul.mubr.bf16.gmra.mrb[0].mxu0 %v746
      %v1930 = vpop.f32.mrb[0].mxu0
      %v1931 = vadd.f32 %v1851, %v1930
      %v1932 = vpop.f32.mrb[0].mxu0
      %v1933 = vpop.f32.mrb[0].mxu0
      %v1934 = vadd.f32 %v1854, %v1933
      %v1935 = vpop.f32.mrb[0].mxu0
      %1936 = vmatprep.mubr.bf16.mxu0 %v760
      %1937 = vmatmul.mubr.bf16.gmra.mrb[0].mxu0 %v759
      %v1938 = vpop.f32.mrb[0].mxu0
      %v1939 = vadd.f32 %v1859, %v1938
      %v1940 = vpop.f32.mrb[0].mxu0
      %v1941 = vpop.f32.mrb[0].mxu0
      %v1942 = vpop.f32.mrb[0].mxu0
      %1943 = vdwg.mxu0
      %1944 = vmatprep.subr.bf16.mxu0 0
      %1945 = vmatpush1.bf16.msra.mxu0 %v1352
      %1946 = vmatprep.subr.bf16.mxu0 0
      %1947 = vmatpush1.bf16.msra.mxu0 %v1353
      %1948 = vmatprep.subr.bf16.mxu0 0
      %1949 = vmatpush1.bf16.msra.mxu0 %v1354
      %1950 = vmatprep.subr.bf16.mxu0 0
      %1951 = vmatpush1.bf16.msra.mxu0 %v1355
      %1952 = vmatprep.subr.bf16.mxu0 0
      %1953 = vmatpush1.bf16.msra.mxu0 %v1356
      %1954 = vmatprep.subr.bf16.mxu0 0
      %1955 = vmatpush1.bf16.msra.mxu0 %v1357
      %1956 = vmatprep.subr.bf16.mxu0 0
      %1957 = vmatpush1.bf16.msra.mxu0 %v1358
      %1958 = vmatprep.subr.bf16.mxu0 0
      %1959 = vmatpush1.bf16.msra.mxu0 %v1359
      %1960 = vmatprep.subr.bf16.mxu0 0
      %1961 = vmatpush1.bf16.msra.mxu0 0
      %1962 = vmatprep.subr.bf16.mxu0 0
      %1963 = vmatpush1.bf16.msra.mxu0 0
      %1964 = vmatprep.subr.bf16.mxu0 0
      %1965 = vmatpush1.bf16.msra.mxu0 0
      %1966 = vmatprep.subr.bf16.mxu0 0
      %1967 = vmatpush1.bf16.msra.mxu0 0
      %1968 = vmatprep.subr.bf16.mxu0 0
      %1969 = vmatpush1.bf16.msra.mxu0 0
      %1970 = vmatprep.subr.bf16.mxu0 0
      %1971 = vmatpush1.bf16.msra.mxu0 0
      %1972 = vmatprep.subr.bf16.mxu0 0
      %1973 = vmatpush1.bf16.msra.mxu0 0
      %1974 = vmatprep.subr.bf16.mxu0 0
      %1975 = vmatpush1.bf16.msra.mxu0 0
      %1976 = vmatprep.mubr.bf16.mxu0 0
      %1977 = vmatmul.mubr.bf16.gmra.mrb[0].mxu0 %v696
      %v1978 = vpop.f32.mrb[0].mxu0
      %v1979 = vadd.f32 %v1899, %v1978
      %v1980 = vpop.f32.mrb[0].mxu0
      %v1981 = vpop.f32.mrb[0].mxu0
      %v1982 = vadd.f32 %v1902, %v1981
      %v1983 = vpop.f32.mrb[0].mxu0
      %1984 = vmatprep.mubr.bf16.mxu0 0
      %1985 = vmatmul.mubr.bf16.gmra.mrb[0].mxu0 %v709
      %v1986 = vpop.f32.mrb[0].mxu0
      %v1987 = vadd.f32 %v1907, %v1986
      %v1988 = vpop.f32.mrb[0].mxu0
      %v1989 = vpop.f32.mrb[0].mxu0
      %v1990 = vadd.f32 %v1910, %v1989
      %v1991 = vpop.f32.mrb[0].mxu0
      %1992 = vmatprep.mubr.bf16.mxu0 0
      %1993 = vmatmul.mubr.bf16.gmra.mrb[0].mxu0 %v722
      %v1994 = vpop.f32.mrb[0].mxu0
      %v1995 = vadd.f32 %v1915, %v1994
      %v1996 = vpop.f32.mrb[0].mxu0
      %v1997 = vpop.f32.mrb[0].mxu0
      %v1998 = vadd.f32 %v1918, %v1997
      %v1999 = vpop.f32.mrb[0].mxu0
      %2000 = vmatprep.mubr.bf16.mxu0 0
      %2001 = vmatmul.mubr.bf16.gmra.mrb[0].mxu0 %v735
      %v2002 = vpop.f32.mrb[0].mxu0
      %v2003 = vadd.f32 %v1923, %v2002
      %v2004 = vpop.f32.mrb[0].mxu0
      %v2005 = vpop.f32.mrb[0].mxu0
      %v2006 = vadd.f32 %v1926, %v2005
      %v2007 = vpop.f32.mrb[0].mxu0
      %2008 = vmatprep.mubr.bf16.mxu0 0
      %2009 = vmatmul.mubr.bf16.gmra.mrb[0].mxu0 %v748
      %v2010 = vpop.f32.mrb[0].mxu0
      %v2011 = vadd.f32 %v1931, %v2010
      %v2012 = vpop.f32.mrb[0].mxu0
      %v2013 = vpop.f32.mrb[0].mxu0
      %v2014 = vadd.f32 %v1934, %v2013
      %v2015 = vpop.f32.mrb[0].mxu0
      %2016 = vmatprep.mubr.bf16.mxu0 0
      %2017 = vmatmul.mubr.bf16.gmra.mrb[0].mxu0 %v761
      %v2018 = vpop.f32.mrb[0].mxu0
      %v2019 = vadd.f32 %v1939, %v2018
      %v2020 = vpop.f32.mrb[0].mxu0
      %v2021 = vpop.f32.mrb[0].mxu0
      %v2022 = vpop.f32.mrb[0].mxu0
      %2023 = vdwg.mxu0
      %v2024 = vmax.f32 %v1979, 0.0
      %v2025 = vmax.f32 %v1982, 0.0
      %v2026 = vmax.f32 %v1987, 0.0
      %v2027 = vmax.f32 %v1990, 0.0
      %v2028 = vmax.f32 %v1995, 0.0
      %v2029 = vmax.f32 %v1998, 0.0
      %v2030 = vmax.f32 %v2003, 0.0
      %v2031 = vmax.f32 %v2006, 0.0
      %v2032 = vmax.f32 %v2011, 0.0
      %v2033 = vmax.f32 %v2014, 0.0
      %v2034 = vmax.f32 %v2019, 0.0
      %vm2035 = vcmask 523264
      %2036 = vst.msk [vmem:[#allocation2] sm:$0xff] %vm2035, %v2024
      %2037 = vst.msk [vmem:[#allocation2 + $0x8] sm:$0xff] %vm2035, %v2025
      %2038 = vst.msk [vmem:[#allocation2 + $0x10] sm:$0xff] %vm2035, %v2026
      %2039 = vst.msk [vmem:[#allocation2 + $0x18] sm:$0xff] %vm2035, %v2027
      %2040 = vst.msk [vmem:[#allocation2 + $0x20] sm:$0xff] %vm2035, %v2028
      %2041 = vst.msk [vmem:[#allocation2 + $0x28] sm:$0xff] %vm2035, %v2029
      %2042 = vst.msk [vmem:[#allocation2 + $0x30] sm:$0xff] %vm2035, %v2030
      %2043 = vst.msk [vmem:[#allocation2 + $0x38] sm:$0xff] %vm2035, %v2031
      %2044 = vst.msk [vmem:[#allocation2 + $0x40] sm:$0xff] %vm2035, %v2032
      %2045 = vst.msk [vmem:[#allocation2 + $0x48] sm:$0xff] %vm2035, %v2033
      %vm2046 = vcmask 516096
      %2047 = vst.msk [vmem:[#allocation2 + $0x50] sm:$0x1] %vm2046, %v2034
      %v2048 = vld [vmem:[#allocation2] sm:$0xff]
      %v2049 = vld [vmem:[#allocation2 + $0x8] sm:$0x1]
      %v2050 = vld [vmem:[#allocation2 + $0x9] sm:$0xff]
      %v2051 = vld [vmem:[#allocation2 + $0x11] sm:$0x1]
      %v2052 = vld [vmem:[#allocation2 + $0x12] sm:$0xff]
      %v2053 = vld [vmem:[#allocation2 + $0x1a] sm:$0x1]
      %v2054 = vmax.f32 %v2050, %v2052
      %v2055 = vmax.f32 %v2051, %v2053
      %v2056 = vmax.f32 %v2048, %v2054
      %v2057 = vmax.f32 %v2049, %v2055
      %2058 = vst.msk [vmem:[#allocation3] sm:$0xff] %vm2035, %v2056
      %2059 = vst.msk [vmem:[#allocation3 + $0x8] sm:$0x1] %vm2046, %v2057
      %v2060 = vld [vmem:[#allocation2 + $0x12] sm:$0xff]
      %v2061 = vld [vmem:[#allocation2 + $0x1a] sm:$0x1]
      %v2062 = vld [vmem:[#allocation2 + $0x1b] sm:$0xff]
      %v2063 = vld [vmem:[#allocation2 + $0x23] sm:$0x1]
      %v2064 = vld [vmem:[#allocation2 + $0x24] sm:$0xff]
      %v2065 = vld [vmem:[#allocation2 + $0x2c] sm:$0x1]
      %v2066 = vmax.f32 %v2062, %v2064
      %v2067 = vmax.f32 %v2063, %v2065
      %v2068 = vmax.f32 %v2060, %v2066
      %v2069 = vmax.f32 %v2061, %v2067
      %s2070 = scalar_lea.vmem [#allocation3], 16
      %2071 = vst.msk [vmem:[%s2070] sm:$0xff] %vm2035, %v2068
      %2072 = vst.msk [vmem:[%s2070 + $0x8] sm:$0x1] %vm2046, %v2069
      %v2073 = vld [vmem:[#allocation2 + $0x24] sm:$0xff]
      %v2074 = vld [vmem:[#allocation2 + $0x2c] sm:$0x1]
      %v2075 = vld [vmem:[#allocation2 + $0x2d] sm:$0xff]
      %v2076 = vld [vmem:[#allocation2 + $0x35] sm:$0x1]
      %v2077 = vld [vmem:[#allocation2 + $0x36] sm:$0xff]
      %v2078 = vld [vmem:[#allocation2 + $0x3e] sm:$0x1]
      %v2079 = vmax.f32 %v2075, %v2077
      %v2080 = vmax.f32 %v2076, %v2078
      %v2081 = vmax.f32 %v2073, %v2079
      %v2082 = vmax.f32 %v2074, %v2080
      %s2083 = scalar_lea.vmem [#allocation3], 32
      %2084 = vst.msk [vmem:[%s2083] sm:$0xff] %vm2035, %v2081
      %2085 = vst.msk [vmem:[%s2083 + $0x8] sm:$0x1] %vm2046, %v2082
      %v2086 = vld [vmem:[#allocation2 + $0x36] sm:$0xff]
      %v2087 = vld [vmem:[#allocation2 + $0x3e] sm:$0x1]
      %v2088 = vld [vmem:[#allocation2 + $0x3f] sm:$0xff]
      %v2089 = vld [vmem:[#allocation2 + $0x47] sm:$0x1]
      %v2090 = vld [vmem:[#allocation2 + $0x48] sm:$0xff]
      %v2091 = vld [vmem:[#allocation2 + $0x50] sm:$0x1]
      %v2092 = vmax.f32 %v2088, %v2090
      %v2093 = vmax.f32 %v2089, %v2091
      %v2094 = vmax.f32 %v2086, %v2092
      %v2095 = vmax.f32 %v2087, %v2093
      %s2096 = scalar_lea.vmem [#allocation3], 48
      %2097 = vst.msk [vmem:[%s2096] sm:$0xff] %vm2035, %v2094
      %2098 = vst.msk [vmem:[%s2096 + $0x8] sm:$0x1] %vm2046, %v2095
      %v2099 = vld [vmem:[#allocation3] ss:$2 sm:$0xf]
      %s2100 = scalar_lea.vmem [#allocation3], 16
      %v2101 = vld [vmem:[%s2100] ss:$2 sm:$0xf]
      %s2102 = scalar_lea.vmem [#allocation3], 32
      %v2103 = vld [vmem:[%s2102] ss:$2 sm:$0xf]
      %s2104 = scalar_lea.vmem [#allocation3], 48
      %v2105 = vld [vmem:[%s2104] ss:$2 sm:$0xf]
      %s2106 = scalar_lea.vmem [#allocation3], 1
      %v2107 = vld [vmem:[%s2106] ss:$2 sm:$0xf]
      %s2108 = scalar_lea.vmem [#allocation3], 17
      %v2109 = vld [vmem:[%s2108] ss:$2 sm:$0xf]
      %s2110 = scalar_lea.vmem [#allocation3], 33
      %v2111 = vld [vmem:[%s2110] ss:$2 sm:$0xf]
      %s2112 = scalar_lea.vmem [#allocation3], 49
      %v2113 = vld [vmem:[%s2112] ss:$2 sm:$0xf]
      %s2114 = scalar_lea.vmem [#allocation3], 2
      %v2115 = vld [vmem:[%s2114] ss:$2 sm:$0xf]
      %s2116 = scalar_lea.vmem [#allocation3], 18
      %v2117 = vld [vmem:[%s2116] ss:$2 sm:$0xf]
      %s2118 = scalar_lea.vmem [#allocation3], 34
      %v2119 = vld [vmem:[%s2118] ss:$2 sm:$0xf]
      %s2120 = scalar_lea.vmem [#allocation3], 50
      %v2121 = vld [vmem:[%s2120] ss:$2 sm:$0xf]
      %v2122 = vmax.f32 %v2107, %v2115
      %v2123 = vmax.f32 %v2109, %v2117
      %v2124 = vmax.f32 %v2111, %v2119
      %v2125 = vmax.f32 %v2113, %v2121
      %v2126 = vmax.f32 %v2099, %v2122
      %v2127 = vmax.f32 %v2101, %v2123
      %v2128 = vmax.f32 %v2103, %v2124
      %v2129 = vmax.f32 %v2105, %v2125
      %v2130 = vpack.c.bf16 %v2126, %v2126
      %v2131 = vpack.c.bf16 %v2127, %v2127
      %v2132 = vpack.c.bf16 %v2128, %v2128
      %v2133 = vpack.c.bf16 %v2129, %v2129
      %vm2134 = vcmask 517120
      %2135 = vst.msk [vmem:[%s170] sm:$0x3] %vm2134, %v2130
      %2136 = vst.msk [vmem:[%s170 + $0x2] sm:$0x3] %vm2134, %v2131
      %2137 = vst.msk [vmem:[%s170 + $0x4] sm:$0x3] %vm2134, %v2132
      %2138 = vst.msk [vmem:[%s170 + $0x6] sm:$0x3] %vm2134, %v2133
      %p2139 = scmp.lt.s32.totalorder %s14, 1
      %s2140 = scalar_select %p2139, %s14, 1
      %s2141 = smul.addr %s2140, 4
      %s2142 = smul.addr %s2141, 2
      %s2143 = scalar_lea.vmem %s3, %s2142
      // Predicated region
      $region33: #{cnn_cifar_forward.4} parent=31 // pred_check
        %p2144 = pneg %p100
      $region34: #{cnn_cifar_forward.4} parent=31 // pred_check_branch
        %2146 = sbr.rel (%p2144) target = $region36
      $region35: #{cnn_cifar_forward.4} parent=31 // pred_region
        _
      $region36: #{cnn_cifar_forward.4} parent=31 // pred_fallthru
        _
    $region32: #{cnn_cifar_forward.4} parent=5 // pred_fallthru
      _
    %p2147 = scmp.le.s32.totalorder 2, %s9
    // Predicated region
    $region37: #{cnn_cifar_forward.4} parent=5 // pred_check
      %p2148 = pneg %p2147
    $region38: #{cnn_cifar_forward.4} parent=5 // pred_check_branch
      %2150 = sbr.rel (%p2148) target = $region40
    $region39: #{cnn_cifar_forward.4} parent=5 // pred_region
      %s2151 = ssub.s32 %s9, 2
      // Predicated region
      $region41: #{cnn_cifar_forward.4} parent=39 // pred_check
        %p2152 = pneg %p106
      $region42: #{cnn_cifar_forward.4} parent=39 // pred_check_branch
        %2154 = sbr.rel (%p2152) target = $region44
      $region43: #{cnn_cifar_forward.4} parent=39 // pred_region
        %p2155 = scmp.lt.s32.totalorder %s15, 1
        %s2156 = scalar_select %p2155, %s15, 1
        %s2157 = smul.addr %s2156, 4
        %s2158 = smul.addr %s2157, 2
        %s2159 = scalar_lea.vmem %s3, %s2158
      $region44: #{cnn_cifar_forward.4} parent=39 // pred_fallthru
        _
    $region40: #{cnn_cifar_forward.4} parent=5 // pred_fallthru
      _
  $region6: #{cnn_cifar_forward.4} parent=0 // loop_footer
    %s13 = sadd.s32 1, %s9
  $region7: #{cnn_cifar_forward.4} parent=0 // loop_footer_branch
    %8 = sbr.rel target = $region3
  $region8: #{cnn_cifar_forward.4} parent=0 // loop_exit
    _

// kernel: cnn_cifar_forward.5
$region0: #{cnn_cifar_forward.5}
  #allocation0 [shape = 'u32[]', space=smem, size = 0x4, offset = 0x4, fixed_abs, tag = 'smem constant byte address 0x4 - core index']
  #allocation1 [shape = 'u32[144,128]{1,0:T(1,128)}', space=vmem, size = 0x12000, scoped, tag = 'internal scratch']
  %s0 = inlined_call_operand.vmem [shape: bf16[8,1024], index: 0, kind: input, shape index: {}]
  %s1 = inlined_call_operand.vmem [shape: bf16[1024,384], index: 1, kind: input, shape index: {}]
  %s2 = inlined_call_operand.vmem [shape: f32[1,384], index: 2, kind: input, shape index: {}]
  %s3 = inlined_call_operand.vmem [shape: bf16[384,192], index: 3, kind: input, shape index: {}]
  %s4 = inlined_call_operand.vmem [shape: f32[1,192], index: 4, kind: input, shape index: {}]
  %s5 = inlined_call_operand.vmem [shape: bf16[192,10], index: 5, kind: input, shape index: {}]
  %s6 = inlined_call_operand.vmem [shape: f32[1,10], index: 6, kind: input, shape index: {}]
  %s7 = inlined_call_operand.vmem [shape: f32[8,10], index: 7, kind: output, shape index: {}]
  %s8 = sld [smem:[#allocation0]]
  $region38: #{cnn_cifar_forward.5} parent=0
    _
  %s10 = ssub.s32 1, %s8
  %s11 = scalar_select 0, %s10, %s8
  // Predicated region
  $region2: #{cnn_cifar_forward.5} parent=0 // pred_check
    _
  $region3: #{cnn_cifar_forward.5} parent=0 // pred_check_branch
    %13 = sbr.rel (0) target = $region5
  $region4: #{cnn_cifar_forward.5} parent=0 // pred_region
    _
  $region5: #{cnn_cifar_forward.5} parent=0 // pred_fallthru
    _
  // Predicated region
  $region6: #{cnn_cifar_forward.5} parent=0 // pred_check
    _
  $region7: #{cnn_cifar_forward.5} parent=0 // pred_check_branch
    %15 = sbr.rel (0) target = $region9
  $region8: #{cnn_cifar_forward.5} parent=0 // pred_region
    _
  $region9: #{cnn_cifar_forward.5} parent=0 // pred_fallthru
    _
  // Predicated region
  $region10: #{cnn_cifar_forward.5} parent=0 // pred_check
    _
  $region11: #{cnn_cifar_forward.5} parent=0 // pred_check_branch
    %17 = sbr.rel (0) target = $region13
  $region12: #{cnn_cifar_forward.5} parent=0 // pred_region
    _
  $region13: #{cnn_cifar_forward.5} parent=0 // pred_fallthru
    _
  // Predicated region
  $region14: #{cnn_cifar_forward.5} parent=0 // pred_check
    _
  $region15: #{cnn_cifar_forward.5} parent=0 // pred_check_branch
    %19 = sbr.rel (0) target = $region17
  $region16: #{cnn_cifar_forward.5} parent=0 // pred_region
    _
  $region17: #{cnn_cifar_forward.5} parent=0 // pred_fallthru
    _
  // Predicated region
  $region18: #{cnn_cifar_forward.5} parent=0 // pred_check
    _
  $region19: #{cnn_cifar_forward.5} parent=0 // pred_check_branch
    %21 = sbr.rel (0) target = $region21
  $region20: #{cnn_cifar_forward.5} parent=0 // pred_region
    _
  $region21: #{cnn_cifar_forward.5} parent=0 // pred_fallthru
    _
  // Predicated region
  $region22: #{cnn_cifar_forward.5} parent=0 // pred_check
    _
  $region23: #{cnn_cifar_forward.5} parent=0 // pred_check_branch
    %23 = sbr.rel (0) target = $region25
  $region24: #{cnn_cifar_forward.5} parent=0 // pred_region
    _
  $region25: #{cnn_cifar_forward.5} parent=0 // pred_fallthru
    _
  // Predicated region
  $region26: #{cnn_cifar_forward.5} parent=0 // pred_check
    _
  $region27: #{cnn_cifar_forward.5} parent=0 // pred_check_branch
    %25 = sbr.rel (0) target = $region29
  $region28: #{cnn_cifar_forward.5} parent=0 // pred_region
    _
  $region29: #{cnn_cifar_forward.5} parent=0 // pred_fallthru
    _
  %v27 = vld [vmem:[%s0] sm:$0xff]
  %v28 = vld [vmem:[%s0 + $0x8] sm:$0xff]
  %v29 = vld [vmem:[%s0 + $0x10] sm:$0xff]
  %v30 = vld [vmem:[%s0 + $0x18] sm:$0xff]
  %v31 = vld [vmem:[%s1] sm:$0xff]
  %v32 = vld [vmem:[%s1 + $0x8] sm:$0xf]
  %v33 = vld [vmem:[%s1 + $0xc] sm:$0xff]
  %v34 = vld [vmem:[%s1 + $0x14] sm:$0xf]
  %v35 = vld [vmem:[%s1 + $0x18] sm:$0xff]
  %v36 = vld [vmem:[%s1 + $0x20] sm:$0xf]
  %v37 = vld [vmem:[%s1 + $0x24] sm:$0xff]
  %v38 = vld [vmem:[%s1 + $0x2c] sm:$0xf]
  %v39 = vld [vmem:[%s1 + $0x30] sm:$0xff]
  %v40 = vld [vmem:[%s1 + $0x38] sm:$0xf]
  %v41 = vld [vmem:[%s1 + $0x3c] sm:$0xff]
  %v42 = vld [vmem:[%s1 + $0x44] sm:$0xf]
  %v43 = vld [vmem:[%s1 + $0x48] sm:$0xff]
  %v44 = vld [vmem:[%s1 + $0x50] sm:$0xf]
  %v45 = vld [vmem:[%s1 + $0x54] sm:$0xff]
  %v46 = vld [vmem:[%s1 + $0x5c] sm:$0xf]
  %v47 = vld [vmem:[%s1 + $0x60] sm:$0xff]
  %v48 = vld [vmem:[%s1 + $0x68] sm:$0xf]
  %v49 = vld [vmem:[%s1 + $0x6c] sm:$0xff]
  %v50 = vld [vmem:[%s1 + $0x74] sm:$0xf]
  %v51 = vld [vmem:[%s1 + $0x78] sm:$0xff]
  %v52 = vld [vmem:[%s1 + $0x80] sm:$0xf]
  %v53 = vld [vmem:[%s1 + $0x84] sm:$0xff]
  %v54 = vld [vmem:[%s1 + $0x8c] sm:$0xf]
  %v55 = vld [vmem:[%s1 + $0x90] sm:$0xff]
  %v56 = vld [vmem:[%s1 + $0x98] sm:$0xf]
  %v57 = vld [vmem:[%s1 + $0x9c] sm:$0xff]
  %v58 = vld [vmem:[%s1 + $0xa4] sm:$0xf]
  %v59 = vld [vmem:[%s1 + $0xa8] sm:$0xff]
  %v60 = vld [vmem:[%s1 + $0xb0] sm:$0xf]
  %v61 = vld [vmem:[%s1 + $0xb4] sm:$0xff]
  %v62 = vld [vmem:[%s1 + $0xbc] sm:$0xf]
  %v63 = vld [vmem:[%s1 + $0xc0] sm:$0xff]
  %v64 = vld [vmem:[%s1 + $0xc8] sm:$0xf]
  %v65 = vld [vmem:[%s1 + $0xcc] sm:$0xff]
  %v66 = vld [vmem:[%s1 + $0xd4] sm:$0xf]
  %v67 = vld [vmem:[%s1 + $0xd8] sm:$0xff]
  %v68 = vld [vmem:[%s1 + $0xe0] sm:$0xf]
  %v69 = vld [vmem:[%s1 + $0xe4] sm:$0xff]
  %v70 = vld [vmem:[%s1 + $0xec] sm:$0xf]
  %v71 = vld [vmem:[%s1 + $0xf0] sm:$0xff]
  %v72 = vld [vmem:[%s1 + $0xf8] sm:$0xf]
  %v73 = vld [vmem:[%s1 + $0xfc] sm:$0xff]
  %v74 = vld [vmem:[%s1 + $0x104] sm:$0xf]
  %v75 = vld [vmem:[%s1 + $0x108] sm:$0xff]
  %v76 = vld [vmem:[%s1 + $0x110] sm:$0xf]
  %v77 = vld [vmem:[%s1 + $0x114] sm:$0xff]
  %v78 = vld [vmem:[%s1 + $0x11c] sm:$0xf]
  %v79 = vld [vmem:[%s1 + $0x120] sm:$0xff]
  %v80 = vld [vmem:[%s1 + $0x128] sm:$0xf]
  %v81 = vld [vmem:[%s1 + $0x12c] sm:$0xff]
  %v82 = vld [vmem:[%s1 + $0x134] sm:$0xf]
  %v83 = vld [vmem:[%s1 + $0x138] sm:$0xff]
  %v84 = vld [vmem:[%s1 + $0x140] sm:$0xf]
  %v85 = vld [vmem:[%s1 + $0x144] sm:$0xff]
  %v86 = vld [vmem:[%s1 + $0x14c] sm:$0xf]
  %v87 = vld [vmem:[%s1 + $0x150] sm:$0xff]
  %v88 = vld [vmem:[%s1 + $0x158] sm:$0xf]
  %v89 = vld [vmem:[%s1 + $0x15c] sm:$0xff]
  %v90 = vld [vmem:[%s1 + $0x164] sm:$0xf]
  %v91 = vld [vmem:[%s1 + $0x168] sm:$0xff]
  %v92 = vld [vmem:[%s1 + $0x170] sm:$0xf]
  %v93 = vld [vmem:[%s1 + $0x174] sm:$0xff]
  %v94 = vld [vmem:[%s1 + $0x17c] sm:$0xf]
  %v95 = vld [vmem:[%s1 + $0x180] sm:$0xff]
  %v96 = vld [vmem:[%s1 + $0x188] sm:$0xf]
  %v97 = vld [vmem:[%s1 + $0x18c] sm:$0xff]
  %v98 = vld [vmem:[%s1 + $0x194] sm:$0xf]
  %v99 = vld [vmem:[%s1 + $0x198] sm:$0xff]
  %v100 = vld [vmem:[%s1 + $0x1a0] sm:$0xf]
  %v101 = vld [vmem:[%s1 + $0x1a4] sm:$0xff]
  %v102 = vld [vmem:[%s1 + $0x1ac] sm:$0xf]
  %v103 = vld [vmem:[%s1 + $0x1b0] sm:$0xff]
  %v104 = vld [vmem:[%s1 + $0x1b8] sm:$0xf]
  %v105 = vld [vmem:[%s1 + $0x1bc] sm:$0xff]
  %v106 = vld [vmem:[%s1 + $0x1c4] sm:$0xf]
  %v107 = vld [vmem:[%s1 + $0x1c8] sm:$0xff]
  %v108 = vld [vmem:[%s1 + $0x1d0] sm:$0xf]
  %v109 = vld [vmem:[%s1 + $0x1d4] sm:$0xff]
  %v110 = vld [vmem:[%s1 + $0x1dc] sm:$0xf]
  %v111 = vld [vmem:[%s1 + $0x1e0] sm:$0xff]
  %v112 = vld [vmem:[%s1 + $0x1e8] sm:$0xf]
  %v113 = vld [vmem:[%s1 + $0x1ec] sm:$0xff]
  %v114 = vld [vmem:[%s1 + $0x1f4] sm:$0xf]
  %v115 = vld [vmem:[%s1 + $0x1f8] sm:$0xff]
  %v116 = vld [vmem:[%s1 + $0x200] sm:$0xf]
  %v117 = vld [vmem:[%s1 + $0x204] sm:$0xff]
  %v118 = vld [vmem:[%s1 + $0x20c] sm:$0xf]
  %v119 = vld [vmem:[%s1 + $0x210] sm:$0xff]
  %v120 = vld [vmem:[%s1 + $0x218] sm:$0xf]
  %v121 = vld [vmem:[%s1 + $0x21c] sm:$0xff]
  %v122 = vld [vmem:[%s1 + $0x224] sm:$0xf]
  %v123 = vld [vmem:[%s1 + $0x228] sm:$0xff]
  %v124 = vld [vmem:[%s1 + $0x230] sm:$0xf]
  %v125 = vld [vmem:[%s1 + $0x234] sm:$0xff]
  %v126 = vld [vmem:[%s1 + $0x23c] sm:$0xf]
  %v127 = vld [vmem:[%s1 + $0x240] sm:$0xff]
  %v128 = vld [vmem:[%s1 + $0x248] sm:$0xf]
  %v129 = vld [vmem:[%s1 + $0x24c] sm:$0xff]
  %v130 = vld [vmem:[%s1 + $0x254] sm:$0xf]
  %v131 = vld [vmem:[%s1 + $0x258] sm:$0xff]
  %v132 = vld [vmem:[%s1 + $0x260] sm:$0xf]
  %v133 = vld [vmem:[%s1 + $0x264] sm:$0xff]
  %v134 = vld [vmem:[%s1 + $0x26c] sm:$0xf]
  %v135 = vld [vmem:[%s1 + $0x270] sm:$0xff]
  %v136 = vld [vmem:[%s1 + $0x278] sm:$0xf]
  %v137 = vld [vmem:[%s1 + $0x27c] sm:$0xff]
  %v138 = vld [vmem:[%s1 + $0x284] sm:$0xf]
  %v139 = vld [vmem:[%s1 + $0x288] sm:$0xff]
  %v140 = vld [vmem:[%s1 + $0x290] sm:$0xf]
  %v141 = vld [vmem:[%s1 + $0x294] sm:$0xff]
  %v142 = vld [vmem:[%s1 + $0x29c] sm:$0xf]
  %v143 = vld [vmem:[%s1 + $0x2a0] sm:$0xff]
  %v144 = vld [vmem:[%s1 + $0x2a8] sm:$0xf]
  %v145 = vld [vmem:[%s1 + $0x2ac] sm:$0xff]
  %v146 = vld [vmem:[%s1 + $0x2b4] sm:$0xf]
  %v147 = vld [vmem:[%s1 + $0x2b8] sm:$0xff]
  %v148 = vld [vmem:[%s1 + $0x2c0] sm:$0xf]
  %v149 = vld [vmem:[%s1 + $0x2c4] sm:$0xff]
  %v150 = vld [vmem:[%s1 + $0x2cc] sm:$0xf]
  %v151 = vld [vmem:[%s1 + $0x2d0] sm:$0xff]
  %v152 = vld [vmem:[%s1 + $0x2d8] sm:$0xf]
  %v153 = vld [vmem:[%s1 + $0x2dc] sm:$0xff]
  %v154 = vld [vmem:[%s1 + $0x2e4] sm:$0xf]
  %v155 = vld [vmem:[%s1 + $0x2e8] sm:$0xff]
  %v156 = vld [vmem:[%s1 + $0x2f0] sm:$0xf]
  %v157 = vld [vmem:[%s1 + $0x2f4] sm:$0xff]
  %v158 = vld [vmem:[%s1 + $0x2fc] sm:$0xf]
  %v159 = vld [vmem:[%s1 + $0x300] sm:$0xff]
  %v160 = vld [vmem:[%s1 + $0x308] sm:$0xf]
  %v161 = vld [vmem:[%s1 + $0x30c] sm:$0xff]
  %v162 = vld [vmem:[%s1 + $0x314] sm:$0xf]
  %v163 = vld [vmem:[%s1 + $0x318] sm:$0xff]
  %v164 = vld [vmem:[%s1 + $0x320] sm:$0xf]
  %v165 = vld [vmem:[%s1 + $0x324] sm:$0xff]
  %v166 = vld [vmem:[%s1 + $0x32c] sm:$0xf]
  %v167 = vld [vmem:[%s1 + $0x330] sm:$0xff]
  %v168 = vld [vmem:[%s1 + $0x338] sm:$0xf]
  %v169 = vld [vmem:[%s1 + $0x33c] sm:$0xff]
  %v170 = vld [vmem:[%s1 + $0x344] sm:$0xf]
  %v171 = vld [vmem:[%s1 + $0x348] sm:$0xff]
  %v172 = vld [vmem:[%s1 + $0x350] sm:$0xf]
  %v173 = vld [vmem:[%s1 + $0x354] sm:$0xff]
  %v174 = vld [vmem:[%s1 + $0x35c] sm:$0xf]
  %v175 = vld [vmem:[%s1 + $0x360] sm:$0xff]
  %v176 = vld [vmem:[%s1 + $0x368] sm:$0xf]
  %v177 = vld [vmem:[%s1 + $0x36c] sm:$0xff]
  %v178 = vld [vmem:[%s1 + $0x374] sm:$0xf]
  %v179 = vld [vmem:[%s1 + $0x378] sm:$0xff]
  %v180 = vld [vmem:[%s1 + $0x380] sm:$0xf]
  %v181 = vld [vmem:[%s1 + $0x384] sm:$0xff]
  %v182 = vld [vmem:[%s1 + $0x38c] sm:$0xf]
  %v183 = vld [vmem:[%s1 + $0x390] sm:$0xff]
  %v184 = vld [vmem:[%s1 + $0x398] sm:$0xf]
  %v185 = vld [vmem:[%s1 + $0x39c] sm:$0xff]
  %v186 = vld [vmem:[%s1 + $0x3a4] sm:$0xf]
  %v187 = vld [vmem:[%s1 + $0x3a8] sm:$0xff]
  %v188 = vld [vmem:[%s1 + $0x3b0] sm:$0xf]
  %v189 = vld [vmem:[%s1 + $0x3b4] sm:$0xff]
  %v190 = vld [vmem:[%s1 + $0x3bc] sm:$0xf]
  %v191 = vld [vmem:[%s1 + $0x3c0] sm:$0xff]
  %v192 = vld [vmem:[%s1 + $0x3c8] sm:$0xf]
  %v193 = vld [vmem:[%s1 + $0x3cc] sm:$0xff]
  %v194 = vld [vmem:[%s1 + $0x3d4] sm:$0xf]
  %v195 = vld [vmem:[%s1 + $0x3d8] sm:$0xff]
  %v196 = vld [vmem:[%s1 + $0x3e0] sm:$0xf]
  %v197 = vld [vmem:[%s1 + $0x3e4] sm:$0xff]
  %v198 = vld [vmem:[%s1 + $0x3ec] sm:$0xf]
  %v199 = vld [vmem:[%s1 + $0x3f0] sm:$0xff]
  %v200 = vld [vmem:[%s1 + $0x3f8] sm:$0xf]
  %v201 = vld [vmem:[%s1 + $0x3fc] sm:$0xff]
  %v202 = vld [vmem:[%s1 + $0x404] sm:$0xf]
  %v203 = vld [vmem:[%s1 + $0x408] sm:$0xff]
  %v204 = vld [vmem:[%s1 + $0x410] sm:$0xf]
  %v205 = vld [vmem:[%s1 + $0x414] sm:$0xff]
  %v206 = vld [vmem:[%s1 + $0x41c] sm:$0xf]
  %v207 = vld [vmem:[%s1 + $0x420] sm:$0xff]
  %v208 = vld [vmem:[%s1 + $0x428] sm:$0xf]
  %v209 = vld [vmem:[%s1 + $0x42c] sm:$0xff]
  %v210 = vld [vmem:[%s1 + $0x434] sm:$0xf]
  %v211 = vld [vmem:[%s1 + $0x438] sm:$0xff]
  %v212 = vld [vmem:[%s1 + $0x440] sm:$0xf]
  %v213 = vld [vmem:[%s1 + $0x444] sm:$0xff]
  %v214 = vld [vmem:[%s1 + $0x44c] sm:$0xf]
  %v215 = vld [vmem:[%s1 + $0x450] sm:$0xff]
  %v216 = vld [vmem:[%s1 + $0x458] sm:$0xf]
  %v217 = vld [vmem:[%s1 + $0x45c] sm:$0xff]
  %v218 = vld [vmem:[%s1 + $0x464] sm:$0xf]
  %v219 = vld [vmem:[%s1 + $0x468] sm:$0xff]
  %v220 = vld [vmem:[%s1 + $0x470] sm:$0xf]
  %v221 = vld [vmem:[%s1 + $0x474] sm:$0xff]
  %v222 = vld [vmem:[%s1 + $0x47c] sm:$0xf]
  %v223 = vld [vmem:[%s1 + $0x480] sm:$0xff]
  %v224 = vld [vmem:[%s1 + $0x488] sm:$0xf]
  %v225 = vld [vmem:[%s1 + $0x48c] sm:$0xff]
  %v226 = vld [vmem:[%s1 + $0x494] sm:$0xf]
  %v227 = vld [vmem:[%s1 + $0x498] sm:$0xff]
  %v228 = vld [vmem:[%s1 + $0x4a0] sm:$0xf]
  %v229 = vld [vmem:[%s1 + $0x4a4] sm:$0xff]
  %v230 = vld [vmem:[%s1 + $0x4ac] sm:$0xf]
  %v231 = vld [vmem:[%s1 + $0x4b0] sm:$0xff]
  %v232 = vld [vmem:[%s1 + $0x4b8] sm:$0xf]
  %v233 = vld [vmem:[%s1 + $0x4bc] sm:$0xff]
  %v234 = vld [vmem:[%s1 + $0x4c4] sm:$0xf]
  %v235 = vld [vmem:[%s1 + $0x4c8] sm:$0xff]
  %v236 = vld [vmem:[%s1 + $0x4d0] sm:$0xf]
  %v237 = vld [vmem:[%s1 + $0x4d4] sm:$0xff]
  %v238 = vld [vmem:[%s1 + $0x4dc] sm:$0xf]
  %v239 = vld [vmem:[%s1 + $0x4e0] sm:$0xff]
  %v240 = vld [vmem:[%s1 + $0x4e8] sm:$0xf]
  %v241 = vld [vmem:[%s1 + $0x4ec] sm:$0xff]
  %v242 = vld [vmem:[%s1 + $0x4f4] sm:$0xf]
  %v243 = vld [vmem:[%s1 + $0x4f8] sm:$0xff]
  %v244 = vld [vmem:[%s1 + $0x500] sm:$0xf]
  %v245 = vld [vmem:[%s1 + $0x504] sm:$0xff]
  %v246 = vld [vmem:[%s1 + $0x50c] sm:$0xf]
  %v247 = vld [vmem:[%s1 + $0x510] sm:$0xff]
  %v248 = vld [vmem:[%s1 + $0x518] sm:$0xf]
  %v249 = vld [vmem:[%s1 + $0x51c] sm:$0xff]
  %v250 = vld [vmem:[%s1 + $0x524] sm:$0xf]
  %v251 = vld [vmem:[%s1 + $0x528] sm:$0xff]
  %v252 = vld [vmem:[%s1 + $0x530] sm:$0xf]
  %v253 = vld [vmem:[%s1 + $0x534] sm:$0xff]
  %v254 = vld [vmem:[%s1 + $0x53c] sm:$0xf]
  %v255 = vld [vmem:[%s1 + $0x540] sm:$0xff]
  %v256 = vld [vmem:[%s1 + $0x548] sm:$0xf]
  %v257 = vld [vmem:[%s1 + $0x54c] sm:$0xff]
  %v258 = vld [vmem:[%s1 + $0x554] sm:$0xf]
  %v259 = vld [vmem:[%s1 + $0x558] sm:$0xff]
  %v260 = vld [vmem:[%s1 + $0x560] sm:$0xf]
  %v261 = vld [vmem:[%s1 + $0x564] sm:$0xff]
  %v262 = vld [vmem:[%s1 + $0x56c] sm:$0xf]
  %v263 = vld [vmem:[%s1 + $0x570] sm:$0xff]
  %v264 = vld [vmem:[%s1 + $0x578] sm:$0xf]
  %v265 = vld [vmem:[%s1 + $0x57c] sm:$0xff]
  %v266 = vld [vmem:[%s1 + $0x584] sm:$0xf]
  %v267 = vld [vmem:[%s1 + $0x588] sm:$0xff]
  %v268 = vld [vmem:[%s1 + $0x590] sm:$0xf]
  %v269 = vld [vmem:[%s1 + $0x594] sm:$0xff]
  %v270 = vld [vmem:[%s1 + $0x59c] sm:$0xf]
  %v271 = vld [vmem:[%s1 + $0x5a0] sm:$0xff]
  %v272 = vld [vmem:[%s1 + $0x5a8] sm:$0xf]
  %v273 = vld [vmem:[%s1 + $0x5ac] sm:$0xff]
  %v274 = vld [vmem:[%s1 + $0x5b4] sm:$0xf]
  %v275 = vld [vmem:[%s1 + $0x5b8] sm:$0xff]
  %v276 = vld [vmem:[%s1 + $0x5c0] sm:$0xf]
  %v277 = vld [vmem:[%s1 + $0x5c4] sm:$0xff]
  %v278 = vld [vmem:[%s1 + $0x5cc] sm:$0xf]
  %v279 = vld [vmem:[%s1 + $0x5d0] sm:$0xff]
  %v280 = vld [vmem:[%s1 + $0x5d8] sm:$0xf]
  %v281 = vld [vmem:[%s1 + $0x5dc] sm:$0xff]
  %v282 = vld [vmem:[%s1 + $0x5e4] sm:$0xf]
  %v283 = vld [vmem:[%s1 + $0x5e8] sm:$0xff]
  %v284 = vld [vmem:[%s1 + $0x5f0] sm:$0xf]
  %v285 = vld [vmem:[%s1 + $0x5f4] sm:$0xff]
  %v286 = vld [vmem:[%s1 + $0x5fc] sm:$0xf]
  %v287 = vld [vmem:[%s2] sm:$0x7]
  %v289 = vlaneseq
  %v290 = vshrl.u32 %v289, 7
  %v291 = vsub.s32 0, %v290
  %v292 = vrot.slane %v287, %v291
  %v293 = vlaneseq
  %v294 = vshrl.u32 %v293, 7
  %v295 = vsub.s32 1, %v294
  %v296 = vrot.slane %v287, %v295
  %v297 = vlaneseq
  %v298 = vshrl.u32 %v297, 7
  %v299 = vsub.s32 2, %v298
  %v300 = vrot.slane %v287, %v299
  %v308 = vunpack.c.l.b16 %v27
  %v309 = vunpack.c.h.b16 %v27
  %v310 = vunpack.c.l.b16 %v28
  %v311 = vunpack.c.h.b16 %v28
  %v312 = vunpack.c.l.b16 %v29
  %v313 = vunpack.c.h.b16 %v29
  %v314 = vunpack.c.l.b16 %v30
  %v315 = vunpack.c.h.b16 %v30
  %v316 = vpack.c.b16 %v308, %v308
  %v317 = vpack.c.b16 %v309, %v309
  %v318 = vpack.c.b16 %v310, %v310
  %v319 = vpack.c.b16 %v311, %v311
  %v320 = vpack.c.b16 %v312, %v312
  %v321 = vpack.c.b16 %v313, %v313
  %v322 = vpack.c.b16 %v314, %v314
  %v323 = vpack.c.b16 %v315, %v315
  %v588 = vunpack.c.l.b16 %v31
  %v589 = vunpack.c.h.b16 %v31
  %v590 = vunpack.c.l.b16 %v32
  %v591 = vunpack.c.l.b16 %v33
  %v592 = vunpack.c.h.b16 %v33
  %v593 = vunpack.c.l.b16 %v34
  %v594 = vunpack.c.l.b16 %v35
  %v595 = vunpack.c.h.b16 %v35
  %v596 = vunpack.c.l.b16 %v36
  %v597 = vunpack.c.l.b16 %v37
  %v598 = vunpack.c.h.b16 %v37
  %v599 = vunpack.c.l.b16 %v38
  %v600 = vunpack.c.l.b16 %v39
  %v601 = vunpack.c.h.b16 %v39
  %v602 = vunpack.c.l.b16 %v40
  %v603 = vunpack.c.l.b16 %v41
  %v604 = vunpack.c.h.b16 %v41
  %v605 = vunpack.c.l.b16 %v42
  %v606 = vunpack.c.l.b16 %v43
  %v607 = vunpack.c.h.b16 %v43
  %v608 = vunpack.c.l.b16 %v44
  %v609 = vunpack.c.l.b16 %v45
  %v610 = vunpack.c.h.b16 %v45
  %v611 = vunpack.c.l.b16 %v46
  %v612 = vunpack.c.l.b16 %v47
  %v613 = vunpack.c.h.b16 %v47
  %v614 = vunpack.c.l.b16 %v48
  %v615 = vunpack.c.l.b16 %v49
  %v616 = vunpack.c.h.b16 %v49
  %v617 = vunpack.c.l.b16 %v50
  %v618 = vunpack.c.l.b16 %v51
  %v619 = vunpack.c.h.b16 %v51
  %v620 = vunpack.c.l.b16 %v52
  %v621 = vunpack.c.l.b16 %v53
  %v622 = vunpack.c.h.b16 %v53
  %v623 = vunpack.c.l.b16 %v54
  %v624 = vunpack.c.l.b16 %v55
  %v625 = vunpack.c.h.b16 %v55
  %v626 = vunpack.c.l.b16 %v56
  %v627 = vunpack.c.l.b16 %v57
  %v628 = vunpack.c.h.b16 %v57
  %v629 = vunpack.c.l.b16 %v58
  %v630 = vunpack.c.l.b16 %v59
  %v631 = vunpack.c.h.b16 %v59
  %v632 = vunpack.c.l.b16 %v60
  %v633 = vunpack.c.l.b16 %v61
  %v634 = vunpack.c.h.b16 %v61
  %v635 = vunpack.c.l.b16 %v62
  %v636 = vunpack.c.l.b16 %v63
  %v637 = vunpack.c.h.b16 %v63
  %v638 = vunpack.c.l.b16 %v64
  %v639 = vunpack.c.l.b16 %v65
  %v640 = vunpack.c.h.b16 %v65
  %v641 = vunpack.c.l.b16 %v66
  %v642 = vunpack.c.l.b16 %v67
  %v643 = vunpack.c.h.b16 %v67
  %v644 = vunpack.c.l.b16 %v68
  %v645 = vunpack.c.l.b16 %v69
  %v646 = vunpack.c.h.b16 %v69
  %v647 = vunpack.c.l.b16 %v70
  %v648 = vunpack.c.l.b16 %v71
  %v649 = vunpack.c.h.b16 %v71
  %v650 = vunpack.c.l.b16 %v72
  %v651 = vunpack.c.l.b16 %v73
  %v652 = vunpack.c.h.b16 %v73
  %v653 = vunpack.c.l.b16 %v74
  %v654 = vunpack.c.l.b16 %v75
  %v655 = vunpack.c.h.b16 %v75
  %v656 = vunpack.c.l.b16 %v76
  %v657 = vunpack.c.l.b16 %v77
  %v658 = vunpack.c.h.b16 %v77
  %v659 = vunpack.c.l.b16 %v78
  %v660 = vunpack.c.l.b16 %v79
  %v661 = vunpack.c.h.b16 %v79
  %v662 = vunpack.c.l.b16 %v80
  %v663 = vunpack.c.l.b16 %v81
  %v664 = vunpack.c.h.b16 %v81
  %v665 = vunpack.c.l.b16 %v82
  %v666 = vunpack.c.l.b16 %v83
  %v667 = vunpack.c.h.b16 %v83
  %v668 = vunpack.c.l.b16 %v84
  %v669 = vunpack.c.l.b16 %v85
  %v670 = vunpack.c.h.b16 %v85
  %v671 = vunpack.c.l.b16 %v86
  %v672 = vunpack.c.l.b16 %v87
  %v673 = vunpack.c.h.b16 %v87
  %v674 = vunpack.c.l.b16 %v88
  %v675 = vunpack.c.l.b16 %v89
  %v676 = vunpack.c.h.b16 %v89
  %v677 = vunpack.c.l.b16 %v90
  %v678 = vunpack.c.l.b16 %v91
  %v679 = vunpack.c.h.b16 %v91
  %v680 = vunpack.c.l.b16 %v92
  %v681 = vunpack.c.l.b16 %v93
  %v682 = vunpack.c.h.b16 %v93
  %v683 = vunpack.c.l.b16 %v94
  %v684 = vunpack.c.l.b16 %v95
  %v685 = vunpack.c.h.b16 %v95
  %v686 = vunpack.c.l.b16 %v96
  %v687 = vunpack.c.l.b16 %v97
  %v688 = vunpack.c.h.b16 %v97
  %v689 = vunpack.c.l.b16 %v98
  %v690 = vunpack.c.l.b16 %v99
  %v691 = vunpack.c.h.b16 %v99
  %v692 = vunpack.c.l.b16 %v100
  %v693 = vunpack.c.l.b16 %v101
  %v694 = vunpack.c.h.b16 %v101
  %v695 = vunpack.c.l.b16 %v102
  %v696 = vunpack.c.l.b16 %v103
  %v697 = vunpack.c.h.b16 %v103
  %v698 = vunpack.c.l.b16 %v104
  %v699 = vunpack.c.l.b16 %v105
  %v700 = vunpack.c.h.b16 %v105
  %v701 = vunpack.c.l.b16 %v106
  %v702 = vunpack.c.l.b16 %v107
  %v703 = vunpack.c.h.b16 %v107
  %v704 = vunpack.c.l.b16 %v108
  %v705 = vunpack.c.l.b16 %v109
  %v706 = vunpack.c.h.b16 %v109
  %v707 = vunpack.c.l.b16 %v110
  %v708 = vunpack.c.l.b16 %v111
  %v709 = vunpack.c.h.b16 %v111
  %v710 = vunpack.c.l.b16 %v112
  %v711 = vunpack.c.l.b16 %v113
  %v712 = vunpack.c.h.b16 %v113
  %v713 = vunpack.c.l.b16 %v114
  %v714 = vunpack.c.l.b16 %v115
  %v715 = vunpack.c.h.b16 %v115
  %v716 = vunpack.c.l.b16 %v116
  %v717 = vunpack.c.l.b16 %v117
  %v718 = vunpack.c.h.b16 %v117
  %v719 = vunpack.c.l.b16 %v118
  %v720 = vunpack.c.l.b16 %v119
  %v721 = vunpack.c.h.b16 %v119
  %v722 = vunpack.c.l.b16 %v120
  %v723 = vunpack.c.l.b16 %v121
  %v724 = vunpack.c.h.b16 %v121
  %v725 = vunpack.c.l.b16 %v122
  %v726 = vunpack.c.l.b16 %v123
  %v727 = vunpack.c.h.b16 %v123
  %v728 = vunpack.c.l.b16 %v124
  %v729 = vunpack.c.l.b16 %v125
  %v730 = vunpack.c.h.b16 %v125
  %v731 = vunpack.c.l.b16 %v126
  %v732 = vunpack.c.l.b16 %v127
  %v733 = vunpack.c.h.b16 %v127
  %v734 = vunpack.c.l.b16 %v128
  %v735 = vunpack.c.l.b16 %v129
  %v736 = vunpack.c.h.b16 %v129
  %v737 = vunpack.c.l.b16 %v130
  %v738 = vunpack.c.l.b16 %v131
  %v739 = vunpack.c.h.b16 %v131
  %v740 = vunpack.c.l.b16 %v132
  %v741 = vunpack.c.l.b16 %v133
  %v742 = vunpack.c.h.b16 %v133
  %v743 = vunpack.c.l.b16 %v134
  %v744 = vunpack.c.l.b16 %v135
  %v745 = vunpack.c.h.b16 %v135
  %v746 = vunpack.c.l.b16 %v136
  %v747 = vunpack.c.l.b16 %v137
  %v748 = vunpack.c.h.b16 %v137
  %v749 = vunpack.c.l.b16 %v138
  %v750 = vunpack.c.l.b16 %v139
  %v751 = vunpack.c.h.b16 %v139
  %v752 = vunpack.c.l.b16 %v140
  %v753 = vunpack.c.l.b16 %v141
  %v754 = vunpack.c.h.b16 %v141
  %v755 = vunpack.c.l.b16 %v142
  %v756 = vunpack.c.l.b16 %v143
  %v757 = vunpack.c.h.b16 %v143
  %v758 = vunpack.c.l.b16 %v144
  %v759 = vunpack.c.l.b16 %v145
  %v760 = vunpack.c.h.b16 %v145
  %v761 = vunpack.c.l.b16 %v146
  %v762 = vunpack.c.l.b16 %v147
  %v763 = vunpack.c.h.b16 %v147
  %v764 = vunpack.c.l.b16 %v148
  %v765 = vunpack.c.l.b16 %v149
  %v766 = vunpack.c.h.b16 %v149
  %v767 = vunpack.c.l.b16 %v150
  %v768 = vunpack.c.l.b16 %v151
  %v769 = vunpack.c.h.b16 %v151
  %v770 = vunpack.c.l.b16 %v152
  %v771 = vunpack.c.l.b16 %v153
  %v772 = vunpack.c.h.b16 %v153
  %v773 = vunpack.c.l.b16 %v154
  %v774 = vunpack.c.l.b16 %v155
  %v775 = vunpack.c.h.b16 %v155
  %v776 = vunpack.c.l.b16 %v156
  %v777 = vunpack.c.l.b16 %v157
  %v778 = vunpack.c.h.b16 %v157
  %v779 = vunpack.c.l.b16 %v158
  %v780 = vunpack.c.l.b16 %v159
  %v781 = vunpack.c.h.b16 %v159
  %v782 = vunpack.c.l.b16 %v160
  %v783 = vunpack.c.l.b16 %v161
  %v784 = vunpack.c.h.b16 %v161
  %v785 = vunpack.c.l.b16 %v162
  %v786 = vunpack.c.l.b16 %v163
  %v787 = vunpack.c.h.b16 %v163
  %v788 = vunpack.c.l.b16 %v164
  %v789 = vunpack.c.l.b16 %v165
  %v790 = vunpack.c.h.b16 %v165
  %v791 = vunpack.c.l.b16 %v166
  %v792 = vunpack.c.l.b16 %v167
  %v793 = vunpack.c.h.b16 %v167
  %v794 = vunpack.c.l.b16 %v168
  %v795 = vunpack.c.l.b16 %v169
  %v796 = vunpack.c.h.b16 %v169
  %v797 = vunpack.c.l.b16 %v170
  %v798 = vunpack.c.l.b16 %v171
  %v799 = vunpack.c.h.b16 %v171
  %v800 = vunpack.c.l.b16 %v172
  %v801 = vunpack.c.l.b16 %v173
  %v802 = vunpack.c.h.b16 %v173
  %v803 = vunpack.c.l.b16 %v174
  %v804 = vunpack.c.l.b16 %v175
  %v805 = vunpack.c.h.b16 %v175
  %v806 = vunpack.c.l.b16 %v176
  %v807 = vunpack.c.l.b16 %v177
  %v808 = vunpack.c.h.b16 %v177
  %v809 = vunpack.c.l.b16 %v178
  %v810 = vunpack.c.l.b16 %v179
  %v811 = vunpack.c.h.b16 %v179
  %v812 = vunpack.c.l.b16 %v180
  %v813 = vunpack.c.l.b16 %v181
  %v814 = vunpack.c.h.b16 %v181
  %v815 = vunpack.c.l.b16 %v182
  %v816 = vunpack.c.l.b16 %v183
  %v817 = vunpack.c.h.b16 %v183
  %v818 = vunpack.c.l.b16 %v184
  %v819 = vunpack.c.l.b16 %v185
  %v820 = vunpack.c.h.b16 %v185
  %v821 = vunpack.c.l.b16 %v186
  %v822 = vunpack.c.l.b16 %v187
  %v823 = vunpack.c.h.b16 %v187
  %v824 = vunpack.c.l.b16 %v188
  %v825 = vunpack.c.l.b16 %v189
  %v826 = vunpack.c.h.b16 %v189
  %v827 = vunpack.c.l.b16 %v190
  %v828 = vunpack.c.l.b16 %v191
  %v829 = vunpack.c.h.b16 %v191
  %v830 = vunpack.c.l.b16 %v192
  %v831 = vunpack.c.l.b16 %v193
  %v832 = vunpack.c.h.b16 %v193
  %v833 = vunpack.c.l.b16 %v194
  %v834 = vunpack.c.l.b16 %v195
  %v835 = vunpack.c.h.b16 %v195
  %v836 = vunpack.c.l.b16 %v196
  %v837 = vunpack.c.l.b16 %v197
  %v838 = vunpack.c.h.b16 %v197
  %v839 = vunpack.c.l.b16 %v198
  %v840 = vunpack.c.l.b16 %v199
  %v841 = vunpack.c.h.b16 %v199
  %v842 = vunpack.c.l.b16 %v200
  %v843 = vunpack.c.l.b16 %v201
  %v844 = vunpack.c.h.b16 %v201
  %v845 = vunpack.c.l.b16 %v202
  %v846 = vunpack.c.l.b16 %v203
  %v847 = vunpack.c.h.b16 %v203
  %v848 = vunpack.c.l.b16 %v204
  %v849 = vunpack.c.l.b16 %v205
  %v850 = vunpack.c.h.b16 %v205
  %v851 = vunpack.c.l.b16 %v206
  %v852 = vunpack.c.l.b16 %v207
  %v853 = vunpack.c.h.b16 %v207
  %v854 = vunpack.c.l.b16 %v208
  %v855 = vunpack.c.l.b16 %v209
  %v856 = vunpack.c.h.b16 %v209
  %v857 = vunpack.c.l.b16 %v210
  %v858 = vunpack.c.l.b16 %v211
  %v859 = vunpack.c.h.b16 %v211
  %v860 = vunpack.c.l.b16 %v212
  %v861 = vunpack.c.l.b16 %v213
  %v862 = vunpack.c.h.b16 %v213
  %v863 = vunpack.c.l.b16 %v214
  %v864 = vunpack.c.l.b16 %v215
  %v865 = vunpack.c.h.b16 %v215
  %v866 = vunpack.c.l.b16 %v216
  %v867 = vunpack.c.l.b16 %v217
  %v868 = vunpack.c.h.b16 %v217
  %v869 = vunpack.c.l.b16 %v218
  %v870 = vunpack.c.l.b16 %v219
  %v871 = vunpack.c.h.b16 %v219
  %v872 = vunpack.c.l.b16 %v220
  %v873 = vunpack.c.l.b16 %v221
  %v874 = vunpack.c.h.b16 %v221
  %v875 = vunpack.c.l.b16 %v222
  %v876 = vunpack.c.l.b16 %v223
  %v877 = vunpack.c.h.b16 %v223
  %v878 = vunpack.c.l.b16 %v224
  %v879 = vunpack.c.l.b16 %v225
  %v880 = vunpack.c.h.b16 %v225
  %v881 = vunpack.c.l.b16 %v226
  %v882 = vunpack.c.l.b16 %v227
  %v883 = vunpack.c.h.b16 %v227
  %v884 = vunpack.c.l.b16 %v228
  %v885 = vunpack.c.l.b16 %v229
  %v886 = vunpack.c.h.b16 %v229
  %v887 = vunpack.c.l.b16 %v230
  %v888 = vunpack.c.l.b16 %v231
  %v889 = vunpack.c.h.b16 %v231
  %v890 = vunpack.c.l.b16 %v232
  %v891 = vunpack.c.l.b16 %v233
  %v892 = vunpack.c.h.b16 %v233
  %v893 = vunpack.c.l.b16 %v234
  %v894 = vunpack.c.l.b16 %v235
  %v895 = vunpack.c.h.b16 %v235
  %v896 = vunpack.c.l.b16 %v236
  %v897 = vunpack.c.l.b16 %v237
  %v898 = vunpack.c.h.b16 %v237
  %v899 = vunpack.c.l.b16 %v238
  %v900 = vunpack.c.l.b16 %v239
  %v901 = vunpack.c.h.b16 %v239
  %v902 = vunpack.c.l.b16 %v240
  %v903 = vunpack.c.l.b16 %v241
  %v904 = vunpack.c.h.b16 %v241
  %v905 = vunpack.c.l.b16 %v242
  %v906 = vunpack.c.l.b16 %v243
  %v907 = vunpack.c.h.b16 %v243
  %v908 = vunpack.c.l.b16 %v244
  %v909 = vunpack.c.l.b16 %v245
  %v910 = vunpack.c.h.b16 %v245
  %v911 = vunpack.c.l.b16 %v246
  %v912 = vunpack.c.l.b16 %v247
  %v913 = vunpack.c.h.b16 %v247
  %v914 = vunpack.c.l.b16 %v248
  %v915 = vunpack.c.l.b16 %v249
  %v916 = vunpack.c.h.b16 %v249
  %v917 = vunpack.c.l.b16 %v250
  %v918 = vunpack.c.l.b16 %v251
  %v919 = vunpack.c.h.b16 %v251
  %v920 = vunpack.c.l.b16 %v252
  %v921 = vunpack.c.l.b16 %v253
  %v922 = vunpack.c.h.b16 %v253
  %v923 = vunpack.c.l.b16 %v254
  %v924 = vunpack.c.l.b16 %v255
  %v925 = vunpack.c.h.b16 %v255
  %v926 = vunpack.c.l.b16 %v256
  %v927 = vunpack.c.l.b16 %v257
  %v928 = vunpack.c.h.b16 %v257
  %v929 = vunpack.c.l.b16 %v258
  %v930 = vunpack.c.l.b16 %v259
  %v931 = vunpack.c.h.b16 %v259
  %v932 = vunpack.c.l.b16 %v260
  %v933 = vunpack.c.l.b16 %v261
  %v934 = vunpack.c.h.b16 %v261
  %v935 = vunpack.c.l.b16 %v262
  %v936 = vunpack.c.l.b16 %v263
  %v937 = vunpack.c.h.b16 %v263
  %v938 = vunpack.c.l.b16 %v264
  %v939 = vunpack.c.l.b16 %v265
  %v940 = vunpack.c.h.b16 %v265
  %v941 = vunpack.c.l.b16 %v266
  %v942 = vunpack.c.l.b16 %v267
  %v943 = vunpack.c.h.b16 %v267
  %v944 = vunpack.c.l.b16 %v268
  %v945 = vunpack.c.l.b16 %v269
  %v946 = vunpack.c.h.b16 %v269
  %v947 = vunpack.c.l.b16 %v270
  %v948 = vunpack.c.l.b16 %v271
  %v949 = vunpack.c.h.b16 %v271
  %v950 = vunpack.c.l.b16 %v272
  %v951 = vunpack.c.l.b16 %v273
  %v952 = vunpack.c.h.b16 %v273
  %v953 = vunpack.c.l.b16 %v274
  %v954 = vunpack.c.l.b16 %v275
  %v955 = vunpack.c.h.b16 %v275
  %v956 = vunpack.c.l.b16 %v276
  %v957 = vunpack.c.l.b16 %v277
  %v958 = vunpack.c.h.b16 %v277
  %v959 = vunpack.c.l.b16 %v278
  %v960 = vunpack.c.l.b16 %v279
  %v961 = vunpack.c.h.b16 %v279
  %v962 = vunpack.c.l.b16 %v280
  %v963 = vunpack.c.l.b16 %v281
  %v964 = vunpack.c.h.b16 %v281
  %v965 = vunpack.c.l.b16 %v282
  %v966 = vunpack.c.l.b16 %v283
  %v967 = vunpack.c.h.b16 %v283
  %v968 = vunpack.c.l.b16 %v284
  %v969 = vunpack.c.l.b16 %v285
  %v970 = vunpack.c.h.b16 %v285
  %v971 = vunpack.c.l.b16 %v286
  %v972 = vpack.c.b16 %v591, %v588
  %v973 = vpack.c.b16 %v592, %v589
  %v974 = vpack.c.b16 %v593, %v590
  %v975 = vpack.c.b16 %v597, %v594
  %v976 = vpack.c.b16 %v598, %v595
  %v977 = vpack.c.b16 %v599, %v596
  %v978 = vpack.c.b16 %v603, %v600
  %v979 = vpack.c.b16 %v604, %v601
  %v980 = vpack.c.b16 %v605, %v602
  %v981 = vpack.c.b16 %v609, %v606
  %v982 = vpack.c.b16 %v610, %v607
  %v983 = vpack.c.b16 %v611, %v608
  %v984 = vpack.c.b16 %v615, %v612
  %v985 = vpack.c.b16 %v616, %v613
  %v986 = vpack.c.b16 %v617, %v614
  %v987 = vpack.c.b16 %v621, %v618
  %v988 = vpack.c.b16 %v622, %v619
  %v989 = vpack.c.b16 %v623, %v620
  %v990 = vpack.c.b16 %v627, %v624
  %v991 = vpack.c.b16 %v628, %v625
  %v992 = vpack.c.b16 %v629, %v626
  %v993 = vpack.c.b16 %v633, %v630
  %v994 = vpack.c.b16 %v634, %v631
  %v995 = vpack.c.b16 %v635, %v632
  %v996 = vpack.c.b16 %v639, %v636
  %v997 = vpack.c.b16 %v640, %v637
  %v998 = vpack.c.b16 %v641, %v638
  %v999 = vpack.c.b16 %v645, %v642
  %v1000 = vpack.c.b16 %v646, %v643
  %v1001 = vpack.c.b16 %v647, %v644
  %v1002 = vpack.c.b16 %v651, %v648
  %v1003 = vpack.c.b16 %v652, %v649
  %v1004 = vpack.c.b16 %v653, %v650
  %v1005 = vpack.c.b16 %v657, %v654
  %v1006 = vpack.c.b16 %v658, %v655
  %v1007 = vpack.c.b16 %v659, %v656
  %v1008 = vpack.c.b16 %v663, %v660
  %v1009 = vpack.c.b16 %v664, %v661
  %v1010 = vpack.c.b16 %v665, %v662
  %v1011 = vpack.c.b16 %v669, %v666
  %v1012 = vpack.c.b16 %v670, %v667
  %v1013 = vpack.c.b16 %v671, %v668
  %v1014 = vpack.c.b16 %v675, %v672
  %v1015 = vpack.c.b16 %v676, %v673
  %v1016 = vpack.c.b16 %v677, %v674
  %v1017 = vpack.c.b16 %v681, %v678
  %v1018 = vpack.c.b16 %v682, %v679
  %v1019 = vpack.c.b16 %v683, %v680
  %v1020 = vpack.c.b16 %v687, %v684
  %v1021 = vpack.c.b16 %v688, %v685
  %v1022 = vpack.c.b16 %v689, %v686
  %v1023 = vpack.c.b16 %v693, %v690
  %v1024 = vpack.c.b16 %v694, %v691
  %v1025 = vpack.c.b16 %v695, %v692
  %v1026 = vpack.c.b16 %v699, %v696
  %v1027 = vpack.c.b16 %v700, %v697
  %v1028 = vpack.c.b16 %v701, %v698
  %v1029 = vpack.c.b16 %v705, %v702
  %v1030 = vpack.c.b16 %v706, %v703
  %v1031 = vpack.c.b16 %v707, %v704
  %v1032 = vpack.c.b16 %v711, %v708
  %v1033 = vpack.c.b16 %v712, %v709
  %v1034 = vpack.c.b16 %v713, %v710
  %v1035 = vpack.c.b16 %v717, %v714
  %v1036 = vpack.c.b16 %v718, %v715
  %v1037 = vpack.c.b16 %v719, %v716
  %v1038 = vpack.c.b16 %v723, %v720
  %v1039 = vpack.c.b16 %v724, %v721
  %v1040 = vpack.c.b16 %v725, %v722
  %v1041 = vpack.c.b16 %v729, %v726
  %v1042 = vpack.c.b16 %v730, %v727
  %v1043 = vpack.c.b16 %v731, %v728
  %v1044 = vpack.c.b16 %v735, %v732
  %v1045 = vpack.c.b16 %v736, %v733
  %v1046 = vpack.c.b16 %v737, %v734
  %v1047 = vpack.c.b16 %v741, %v738
  %v1048 = vpack.c.b16 %v742, %v739
  %v1049 = vpack.c.b16 %v743, %v740
  %v1050 = vpack.c.b16 %v747, %v744
  %v1051 = vpack.c.b16 %v748, %v745
  %v1052 = vpack.c.b16 %v749, %v746
  %v1053 = vpack.c.b16 %v753, %v750
  %v1054 = vpack.c.b16 %v754, %v751
  %v1055 = vpack.c.b16 %v755, %v752
  %v1056 = vpack.c.b16 %v759, %v756
  %v1057 = vpack.c.b16 %v760, %v757
  %v1058 = vpack.c.b16 %v761, %v758
  %v1059 = vpack.c.b16 %v765, %v762
  %v1060 = vpack.c.b16 %v766, %v763
  %v1061 = vpack.c.b16 %v767, %v764
  %v1062 = vpack.c.b16 %v771, %v768
  %v1063 = vpack.c.b16 %v772, %v769
  %v1064 = vpack.c.b16 %v773, %v770
  %v1065 = vpack.c.b16 %v777, %v774
  %v1066 = vpack.c.b16 %v778, %v775
  %v1067 = vpack.c.b16 %v779, %v776
  %v1068 = vpack.c.b16 %v783, %v780
  %v1069 = vpack.c.b16 %v784, %v781
  %v1070 = vpack.c.b16 %v785, %v782
  %v1071 = vpack.c.b16 %v789, %v786
  %v1072 = vpack.c.b16 %v790, %v787
  %v1073 = vpack.c.b16 %v791, %v788
  %v1074 = vpack.c.b16 %v795, %v792
  %v1075 = vpack.c.b16 %v796, %v793
  %v1076 = vpack.c.b16 %v797, %v794
  %v1077 = vpack.c.b16 %v801, %v798
  %v1078 = vpack.c.b16 %v802, %v799
  %v1079 = vpack.c.b16 %v803, %v800
  %v1080 = vpack.c.b16 %v807, %v804
  %v1081 = vpack.c.b16 %v808, %v805
  %v1082 = vpack.c.b16 %v809, %v806
  %v1083 = vpack.c.b16 %v813, %v810
  %v1084 = vpack.c.b16 %v814, %v811
  %v1085 = vpack.c.b16 %v815, %v812
  %v1086 = vpack.c.b16 %v819, %v816
  %v1087 = vpack.c.b16 %v820, %v817
  %v1088 = vpack.c.b16 %v821, %v818
  %v1089 = vpack.c.b16 %v825, %v822
  %v1090 = vpack.c.b16 %v826, %v823
  %v1091 = vpack.c.b16 %v827, %v824
  %v1092 = vpack.c.b16 %v831, %v828
  %v1093 = vpack.c.b16 %v832, %v829
  %v1094 = vpack.c.b16 %v833, %v830
  %v1095 = vpack.c.b16 %v837, %v834
  %v1096 = vpack.c.b16 %v838, %v835
  %v1097 = vpack.c.b16 %v839, %v836
  %v1098 = vpack.c.b16 %v843, %v840
  %v1099 = vpack.c.b16 %v844, %v841
  %v1100 = vpack.c.b16 %v845, %v842
  %v1101 = vpack.c.b16 %v849, %v846
  %v1102 = vpack.c.b16 %v850, %v847
  %v1103 = vpack.c.b16 %v851, %v848
  %v1104 = vpack.c.b16 %v855, %v852
  %v1105 = vpack.c.b16 %v856, %v853
  %v1106 = vpack.c.b16 %v857, %v854
  %v1107 = vpack.c.b16 %v861, %v858
  %v1108 = vpack.c.b16 %v862, %v859
  %v1109 = vpack.c.b16 %v863, %v860
  %v1110 = vpack.c.b16 %v867, %v864
  %v1111 = vpack.c.b16 %v868, %v865
  %v1112 = vpack.c.b16 %v869, %v866
  %v1113 = vpack.c.b16 %v873, %v870
  %v1114 = vpack.c.b16 %v874, %v871
  %v1115 = vpack.c.b16 %v875, %v872
  %v1116 = vpack.c.b16 %v879, %v876
  %v1117 = vpack.c.b16 %v880, %v877
  %v1118 = vpack.c.b16 %v881, %v878
  %v1119 = vpack.c.b16 %v885, %v882
  %v1120 = vpack.c.b16 %v886, %v883
  %v1121 = vpack.c.b16 %v887, %v884
  %v1122 = vpack.c.b16 %v891, %v888
  %v1123 = vpack.c.b16 %v892, %v889
  %v1124 = vpack.c.b16 %v893, %v890
  %v1125 = vpack.c.b16 %v897, %v894
  %v1126 = vpack.c.b16 %v898, %v895
  %v1127 = vpack.c.b16 %v899, %v896
  %v1128 = vpack.c.b16 %v903, %v900
  %v1129 = vpack.c.b16 %v904, %v901
  %v1130 = vpack.c.b16 %v905, %v902
  %v1131 = vpack.c.b16 %v909, %v906
  %v1132 = vpack.c.b16 %v910, %v907
  %v1133 = vpack.c.b16 %v911, %v908
  %v1134 = vpack.c.b16 %v915, %v912
  %v1135 = vpack.c.b16 %v916, %v913
  %v1136 = vpack.c.b16 %v917, %v914
  %v1137 = vpack.c.b16 %v921, %v918
  %v1138 = vpack.c.b16 %v922, %v919
  %v1139 = vpack.c.b16 %v923, %v920
  %v1140 = vpack.c.b16 %v927, %v924
  %v1141 = vpack.c.b16 %v928, %v925
  %v1142 = vpack.c.b16 %v929, %v926
  %v1143 = vpack.c.b16 %v933, %v930
  %v1144 = vpack.c.b16 %v934, %v931
  %v1145 = vpack.c.b16 %v935, %v932
  %v1146 = vpack.c.b16 %v939, %v936
  %v1147 = vpack.c.b16 %v940, %v937
  %v1148 = vpack.c.b16 %v941, %v938
  %v1149 = vpack.c.b16 %v945, %v942
  %v1150 = vpack.c.b16 %v946, %v943
  %v1151 = vpack.c.b16 %v947, %v944
  %v1152 = vpack.c.b16 %v951, %v948
  %v1153 = vpack.c.b16 %v952, %v949
  %v1154 = vpack.c.b16 %v953, %v950
  %v1155 = vpack.c.b16 %v957, %v954
  %v1156 = vpack.c.b16 %v958, %v955
  %v1157 = vpack.c.b16 %v959, %v956
  %v1158 = vpack.c.b16 %v963, %v960
  %v1159 = vpack.c.b16 %v964, %v961
  %v1160 = vpack.c.b16 %v965, %v962
  %v1161 = vpack.c.b16 %v969, %v966
  %v1162 = vpack.c.b16 %v970, %v967
  %v1163 = vpack.c.b16 %v971, %v968
  %1356 = vmatprep.subr.bf16.mxu0 %v973
  %1357 = vmatpush1.bf16.msra.mxu0 %v972
  %1358 = vmatprep.subr.bf16.mxu0 %v976
  %1359 = vmatpush1.bf16.msra.mxu0 %v975
  %1360 = vmatprep.subr.bf16.mxu0 %v979
  %1361 = vmatpush1.bf16.msra.mxu0 %v978
  %1362 = vmatprep.subr.bf16.mxu0 %v982
  %1363 = vmatpush1.bf16.msra.mxu0 %v981
  %1364 = vmatprep.subr.bf16.mxu0 %v985
  %1365 = vmatpush1.bf16.msra.mxu0 %v984
  %1366 = vmatprep.subr.bf16.mxu0 %v988
  %1367 = vmatpush1.bf16.msra.mxu0 %v987
  %1368 = vmatprep.subr.bf16.mxu0 %v991
  %1369 = vmatpush1.bf16.msra.mxu0 %v990
  %1370 = vmatprep.subr.bf16.mxu0 %v994
  %1371 = vmatpush1.bf16.msra.mxu0 %v993
  %1372 = vmatprep.subr.bf16.mxu0 %v997
  %1373 = vmatpush1.bf16.msra.mxu0 %v996
  %1374 = vmatprep.subr.bf16.mxu0 %v1000
  %1375 = vmatpush1.bf16.msra.mxu0 %v999
  %1376 = vmatprep.subr.bf16.mxu0 %v1003
  %1377 = vmatpush1.bf16.msra.mxu0 %v1002
  %1378 = vmatprep.subr.bf16.mxu0 %v1006
  %1379 = vmatpush1.bf16.msra.mxu0 %v1005
  %1380 = vmatprep.subr.bf16.mxu0 %v1009
  %1381 = vmatpush1.bf16.msra.mxu0 %v1008
  %1382 = vmatprep.subr.bf16.mxu0 %v1012
  %1383 = vmatpush1.bf16.msra.mxu0 %v1011
  %1384 = vmatprep.subr.bf16.mxu0 %v1015
  %1385 = vmatpush1.bf16.msra.mxu0 %v1014
  %1386 = vmatprep.subr.bf16.mxu0 %v1018
  %1387 = vmatpush1.bf16.msra.mxu0 %v1017
  %1388 = vmatprep.mubr.bf16.mxu0 %v317
  %1389 = vmatmul.mubr.bf16.gmra.mrb[0].mxu0 %v316
  %v1390 = vpop.f32.mrb[0].mxu0
  %v1391 = vadd.f32 %v292, %v1390
  %v1392 = vpop.f32.mrb[0].mxu0
  %v1393 = vadd.f32 %v296, %v1392
  %v1394 = vpop.f32.mrb[0].mxu0
  %v1395 = vpop.f32.mrb[0].mxu0
  %1396 = vdwg.mxu0
  %1397 = vmatprep.subr.bf16.mxu0 %v1021
  %1398 = vmatpush1.bf16.msra.mxu0 %v1020
  %1399 = vmatprep.subr.bf16.mxu0 %v1024
  %1400 = vmatpush1.bf16.msra.mxu0 %v1023
  %1401 = vmatprep.subr.bf16.mxu0 %v1027
  %1402 = vmatpush1.bf16.msra.mxu0 %v1026
  %1403 = vmatprep.subr.bf16.mxu0 %v1030
  %1404 = vmatpush1.bf16.msra.mxu0 %v1029
  %1405 = vmatprep.subr.bf16.mxu0 %v1033
  %1406 = vmatpush1.bf16.msra.mxu0 %v1032
  %1407 = vmatprep.subr.bf16.mxu0 %v1036
  %1408 = vmatpush1.bf16.msra.mxu0 %v1035
  %1409 = vmatprep.subr.bf16.mxu0 %v1039
  %1410 = vmatpush1.bf16.msra.mxu0 %v1038
  %1411 = vmatprep.subr.bf16.mxu0 %v1042
  %1412 = vmatpush1.bf16.msra.mxu0 %v1041
  %1413 = vmatprep.subr.bf16.mxu0 %v1045
  %1414 = vmatpush1.bf16.msra.mxu0 %v1044
  %1415 = vmatprep.subr.bf16.mxu0 %v1048
  %1416 = vmatpush1.bf16.msra.mxu0 %v1047
  %1417 = vmatprep.subr.bf16.mxu0 %v1051
  %1418 = vmatpush1.bf16.msra.mxu0 %v1050
  %1419 = vmatprep.subr.bf16.mxu0 %v1054
  %1420 = vmatpush1.bf16.msra.mxu0 %v1053
  %1421 = vmatprep.subr.bf16.mxu0 %v1057
  %1422 = vmatpush1.bf16.msra.mxu0 %v1056
  %1423 = vmatprep.subr.bf16.mxu0 %v1060
  %1424 = vmatpush1.bf16.msra.mxu0 %v1059
  %1425 = vmatprep.subr.bf16.mxu0 %v1063
  %1426 = vmatpush1.bf16.msra.mxu0 %v1062
  %1427 = vmatprep.subr.bf16.mxu0 %v1066
  %1428 = vmatpush1.bf16.msra.mxu0 %v1065
  %1429 = vmatprep.mubr.bf16.mxu0 %v319
  %1430 = vmatmul.mubr.bf16.gmra.mrb[0].mxu0 %v318
  %v1431 = vpop.f32.mrb[0].mxu0
  %v1432 = vadd.f32 %v1391, %v1431
  %v1433 = vpop.f32.mrb[0].mxu0
  %v1434 = vadd.f32 %v1393, %v1433
  %v1435 = vpop.f32.mrb[0].mxu0
  %v1436 = vpop.f32.mrb[0].mxu0
  %1437 = vdwg.mxu0
  %1438 = vmatprep.subr.bf16.mxu0 %v1069
  %1439 = vmatpush1.bf16.msra.mxu0 %v1068
  %1440 = vmatprep.subr.bf16.mxu0 %v1072
  %1441 = vmatpush1.bf16.msra.mxu0 %v1071
  %1442 = vmatprep.subr.bf16.mxu0 %v1075
  %1443 = vmatpush1.bf16.msra.mxu0 %v1074
  %1444 = vmatprep.subr.bf16.mxu0 %v1078
  %1445 = vmatpush1.bf16.msra.mxu0 %v1077
  %1446 = vmatprep.subr.bf16.mxu0 %v1081
  %1447 = vmatpush1.bf16.msra.mxu0 %v1080
  %1448 = vmatprep.subr.bf16.mxu0 %v1084
  %1449 = vmatpush1.bf16.msra.mxu0 %v1083
  %1450 = vmatprep.subr.bf16.mxu0 %v1087
  %1451 = vmatpush1.bf16.msra.mxu0 %v1086
  %1452 = vmatprep.subr.bf16.mxu0 %v1090
  %1453 = vmatpush1.bf16.msra.mxu0 %v1089
  %1454 = vmatprep.subr.bf16.mxu0 %v1093
  %1455 = vmatpush1.bf16.msra.mxu0 %v1092
  %1456 = vmatprep.subr.bf16.mxu0 %v1096
  %1457 = vmatpush1.bf16.msra.mxu0 %v1095
  %1458 = vmatprep.subr.bf16.mxu0 %v1099
  %1459 = vmatpush1.bf16.msra.mxu0 %v1098
  %1460 = vmatprep.subr.bf16.mxu0 %v1102
  %1461 = vmatpush1.bf16.msra.mxu0 %v1101
  %1462 = vmatprep.subr.bf16.mxu0 %v1105
  %1463 = vmatpush1.bf16.msra.mxu0 %v1104
  %1464 = vmatprep.subr.bf16.mxu0 %v1108
  %1465 = vmatpush1.bf16.msra.mxu0 %v1107
  %1466 = vmatprep.subr.bf16.mxu0 %v1111
  %1467 = vmatpush1.bf16.msra.mxu0 %v1110
  %1468 = vmatprep.subr.bf16.mxu0 %v1114
  %1469 = vmatpush1.bf16.msra.mxu0 %v1113
  %1470 = vmatprep.mubr.bf16.mxu0 %v321
  %1471 = vmatmul.mubr.bf16.gmra.mrb[0].mxu0 %v320
  %v1472 = vpop.f32.mrb[0].mxu0
  %v1473 = vadd.f32 %v1432, %v1472
  %v1474 = vpop.f32.mrb[0].mxu0
  %v1475 = vadd.f32 %v1434, %v1474
  %v1476 = vpop.f32.mrb[0].mxu0
  %v1477 = vpop.f32.mrb[0].mxu0
  %1478 = vdwg.mxu0
  %1479 = vmatprep.subr.bf16.mxu0 %v1117
  %1480 = vmatpush1.bf16.msra.mxu0 %v1116
  %1481 = vmatprep.subr.bf16.mxu0 %v1120
  %1482 = vmatpush1.bf16.msra.mxu0 %v1119
  %1483 = vmatprep.subr.bf16.mxu0 %v1123
  %1484 = vmatpush1.bf16.msra.mxu0 %v1122
  %1485 = vmatprep.subr.bf16.mxu0 %v1126
  %1486 = vmatpush1.bf16.msra.mxu0 %v1125
  %1487 = vmatprep.subr.bf16.mxu0 %v1129
  %1488 = vmatpush1.bf16.msra.mxu0 %v1128
  %1489 = vmatprep.subr.bf16.mxu0 %v1132
  %1490 = vmatpush1.bf16.msra.mxu0 %v1131
  %1491 = vmatprep.subr.bf16.mxu0 %v1135
  %1492 = vmatpush1.bf16.msra.mxu0 %v1134
  %1493 = vmatprep.subr.bf16.mxu0 %v1138
  %1494 = vmatpush1.bf16.msra.mxu0 %v1137
  %1495 = vmatprep.subr.bf16.mxu0 %v1141
  %1496 = vmatpush1.bf16.msra.mxu0 %v1140
  %1497 = vmatprep.subr.bf16.mxu0 %v1144
  %1498 = vmatpush1.bf16.msra.mxu0 %v1143
  %1499 = vmatprep.subr.bf16.mxu0 %v1147
  %1500 = vmatpush1.bf16.msra.mxu0 %v1146
  %1501 = vmatprep.subr.bf16.mxu0 %v1150
  %1502 = vmatpush1.bf16.msra.mxu0 %v1149
  %1503 = vmatprep.subr.bf16.mxu0 %v1153
  %1504 = vmatpush1.bf16.msra.mxu0 %v1152
  %1505 = vmatprep.subr.bf16.mxu0 %v1156
  %1506 = vmatpush1.bf16.msra.mxu0 %v1155
  %1507 = vmatprep.subr.bf16.mxu0 %v1159
  %1508 = vmatpush1.bf16.msra.mxu0 %v1158
  %1509 = vmatprep.subr.bf16.mxu0 %v1162
  %1510 = vmatpush1.bf16.msra.mxu0 %v1161
  %1511 = vmatprep.mubr.bf16.mxu0 %v323
  %1512 = vmatmul.mubr.bf16.gmra.mrb[0].mxu0 %v322
  %v1513 = vpop.f32.mrb[0].mxu0
  %v1514 = vadd.f32 %v1473, %v1513
  %v1515 = vpop.f32.mrb[0].mxu0
  %v1516 = vadd.f32 %v1475, %v1515
  %v1517 = vpop.f32.mrb[0].mxu0
  %v1518 = vpop.f32.mrb[0].mxu0
  %1519 = vdwg.mxu0
  %1520 = vmatprep.subr.bf16.mxu0 0
  %1521 = vmatpush1.bf16.msra.mxu0 %v974
  %1522 = vmatprep.subr.bf16.mxu0 0
  %1523 = vmatpush1.bf16.msra.mxu0 %v977
  %1524 = vmatprep.subr.bf16.mxu0 0
  %1525 = vmatpush1.bf16.msra.mxu0 %v980
  %1526 = vmatprep.subr.bf16.mxu0 0
  %1527 = vmatpush1.bf16.msra.mxu0 %v983
  %1528 = vmatprep.subr.bf16.mxu0 0
  %1529 = vmatpush1.bf16.msra.mxu0 %v986
  %1530 = vmatprep.subr.bf16.mxu0 0
  %1531 = vmatpush1.bf16.msra.mxu0 %v989
  %1532 = vmatprep.subr.bf16.mxu0 0
  %1533 = vmatpush1.bf16.msra.mxu0 %v992
  %1534 = vmatprep.subr.bf16.mxu0 0
  %1535 = vmatpush1.bf16.msra.mxu0 %v995
  %1536 = vmatprep.subr.bf16.mxu0 0
  %1537 = vmatpush1.bf16.msra.mxu0 %v998
  %1538 = vmatprep.subr.bf16.mxu0 0
  %1539 = vmatpush1.bf16.msra.mxu0 %v1001
  %1540 = vmatprep.subr.bf16.mxu0 0
  %1541 = vmatpush1.bf16.msra.mxu0 %v1004
  %1542 = vmatprep.subr.bf16.mxu0 0
  %1543 = vmatpush1.bf16.msra.mxu0 %v1007
  %1544 = vmatprep.subr.bf16.mxu0 0
  %1545 = vmatpush1.bf16.msra.mxu0 %v1010
  %1546 = vmatprep.subr.bf16.mxu0 0
  %1547 = vmatpush1.bf16.msra.mxu0 %v1013
  %1548 = vmatprep.subr.bf16.mxu0 0
  %1549 = vmatpush1.bf16.msra.mxu0 %v1016
  %1550 = vmatprep.subr.bf16.mxu0 0
  %1551 = vmatpush1.bf16.msra.mxu0 %v1019
  %1552 = vmatprep.mubr.bf16.mxu0 %v317
  %1553 = vmatmul.mubr.bf16.gmra.mrb[0].mxu0 %v316
  %v1554 = vpop.f32.mrb[0].mxu0
  %v1555 = vadd.f32 %v300, %v1554
  %v1556 = vpop.f32.mrb[0].mxu0
  %v1557 = vpop.f32.mrb[0].mxu0
  %v1558 = vpop.f32.mrb[0].mxu0
  %1559 = vdwg.mxu0
  %1560 = vmatprep.subr.bf16.mxu0 0
  %1561 = vmatpush1.bf16.msra.mxu0 %v1022
  %1562 = vmatprep.subr.bf16.mxu0 0
  %1563 = vmatpush1.bf16.msra.mxu0 %v1025
  %1564 = vmatprep.subr.bf16.mxu0 0
  %1565 = vmatpush1.bf16.msra.mxu0 %v1028
  %1566 = vmatprep.subr.bf16.mxu0 0
  %1567 = vmatpush1.bf16.msra.mxu0 %v1031
  %1568 = vmatprep.subr.bf16.mxu0 0
  %1569 = vmatpush1.bf16.msra.mxu0 %v1034
  %1570 = vmatprep.subr.bf16.mxu0 0
  %1571 = vmatpush1.bf16.msra.mxu0 %v1037
  %1572 = vmatprep.subr.bf16.mxu0 0
  %1573 = vmatpush1.bf16.msra.mxu0 %v1040
  %1574 = vmatprep.subr.bf16.mxu0 0
  %1575 = vmatpush1.bf16.msra.mxu0 %v1043
  %1576 = vmatprep.subr.bf16.mxu0 0
  %1577 = vmatpush1.bf16.msra.mxu0 %v1046
  %1578 = vmatprep.subr.bf16.mxu0 0
  %1579 = vmatpush1.bf16.msra.mxu0 %v1049
  %1580 = vmatprep.subr.bf16.mxu0 0
  %1581 = vmatpush1.bf16.msra.mxu0 %v1052
  %1582 = vmatprep.subr.bf16.mxu0 0
  %1583 = vmatpush1.bf16.msra.mxu0 %v1055
  %1584 = vmatprep.subr.bf16.mxu0 0
  %1585 = vmatpush1.bf16.msra.mxu0 %v1058
  %1586 = vmatprep.subr.bf16.mxu0 0
  %1587 = vmatpush1.bf16.msra.mxu0 %v1061
  %1588 = vmatprep.subr.bf16.mxu0 0
  %1589 = vmatpush1.bf16.msra.mxu0 %v1064
  %1590 = vmatprep.subr.bf16.mxu0 0
  %1591 = vmatpush1.bf16.msra.mxu0 %v1067
  %1592 = vmatprep.mubr.bf16.mxu0 %v319
  %1593 = vmatmul.mubr.bf16.gmra.mrb[0].mxu0 %v318
  %v1594 = vpop.f32.mrb[0].mxu0
  %v1595 = vadd.f32 %v1555, %v1594
  %v1596 = vpop.f32.mrb[0].mxu0
  %v1597 = vpop.f32.mrb[0].mxu0
  %v1598 = vpop.f32.mrb[0].mxu0
  %1599 = vdwg.mxu0
  %1600 = vmatprep.subr.bf16.mxu0 0
  %1601 = vmatpush1.bf16.msra.mxu0 %v1070
  %1602 = vmatprep.subr.bf16.mxu0 0
  %1603 = vmatpush1.bf16.msra.mxu0 %v1073
  %1604 = vmatprep.subr.bf16.mxu0 0
  %1605 = vmatpush1.bf16.msra.mxu0 %v1076
  %1606 = vmatprep.subr.bf16.mxu0 0
  %1607 = vmatpush1.bf16.msra.mxu0 %v1079
  %1608 = vmatprep.subr.bf16.mxu0 0
  %1609 = vmatpush1.bf16.msra.mxu0 %v1082
  %1610 = vmatprep.subr.bf16.mxu0 0
  %1611 = vmatpush1.bf16.msra.mxu0 %v1085
  %1612 = vmatprep.subr.bf16.mxu0 0
  %1613 = vmatpush1.bf16.msra.mxu0 %v1088
  %1614 = vmatprep.subr.bf16.mxu0 0
  %1615 = vmatpush1.bf16.msra.mxu0 %v1091
  %1616 = vmatprep.subr.bf16.mxu0 0
  %1617 = vmatpush1.bf16.msra.mxu0 %v1094
  %1618 = vmatprep.subr.bf16.mxu0 0
  %1619 = vmatpush1.bf16.msra.mxu0 %v1097
  %1620 = vmatprep.subr.bf16.mxu0 0
  %1621 = vmatpush1.bf16.msra.mxu0 %v1100
  %1622 = vmatprep.subr.bf16.mxu0 0
  %1623 = vmatpush1.bf16.msra.mxu0 %v1103
  %1624 = vmatprep.subr.bf16.mxu0 0
  %1625 = vmatpush1.bf16.msra.mxu0 %v1106
  %1626 = vmatprep.subr.bf16.mxu0 0
  %1627 = vmatpush1.bf16.msra.mxu0 %v1109
  %1628 = vmatprep.subr.bf16.mxu0 0
  %1629 = vmatpush1.bf16.msra.mxu0 %v1112
  %1630 = vmatprep.subr.bf16.mxu0 0
  %1631 = vmatpush1.bf16.msra.mxu0 %v1115
  %1632 = vmatprep.mubr.bf16.mxu0 %v321
  %1633 = vmatmul.mubr.bf16.gmra.mrb[0].mxu0 %v320
  %v1634 = vpop.f32.mrb[0].mxu0
  %v1635 = vadd.f32 %v1595, %v1634
  %v1636 = vpop.f32.mrb[0].mxu0
  %v1637 = vpop.f32.mrb[0].mxu0
  %v1638 = vpop.f32.mrb[0].mxu0
  %1639 = vdwg.mxu0
  %1640 = vmatprep.subr.bf16.mxu0 0
  %1641 = vmatpush1.bf16.msra.mxu0 %v1118
  %1642 = vmatprep.subr.bf16.mxu0 0
  %1643 = vmatpush1.bf16.msra.mxu0 %v1121
  %1644 = vmatprep.subr.bf16.mxu0 0
  %1645 = vmatpush1.bf16.msra.mxu0 %v1124
  %1646 = vmatprep.subr.bf16.mxu0 0
  %1647 = vmatpush1.bf16.msra.mxu0 %v1127
  %1648 = vmatprep.subr.bf16.mxu0 0
  %1649 = vmatpush1.bf16.msra.mxu0 %v1130
  %1650 = vmatprep.subr.bf16.mxu0 0
  %1651 = vmatpush1.bf16.msra.mxu0 %v1133
  %1652 = vmatprep.subr.bf16.mxu0 0
  %1653 = vmatpush1.bf16.msra.mxu0 %v1136
  %1654 = vmatprep.subr.bf16.mxu0 0
  %1655 = vmatpush1.bf16.msra.mxu0 %v1139
  %1656 = vmatprep.subr.bf16.mxu0 0
  %1657 = vmatpush1.bf16.msra.mxu0 %v1142
  %1658 = vmatprep.subr.bf16.mxu0 0
  %1659 = vmatpush1.bf16.msra.mxu0 %v1145
  %1660 = vmatprep.subr.bf16.mxu0 0
  %1661 = vmatpush1.bf16.msra.mxu0 %v1148
  %1662 = vmatprep.subr.bf16.mxu0 0
  %1663 = vmatpush1.bf16.msra.mxu0 %v1151
  %1664 = vmatprep.subr.bf16.mxu0 0
  %1665 = vmatpush1.bf16.msra.mxu0 %v1154
  %1666 = vmatprep.subr.bf16.mxu0 0
  %1667 = vmatpush1.bf16.msra.mxu0 %v1157
  %1668 = vmatprep.subr.bf16.mxu0 0
  %1669 = vmatpush1.bf16.msra.mxu0 %v1160
  %1670 = vmatprep.subr.bf16.mxu0 0
  %1671 = vmatpush1.bf16.msra.mxu0 %v1163
  %1672 = vmatprep.mubr.bf16.mxu0 %v323
  %1673 = vmatmul.mubr.bf16.gmra.mrb[0].mxu0 %v322
  %v1674 = vpop.f32.mrb[0].mxu0
  %v1675 = vadd.f32 %v1635, %v1674
  %v1676 = vpop.f32.mrb[0].mxu0
  %v1677 = vpop.f32.mrb[0].mxu0
  %v1678 = vpop.f32.mrb[0].mxu0
  %1679 = vdwg.mxu0
  %v1680 = vmax.f32 %v1514, 0.0
  %v1681 = vmax.f32 %v1516, 0.0
  %v1682 = vmax.f32 %v1675, 0.0
  %v1683 = vpack.c.bf16 %v1680, %v1680
  %v1684 = vpack.c.bf16 %v1681, %v1681
  %v1685 = vpack.c.bf16 %v1682, %v1682
  %v1686 = vld [vmem:[%s3] sm:$0xff]
  %v1687 = vld [vmem:[%s3 + $0x8] sm:$0xff]
  %v1688 = vld [vmem:[%s3 + $0x10] sm:$0xff]
  %v1689 = vld [vmem:[%s3 + $0x18] sm:$0xff]
  %v1690 = vld [vmem:[%s3 + $0x20] sm:$0xff]
  %v1691 = vld [vmem:[%s3 + $0x28] sm:$0xff]
  %v1692 = vld [vmem:[%s3 + $0x30] sm:$0xff]
  %v1693 = vld [vmem:[%s3 + $0x38] sm:$0xff]
  %v1694 = vld [vmem:[%s3 + $0x40] sm:$0xff]
  %v1695 = vld [vmem:[%s3 + $0x48] sm:$0xff]
  %v1696 = vld [vmem:[%s3 + $0x50] sm:$0xff]
  %v1697 = vld [vmem:[%s3 + $0x58] sm:$0xff]
  %v1698 = vld [vmem:[%s3 + $0x60] sm:$0xff]
  %v1699 = vld [vmem:[%s3 + $0x68] sm:$0xff]
  %v1700 = vld [vmem:[%s3 + $0x70] sm:$0xff]
  %v1701 = vld [vmem:[%s3 + $0x78] sm:$0xff]
  %v1702 = vld [vmem:[%s3 + $0x80] sm:$0xff]
  %v1703 = vld [vmem:[%s3 + $0x88] sm:$0xff]
  %v1704 = vld [vmem:[%s3 + $0x90] sm:$0xff]
  %v1705 = vld [vmem:[%s3 + $0x98] sm:$0xff]
  %v1706 = vld [vmem:[%s3 + $0xa0] sm:$0xff]
  %v1707 = vld [vmem:[%s3 + $0xa8] sm:$0xff]
  %v1708 = vld [vmem:[%s3 + $0xb0] sm:$0xff]
  %v1709 = vld [vmem:[%s3 + $0xb8] sm:$0xff]
  %v1710 = vld [vmem:[%s3 + $0xc0] sm:$0xff]
  %v1711 = vld [vmem:[%s3 + $0xc8] sm:$0xff]
  %v1712 = vld [vmem:[%s3 + $0xd0] sm:$0xff]
  %v1713 = vld [vmem:[%s3 + $0xd8] sm:$0xff]
  %v1714 = vld [vmem:[%s3 + $0xe0] sm:$0xff]
  %v1715 = vld [vmem:[%s3 + $0xe8] sm:$0xff]
  %v1716 = vld [vmem:[%s3 + $0xf0] sm:$0xff]
  %v1717 = vld [vmem:[%s3 + $0xf8] sm:$0xff]
  %v1718 = vld [vmem:[%s3 + $0x100] sm:$0xff]
  %v1719 = vld [vmem:[%s3 + $0x108] sm:$0xff]
  %v1720 = vld [vmem:[%s3 + $0x110] sm:$0xff]
  %v1721 = vld [vmem:[%s3 + $0x118] sm:$0xff]
  %v1722 = vld [vmem:[%s3 + $0x120] sm:$0xff]
  %v1723 = vld [vmem:[%s3 + $0x128] sm:$0xff]
  %v1724 = vld [vmem:[%s3 + $0x130] sm:$0xff]
  %v1725 = vld [vmem:[%s3 + $0x138] sm:$0xff]
  %v1726 = vld [vmem:[%s3 + $0x140] sm:$0xff]
  %v1727 = vld [vmem:[%s3 + $0x148] sm:$0xff]
  %v1728 = vld [vmem:[%s3 + $0x150] sm:$0xff]
  %v1729 = vld [vmem:[%s3 + $0x158] sm:$0xff]
  %v1730 = vld [vmem:[%s3 + $0x160] sm:$0xff]
  %v1731 = vld [vmem:[%s3 + $0x168] sm:$0xff]
  %v1732 = vld [vmem:[%s3 + $0x170] sm:$0xff]
  %v1733 = vld [vmem:[%s3 + $0x178] sm:$0xff]
  %v1734 = vld [vmem:[%s4] sm:$0x3]
  %v1736 = vlaneseq
  %v1737 = vshrl.u32 %v1736, 7
  %v1738 = vsub.s32 0, %v1737
  %v1739 = vrot.slane %v1734, %v1738
  %v1740 = vlaneseq
  %v1741 = vshrl.u32 %v1740, 7
  %v1742 = vsub.s32 1, %v1741
  %v1743 = vrot.slane %v1734, %v1742
  %v1794 = vunpack.c.l.b16 %v1686
  %v1795 = vunpack.c.h.b16 %v1686
  %v1796 = vunpack.c.l.b16 %v1687
  %v1797 = vunpack.c.h.b16 %v1687
  %v1798 = vunpack.c.l.b16 %v1688
  %v1799 = vunpack.c.h.b16 %v1688
  %v1800 = vunpack.c.l.b16 %v1689
  %v1801 = vunpack.c.h.b16 %v1689
  %v1802 = vunpack.c.l.b16 %v1690
  %v1803 = vunpack.c.h.b16 %v1690
  %v1804 = vunpack.c.l.b16 %v1691
  %v1805 = vunpack.c.h.b16 %v1691
  %v1806 = vunpack.c.l.b16 %v1692
  %v1807 = vunpack.c.h.b16 %v1692
  %v1808 = vunpack.c.l.b16 %v1693
  %v1809 = vunpack.c.h.b16 %v1693
  %v1810 = vunpack.c.l.b16 %v1694
  %v1811 = vunpack.c.h.b16 %v1694
  %v1812 = vunpack.c.l.b16 %v1695
  %v1813 = vunpack.c.h.b16 %v1695
  %v1814 = vunpack.c.l.b16 %v1696
  %v1815 = vunpack.c.h.b16 %v1696
  %v1816 = vunpack.c.l.b16 %v1697
  %v1817 = vunpack.c.h.b16 %v1697
  %v1818 = vunpack.c.l.b16 %v1698
  %v1819 = vunpack.c.h.b16 %v1698
  %v1820 = vunpack.c.l.b16 %v1699
  %v1821 = vunpack.c.h.b16 %v1699
  %v1822 = vunpack.c.l.b16 %v1700
  %v1823 = vunpack.c.h.b16 %v1700
  %v1824 = vunpack.c.l.b16 %v1701
  %v1825 = vunpack.c.h.b16 %v1701
  %v1826 = vunpack.c.l.b16 %v1702
  %v1827 = vunpack.c.h.b16 %v1702
  %v1828 = vunpack.c.l.b16 %v1703
  %v1829 = vunpack.c.h.b16 %v1703
  %v1830 = vunpack.c.l.b16 %v1704
  %v1831 = vunpack.c.h.b16 %v1704
  %v1832 = vunpack.c.l.b16 %v1705
  %v1833 = vunpack.c.h.b16 %v1705
  %v1834 = vunpack.c.l.b16 %v1706
  %v1835 = vunpack.c.h.b16 %v1706
  %v1836 = vunpack.c.l.b16 %v1707
  %v1837 = vunpack.c.h.b16 %v1707
  %v1838 = vunpack.c.l.b16 %v1708
  %v1839 = vunpack.c.h.b16 %v1708
  %v1840 = vunpack.c.l.b16 %v1709
  %v1841 = vunpack.c.h.b16 %v1709
  %v1842 = vunpack.c.l.b16 %v1710
  %v1843 = vunpack.c.h.b16 %v1710
  %v1844 = vunpack.c.l.b16 %v1711
  %v1845 = vunpack.c.h.b16 %v1711
  %v1846 = vunpack.c.l.b16 %v1712
  %v1847 = vunpack.c.h.b16 %v1712
  %v1848 = vunpack.c.l.b16 %v1713
  %v1849 = vunpack.c.h.b16 %v1713
  %v1850 = vunpack.c.l.b16 %v1714
  %v1851 = vunpack.c.h.b16 %v1714
  %v1852 = vunpack.c.l.b16 %v1715
  %v1853 = vunpack.c.h.b16 %v1715
  %v1854 = vunpack.c.l.b16 %v1716
  %v1855 = vunpack.c.h.b16 %v1716
  %v1856 = vunpack.c.l.b16 %v1717
  %v1857 = vunpack.c.h.b16 %v1717
  %v1858 = vunpack.c.l.b16 %v1718
  %v1859 = vunpack.c.h.b16 %v1718
  %v1860 = vunpack.c.l.b16 %v1719
  %v1861 = vunpack.c.h.b16 %v1719
  %v1862 = vunpack.c.l.b16 %v1720
  %v1863 = vunpack.c.h.b16 %v1720
  %v1864 = vunpack.c.l.b16 %v1721
  %v1865 = vunpack.c.h.b16 %v1721
  %v1866 = vunpack.c.l.b16 %v1722
  %v1867 = vunpack.c.h.b16 %v1722
  %v1868 = vunpack.c.l.b16 %v1723
  %v1869 = vunpack.c.h.b16 %v1723
  %v1870 = vunpack.c.l.b16 %v1724
  %v1871 = vunpack.c.h.b16 %v1724
  %v1872 = vunpack.c.l.b16 %v1725
  %v1873 = vunpack.c.h.b16 %v1725
  %v1874 = vunpack.c.l.b16 %v1726
  %v1875 = vunpack.c.h.b16 %v1726
  %v1876 = vunpack.c.l.b16 %v1727
  %v1877 = vunpack.c.h.b16 %v1727
  %v1878 = vunpack.c.l.b16 %v1728
  %v1879 = vunpack.c.h.b16 %v1728
  %v1880 = vunpack.c.l.b16 %v1729
  %v1881 = vunpack.c.h.b16 %v1729
  %v1882 = vunpack.c.l.b16 %v1730
  %v1883 = vunpack.c.h.b16 %v1730
  %v1884 = vunpack.c.l.b16 %v1731
  %v1885 = vunpack.c.h.b16 %v1731
  %v1886 = vunpack.c.l.b16 %v1732
  %v1887 = vunpack.c.h.b16 %v1732
  %v1888 = vunpack.c.l.b16 %v1733
  %v1889 = vunpack.c.h.b16 %v1733
  %v1890 = vpack.c.b16 %v1796, %v1794
  %v1891 = vpack.c.b16 %v1797, %v1795
  %v1892 = vpack.c.b16 %v1800, %v1798
  %v1893 = vpack.c.b16 %v1801, %v1799
  %v1894 = vpack.c.b16 %v1804, %v1802
  %v1895 = vpack.c.b16 %v1805, %v1803
  %v1896 = vpack.c.b16 %v1808, %v1806
  %v1897 = vpack.c.b16 %v1809, %v1807
  %v1898 = vpack.c.b16 %v1812, %v1810
  %v1899 = vpack.c.b16 %v1813, %v1811
  %v1900 = vpack.c.b16 %v1816, %v1814
  %v1901 = vpack.c.b16 %v1817, %v1815
  %v1902 = vpack.c.b16 %v1820, %v1818
  %v1903 = vpack.c.b16 %v1821, %v1819
  %v1904 = vpack.c.b16 %v1824, %v1822
  %v1905 = vpack.c.b16 %v1825, %v1823
  %v1906 = vpack.c.b16 %v1828, %v1826
  %v1907 = vpack.c.b16 %v1829, %v1827
  %v1908 = vpack.c.b16 %v1832, %v1830
  %v1909 = vpack.c.b16 %v1833, %v1831
  %v1910 = vpack.c.b16 %v1836, %v1834
  %v1911 = vpack.c.b16 %v1837, %v1835
  %v1912 = vpack.c.b16 %v1840, %v1838
  %v1913 = vpack.c.b16 %v1841, %v1839
  %v1914 = vpack.c.b16 %v1844, %v1842
  %v1915 = vpack.c.b16 %v1845, %v1843
  %v1916 = vpack.c.b16 %v1848, %v1846
  %v1917 = vpack.c.b16 %v1849, %v1847
  %v1918 = vpack.c.b16 %v1852, %v1850
  %v1919 = vpack.c.b16 %v1853, %v1851
  %v1920 = vpack.c.b16 %v1856, %v1854
  %v1921 = vpack.c.b16 %v1857, %v1855
  %v1922 = vpack.c.b16 %v1860, %v1858
  %v1923 = vpack.c.b16 %v1861, %v1859
  %v1924 = vpack.c.b16 %v1864, %v1862
  %v1925 = vpack.c.b16 %v1865, %v1863
  %v1926 = vpack.c.b16 %v1868, %v1866
  %v1927 = vpack.c.b16 %v1869, %v1867
  %v1928 = vpack.c.b16 %v1872, %v1870
  %v1929 = vpack.c.b16 %v1873, %v1871
  %v1930 = vpack.c.b16 %v1876, %v1874
  %v1931 = vpack.c.b16 %v1877, %v1875
  %v1932 = vpack.c.b16 %v1880, %v1878
  %v1933 = vpack.c.b16 %v1881, %v1879
  %v1934 = vpack.c.b16 %v1884, %v1882
  %v1935 = vpack.c.b16 %v1885, %v1883
  %v1936 = vpack.c.b16 %v1888, %v1886
  %v1937 = vpack.c.b16 %v1889, %v1887
  %1986 = vmatprep.subr.bf16.mxu0 %v1891
  %1987 = vmatpush1.bf16.msra.mxu0 %v1890
  %1988 = vmatprep.subr.bf16.mxu0 %v1893
  %1989 = vmatpush1.bf16.msra.mxu0 %v1892
  %1990 = vmatprep.subr.bf16.mxu0 %v1895
  %1991 = vmatpush1.bf16.msra.mxu0 %v1894
  %1992 = vmatprep.subr.bf16.mxu0 %v1897
  %1993 = vmatpush1.bf16.msra.mxu0 %v1896
  %1994 = vmatprep.subr.bf16.mxu0 %v1899
  %1995 = vmatpush1.bf16.msra.mxu0 %v1898
  %1996 = vmatprep.subr.bf16.mxu0 %v1901
  %1997 = vmatpush1.bf16.msra.mxu0 %v1900
  %1998 = vmatprep.subr.bf16.mxu0 %v1903
  %1999 = vmatpush1.bf16.msra.mxu0 %v1902
  %2000 = vmatprep.subr.bf16.mxu0 %v1905
  %2001 = vmatpush1.bf16.msra.mxu0 %v1904
  %2002 = vmatprep.subr.bf16.mxu0 %v1907
  %2003 = vmatpush1.bf16.msra.mxu0 %v1906
  %2004 = vmatprep.subr.bf16.mxu0 %v1909
  %2005 = vmatpush1.bf16.msra.mxu0 %v1908
  %2006 = vmatprep.subr.bf16.mxu0 %v1911
  %2007 = vmatpush1.bf16.msra.mxu0 %v1910
  %2008 = vmatprep.subr.bf16.mxu0 %v1913
  %2009 = vmatpush1.bf16.msra.mxu0 %v1912
  %2010 = vmatprep.subr.bf16.mxu0 %v1915
  %2011 = vmatpush1.bf16.msra.mxu0 %v1914
  %2012 = vmatprep.subr.bf16.mxu0 %v1917
  %2013 = vmatpush1.bf16.msra.mxu0 %v1916
  %2014 = vmatprep.subr.bf16.mxu0 %v1919
  %2015 = vmatpush1.bf16.msra.mxu0 %v1918
  %2016 = vmatprep.subr.bf16.mxu0 %v1921
  %2017 = vmatpush1.bf16.msra.mxu0 %v1920
  %2018 = vmatprep.mubr.bf16.mxu0 %v1684
  %2019 = vmatmul.mubr.bf16.gmra.mrb[0].mxu0 %v1683
  %v2020 = vpop.f32.mrb[0].mxu0
  %v2021 = vadd.f32 %v1739, %v2020
  %v2022 = vpop.f32.mrb[0].mxu0
  %v2023 = vadd.f32 %v1743, %v2022
  %v2024 = vpop.f32.mrb[0].mxu0
  %v2025 = vpop.f32.mrb[0].mxu0
  %2026 = vdwg.mxu0
  %2027 = vmatprep.subr.bf16.mxu0 %v1923
  %2028 = vmatpush1.bf16.msra.mxu0 %v1922
  %2029 = vmatprep.subr.bf16.mxu0 %v1925
  %2030 = vmatpush1.bf16.msra.mxu0 %v1924
  %2031 = vmatprep.subr.bf16.mxu0 %v1927
  %2032 = vmatpush1.bf16.msra.mxu0 %v1926
  %2033 = vmatprep.subr.bf16.mxu0 %v1929
  %2034 = vmatpush1.bf16.msra.mxu0 %v1928
  %2035 = vmatprep.subr.bf16.mxu0 %v1931
  %2036 = vmatpush1.bf16.msra.mxu0 %v1930
  %2037 = vmatprep.subr.bf16.mxu0 %v1933
  %2038 = vmatpush1.bf16.msra.mxu0 %v1932
  %2039 = vmatprep.subr.bf16.mxu0 %v1935
  %2040 = vmatpush1.bf16.msra.mxu0 %v1934
  %2041 = vmatprep.subr.bf16.mxu0 %v1937
  %2042 = vmatpush1.bf16.msra.mxu0 %v1936
  %2043 = vmatprep.subr.bf16.mxu0 0
  %2044 = vmatpush1.bf16.msra.mxu0 0
  %2045 = vmatprep.subr.bf16.mxu0 0
  %2046 = vmatpush1.bf16.msra.mxu0 0
  %2047 = vmatprep.subr.bf16.mxu0 0
  %2048 = vmatpush1.bf16.msra.mxu0 0
  %2049 = vmatprep.subr.bf16.mxu0 0
  %2050 = vmatpush1.bf16.msra.mxu0 0
  %2051 = vmatprep.subr.bf16.mxu0 0
  %2052 = vmatpush1.bf16.msra.mxu0 0
  %2053 = vmatprep.subr.bf16.mxu0 0
  %2054 = vmatpush1.bf16.msra.mxu0 0
  %2055 = vmatprep.subr.bf16.mxu0 0
  %2056 = vmatpush1.bf16.msra.mxu0 0
  %2057 = vmatprep.subr.bf16.mxu0 0
  %2058 = vmatpush1.bf16.msra.mxu0 0
  %2059 = vmatprep.mubr.bf16.mxu0 0
  %2060 = vmatmul.mubr.bf16.gmra.mrb[0].mxu0 %v1685
  %v2061 = vpop.f32.mrb[0].mxu0
  %v2062 = vadd.f32 %v2021, %v2061
  %v2063 = vpop.f32.mrb[0].mxu0
  %v2064 = vadd.f32 %v2023, %v2063
  %v2065 = vpop.f32.mrb[0].mxu0
  %v2066 = vpop.f32.mrb[0].mxu0
  %2067 = vdwg.mxu0
  %v2068 = vmax.f32 %v2062, 0.0
  %v2069 = vmax.f32 %v2064, 0.0
  %v2070 = vpack.c.bf16 %v2068, %v2068
  %v2071 = vpack.c.bf16 %v2069, %v2069
  %v2072 = vld [vmem:[%s5] sm:$0xf]
  %v2073 = vld [vmem:[%s5 + $0x4] sm:$0xf]
  %v2074 = vld [vmem:[%s5 + $0x8] sm:$0xf]
  %v2075 = vld [vmem:[%s5 + $0xc] sm:$0xf]
  %v2076 = vld [vmem:[%s5 + $0x10] sm:$0xf]
  %v2077 = vld [vmem:[%s5 + $0x14] sm:$0xf]
  %v2078 = vld [vmem:[%s5 + $0x18] sm:$0xf]
  %v2079 = vld [vmem:[%s5 + $0x1c] sm:$0xf]
  %v2080 = vld [vmem:[%s5 + $0x20] sm:$0xf]
  %v2081 = vld [vmem:[%s5 + $0x24] sm:$0xf]
  %v2082 = vld [vmem:[%s5 + $0x28] sm:$0xf]
  %v2083 = vld [vmem:[%s5 + $0x2c] sm:$0xf]
  %v2084 = vld [vmem:[%s5 + $0x30] sm:$0xf]
  %v2085 = vld [vmem:[%s5 + $0x34] sm:$0xf]
  %v2086 = vld [vmem:[%s5 + $0x38] sm:$0xf]
  %v2087 = vld [vmem:[%s5 + $0x3c] sm:$0xf]
  %v2088 = vld [vmem:[%s5 + $0x40] sm:$0xf]
  %v2089 = vld [vmem:[%s5 + $0x44] sm:$0xf]
  %v2090 = vld [vmem:[%s5 + $0x48] sm:$0xf]
  %v2091 = vld [vmem:[%s5 + $0x4c] sm:$0xf]
  %v2092 = vld [vmem:[%s5 + $0x50] sm:$0xf]
  %v2093 = vld [vmem:[%s5 + $0x54] sm:$0xf]
  %v2094 = vld [vmem:[%s5 + $0x58] sm:$0xf]
  %v2095 = vld [vmem:[%s5 + $0x5c] sm:$0xf]
  %v2096 = vld [vmem:[%s6] sm:$0x1]
  %v2098 = vlaneseq
  %v2099 = vshrl.u32 %v2098, 7
  %v2100 = vsub.s32 0, %v2099
  %v2101 = vrot.slane %v2096, %v2100
  %v2127 = vunpack.c.l.b16 %v2072
  %v2128 = vunpack.c.l.b16 %v2073
  %v2129 = vunpack.c.l.b16 %v2074
  %v2130 = vunpack.c.l.b16 %v2075
  %v2131 = vunpack.c.l.b16 %v2076
  %v2132 = vunpack.c.l.b16 %v2077
  %v2133 = vunpack.c.l.b16 %v2078
  %v2134 = vunpack.c.l.b16 %v2079
  %v2135 = vunpack.c.l.b16 %v2080
  %v2136 = vunpack.c.l.b16 %v2081
  %v2137 = vunpack.c.l.b16 %v2082
  %v2138 = vunpack.c.l.b16 %v2083
  %v2139 = vunpack.c.l.b16 %v2084
  %v2140 = vunpack.c.l.b16 %v2085
  %v2141 = vunpack.c.l.b16 %v2086
  %v2142 = vunpack.c.l.b16 %v2087
  %v2143 = vunpack.c.l.b16 %v2088
  %v2144 = vunpack.c.l.b16 %v2089
  %v2145 = vunpack.c.l.b16 %v2090
  %v2146 = vunpack.c.l.b16 %v2091
  %v2147 = vunpack.c.l.b16 %v2092
  %v2148 = vunpack.c.l.b16 %v2093
  %v2149 = vunpack.c.l.b16 %v2094
  %v2150 = vunpack.c.l.b16 %v2095
  %v2151 = vpack.c.b16 %v2128, %v2127
  %v2152 = vpack.c.b16 %v2130, %v2129
  %v2153 = vpack.c.b16 %v2132, %v2131
  %v2154 = vpack.c.b16 %v2134, %v2133
  %v2155 = vpack.c.b16 %v2136, %v2135
  %v2156 = vpack.c.b16 %v2138, %v2137
  %v2157 = vpack.c.b16 %v2140, %v2139
  %v2158 = vpack.c.b16 %v2142, %v2141
  %v2159 = vpack.c.b16 %v2144, %v2143
  %v2160 = vpack.c.b16 %v2146, %v2145
  %v2161 = vpack.c.b16 %v2148, %v2147
  %v2162 = vpack.c.b16 %v2150, %v2149
  %vm2175 = vcmask 523264
  %v2177 = vsel %vm2175, %v2071, 0
  %2179 = vmatprep.subr.bf16.mxu0 0
  %2180 = vmatpush1.bf16.msra.mxu0 %v2151
  %2181 = vmatprep.subr.bf16.mxu0 0
  %2182 = vmatpush1.bf16.msra.mxu0 %v2152
  %2183 = vmatprep.subr.bf16.mxu0 0
  %2184 = vmatpush1.bf16.msra.mxu0 %v2153
  %2185 = vmatprep.subr.bf16.mxu0 0
  %2186 = vmatpush1.bf16.msra.mxu0 %v2154
  %2187 = vmatprep.subr.bf16.mxu0 0
  %2188 = vmatpush1.bf16.msra.mxu0 %v2155
  %2189 = vmatprep.subr.bf16.mxu0 0
  %2190 = vmatpush1.bf16.msra.mxu0 %v2156
  %2191 = vmatprep.subr.bf16.mxu0 0
  %2192 = vmatpush1.bf16.msra.mxu0 %v2157
  %2193 = vmatprep.subr.bf16.mxu0 0
  %2194 = vmatpush1.bf16.msra.mxu0 %v2158
  %2195 = vmatprep.subr.bf16.mxu0 0
  %2196 = vmatpush1.bf16.msra.mxu0 %v2159
  %2197 = vmatprep.subr.bf16.mxu0 0
  %2198 = vmatpush1.bf16.msra.mxu0 %v2160
  %2199 = vmatprep.subr.bf16.mxu0 0
  %2200 = vmatpush1.bf16.msra.mxu0 %v2161
  %2201 = vmatprep.subr.bf16.mxu0 0
  %2202 = vmatpush1.bf16.msra.mxu0 %v2162
  %2203 = vmatprep.subr.bf16.mxu0 0
  %2204 = vmatpush1.bf16.msra.mxu0 0
  %2205 = vmatprep.subr.bf16.mxu0 0
  %2206 = vmatpush1.bf16.msra.mxu0 0
  %2207 = vmatprep.subr.bf16.mxu0 0
  %2208 = vmatpush1.bf16.msra.mxu0 0
  %2209 = vmatprep.subr.bf16.mxu0 0
  %2210 = vmatpush1.bf16.msra.mxu0 0
  %2211 = vmatprep.mubr.bf16.mxu0 %v2177
  %2212 = vmatmul.mubr.bf16.gmra.mrb[0].mxu0 %v2070
  %v2213 = vpop.f32.mrb[0].mxu0
  %v2214 = vadd.f32 %v2101, %v2213
  %v2215 = vpop.f32.mrb[0].mxu0
  %v2216 = vpop.f32.mrb[0].mxu0
  %v2217 = vpop.f32.mrb[0].mxu0
  %2218 = vdwg.mxu0
  %vm2219 = vcmask 80896
  %v2220 = vsel %vm2219, %v2214, -inf
  %2221 = vmax.xlane.f32.xlu0 %v2220
  %v2222 = vpop.xlane.xlu0 %2221
  %v2223 = vsub.f32 %v2214, %v2222
  %v2224 = vmul.f32 %v2223, 1.442695
  %v2225 = vpow.pop %v2224
  %v2226 = vsel %vm2219, %v2225, 0.0
  %2227 = vadd.xlane.f32.xlu0 %v2226
  %v2228 = vpop.xlane.xlu0 %2227
  %v2229 = vlog2.pop %v2228
  %v2230 = vmul.f32 %v2229, 0.6931472
  %v2231 = vsub.f32 %v2223, %v2230
  %2232 = vst.msk [vmem:[%s7] sm:$0xff] %vm2219, %v2231
  // Predicated region
  $region30: #{cnn_cifar_forward.5} parent=0 // pred_check
    _
  $region31: #{cnn_cifar_forward.5} parent=0 // pred_check_branch
    %2234 = sbr.rel (0) target = $region33
  $region32: #{cnn_cifar_forward.5} parent=0 // pred_region
    _
  $region33: #{cnn_cifar_forward.5} parent=0 // pred_fallthru
    _
  // Predicated region
  $region34: #{cnn_cifar_forward.5} parent=0 // pred_check
    _
  $region35: #{cnn_cifar_forward.5} parent=0 // pred_check_branch
    %2236 = sbr.rel (0) target = $region37
  $region36: #{cnn_cifar_forward.5} parent=0 // pred_region
    _
  $region37: #{cnn_cifar_forward.5} parent=0 // pred_fallthru
    _

</llo_original>
